<compile_context>
chip_gen: v7x
topology: tpu7x:2x2x1
jax: 0.10.0
libtpu: 0.0.40
codegen_flags: <defaults>
</compile_context>

<pallas_src>
import math

import numpy as np
import jax
import jax.numpy as jnp
from jax.experimental import pallas as pl
from jax.experimental.pallas import tpu as pltpu

# ----------------------------- configuration ------------------------------
BATCH = 2
NUM_PTS = 64
DEGREE_RES = 30
NUM_ROT = int(math.ceil(360 / DEGREE_RES))              # 12
PIXEL_SIZE = 0.0625
INV_PIX = 1.0 / PIXEL_SIZE                              # 16.0 (exact power of two)
IM_SIZE_METERS = (4.0, 4.0)
IM_SIZE = (int(IM_SIZE_METERS[0] / PIXEL_SIZE),
           int(IM_SIZE_METERS[1] / PIXEL_SIZE))          # (64, 64)
HALF = IM_SIZE_METERS[0] / 2.0                           # torch uses im_size_meters[0] for both coords
OCCUPANCY = True                                         # cfg.RCNN.ROT_CONFIG.OCCUPANCY assumed True

_angles = np.radians([i * DEGREE_RES for i in range(NUM_ROT)])
COS = [float(c) for c in np.cos(_angles)]                # baked-in scalar constants
SIN = [float(s) for s in np.sin(_angles)]


# ------------------------------- kernel ------------------------------------
def _rot_proj_kernel(xyz_ref, img_ref):
    """One batch element: rotate about y, project to BEV grid, rasterize occupancy.

    xyz_ref: (1, N, 3) points (points on sublanes, xyz coords on lanes)
    img_ref: (1, H, NUM_ROT*W) lane-dense occupancy slab; column c = m*W + w
    """
    pts = xyz_ref[0]                                     # (N, 3)
    n = pts.shape[0]
    x = pts[:, 0:1]                                      # (N, 1)
    y = pts[:, 1:2]                                      # (N, 1)
    z = pts[:, 2:3]                                      # (N, 1)

    # Row (height) index: y is unchanged by a rotation about the y axis.
    py0 = jnp.round((y + HALF) * INV_PIX).astype(jnp.int32)        # (N, 1)
    # NOTE: bound ordering mirrors the PyTorch module exactly (proj[...,0] vs
    # im_size[0], proj[...,1] vs im_size[1]); benign because IM_SIZE is square.
    py_ok = (py0 >= 0) & (py0 < IM_SIZE[1])

    row_parts = []
    col_parts = []
    for m in range(NUM_ROT):                             # unrolled at trace time
        c, s = COS[m], SIN[m]
        # R = [[c,0,-s],[0,1,0],[s,0,c]] => x' = c*x - s*z
        xr = c * x - s * z                               # (N, 1)
        px = jnp.round((xr + HALF) * INV_PIX).astype(jnp.int32)    # column index
        ok = py_ok & (px >= 0) & (px < IM_SIZE[0])
        # torch zeroes out-of-range coords and still scatters (-> pixel (0, 0)).
        row_parts.append(jnp.where(ok, py0, 0))
        col_parts.append(jnp.where(ok, px, 0) + m * IM_SIZE[1])    # combined m*W + px

    p = NUM_ROT * n
    rows = jnp.concatenate(row_parts, axis=0)            # (P, 1) int32, P = M*N
    cols = jnp.concatenate(col_parts, axis=0)            # (P, 1) int32

    h_iota = jax.lax.broadcasted_iota(jnp.int32, (p, IM_SIZE[0]), 1)
    c_iota = jax.lax.broadcasted_iota(jnp.int32, (p, NUM_ROT * IM_SIZE[1]), 1)
    # bf16 one-hots: counts <= NUM_PTS = 64, so bf16 operands with f32
    # accumulation are exact; compare stays in int32 (v5e has no bf16 VALU).
    a_oh = (rows == h_iota).astype(jnp.bfloat16)         # (P, H)
    b_oh = (cols == c_iota).astype(jnp.bfloat16)         # (P, M*W)

    # counts[h, m*W + w] = number of points of rotation m that hit pixel (h, w).
    counts = jax.lax.dot_general(
        a_oh, b_oh,
        dimension_numbers=(((0,), (0,)), ((), ())),      # A^T @ B, contract over points
        preferred_element_type=jnp.float32)              # (H, M*W) = (64, 768)

    # OCCUPANCY=True: any hit -> 1.0 (duplicate writes of 1 are idempotent, as in torch).
    img_ref[0] = (counts > 0.0).astype(jnp.float32)
    # TODO(synk): cfg.RCNN.ROT_CONFIG.OCCUPANCY == False branch (write z'/10 with
    # last-write-wins duplicate-pixel semantics) has no clean matmul form; occupancy assumed.


# ------------------------------- wrapper ------------------------------------
def rot_proj_forward(xyz):
    """xyz: (B, N, 3) float32 -> image: (B, NUM_ROT, H, W) float32."""
    b, n, _ = xyz.shape
    mw = NUM_ROT * IM_SIZE[1]
    flat = pl.pallas_call(
        _rot_proj_kernel,
        out_shape=jax.ShapeDtypeStruct((b, IM_SIZE[0], mw), jnp.float32),
        grid=(b,),
        in_specs=[pl.BlockSpec((1, n, 3), lambda i: (i, 0, 0))],
        out_specs=pl.BlockSpec((1, IM_SIZE[0], mw), lambda i: (i, 0, 0)),
        compiler_params=pltpu.CompilerParams(dimension_semantics=("parallel",)),
    )(xyz)
    # (B, H, M*W) -> (B, M, H, W): cheap XLA relayout outside the kernel.
    return jnp.transpose(flat.reshape(b, IM_SIZE[0], NUM_ROT, IM_SIZE[1]), (0, 2, 1, 3))


# --------------------------- pure-JAX reference ------------------------------
def rot_proj_ref(xyz):
    """Mirror of the PyTorch forward (OCCUPANCY=True), using an explicit scatter."""
    b = xyz.shape[0]
    x, y, z = xyz[..., 0], xyz[..., 1], xyz[..., 2]                 # (B, N)
    c = jnp.asarray(np.cos(_angles), jnp.float32).reshape(1, NUM_ROT, 1)
    s = jnp.asarray(np.sin(_angles), jnp.float32).reshape(1, NUM_ROT, 1)
    xr = c * x[:, None, :] - s * z[:, None, :]                      # (B, M, N)
    yr = jnp.broadcast_to(y[:, None, :], xr.shape)
    px = jnp.round((xr + HALF) * INV_PIX).astype(jnp.int32)
    py = jnp.round((yr + HALF) * INV_PIX).astype(jnp.int32)
    mask = (px >= 0) & (px < IM_SIZE[0]) & (py >= 0) & (py < IM_SIZE[1])
    px = jnp.where(mask, px, 0)
    py = jnp.where(mask, py, 0)
    img = jnp.zeros((b, NUM_ROT, IM_SIZE[0], IM_SIZE[1]), jnp.float32)
    bi = jnp.arange(b)[:, None, None]
    mi = jnp.arange(NUM_ROT)[None, :, None]
    return img.at[bi, mi, py, px].set(1.0)


# --------------------------------- main --------------------------------------
if __name__ == "__main__":
    key = jax.random.PRNGKey(0)
    xyz = 1.5 * jax.random.normal(key, (BATCH, NUM_PTS, 3), dtype=jnp.float32)

    fwd = jax.jit(rot_proj_forward)
    out = fwd(xyz)
    jax.block_until_ready(out)

    assert out.shape == (BATCH, NUM_ROT, IM_SIZE[0], IM_SIZE[1])
    assert bool(jnp.all(jnp.isfinite(out)))
    assert bool(jnp.all((out == 0.0) | (out == 1.0)))

    ref = rot_proj_ref(xyz)
    assert bool(jnp.array_equal(out, ref)), "Pallas kernel mismatch vs pure-JAX reference"

    print("KERNEL_OK")
</pallas_src>

<mosaic_0001>
module attributes {stable_mosaic.version = 11 : i64} {
  func.func @_rot_proj_kernel(%arg0: i32, %arg1: memref<1x64x3xf32, #tpu.memory_space<vmem>>, %arg2: memref<1x64x768xf32, #tpu.memory_space<vmem>>) attributes {dimension_semantics = [#tpu.dimension_semantics<parallel>], iteration_bounds = array<i64: 2>, scalar_prefetch = 0 : i64, scratch_operands = 0 : i64, tpu.core_type = #tpu.core_type<tc>, window_params = [{transform_indices = @transform_0, window_bounds = array<i64: 1, 64, 3>}, {transform_indices = @transform_1, window_bounds = array<i64: 1, 64, 768>}]} {
    %c0 = arith.constant 0 : index
    %c0_0 = arith.constant 0 : index
    %c0_1 = arith.constant 0 : index
    %0 = vector.load %arg1[%c0, %c0_0, %c0_1] : memref<1x64x3xf32, #tpu.memory_space<vmem>>, vector<1x64x3xf32>
    %1 = vector.shape_cast %0 : vector<1x64x3xf32> to vector<64x3xf32>
    %2 = vector.extract_strided_slice %1 {offsets = [0, 0], sizes = [64, 1], strides = [1, 1]} : vector<64x3xf32> to vector<64x1xf32>
    %3 = vector.extract_strided_slice %1 {offsets = [0, 1], sizes = [64, 1], strides = [1, 1]} : vector<64x3xf32> to vector<64x1xf32>
    %4 = vector.extract_strided_slice %1 {offsets = [0, 2], sizes = [64, 1], strides = [1, 1]} : vector<64x3xf32> to vector<64x1xf32>
    %cst = arith.constant 2.000000e+00 : f32
    %5 = vector.broadcast %cst : f32 to vector<64x1xf32>
    %6 = arith.addf %3, %5 : vector<64x1xf32>
    %cst_2 = arith.constant 1.600000e+01 : f32
    %7 = vector.broadcast %cst_2 : f32 to vector<64x1xf32>
    %8 = arith.mulf %6, %7 : vector<64x1xf32>
    %9 = math.roundeven %8 : vector<64x1xf32>
    %10 = arith.fptosi %9 : vector<64x1xf32> to vector<64x1xi32>
    %c0_i32 = arith.constant 0 : i32
    %11 = vector.broadcast %c0_i32 : i32 to vector<64x1xi32>
    %12 = arith.cmpi sge, %10, %11 : vector<64x1xi32>
    %c64_i32 = arith.constant 64 : i32
    %13 = vector.broadcast %c64_i32 : i32 to vector<64x1xi32>
    %14 = arith.cmpi slt, %10, %13 : vector<64x1xi32>
    %15 = arith.andi %12, %14 : vector<64x1xi1>
    %cst_3 = arith.constant 1.000000e+00 : f32
    %16 = vector.broadcast %cst_3 : f32 to vector<64x1xf32>
    %17 = arith.mulf %16, %2 : vector<64x1xf32>
    %cst_4 = arith.constant 0.000000e+00 : f32
    %18 = vector.broadcast %cst_4 : f32 to vector<64x1xf32>
    %19 = arith.mulf %18, %4 : vector<64x1xf32>
    %20 = arith.subf %17, %19 : vector<64x1xf32>
    %cst_5 = arith.constant 2.000000e+00 : f32
    %21 = vector.broadcast %cst_5 : f32 to vector<64x1xf32>
    %22 = arith.addf %20, %21 : vector<64x1xf32>
    %cst_6 = arith.constant 1.600000e+01 : f32
    %23 = vector.broadcast %cst_6 : f32 to vector<64x1xf32>
    %24 = arith.mulf %22, %23 : vector<64x1xf32>
    %25 = math.roundeven %24 : vector<64x1xf32>
    %26 = arith.fptosi %25 : vector<64x1xf32> to vector<64x1xi32>
    %c0_i32_7 = arith.constant 0 : i32
    %27 = vector.broadcast %c0_i32_7 : i32 to vector<64x1xi32>
    %28 = arith.cmpi sge, %26, %27 : vector<64x1xi32>
    %29 = arith.andi %15, %28 : vector<64x1xi1>
    %c64_i32_8 = arith.constant 64 : i32
    %30 = vector.broadcast %c64_i32_8 : i32 to vector<64x1xi32>
    %31 = arith.cmpi slt, %26, %30 : vector<64x1xi32>
    %32 = arith.andi %29, %31 : vector<64x1xi1>
    %c0_i32_9 = arith.constant 0 : i32
    %33 = vector.broadcast %c0_i32_9 : i32 to vector<64x1xi32>
    %34 = arith.select %32, %10, %33 : vector<64x1xi1>, vector<64x1xi32>
    %c0_i32_10 = arith.constant 0 : i32
    %35 = vector.broadcast %c0_i32_10 : i32 to vector<64x1xi32>
    %36 = arith.select %32, %26, %35 : vector<64x1xi1>, vector<64x1xi32>
    %c0_i32_11 = arith.constant 0 : i32
    %37 = vector.broadcast %c0_i32_11 : i32 to vector<64x1xi32>
    %38 = arith.addi %36, %37 : vector<64x1xi32>
    %cst_12 = arith.constant 0.866025388 : f32
    %39 = vector.broadcast %cst_12 : f32 to vector<64x1xf32>
    %40 = arith.mulf %39, %2 : vector<64x1xf32>
    %cst_13 = arith.constant 5.000000e-01 : f32
    %41 = vector.broadcast %cst_13 : f32 to vector<64x1xf32>
    %42 = arith.mulf %41, %4 : vector<64x1xf32>
    %43 = arith.subf %40, %42 : vector<64x1xf32>
    %cst_14 = arith.constant 2.000000e+00 : f32
    %44 = vector.broadcast %cst_14 : f32 to vector<64x1xf32>
    %45 = arith.addf %43, %44 : vector<64x1xf32>
    %cst_15 = arith.constant 1.600000e+01 : f32
    %46 = vector.broadcast %cst_15 : f32 to vector<64x1xf32>
    %47 = arith.mulf %45, %46 : vector<64x1xf32>
    %48 = math.roundeven %47 : vector<64x1xf32>
    %49 = arith.fptosi %48 : vector<64x1xf32> to vector<64x1xi32>
    %c0_i32_16 = arith.constant 0 : i32
    %50 = vector.broadcast %c0_i32_16 : i32 to vector<64x1xi32>
    %51 = arith.cmpi sge, %49, %50 : vector<64x1xi32>
    %52 = arith.andi %15, %51 : vector<64x1xi1>
    %c64_i32_17 = arith.constant 64 : i32
    %53 = vector.broadcast %c64_i32_17 : i32 to vector<64x1xi32>
    %54 = arith.cmpi slt, %49, %53 : vector<64x1xi32>
    %55 = arith.andi %52, %54 : vector<64x1xi1>
    %c0_i32_18 = arith.constant 0 : i32
    %56 = vector.broadcast %c0_i32_18 : i32 to vector<64x1xi32>
    %57 = arith.select %55, %10, %56 : vector<64x1xi1>, vector<64x1xi32>
    %c0_i32_19 = arith.constant 0 : i32
    %58 = vector.broadcast %c0_i32_19 : i32 to vector<64x1xi32>
    %59 = arith.select %55, %49, %58 : vector<64x1xi1>, vector<64x1xi32>
    %c64_i32_20 = arith.constant 64 : i32
    %60 = vector.broadcast %c64_i32_20 : i32 to vector<64x1xi32>
    %61 = arith.addi %59, %60 : vector<64x1xi32>
    %cst_21 = arith.constant 5.000000e-01 : f32
    %62 = vector.broadcast %cst_21 : f32 to vector<64x1xf32>
    %63 = arith.mulf %62, %2 : vector<64x1xf32>
    %cst_22 = arith.constant 0.866025388 : f32
    %64 = vector.broadcast %cst_22 : f32 to vector<64x1xf32>
    %65 = arith.mulf %64, %4 : vector<64x1xf32>
    %66 = arith.subf %63, %65 : vector<64x1xf32>
    %cst_23 = arith.constant 2.000000e+00 : f32
    %67 = vector.broadcast %cst_23 : f32 to vector<64x1xf32>
    %68 = arith.addf %66, %67 : vector<64x1xf32>
    %cst_24 = arith.constant 1.600000e+01 : f32
    %69 = vector.broadcast %cst_24 : f32 to vector<64x1xf32>
    %70 = arith.mulf %68, %69 : vector<64x1xf32>
    %71 = math.roundeven %70 : vector<64x1xf32>
    %72 = arith.fptosi %71 : vector<64x1xf32> to vector<64x1xi32>
    %c0_i32_25 = arith.constant 0 : i32
    %73 = vector.broadcast %c0_i32_25 : i32 to vector<64x1xi32>
    %74 = arith.cmpi sge, %72, %73 : vector<64x1xi32>
    %75 = arith.andi %15, %74 : vector<64x1xi1>
    %c64_i32_26 = arith.constant 64 : i32
    %76 = vector.broadcast %c64_i32_26 : i32 to vector<64x1xi32>
    %77 = arith.cmpi slt, %72, %76 : vector<64x1xi32>
    %78 = arith.andi %75, %77 : vector<64x1xi1>
    %c0_i32_27 = arith.constant 0 : i32
    %79 = vector.broadcast %c0_i32_27 : i32 to vector<64x1xi32>
    %80 = arith.select %78, %10, %79 : vector<64x1xi1>, vector<64x1xi32>
    %c0_i32_28 = arith.constant 0 : i32
    %81 = vector.broadcast %c0_i32_28 : i32 to vector<64x1xi32>
    %82 = arith.select %78, %72, %81 : vector<64x1xi1>, vector<64x1xi32>
    %c128_i32 = arith.constant 128 : i32
    %83 = vector.broadcast %c128_i32 : i32 to vector<64x1xi32>
    %84 = arith.addi %82, %83 : vector<64x1xi32>
    %cst_29 = arith.constant 6.12323426E-17 : f32
    %85 = vector.broadcast %cst_29 : f32 to vector<64x1xf32>
    %86 = arith.mulf %85, %2 : vector<64x1xf32>
    %cst_30 = arith.constant 1.000000e+00 : f32
    %87 = vector.broadcast %cst_30 : f32 to vector<64x1xf32>
    %88 = arith.mulf %87, %4 : vector<64x1xf32>
    %89 = arith.subf %86, %88 : vector<64x1xf32>
    %cst_31 = arith.constant 2.000000e+00 : f32
    %90 = vector.broadcast %cst_31 : f32 to vector<64x1xf32>
    %91 = arith.addf %89, %90 : vector<64x1xf32>
    %cst_32 = arith.constant 1.600000e+01 : f32
    %92 = vector.broadcast %cst_32 : f32 to vector<64x1xf32>
    %93 = arith.mulf %91, %92 : vector<64x1xf32>
    %94 = math.roundeven %93 : vector<64x1xf32>
    %95 = arith.fptosi %94 : vector<64x1xf32> to vector<64x1xi32>
    %c0_i32_33 = arith.constant 0 : i32
    %96 = vector.broadcast %c0_i32_33 : i32 to vector<64x1xi32>
    %97 = arith.cmpi sge, %95, %96 : vector<64x1xi32>
    %98 = arith.andi %15, %97 : vector<64x1xi1>
    %c64_i32_34 = arith.constant 64 : i32
    %99 = vector.broadcast %c64_i32_34 : i32 to vector<64x1xi32>
    %100 = arith.cmpi slt, %95, %99 : vector<64x1xi32>
    %101 = arith.andi %98, %100 : vector<64x1xi1>
    %c0_i32_35 = arith.constant 0 : i32
    %102 = vector.broadcast %c0_i32_35 : i32 to vector<64x1xi32>
    %103 = arith.select %101, %10, %102 : vector<64x1xi1>, vector<64x1xi32>
    %c0_i32_36 = arith.constant 0 : i32
    %104 = vector.broadcast %c0_i32_36 : i32 to vector<64x1xi32>
    %105 = arith.select %101, %95, %104 : vector<64x1xi1>, vector<64x1xi32>
    %c192_i32 = arith.constant 192 : i32
    %106 = vector.broadcast %c192_i32 : i32 to vector<64x1xi32>
    %107 = arith.addi %105, %106 : vector<64x1xi32>
    %cst_37 = arith.constant -5.000000e-01 : f32
    %108 = vector.broadcast %cst_37 : f32 to vector<64x1xf32>
    %109 = arith.mulf %108, %2 : vector<64x1xf32>
    %cst_38 = arith.constant 0.866025388 : f32
    %110 = vector.broadcast %cst_38 : f32 to vector<64x1xf32>
    %111 = arith.mulf %110, %4 : vector<64x1xf32>
    %112 = arith.subf %109, %111 : vector<64x1xf32>
    %cst_39 = arith.constant 2.000000e+00 : f32
    %113 = vector.broadcast %cst_39 : f32 to vector<64x1xf32>
    %114 = arith.addf %112, %113 : vector<64x1xf32>
    %cst_40 = arith.constant 1.600000e+01 : f32
    %115 = vector.broadcast %cst_40 : f32 to vector<64x1xf32>
    %116 = arith.mulf %114, %115 : vector<64x1xf32>
    %117 = math.roundeven %116 : vector<64x1xf32>
    %118 = arith.fptosi %117 : vector<64x1xf32> to vector<64x1xi32>
    %c0_i32_41 = arith.constant 0 : i32
    %119 = vector.broadcast %c0_i32_41 : i32 to vector<64x1xi32>
    %120 = arith.cmpi sge, %118, %119 : vector<64x1xi32>
    %121 = arith.andi %15, %120 : vector<64x1xi1>
    %c64_i32_42 = arith.constant 64 : i32
    %122 = vector.broadcast %c64_i32_42 : i32 to vector<64x1xi32>
    %123 = arith.cmpi slt, %118, %122 : vector<64x1xi32>
    %124 = arith.andi %121, %123 : vector<64x1xi1>
    %c0_i32_43 = arith.constant 0 : i32
    %125 = vector.broadcast %c0_i32_43 : i32 to vector<64x1xi32>
    %126 = arith.select %124, %10, %125 : vector<64x1xi1>, vector<64x1xi32>
    %c0_i32_44 = arith.constant 0 : i32
    %127 = vector.broadcast %c0_i32_44 : i32 to vector<64x1xi32>
    %128 = arith.select %124, %118, %127 : vector<64x1xi1>, vector<64x1xi32>
    %c256_i32 = arith.constant 256 : i32
    %129 = vector.broadcast %c256_i32 : i32 to vector<64x1xi32>
    %130 = arith.addi %128, %129 : vector<64x1xi32>
    %cst_45 = arith.constant -0.866025388 : f32
    %131 = vector.broadcast %cst_45 : f32 to vector<64x1xf32>
    %132 = arith.mulf %131, %2 : vector<64x1xf32>
    %cst_46 = arith.constant 5.000000e-01 : f32
    %133 = vector.broadcast %cst_46 : f32 to vector<64x1xf32>
    %134 = arith.mulf %133, %4 : vector<64x1xf32>
    %135 = arith.subf %132, %134 : vector<64x1xf32>
    %cst_47 = arith.constant 2.000000e+00 : f32
    %136 = vector.broadcast %cst_47 : f32 to vector<64x1xf32>
    %137 = arith.addf %135, %136 : vector<64x1xf32>
    %cst_48 = arith.constant 1.600000e+01 : f32
    %138 = vector.broadcast %cst_48 : f32 to vector<64x1xf32>
    %139 = arith.mulf %137, %138 : vector<64x1xf32>
    %140 = math.roundeven %139 : vector<64x1xf32>
    %141 = arith.fptosi %140 : vector<64x1xf32> to vector<64x1xi32>
    %c0_i32_49 = arith.constant 0 : i32
    %142 = vector.broadcast %c0_i32_49 : i32 to vector<64x1xi32>
    %143 = arith.cmpi sge, %141, %142 : vector<64x1xi32>
    %144 = arith.andi %15, %143 : vector<64x1xi1>
    %c64_i32_50 = arith.constant 64 : i32
    %145 = vector.broadcast %c64_i32_50 : i32 to vector<64x1xi32>
    %146 = arith.cmpi slt, %141, %145 : vector<64x1xi32>
    %147 = arith.andi %144, %146 : vector<64x1xi1>
    %c0_i32_51 = arith.constant 0 : i32
    %148 = vector.broadcast %c0_i32_51 : i32 to vector<64x1xi32>
    %149 = arith.select %147, %10, %148 : vector<64x1xi1>, vector<64x1xi32>
    %c0_i32_52 = arith.constant 0 : i32
    %150 = vector.broadcast %c0_i32_52 : i32 to vector<64x1xi32>
    %151 = arith.select %147, %141, %150 : vector<64x1xi1>, vector<64x1xi32>
    %c320_i32 = arith.constant 320 : i32
    %152 = vector.broadcast %c320_i32 : i32 to vector<64x1xi32>
    %153 = arith.addi %151, %152 : vector<64x1xi32>
    %cst_53 = arith.constant -1.000000e+00 : f32
    %154 = vector.broadcast %cst_53 : f32 to vector<64x1xf32>
    %155 = arith.mulf %154, %2 : vector<64x1xf32>
    %cst_54 = arith.constant 1.22464685E-16 : f32
    %156 = vector.broadcast %cst_54 : f32 to vector<64x1xf32>
    %157 = arith.mulf %156, %4 : vector<64x1xf32>
    %158 = arith.subf %155, %157 : vector<64x1xf32>
    %cst_55 = arith.constant 2.000000e+00 : f32
    %159 = vector.broadcast %cst_55 : f32 to vector<64x1xf32>
    %160 = arith.addf %158, %159 : vector<64x1xf32>
    %cst_56 = arith.constant 1.600000e+01 : f32
    %161 = vector.broadcast %cst_56 : f32 to vector<64x1xf32>
    %162 = arith.mulf %160, %161 : vector<64x1xf32>
    %163 = math.roundeven %162 : vector<64x1xf32>
    %164 = arith.fptosi %163 : vector<64x1xf32> to vector<64x1xi32>
    %c0_i32_57 = arith.constant 0 : i32
    %165 = vector.broadcast %c0_i32_57 : i32 to vector<64x1xi32>
    %166 = arith.cmpi sge, %164, %165 : vector<64x1xi32>
    %167 = arith.andi %15, %166 : vector<64x1xi1>
    %c64_i32_58 = arith.constant 64 : i32
    %168 = vector.broadcast %c64_i32_58 : i32 to vector<64x1xi32>
    %169 = arith.cmpi slt, %164, %168 : vector<64x1xi32>
    %170 = arith.andi %167, %169 : vector<64x1xi1>
    %c0_i32_59 = arith.constant 0 : i32
    %171 = vector.broadcast %c0_i32_59 : i32 to vector<64x1xi32>
    %172 = arith.select %170, %10, %171 : vector<64x1xi1>, vector<64x1xi32>
    %c0_i32_60 = arith.constant 0 : i32
    %173 = vector.broadcast %c0_i32_60 : i32 to vector<64x1xi32>
    %174 = arith.select %170, %164, %173 : vector<64x1xi1>, vector<64x1xi32>
    %c384_i32 = arith.constant 384 : i32
    %175 = vector.broadcast %c384_i32 : i32 to vector<64x1xi32>
    %176 = arith.addi %174, %175 : vector<64x1xi32>
    %cst_61 = arith.constant -0.866025388 : f32
    %177 = vector.broadcast %cst_61 : f32 to vector<64x1xf32>
    %178 = arith.mulf %177, %2 : vector<64x1xf32>
    %cst_62 = arith.constant -5.000000e-01 : f32
    %179 = vector.broadcast %cst_62 : f32 to vector<64x1xf32>
    %180 = arith.mulf %179, %4 : vector<64x1xf32>
    %181 = arith.subf %178, %180 : vector<64x1xf32>
    %cst_63 = arith.constant 2.000000e+00 : f32
    %182 = vector.broadcast %cst_63 : f32 to vector<64x1xf32>
    %183 = arith.addf %181, %182 : vector<64x1xf32>
    %cst_64 = arith.constant 1.600000e+01 : f32
    %184 = vector.broadcast %cst_64 : f32 to vector<64x1xf32>
    %185 = arith.mulf %183, %184 : vector<64x1xf32>
    %186 = math.roundeven %185 : vector<64x1xf32>
    %187 = arith.fptosi %186 : vector<64x1xf32> to vector<64x1xi32>
    %c0_i32_65 = arith.constant 0 : i32
    %188 = vector.broadcast %c0_i32_65 : i32 to vector<64x1xi32>
    %189 = arith.cmpi sge, %187, %188 : vector<64x1xi32>
    %190 = arith.andi %15, %189 : vector<64x1xi1>
    %c64_i32_66 = arith.constant 64 : i32
    %191 = vector.broadcast %c64_i32_66 : i32 to vector<64x1xi32>
    %192 = arith.cmpi slt, %187, %191 : vector<64x1xi32>
    %193 = arith.andi %190, %192 : vector<64x1xi1>
    %c0_i32_67 = arith.constant 0 : i32
    %194 = vector.broadcast %c0_i32_67 : i32 to vector<64x1xi32>
    %195 = arith.select %193, %10, %194 : vector<64x1xi1>, vector<64x1xi32>
    %c0_i32_68 = arith.constant 0 : i32
    %196 = vector.broadcast %c0_i32_68 : i32 to vector<64x1xi32>
    %197 = arith.select %193, %187, %196 : vector<64x1xi1>, vector<64x1xi32>
    %c448_i32 = arith.constant 448 : i32
    %198 = vector.broadcast %c448_i32 : i32 to vector<64x1xi32>
    %199 = arith.addi %197, %198 : vector<64x1xi32>
    %cst_69 = arith.constant -5.000000e-01 : f32
    %200 = vector.broadcast %cst_69 : f32 to vector<64x1xf32>
    %201 = arith.mulf %200, %2 : vector<64x1xf32>
    %cst_70 = arith.constant -0.866025388 : f32
    %202 = vector.broadcast %cst_70 : f32 to vector<64x1xf32>
    %203 = arith.mulf %202, %4 : vector<64x1xf32>
    %204 = arith.subf %201, %203 : vector<64x1xf32>
    %cst_71 = arith.constant 2.000000e+00 : f32
    %205 = vector.broadcast %cst_71 : f32 to vector<64x1xf32>
    %206 = arith.addf %204, %205 : vector<64x1xf32>
    %cst_72 = arith.constant 1.600000e+01 : f32
    %207 = vector.broadcast %cst_72 : f32 to vector<64x1xf32>
    %208 = arith.mulf %206, %207 : vector<64x1xf32>
    %209 = math.roundeven %208 : vector<64x1xf32>
    %210 = arith.fptosi %209 : vector<64x1xf32> to vector<64x1xi32>
    %c0_i32_73 = arith.constant 0 : i32
    %211 = vector.broadcast %c0_i32_73 : i32 to vector<64x1xi32>
    %212 = arith.cmpi sge, %210, %211 : vector<64x1xi32>
    %213 = arith.andi %15, %212 : vector<64x1xi1>
    %c64_i32_74 = arith.constant 64 : i32
    %214 = vector.broadcast %c64_i32_74 : i32 to vector<64x1xi32>
    %215 = arith.cmpi slt, %210, %214 : vector<64x1xi32>
    %216 = arith.andi %213, %215 : vector<64x1xi1>
    %c0_i32_75 = arith.constant 0 : i32
    %217 = vector.broadcast %c0_i32_75 : i32 to vector<64x1xi32>
    %218 = arith.select %216, %10, %217 : vector<64x1xi1>, vector<64x1xi32>
    %c0_i32_76 = arith.constant 0 : i32
    %219 = vector.broadcast %c0_i32_76 : i32 to vector<64x1xi32>
    %220 = arith.select %216, %210, %219 : vector<64x1xi1>, vector<64x1xi32>
    %c512_i32 = arith.constant 512 : i32
    %221 = vector.broadcast %c512_i32 : i32 to vector<64x1xi32>
    %222 = arith.addi %220, %221 : vector<64x1xi32>
    %cst_77 = arith.constant -1.83697015E-16 : f32
    %223 = vector.broadcast %cst_77 : f32 to vector<64x1xf32>
    %224 = arith.mulf %223, %2 : vector<64x1xf32>
    %cst_78 = arith.constant -1.000000e+00 : f32
    %225 = vector.broadcast %cst_78 : f32 to vector<64x1xf32>
    %226 = arith.mulf %225, %4 : vector<64x1xf32>
    %227 = arith.subf %224, %226 : vector<64x1xf32>
    %cst_79 = arith.constant 2.000000e+00 : f32
    %228 = vector.broadcast %cst_79 : f32 to vector<64x1xf32>
    %229 = arith.addf %227, %228 : vector<64x1xf32>
    %cst_80 = arith.constant 1.600000e+01 : f32
    %230 = vector.broadcast %cst_80 : f32 to vector<64x1xf32>
    %231 = arith.mulf %229, %230 : vector<64x1xf32>
    %232 = math.roundeven %231 : vector<64x1xf32>
    %233 = arith.fptosi %232 : vector<64x1xf32> to vector<64x1xi32>
    %c0_i32_81 = arith.constant 0 : i32
    %234 = vector.broadcast %c0_i32_81 : i32 to vector<64x1xi32>
    %235 = arith.cmpi sge, %233, %234 : vector<64x1xi32>
    %236 = arith.andi %15, %235 : vector<64x1xi1>
    %c64_i32_82 = arith.constant 64 : i32
    %237 = vector.broadcast %c64_i32_82 : i32 to vector<64x1xi32>
    %238 = arith.cmpi slt, %233, %237 : vector<64x1xi32>
    %239 = arith.andi %236, %238 : vector<64x1xi1>
    %c0_i32_83 = arith.constant 0 : i32
    %240 = vector.broadcast %c0_i32_83 : i32 to vector<64x1xi32>
    %241 = arith.select %239, %10, %240 : vector<64x1xi1>, vector<64x1xi32>
    %c0_i32_84 = arith.constant 0 : i32
    %242 = vector.broadcast %c0_i32_84 : i32 to vector<64x1xi32>
    %243 = arith.select %239, %233, %242 : vector<64x1xi1>, vector<64x1xi32>
    %c576_i32 = arith.constant 576 : i32
    %244 = vector.broadcast %c576_i32 : i32 to vector<64x1xi32>
    %245 = arith.addi %243, %244 : vector<64x1xi32>
    %cst_85 = arith.constant 5.000000e-01 : f32
    %246 = vector.broadcast %cst_85 : f32 to vector<64x1xf32>
    %247 = arith.mulf %246, %2 : vector<64x1xf32>
    %cst_86 = arith.constant -0.866025388 : f32
    %248 = vector.broadcast %cst_86 : f32 to vector<64x1xf32>
    %249 = arith.mulf %248, %4 : vector<64x1xf32>
    %250 = arith.subf %247, %249 : vector<64x1xf32>
    %cst_87 = arith.constant 2.000000e+00 : f32
    %251 = vector.broadcast %cst_87 : f32 to vector<64x1xf32>
    %252 = arith.addf %250, %251 : vector<64x1xf32>
    %cst_88 = arith.constant 1.600000e+01 : f32
    %253 = vector.broadcast %cst_88 : f32 to vector<64x1xf32>
    %254 = arith.mulf %252, %253 : vector<64x1xf32>
    %255 = math.roundeven %254 : vector<64x1xf32>
    %256 = arith.fptosi %255 : vector<64x1xf32> to vector<64x1xi32>
    %c0_i32_89 = arith.constant 0 : i32
    %257 = vector.broadcast %c0_i32_89 : i32 to vector<64x1xi32>
    %258 = arith.cmpi sge, %256, %257 : vector<64x1xi32>
    %259 = arith.andi %15, %258 : vector<64x1xi1>
    %c64_i32_90 = arith.constant 64 : i32
    %260 = vector.broadcast %c64_i32_90 : i32 to vector<64x1xi32>
    %261 = arith.cmpi slt, %256, %260 : vector<64x1xi32>
    %262 = arith.andi %259, %261 : vector<64x1xi1>
    %c0_i32_91 = arith.constant 0 : i32
    %263 = vector.broadcast %c0_i32_91 : i32 to vector<64x1xi32>
    %264 = arith.select %262, %10, %263 : vector<64x1xi1>, vector<64x1xi32>
    %c0_i32_92 = arith.constant 0 : i32
    %265 = vector.broadcast %c0_i32_92 : i32 to vector<64x1xi32>
    %266 = arith.select %262, %256, %265 : vector<64x1xi1>, vector<64x1xi32>
    %c640_i32 = arith.constant 640 : i32
    %267 = vector.broadcast %c640_i32 : i32 to vector<64x1xi32>
    %268 = arith.addi %266, %267 : vector<64x1xi32>
    %cst_93 = arith.constant 0.866025388 : f32
    %269 = vector.broadcast %cst_93 : f32 to vector<64x1xf32>
    %270 = arith.mulf %269, %2 : vector<64x1xf32>
    %cst_94 = arith.constant -5.000000e-01 : f32
    %271 = vector.broadcast %cst_94 : f32 to vector<64x1xf32>
    %272 = arith.mulf %271, %4 : vector<64x1xf32>
    %273 = arith.subf %270, %272 : vector<64x1xf32>
    %cst_95 = arith.constant 2.000000e+00 : f32
    %274 = vector.broadcast %cst_95 : f32 to vector<64x1xf32>
    %275 = arith.addf %273, %274 : vector<64x1xf32>
    %cst_96 = arith.constant 1.600000e+01 : f32
    %276 = vector.broadcast %cst_96 : f32 to vector<64x1xf32>
    %277 = arith.mulf %275, %276 : vector<64x1xf32>
    %278 = math.roundeven %277 : vector<64x1xf32>
    %279 = arith.fptosi %278 : vector<64x1xf32> to vector<64x1xi32>
    %c0_i32_97 = arith.constant 0 : i32
    %280 = vector.broadcast %c0_i32_97 : i32 to vector<64x1xi32>
    %281 = arith.cmpi sge, %279, %280 : vector<64x1xi32>
    %282 = arith.andi %15, %281 : vector<64x1xi1>
    %c64_i32_98 = arith.constant 64 : i32
    %283 = vector.broadcast %c64_i32_98 : i32 to vector<64x1xi32>
    %284 = arith.cmpi slt, %279, %283 : vector<64x1xi32>
    %285 = arith.andi %282, %284 : vector<64x1xi1>
    %c0_i32_99 = arith.constant 0 : i32
    %286 = vector.broadcast %c0_i32_99 : i32 to vector<64x1xi32>
    %287 = arith.select %285, %10, %286 : vector<64x1xi1>, vector<64x1xi32>
    %c0_i32_100 = arith.constant 0 : i32
    %288 = vector.broadcast %c0_i32_100 : i32 to vector<64x1xi32>
    %289 = arith.select %285, %279, %288 : vector<64x1xi1>, vector<64x1xi32>
    %c704_i32 = arith.constant 704 : i32
    %290 = vector.broadcast %c704_i32 : i32 to vector<64x1xi32>
    %291 = arith.addi %289, %290 : vector<64x1xi32>
    %292 = tpu.concatenate %34, %57, %80, %103, %126, %149, %172, %195, %218, %241, %264, %287 in 0 : vector<64x1xi32>, vector<64x1xi32>, vector<64x1xi32>, vector<64x1xi32>, vector<64x1xi32>, vector<64x1xi32>, vector<64x1xi32>, vector<64x1xi32>, vector<64x1xi32>, vector<64x1xi32>, vector<64x1xi32>, vector<64x1xi32> -> vector<768x1xi32>
    %293 = tpu.concatenate %38, %61, %84, %107, %130, %153, %176, %199, %222, %245, %268, %291 in 0 : vector<64x1xi32>, vector<64x1xi32>, vector<64x1xi32>, vector<64x1xi32>, vector<64x1xi32>, vector<64x1xi32>, vector<64x1xi32>, vector<64x1xi32>, vector<64x1xi32>, vector<64x1xi32>, vector<64x1xi32>, vector<64x1xi32> -> vector<768x1xi32>
    %294 = tpu.iota {dimensions = array<i32: 1>} : vector<768x64xi32>
    %295 = tpu.iota {dimensions = array<i32: 1>} : vector<768x768xi32>
    %296 = vector.broadcast %292 : vector<768x1xi32> to vector<768x64xi32>
    %297 = arith.cmpi eq, %296, %294 : vector<768x64xi32>
    %298 = arith.extui %297 : vector<768x64xi1> to vector<768x64xi32>
    %299 = arith.sitofp %298 : vector<768x64xi32> to vector<768x64xf32>
    %300 = arith.truncf %299 : vector<768x64xf32> to vector<768x64xbf16>
    %301 = vector.broadcast %293 : vector<768x1xi32> to vector<768x768xi32>
    %302 = arith.cmpi eq, %301, %295 : vector<768x768xi32>
    %303 = arith.extui %302 : vector<768x768xi1> to vector<768x768xi32>
    %304 = arith.sitofp %303 : vector<768x768xi32> to vector<768x768xf32>
    %305 = arith.truncf %304 : vector<768x768xf32> to vector<768x768xbf16>
    %cst_101 = arith.constant dense<0.000000e+00> : vector<64x768xf32>
    %306 = tpu.matmul %300, %305, %cst_101 {dimension_numbers = #tpu.dot_dimension_numbers<[0], [0], [1], [1], [0, 1, 1, 1], [], []>} : vector<768x64xbf16>, vector<768x768xbf16>, vector<64x768xf32> -> vector<64x768xf32>
    %cst_102 = arith.constant 0.000000e+00 : f32
    %307 = vector.broadcast %cst_102 : f32 to vector<64x768xf32>
    %308 = arith.cmpf ogt, %306, %307 : vector<64x768xf32>
    %309 = arith.extui %308 : vector<64x768xi1> to vector<64x768xi32>
    %310 = arith.sitofp %309 : vector<64x768xi32> to vector<64x768xf32>
    %c0_103 = arith.constant 0 : index
    %c0_104 = arith.constant 0 : index
    %c0_105 = arith.constant 0 : index
    %311 = vector.load %arg2[%c0_103, %c0_104, %c0_105] : memref<1x64x768xf32, #tpu.memory_space<vmem>>, vector<1x64x768xf32>
    %312 = vector.shape_cast %311 : vector<1x64x768xf32> to vector<64x768xf32>
    %313 = vector.shape_cast %310 : vector<64x768xf32> to vector<1x64x768xf32>
    tpu.vector_store %arg2[%c0_103, %c0_104, %c0_105], %313 {strides = array<i32>} : memref<1x64x768xf32, #tpu.memory_space<vmem>>, vector<1x64x768xf32>,
    return
  }
  func.func @transform_0(%arg0: i32) -> (i32, i32, i32) {
    %c0_i32 = arith.constant 0 : i32
    %c0_i32_0 = arith.constant 0 : i32
    %c0_i32_1 = arith.constant 0 : i32
    return %arg0, %c0_i32, %c0_i32_0 : i32, i32, i32
  }
  func.func @transform_1(%arg0: i32) -> (i32, i32, i32) {
    %c0_i32 = arith.constant 0 : i32
    %c0_i32_0 = arith.constant 0 : i32
    %c0_i32_1 = arith.constant 0 : i32
    return %arg0, %c0_i32, %c0_i32_0 : i32, i32, i32
  }
}

</mosaic_0001>

<llo_original>
// kernel: rot_proj_forward.1
$region0: #{rot_proj_forward.1}
  #allocation0 [shape = 'u32[]', space=smem, size = 0x4, offset = 0x4, fixed_abs, tag = 'smem constant byte address 0x4 - core index']
  #allocation1 [shape = 'u32[144,128]{1,0:T(1,128)}', space=vmem, size = 0x12000, scoped, tag = 'internal scratch']
  %s0 = inlined_call_operand.vmem [shape: f32[2,64,3], index: 0, kind: input, shape index: {}]
  %s1 = inlined_call_operand.vmem [shape: f32[2,64,768], index: 1, kind: output, shape index: {}]
  %s2 = sld [smem:[#allocation0]]
  $region37: #{rot_proj_forward.1} parent=0
    _
  %s4 = ssub.s32 1, %s2
  %s5 = scalar_select 0, %s4, %s2
  loop: start=0, step=1, limit=4
  $region2: #{rot_proj_forward.1} parent=0 // loop_pre_header
    _
  $region3: #{rot_proj_forward.1} parent=0 // loop_header
    %s7 = sphi 0, %s11
    %p8 = scmp.ge.s32.totalorder %s7, 4
    %s17 = sphi 0, %s19
    %s20 = sphi 0, %s17
    %s21 = sphi 0, %s20
    %s37 = sphi 0, %s21
    %s43 = sphi 0, %s45
    %s46 = sphi 0, %s43
    %s47 = sphi 0, %s46
    %s63 = sphi 0, %s47
  $region4: #{rot_proj_forward.1} parent=0 // loop_header_branch
    %10 = sbr.rel (%p8) target = $region8
  $region5: #{rot_proj_forward.1} parent=0 // loop_body
    %s12 = ssub.s32 %s7, 1
    %s13 = ssub.s32 %s7, 2
    %s14 = sadd.s32 %s7, 1
    %s15 = ssub.s32 %s7, %s14
    %p16 = scmp.eq.s32.totalorder %s15, 0
    %s18 = sadd.s32 %s17, 1
    %s19 = scalar_select %p16, %s17, %s18
    %p22 = pneg %p16
    %p23 = scmp.eq.s32.totalorder %s7, 1
    %p24 = por %p22, %p23
    %p25 = scmp.ne.s32.totalorder %s17, %s20
    %p26 = scmp.eq.s32.totalorder %s7, 0
    %p27 = por %p25, %p26
    %p28 = scmp.ne.s32.totalorder %s17, %s20
    %p29 = scmp.eq.s32.totalorder %s12, 1
    %p30 = por %p28, %p29
    %p31 = scmp.ne.s32.totalorder %s20, %s21
    %p32 = scmp.eq.s32.totalorder %s12, 0
    %p33 = por %p31, %p32
    %p34 = scmp.ne.s32.totalorder %s20, %s21
    %p35 = scmp.eq.s32.totalorder %s13, 1
    %p36 = por %p34, %p35
    %p38 = scmp.ne.s32.totalorder %s21, %s37
    %p39 = scmp.eq.s32.totalorder %s13, 0
    %p40 = por %p38, %p39
    %s41 = ssub.s32 %s7, %s14
    %p42 = scmp.eq.s32.totalorder %s41, 0
    %s44 = sadd.s32 %s43, 1
    %s45 = scalar_select %p42, %s43, %s44
    %p48 = pneg %p42
    %p49 = scmp.eq.s32.totalorder %s7, 1
    %p50 = por %p48, %p49
    %p51 = scmp.ne.s32.totalorder %s43, %s46
    %p52 = scmp.eq.s32.totalorder %s7, 0
    %p53 = por %p51, %p52
    %p54 = scmp.ne.s32.totalorder %s43, %s46
    %p55 = scmp.eq.s32.totalorder %s12, 1
    %p56 = por %p54, %p55
    %p57 = scmp.ne.s32.totalorder %s46, %s47
    %p58 = scmp.eq.s32.totalorder %s12, 0
    %p59 = por %p57, %p58
    %p60 = scmp.ne.s32.totalorder %s46, %s47
    %p61 = scmp.eq.s32.totalorder %s13, 1
    %p62 = por %p60, %p61
    %p64 = scmp.ne.s32.totalorder %s47, %s63
    %p65 = scmp.eq.s32.totalorder %s13, 0
    %p66 = por %p64, %p65
    %p67 = scmp.le.s32.totalorder 1, %s7
    %p68 = scmp.lt.s32.totalorder %s7, 3
    %p69 = pnand %p67, %p68
    %p70 = pneg %p69
    // Predicated region
    $region9: #{rot_proj_forward.1} parent=5 // pred_check
      _
    $region10: #{rot_proj_forward.1} parent=5 // pred_check_branch
      %72 = sbr.rel (%p69) target = $region12
    $region11: #{rot_proj_forward.1} parent=5 // pred_region
      %s73 = ssub.s32 %s7, 1
    $region12: #{rot_proj_forward.1} parent=5 // pred_fallthru
      _
    %p74 = scmp.lt.s32.totalorder %s7, 2
    // Predicated region
    $region13: #{rot_proj_forward.1} parent=5 // pred_check
      %p75 = pneg %p74
    $region14: #{rot_proj_forward.1} parent=5 // pred_check_branch
      %77 = sbr.rel (%p75) target = $region16
    $region15: #{rot_proj_forward.1} parent=5 // pred_region
      // Predicated region
      $region17: #{rot_proj_forward.1} parent=15 // pred_check
        %p78 = pneg %p27
      $region18: #{rot_proj_forward.1} parent=15 // pred_check_branch
        %80 = sbr.rel (%p78) target = $region20
      $region19: #{rot_proj_forward.1} parent=15 // pred_region
        %p81 = scmp.lt.s32.totalorder %s7, 1
        %s82 = scalar_select %p81, %s7, 1
        %s83 = smul.addr %s82, 8
        %s84 = smul.addr %s83, 8
        %s85 = scalar_lea.vmem %s0, %s84
      $region20: #{rot_proj_forward.1} parent=15 // pred_fallthru
        _
    $region16: #{rot_proj_forward.1} parent=5 // pred_fallthru
      _
    %p86 = scmp.le.s32.totalorder 1, %s7
    %p87 = scmp.lt.s32.totalorder %s7, 3
    %p88 = pnand %p86, %p87
    %p89 = pneg %p88
    // Predicated region
    $region21: #{rot_proj_forward.1} parent=5 // pred_check
      _
    $region22: #{rot_proj_forward.1} parent=5 // pred_check_branch
      %91 = sbr.rel (%p88) target = $region24
    $region23: #{rot_proj_forward.1} parent=5 // pred_region
      %s92 = ssub.s32 %s7, 1
      %p93 = scmp.lt.s32.totalorder %s12, 1
      %s94 = scalar_select %p93, %s12, 1
      %s95 = smul.addr %s94, 8
      %s96 = smul.addr %s95, 8
      %s97 = scalar_lea.vmem %s0, %s96
      %p98 = pneg %p33
      %p99 = pneg %p30
      %p100 = pneg %p59
      %p101 = pneg %p56
      %p102 = scmp.lt.s32.totalorder %s12, 1
      %s103 = scalar_select %p102, %s12, 1
      %s104 = smul.addr %s103, 48
      %s105 = smul.addr %s104, 8
      %s106 = scalar_lea.vmem %s1, %s105
      %p107 = scmp.lt.s32.totalorder %s12, 1
      %s108 = scalar_select %p107, %s12, 1
      %s109 = smul.addr %s108, 8
      %s110 = smul.addr %s109, 8
      %s111 = scalar_lea.vmem %s0, %s110
      %p112 = scmp.lt.s32.totalorder %s12, 1
      %s113 = scalar_select %p112, %s12, 1
      %s114 = smul.addr %s113, 48
      %s115 = smul.addr %s114, 8
      %s116 = scalar_lea.vmem %s1, %s115
      %v117 = vld [vmem:[%s111] sm:$0xff]
      %v118 = vld [vmem:[%s111 + $0x8] sm:$0xff]
      %v119 = vld [vmem:[%s111 + $0x10] sm:$0xff]
      %v120 = vld [vmem:[%s111 + $0x18] sm:$0xff]
      %v121 = vld [vmem:[%s111 + $0x20] sm:$0xff]
      %v122 = vld [vmem:[%s111 + $0x28] sm:$0xff]
      %v123 = vld [vmem:[%s111 + $0x30] sm:$0xff]
      %v124 = vld [vmem:[%s111 + $0x38] sm:$0xff]
      %v125 = vadd.f32 %v117, 2.0
      %v126 = vadd.f32 %v118, 2.0
      %v127 = vadd.f32 %v119, 2.0
      %v128 = vadd.f32 %v120, 2.0
      %v129 = vadd.f32 %v121, 2.0
      %v130 = vadd.f32 %v122, 2.0
      %v131 = vadd.f32 %v123, 2.0
      %v132 = vadd.f32 %v124, 2.0
      %v133 = vmul.f32 %v125, 16.0
      %v134 = vmul.f32 %v126, 16.0
      %v135 = vmul.f32 %v127, 16.0
      %v136 = vmul.f32 %v128, 16.0
      %v137 = vmul.f32 %v129, 16.0
      %v138 = vmul.f32 %v130, 16.0
      %v139 = vmul.f32 %v131, 16.0
      %v140 = vmul.f32 %v132, 16.0
      %v141 = vcvt.f32.s32.ties.to.even %v133
      %v142 = vcvt.f32.s32.ties.to.even %v134
      %v143 = vcvt.f32.s32.ties.to.even %v135
      %v144 = vcvt.f32.s32.ties.to.even %v136
      %v145 = vcvt.f32.s32.ties.to.even %v137
      %v146 = vcvt.f32.s32.ties.to.even %v138
      %v147 = vcvt.f32.s32.ties.to.even %v139
      %v148 = vcvt.f32.s32.ties.to.even %v140
      %vm149 = vcmp.ge.s32.totalorder %v141, 0
      %vm150 = vcmp.ge.s32.totalorder %v142, 0
      %vm151 = vcmp.ge.s32.totalorder %v143, 0
      %vm152 = vcmp.ge.s32.totalorder %v144, 0
      %vm153 = vcmp.ge.s32.totalorder %v145, 0
      %vm154 = vcmp.ge.s32.totalorder %v146, 0
      %vm155 = vcmp.ge.s32.totalorder %v147, 0
      %vm156 = vcmp.ge.s32.totalorder %v148, 0
      %vm157 = vcmp.lt.s32.totalorder %v141, 64
      %vm158 = vcmp.lt.s32.totalorder %v142, 64
      %vm159 = vcmp.lt.s32.totalorder %v143, 64
      %vm160 = vcmp.lt.s32.totalorder %v144, 64
      %vm161 = vcmp.lt.s32.totalorder %v145, 64
      %vm162 = vcmp.lt.s32.totalorder %v146, 64
      %vm163 = vcmp.lt.s32.totalorder %v147, 64
      %vm164 = vcmp.lt.s32.totalorder %v148, 64
      %vm165 = vmand %vm149, %vm157
      %vm166 = vmand %vm150, %vm158
      %vm167 = vmand %vm151, %vm159
      %vm168 = vmand %vm152, %vm160
      %vm169 = vmand %vm153, %vm161
      %vm170 = vmand %vm154, %vm162
      %vm171 = vmand %vm155, %vm163
      %vm172 = vmand %vm156, %vm164
      %v173 = vmul.f32 %v117, 0.0
      %v174 = vmul.f32 %v118, 0.0
      %v175 = vmul.f32 %v119, 0.0
      %v176 = vmul.f32 %v120, 0.0
      %v177 = vmul.f32 %v121, 0.0
      %v178 = vmul.f32 %v122, 0.0
      %v179 = vmul.f32 %v123, 0.0
      %v180 = vmul.f32 %v124, 0.0
      %189 = vrot.lane.b32.xlu0 %v173, 126
      %v190 = vpop.permute.xlu0 %189
      %191 = vrot.lane.b32.xlu0 %v174, 126
      %v192 = vpop.permute.xlu0 %191
      %193 = vrot.lane.b32.xlu0 %v175, 126
      %v194 = vpop.permute.xlu0 %193
      %195 = vrot.lane.b32.xlu0 %v176, 126
      %v196 = vpop.permute.xlu0 %195
      %197 = vrot.lane.b32.xlu0 %v177, 126
      %v198 = vpop.permute.xlu0 %197
      %199 = vrot.lane.b32.xlu0 %v178, 126
      %v200 = vpop.permute.xlu0 %199
      %201 = vrot.lane.b32.xlu0 %v179, 126
      %v202 = vpop.permute.xlu0 %201
      %203 = vrot.lane.b32.xlu0 %v180, 126
      %v204 = vpop.permute.xlu0 %203
      %v213 = vsub.f32 %v117, %v190
      %v214 = vsub.f32 %v118, %v192
      %v215 = vsub.f32 %v119, %v194
      %v216 = vsub.f32 %v120, %v196
      %v217 = vsub.f32 %v121, %v198
      %v218 = vsub.f32 %v122, %v200
      %v219 = vsub.f32 %v123, %v202
      %v220 = vsub.f32 %v124, %v204
      %v221 = vadd.f32 %v213, 2.0
      %v222 = vadd.f32 %v214, 2.0
      %v223 = vadd.f32 %v215, 2.0
      %v224 = vadd.f32 %v216, 2.0
      %v225 = vadd.f32 %v217, 2.0
      %v226 = vadd.f32 %v218, 2.0
      %v227 = vadd.f32 %v219, 2.0
      %v228 = vadd.f32 %v220, 2.0
      %v229 = vmul.f32 %v221, 16.0
      %v230 = vmul.f32 %v222, 16.0
      %v231 = vmul.f32 %v223, 16.0
      %v232 = vmul.f32 %v224, 16.0
      %v233 = vmul.f32 %v225, 16.0
      %v234 = vmul.f32 %v226, 16.0
      %v235 = vmul.f32 %v227, 16.0
      %v236 = vmul.f32 %v228, 16.0
      %v237 = vcvt.f32.s32.ties.to.even %v229
      %v238 = vcvt.f32.s32.ties.to.even %v230
      %v239 = vcvt.f32.s32.ties.to.even %v231
      %v240 = vcvt.f32.s32.ties.to.even %v232
      %v241 = vcvt.f32.s32.ties.to.even %v233
      %v242 = vcvt.f32.s32.ties.to.even %v234
      %v243 = vcvt.f32.s32.ties.to.even %v235
      %v244 = vcvt.f32.s32.ties.to.even %v236
      %vm245 = vcmp.ge.s32.totalorder %v237, 0
      %vm246 = vcmp.ge.s32.totalorder %v238, 0
      %vm247 = vcmp.ge.s32.totalorder %v239, 0
      %vm248 = vcmp.ge.s32.totalorder %v240, 0
      %vm249 = vcmp.ge.s32.totalorder %v241, 0
      %vm250 = vcmp.ge.s32.totalorder %v242, 0
      %vm251 = vcmp.ge.s32.totalorder %v243, 0
      %vm252 = vcmp.ge.s32.totalorder %v244, 0
      %v253 = vsel %vm245, 1, 0
      %v254 = vsel %vm246, 1, 0
      %v255 = vsel %vm247, 1, 0
      %v256 = vsel %vm248, 1, 0
      %v257 = vsel %vm249, 1, 0
      %v258 = vsel %vm250, 1, 0
      %v259 = vsel %vm251, 1, 0
      %v260 = vsel %vm252, 1, 0
      %261 = vrot.lane.b32.xlu0 %v253, 1
      %v262 = vpop.permute.xlu0 %261
      %263 = vrot.lane.b32.xlu0 %v254, 1
      %v264 = vpop.permute.xlu0 %263
      %265 = vrot.lane.b32.xlu0 %v255, 1
      %v266 = vpop.permute.xlu0 %265
      %267 = vrot.lane.b32.xlu0 %v256, 1
      %v268 = vpop.permute.xlu0 %267
      %269 = vrot.lane.b32.xlu0 %v257, 1
      %v270 = vpop.permute.xlu0 %269
      %271 = vrot.lane.b32.xlu0 %v258, 1
      %v272 = vpop.permute.xlu0 %271
      %273 = vrot.lane.b32.xlu0 %v259, 1
      %v274 = vpop.permute.xlu0 %273
      %275 = vrot.lane.b32.xlu0 %v260, 1
      %v276 = vpop.permute.xlu0 %275
      %vm277 = vcmp.ne.s32.totalorder %v262, 0
      %vm278 = vcmp.ne.s32.totalorder %v264, 0
      %vm279 = vcmp.ne.s32.totalorder %v266, 0
      %vm280 = vcmp.ne.s32.totalorder %v268, 0
      %vm281 = vcmp.ne.s32.totalorder %v270, 0
      %vm282 = vcmp.ne.s32.totalorder %v272, 0
      %vm283 = vcmp.ne.s32.totalorder %v274, 0
      %vm284 = vcmp.ne.s32.totalorder %v276, 0
      %vm285 = vmand %vm165, %vm277
      %vm286 = vmand %vm166, %vm278
      %vm287 = vmand %vm167, %vm279
      %vm288 = vmand %vm168, %vm280
      %vm289 = vmand %vm169, %vm281
      %vm290 = vmand %vm170, %vm282
      %vm291 = vmand %vm171, %vm283
      %vm292 = vmand %vm172, %vm284
      %vm293 = vcmp.lt.s32.totalorder %v237, 64
      %vm294 = vcmp.lt.s32.totalorder %v238, 64
      %vm295 = vcmp.lt.s32.totalorder %v239, 64
      %vm296 = vcmp.lt.s32.totalorder %v240, 64
      %vm297 = vcmp.lt.s32.totalorder %v241, 64
      %vm298 = vcmp.lt.s32.totalorder %v242, 64
      %vm299 = vcmp.lt.s32.totalorder %v243, 64
      %vm300 = vcmp.lt.s32.totalorder %v244, 64
      %v301 = vsel %vm293, 1, 0
      %v302 = vsel %vm294, 1, 0
      %v303 = vsel %vm295, 1, 0
      %v304 = vsel %vm296, 1, 0
      %v305 = vsel %vm297, 1, 0
      %v306 = vsel %vm298, 1, 0
      %v307 = vsel %vm299, 1, 0
      %v308 = vsel %vm300, 1, 0
      %309 = vrot.lane.b32.xlu0 %v301, 1
      %v310 = vpop.permute.xlu0 %309
      %311 = vrot.lane.b32.xlu0 %v302, 1
      %v312 = vpop.permute.xlu0 %311
      %313 = vrot.lane.b32.xlu0 %v303, 1
      %v314 = vpop.permute.xlu0 %313
      %315 = vrot.lane.b32.xlu0 %v304, 1
      %v316 = vpop.permute.xlu0 %315
      %317 = vrot.lane.b32.xlu0 %v305, 1
      %v318 = vpop.permute.xlu0 %317
      %319 = vrot.lane.b32.xlu0 %v306, 1
      %v320 = vpop.permute.xlu0 %319
      %321 = vrot.lane.b32.xlu0 %v307, 1
      %v322 = vpop.permute.xlu0 %321
      %323 = vrot.lane.b32.xlu0 %v308, 1
      %v324 = vpop.permute.xlu0 %323
      %vm325 = vcmp.ne.s32.totalorder %v310, 0
      %vm326 = vcmp.ne.s32.totalorder %v312, 0
      %vm327 = vcmp.ne.s32.totalorder %v314, 0
      %vm328 = vcmp.ne.s32.totalorder %v316, 0
      %vm329 = vcmp.ne.s32.totalorder %v318, 0
      %vm330 = vcmp.ne.s32.totalorder %v320, 0
      %vm331 = vcmp.ne.s32.totalorder %v322, 0
      %vm332 = vcmp.ne.s32.totalorder %v324, 0
      %vm333 = vmand %vm285, %vm325
      %vm334 = vmand %vm286, %vm326
      %vm335 = vmand %vm287, %vm327
      %vm336 = vmand %vm288, %vm328
      %vm337 = vmand %vm289, %vm329
      %vm338 = vmand %vm290, %vm330
      %vm339 = vmand %vm291, %vm331
      %vm340 = vmand %vm292, %vm332
      %v341 = vsel %vm333, %v141, 0
      %v342 = vsel %vm334, %v142, 0
      %v343 = vsel %vm335, %v143, 0
      %v344 = vsel %vm336, %v144, 0
      %v345 = vsel %vm337, %v145, 0
      %v346 = vsel %vm338, %v146, 0
      %v347 = vsel %vm339, %v147, 0
      %v348 = vsel %vm340, %v148, 0
      %349 = vrot.lane.b32.xlu0 %v237, 1
      %v350 = vpop.permute.xlu0 %349
      %351 = vrot.lane.b32.xlu0 %v238, 1
      %v352 = vpop.permute.xlu0 %351
      %353 = vrot.lane.b32.xlu0 %v239, 1
      %v354 = vpop.permute.xlu0 %353
      %355 = vrot.lane.b32.xlu0 %v240, 1
      %v356 = vpop.permute.xlu0 %355
      %357 = vrot.lane.b32.xlu0 %v241, 1
      %v358 = vpop.permute.xlu0 %357
      %359 = vrot.lane.b32.xlu0 %v242, 1
      %v360 = vpop.permute.xlu0 %359
      %361 = vrot.lane.b32.xlu0 %v243, 1
      %v362 = vpop.permute.xlu0 %361
      %363 = vrot.lane.b32.xlu0 %v244, 1
      %v364 = vpop.permute.xlu0 %363
      %v365 = vsel %vm333, %v350, 0
      %v366 = vsel %vm334, %v352, 0
      %v367 = vsel %vm335, %v354, 0
      %v368 = vsel %vm336, %v356, 0
      %v369 = vsel %vm337, %v358, 0
      %v370 = vsel %vm338, %v360, 0
      %v371 = vsel %vm339, %v362, 0
      %v372 = vsel %vm340, %v364, 0
      %v373 = vmul.f32 %v117, 0.8660254
      %v374 = vmul.f32 %v118, 0.8660254
      %v375 = vmul.f32 %v119, 0.8660254
      %v376 = vmul.f32 %v120, 0.8660254
      %v377 = vmul.f32 %v121, 0.8660254
      %v378 = vmul.f32 %v122, 0.8660254
      %v379 = vmul.f32 %v123, 0.8660254
      %v380 = vmul.f32 %v124, 0.8660254
      %v381 = vmul.f32 %v117, 0.5
      %v382 = vmul.f32 %v118, 0.5
      %v383 = vmul.f32 %v119, 0.5
      %v384 = vmul.f32 %v120, 0.5
      %v385 = vmul.f32 %v121, 0.5
      %v386 = vmul.f32 %v122, 0.5
      %v387 = vmul.f32 %v123, 0.5
      %v388 = vmul.f32 %v124, 0.5
      %397 = vrot.lane.b32.xlu0 %v381, 126
      %v398 = vpop.permute.xlu0 %397
      %399 = vrot.lane.b32.xlu0 %v382, 126
      %v400 = vpop.permute.xlu0 %399
      %401 = vrot.lane.b32.xlu0 %v383, 126
      %v402 = vpop.permute.xlu0 %401
      %403 = vrot.lane.b32.xlu0 %v384, 126
      %v404 = vpop.permute.xlu0 %403
      %405 = vrot.lane.b32.xlu0 %v385, 126
      %v406 = vpop.permute.xlu0 %405
      %407 = vrot.lane.b32.xlu0 %v386, 126
      %v408 = vpop.permute.xlu0 %407
      %409 = vrot.lane.b32.xlu0 %v387, 126
      %v410 = vpop.permute.xlu0 %409
      %411 = vrot.lane.b32.xlu0 %v388, 126
      %v412 = vpop.permute.xlu0 %411
      %v421 = vsub.f32 %v373, %v398
      %v422 = vsub.f32 %v374, %v400
      %v423 = vsub.f32 %v375, %v402
      %v424 = vsub.f32 %v376, %v404
      %v425 = vsub.f32 %v377, %v406
      %v426 = vsub.f32 %v378, %v408
      %v427 = vsub.f32 %v379, %v410
      %v428 = vsub.f32 %v380, %v412
      %v429 = vadd.f32 %v421, 2.0
      %v430 = vadd.f32 %v422, 2.0
      %v431 = vadd.f32 %v423, 2.0
      %v432 = vadd.f32 %v424, 2.0
      %v433 = vadd.f32 %v425, 2.0
      %v434 = vadd.f32 %v426, 2.0
      %v435 = vadd.f32 %v427, 2.0
      %v436 = vadd.f32 %v428, 2.0
      %v437 = vmul.f32 %v429, 16.0
      %v438 = vmul.f32 %v430, 16.0
      %v439 = vmul.f32 %v431, 16.0
      %v440 = vmul.f32 %v432, 16.0
      %v441 = vmul.f32 %v433, 16.0
      %v442 = vmul.f32 %v434, 16.0
      %v443 = vmul.f32 %v435, 16.0
      %v444 = vmul.f32 %v436, 16.0
      %v445 = vcvt.f32.s32.ties.to.even %v437
      %v446 = vcvt.f32.s32.ties.to.even %v438
      %v447 = vcvt.f32.s32.ties.to.even %v439
      %v448 = vcvt.f32.s32.ties.to.even %v440
      %v449 = vcvt.f32.s32.ties.to.even %v441
      %v450 = vcvt.f32.s32.ties.to.even %v442
      %v451 = vcvt.f32.s32.ties.to.even %v443
      %v452 = vcvt.f32.s32.ties.to.even %v444
      %vm453 = vcmp.ge.s32.totalorder %v445, 0
      %vm454 = vcmp.ge.s32.totalorder %v446, 0
      %vm455 = vcmp.ge.s32.totalorder %v447, 0
      %vm456 = vcmp.ge.s32.totalorder %v448, 0
      %vm457 = vcmp.ge.s32.totalorder %v449, 0
      %vm458 = vcmp.ge.s32.totalorder %v450, 0
      %vm459 = vcmp.ge.s32.totalorder %v451, 0
      %vm460 = vcmp.ge.s32.totalorder %v452, 0
      %v461 = vsel %vm453, 1, 0
      %v462 = vsel %vm454, 1, 0
      %v463 = vsel %vm455, 1, 0
      %v464 = vsel %vm456, 1, 0
      %v465 = vsel %vm457, 1, 0
      %v466 = vsel %vm458, 1, 0
      %v467 = vsel %vm459, 1, 0
      %v468 = vsel %vm460, 1, 0
      %469 = vrot.lane.b32.xlu0 %v461, 1
      %v470 = vpop.permute.xlu0 %469
      %471 = vrot.lane.b32.xlu0 %v462, 1
      %v472 = vpop.permute.xlu0 %471
      %473 = vrot.lane.b32.xlu0 %v463, 1
      %v474 = vpop.permute.xlu0 %473
      %475 = vrot.lane.b32.xlu0 %v464, 1
      %v476 = vpop.permute.xlu0 %475
      %477 = vrot.lane.b32.xlu0 %v465, 1
      %v478 = vpop.permute.xlu0 %477
      %479 = vrot.lane.b32.xlu0 %v466, 1
      %v480 = vpop.permute.xlu0 %479
      %481 = vrot.lane.b32.xlu0 %v467, 1
      %v482 = vpop.permute.xlu0 %481
      %483 = vrot.lane.b32.xlu0 %v468, 1
      %v484 = vpop.permute.xlu0 %483
      %vm485 = vcmp.ne.s32.totalorder %v470, 0
      %vm486 = vcmp.ne.s32.totalorder %v472, 0
      %vm487 = vcmp.ne.s32.totalorder %v474, 0
      %vm488 = vcmp.ne.s32.totalorder %v476, 0
      %vm489 = vcmp.ne.s32.totalorder %v478, 0
      %vm490 = vcmp.ne.s32.totalorder %v480, 0
      %vm491 = vcmp.ne.s32.totalorder %v482, 0
      %vm492 = vcmp.ne.s32.totalorder %v484, 0
      %vm493 = vmand %vm165, %vm485
      %vm494 = vmand %vm166, %vm486
      %vm495 = vmand %vm167, %vm487
      %vm496 = vmand %vm168, %vm488
      %vm497 = vmand %vm169, %vm489
      %vm498 = vmand %vm170, %vm490
      %vm499 = vmand %vm171, %vm491
      %vm500 = vmand %vm172, %vm492
      %vm501 = vcmp.lt.s32.totalorder %v445, 64
      %vm502 = vcmp.lt.s32.totalorder %v446, 64
      %vm503 = vcmp.lt.s32.totalorder %v447, 64
      %vm504 = vcmp.lt.s32.totalorder %v448, 64
      %vm505 = vcmp.lt.s32.totalorder %v449, 64
      %vm506 = vcmp.lt.s32.totalorder %v450, 64
      %vm507 = vcmp.lt.s32.totalorder %v451, 64
      %vm508 = vcmp.lt.s32.totalorder %v452, 64
      %v509 = vsel %vm501, 1, 0
      %v510 = vsel %vm502, 1, 0
      %v511 = vsel %vm503, 1, 0
      %v512 = vsel %vm504, 1, 0
      %v513 = vsel %vm505, 1, 0
      %v514 = vsel %vm506, 1, 0
      %v515 = vsel %vm507, 1, 0
      %v516 = vsel %vm508, 1, 0
      %517 = vrot.lane.b32.xlu0 %v509, 1
      %v518 = vpop.permute.xlu0 %517
      %519 = vrot.lane.b32.xlu0 %v510, 1
      %v520 = vpop.permute.xlu0 %519
      %521 = vrot.lane.b32.xlu0 %v511, 1
      %v522 = vpop.permute.xlu0 %521
      %523 = vrot.lane.b32.xlu0 %v512, 1
      %v524 = vpop.permute.xlu0 %523
      %525 = vrot.lane.b32.xlu0 %v513, 1
      %v526 = vpop.permute.xlu0 %525
      %527 = vrot.lane.b32.xlu0 %v514, 1
      %v528 = vpop.permute.xlu0 %527
      %529 = vrot.lane.b32.xlu0 %v515, 1
      %v530 = vpop.permute.xlu0 %529
      %531 = vrot.lane.b32.xlu0 %v516, 1
      %v532 = vpop.permute.xlu0 %531
      %vm533 = vcmp.ne.s32.totalorder %v518, 0
      %vm534 = vcmp.ne.s32.totalorder %v520, 0
      %vm535 = vcmp.ne.s32.totalorder %v522, 0
      %vm536 = vcmp.ne.s32.totalorder %v524, 0
      %vm537 = vcmp.ne.s32.totalorder %v526, 0
      %vm538 = vcmp.ne.s32.totalorder %v528, 0
      %vm539 = vcmp.ne.s32.totalorder %v530, 0
      %vm540 = vcmp.ne.s32.totalorder %v532, 0
      %vm541 = vmand %vm493, %vm533
      %vm542 = vmand %vm494, %vm534
      %vm543 = vmand %vm495, %vm535
      %vm544 = vmand %vm496, %vm536
      %vm545 = vmand %vm497, %vm537
      %vm546 = vmand %vm498, %vm538
      %vm547 = vmand %vm499, %vm539
      %vm548 = vmand %vm500, %vm540
      %v549 = vsel %vm541, %v141, 0
      %v550 = vsel %vm542, %v142, 0
      %v551 = vsel %vm543, %v143, 0
      %v552 = vsel %vm544, %v144, 0
      %v553 = vsel %vm545, %v145, 0
      %v554 = vsel %vm546, %v146, 0
      %v555 = vsel %vm547, %v147, 0
      %v556 = vsel %vm548, %v148, 0
      %557 = vrot.lane.b32.xlu0 %v445, 1
      %v558 = vpop.permute.xlu0 %557
      %559 = vrot.lane.b32.xlu0 %v446, 1
      %v560 = vpop.permute.xlu0 %559
      %561 = vrot.lane.b32.xlu0 %v447, 1
      %v562 = vpop.permute.xlu0 %561
      %563 = vrot.lane.b32.xlu0 %v448, 1
      %v564 = vpop.permute.xlu0 %563
      %565 = vrot.lane.b32.xlu0 %v449, 1
      %v566 = vpop.permute.xlu0 %565
      %567 = vrot.lane.b32.xlu0 %v450, 1
      %v568 = vpop.permute.xlu0 %567
      %569 = vrot.lane.b32.xlu0 %v451, 1
      %v570 = vpop.permute.xlu0 %569
      %571 = vrot.lane.b32.xlu0 %v452, 1
      %v572 = vpop.permute.xlu0 %571
      %v573 = vsel %vm541, %v558, 0
      %v574 = vsel %vm542, %v560, 0
      %v575 = vsel %vm543, %v562, 0
      %v576 = vsel %vm544, %v564, 0
      %v577 = vsel %vm545, %v566, 0
      %v578 = vsel %vm546, %v568, 0
      %v579 = vsel %vm547, %v570, 0
      %v580 = vsel %vm548, %v572, 0
      %v581 = vadd.s32 %v573, 64
      %v582 = vadd.s32 %v574, 64
      %v583 = vadd.s32 %v575, 64
      %v584 = vadd.s32 %v576, 64
      %v585 = vadd.s32 %v577, 64
      %v586 = vadd.s32 %v578, 64
      %v587 = vadd.s32 %v579, 64
      %v588 = vadd.s32 %v580, 64
      %597 = vrot.lane.b32.xlu0 %v373, 126
      %v598 = vpop.permute.xlu0 %597
      %599 = vrot.lane.b32.xlu0 %v374, 126
      %v600 = vpop.permute.xlu0 %599
      %601 = vrot.lane.b32.xlu0 %v375, 126
      %v602 = vpop.permute.xlu0 %601
      %603 = vrot.lane.b32.xlu0 %v376, 126
      %v604 = vpop.permute.xlu0 %603
      %605 = vrot.lane.b32.xlu0 %v377, 126
      %v606 = vpop.permute.xlu0 %605
      %607 = vrot.lane.b32.xlu0 %v378, 126
      %v608 = vpop.permute.xlu0 %607
      %609 = vrot.lane.b32.xlu0 %v379, 126
      %v610 = vpop.permute.xlu0 %609
      %611 = vrot.lane.b32.xlu0 %v380, 126
      %v612 = vpop.permute.xlu0 %611
      %v621 = vsub.f32 %v381, %v598
      %v622 = vsub.f32 %v382, %v600
      %v623 = vsub.f32 %v383, %v602
      %v624 = vsub.f32 %v384, %v604
      %v625 = vsub.f32 %v385, %v606
      %v626 = vsub.f32 %v386, %v608
      %v627 = vsub.f32 %v387, %v610
      %v628 = vsub.f32 %v388, %v612
      %v629 = vadd.f32 %v621, 2.0
      %v630 = vadd.f32 %v622, 2.0
      %v631 = vadd.f32 %v623, 2.0
      %v632 = vadd.f32 %v624, 2.0
      %v633 = vadd.f32 %v625, 2.0
      %v634 = vadd.f32 %v626, 2.0
      %v635 = vadd.f32 %v627, 2.0
      %v636 = vadd.f32 %v628, 2.0
      %v637 = vmul.f32 %v629, 16.0
      %v638 = vmul.f32 %v630, 16.0
      %v639 = vmul.f32 %v631, 16.0
      %v640 = vmul.f32 %v632, 16.0
      %v641 = vmul.f32 %v633, 16.0
      %v642 = vmul.f32 %v634, 16.0
      %v643 = vmul.f32 %v635, 16.0
      %v644 = vmul.f32 %v636, 16.0
      %v645 = vcvt.f32.s32.ties.to.even %v637
      %v646 = vcvt.f32.s32.ties.to.even %v638
      %v647 = vcvt.f32.s32.ties.to.even %v639
      %v648 = vcvt.f32.s32.ties.to.even %v640
      %v649 = vcvt.f32.s32.ties.to.even %v641
      %v650 = vcvt.f32.s32.ties.to.even %v642
      %v651 = vcvt.f32.s32.ties.to.even %v643
      %v652 = vcvt.f32.s32.ties.to.even %v644
      %vm653 = vcmp.ge.s32.totalorder %v645, 0
      %vm654 = vcmp.ge.s32.totalorder %v646, 0
      %vm655 = vcmp.ge.s32.totalorder %v647, 0
      %vm656 = vcmp.ge.s32.totalorder %v648, 0
      %vm657 = vcmp.ge.s32.totalorder %v649, 0
      %vm658 = vcmp.ge.s32.totalorder %v650, 0
      %vm659 = vcmp.ge.s32.totalorder %v651, 0
      %vm660 = vcmp.ge.s32.totalorder %v652, 0
      %v661 = vsel %vm653, 1, 0
      %v662 = vsel %vm654, 1, 0
      %v663 = vsel %vm655, 1, 0
      %v664 = vsel %vm656, 1, 0
      %v665 = vsel %vm657, 1, 0
      %v666 = vsel %vm658, 1, 0
      %v667 = vsel %vm659, 1, 0
      %v668 = vsel %vm660, 1, 0
      %669 = vrot.lane.b32.xlu0 %v661, 1
      %v670 = vpop.permute.xlu0 %669
      %671 = vrot.lane.b32.xlu0 %v662, 1
      %v672 = vpop.permute.xlu0 %671
      %673 = vrot.lane.b32.xlu0 %v663, 1
      %v674 = vpop.permute.xlu0 %673
      %675 = vrot.lane.b32.xlu0 %v664, 1
      %v676 = vpop.permute.xlu0 %675
      %677 = vrot.lane.b32.xlu0 %v665, 1
      %v678 = vpop.permute.xlu0 %677
      %679 = vrot.lane.b32.xlu0 %v666, 1
      %v680 = vpop.permute.xlu0 %679
      %681 = vrot.lane.b32.xlu0 %v667, 1
      %v682 = vpop.permute.xlu0 %681
      %683 = vrot.lane.b32.xlu0 %v668, 1
      %v684 = vpop.permute.xlu0 %683
      %vm685 = vcmp.ne.s32.totalorder %v670, 0
      %vm686 = vcmp.ne.s32.totalorder %v672, 0
      %vm687 = vcmp.ne.s32.totalorder %v674, 0
      %vm688 = vcmp.ne.s32.totalorder %v676, 0
      %vm689 = vcmp.ne.s32.totalorder %v678, 0
      %vm690 = vcmp.ne.s32.totalorder %v680, 0
      %vm691 = vcmp.ne.s32.totalorder %v682, 0
      %vm692 = vcmp.ne.s32.totalorder %v684, 0
      %vm693 = vmand %vm165, %vm685
      %vm694 = vmand %vm166, %vm686
      %vm695 = vmand %vm167, %vm687
      %vm696 = vmand %vm168, %vm688
      %vm697 = vmand %vm169, %vm689
      %vm698 = vmand %vm170, %vm690
      %vm699 = vmand %vm171, %vm691
      %vm700 = vmand %vm172, %vm692
      %vm701 = vcmp.lt.s32.totalorder %v645, 64
      %vm702 = vcmp.lt.s32.totalorder %v646, 64
      %vm703 = vcmp.lt.s32.totalorder %v647, 64
      %vm704 = vcmp.lt.s32.totalorder %v648, 64
      %vm705 = vcmp.lt.s32.totalorder %v649, 64
      %vm706 = vcmp.lt.s32.totalorder %v650, 64
      %vm707 = vcmp.lt.s32.totalorder %v651, 64
      %vm708 = vcmp.lt.s32.totalorder %v652, 64
      %v709 = vsel %vm701, 1, 0
      %v710 = vsel %vm702, 1, 0
      %v711 = vsel %vm703, 1, 0
      %v712 = vsel %vm704, 1, 0
      %v713 = vsel %vm705, 1, 0
      %v714 = vsel %vm706, 1, 0
      %v715 = vsel %vm707, 1, 0
      %v716 = vsel %vm708, 1, 0
      %717 = vrot.lane.b32.xlu0 %v709, 1
      %v718 = vpop.permute.xlu0 %717
      %719 = vrot.lane.b32.xlu0 %v710, 1
      %v720 = vpop.permute.xlu0 %719
      %721 = vrot.lane.b32.xlu0 %v711, 1
      %v722 = vpop.permute.xlu0 %721
      %723 = vrot.lane.b32.xlu0 %v712, 1
      %v724 = vpop.permute.xlu0 %723
      %725 = vrot.lane.b32.xlu0 %v713, 1
      %v726 = vpop.permute.xlu0 %725
      %727 = vrot.lane.b32.xlu0 %v714, 1
      %v728 = vpop.permute.xlu0 %727
      %729 = vrot.lane.b32.xlu0 %v715, 1
      %v730 = vpop.permute.xlu0 %729
      %731 = vrot.lane.b32.xlu0 %v716, 1
      %v732 = vpop.permute.xlu0 %731
      %vm733 = vcmp.ne.s32.totalorder %v718, 0
      %vm734 = vcmp.ne.s32.totalorder %v720, 0
      %vm735 = vcmp.ne.s32.totalorder %v722, 0
      %vm736 = vcmp.ne.s32.totalorder %v724, 0
      %vm737 = vcmp.ne.s32.totalorder %v726, 0
      %vm738 = vcmp.ne.s32.totalorder %v728, 0
      %vm739 = vcmp.ne.s32.totalorder %v730, 0
      %vm740 = vcmp.ne.s32.totalorder %v732, 0
      %vm741 = vmand %vm693, %vm733
      %vm742 = vmand %vm694, %vm734
      %vm743 = vmand %vm695, %vm735
      %vm744 = vmand %vm696, %vm736
      %vm745 = vmand %vm697, %vm737
      %vm746 = vmand %vm698, %vm738
      %vm747 = vmand %vm699, %vm739
      %vm748 = vmand %vm700, %vm740
      %v749 = vsel %vm741, %v141, 0
      %v750 = vsel %vm742, %v142, 0
      %v751 = vsel %vm743, %v143, 0
      %v752 = vsel %vm744, %v144, 0
      %v753 = vsel %vm745, %v145, 0
      %v754 = vsel %vm746, %v146, 0
      %v755 = vsel %vm747, %v147, 0
      %v756 = vsel %vm748, %v148, 0
      %757 = vrot.lane.b32.xlu0 %v645, 1
      %v758 = vpop.permute.xlu0 %757
      %759 = vrot.lane.b32.xlu0 %v646, 1
      %v760 = vpop.permute.xlu0 %759
      %761 = vrot.lane.b32.xlu0 %v647, 1
      %v762 = vpop.permute.xlu0 %761
      %763 = vrot.lane.b32.xlu0 %v648, 1
      %v764 = vpop.permute.xlu0 %763
      %765 = vrot.lane.b32.xlu0 %v649, 1
      %v766 = vpop.permute.xlu0 %765
      %767 = vrot.lane.b32.xlu0 %v650, 1
      %v768 = vpop.permute.xlu0 %767
      %769 = vrot.lane.b32.xlu0 %v651, 1
      %v770 = vpop.permute.xlu0 %769
      %771 = vrot.lane.b32.xlu0 %v652, 1
      %v772 = vpop.permute.xlu0 %771
      %v773 = vsel %vm741, %v758, 0
      %v774 = vsel %vm742, %v760, 0
      %v775 = vsel %vm743, %v762, 0
      %v776 = vsel %vm744, %v764, 0
      %v777 = vsel %vm745, %v766, 0
      %v778 = vsel %vm746, %v768, 0
      %v779 = vsel %vm747, %v770, 0
      %v780 = vsel %vm748, %v772, 0
      %v781 = vadd.s32 %v773, 128
      %v782 = vadd.s32 %v774, 128
      %v783 = vadd.s32 %v775, 128
      %v784 = vadd.s32 %v776, 128
      %v785 = vadd.s32 %v777, 128
      %v786 = vadd.s32 %v778, 128
      %v787 = vadd.s32 %v779, 128
      %v788 = vadd.s32 %v780, 128
      %v789 = vmul.f32 %v117, 6.123234e-17
      %v790 = vmul.f32 %v118, 6.123234e-17
      %v791 = vmul.f32 %v119, 6.123234e-17
      %v792 = vmul.f32 %v120, 6.123234e-17
      %v793 = vmul.f32 %v121, 6.123234e-17
      %v794 = vmul.f32 %v122, 6.123234e-17
      %v795 = vmul.f32 %v123, 6.123234e-17
      %v796 = vmul.f32 %v124, 6.123234e-17
      %805 = vrot.lane.b32.xlu0 %v117, 126
      %v806 = vpop.permute.xlu0 %805
      %807 = vrot.lane.b32.xlu0 %v118, 126
      %v808 = vpop.permute.xlu0 %807
      %809 = vrot.lane.b32.xlu0 %v119, 126
      %v810 = vpop.permute.xlu0 %809
      %811 = vrot.lane.b32.xlu0 %v120, 126
      %v812 = vpop.permute.xlu0 %811
      %813 = vrot.lane.b32.xlu0 %v121, 126
      %v814 = vpop.permute.xlu0 %813
      %815 = vrot.lane.b32.xlu0 %v122, 126
      %v816 = vpop.permute.xlu0 %815
      %817 = vrot.lane.b32.xlu0 %v123, 126
      %v818 = vpop.permute.xlu0 %817
      %819 = vrot.lane.b32.xlu0 %v124, 126
      %v820 = vpop.permute.xlu0 %819
      %v829 = vsub.f32 %v789, %v806
      %v830 = vsub.f32 %v790, %v808
      %v831 = vsub.f32 %v791, %v810
      %v832 = vsub.f32 %v792, %v812
      %v833 = vsub.f32 %v793, %v814
      %v834 = vsub.f32 %v794, %v816
      %v835 = vsub.f32 %v795, %v818
      %v836 = vsub.f32 %v796, %v820
      %v837 = vadd.f32 %v829, 2.0
      %v838 = vadd.f32 %v830, 2.0
      %v839 = vadd.f32 %v831, 2.0
      %v840 = vadd.f32 %v832, 2.0
      %v841 = vadd.f32 %v833, 2.0
      %v842 = vadd.f32 %v834, 2.0
      %v843 = vadd.f32 %v835, 2.0
      %v844 = vadd.f32 %v836, 2.0
      %v845 = vmul.f32 %v837, 16.0
      %v846 = vmul.f32 %v838, 16.0
      %v847 = vmul.f32 %v839, 16.0
      %v848 = vmul.f32 %v840, 16.0
      %v849 = vmul.f32 %v841, 16.0
      %v850 = vmul.f32 %v842, 16.0
      %v851 = vmul.f32 %v843, 16.0
      %v852 = vmul.f32 %v844, 16.0
      %v853 = vcvt.f32.s32.ties.to.even %v845
      %v854 = vcvt.f32.s32.ties.to.even %v846
      %v855 = vcvt.f32.s32.ties.to.even %v847
      %v856 = vcvt.f32.s32.ties.to.even %v848
      %v857 = vcvt.f32.s32.ties.to.even %v849
      %v858 = vcvt.f32.s32.ties.to.even %v850
      %v859 = vcvt.f32.s32.ties.to.even %v851
      %v860 = vcvt.f32.s32.ties.to.even %v852
      %vm861 = vcmp.ge.s32.totalorder %v853, 0
      %vm862 = vcmp.ge.s32.totalorder %v854, 0
      %vm863 = vcmp.ge.s32.totalorder %v855, 0
      %vm864 = vcmp.ge.s32.totalorder %v856, 0
      %vm865 = vcmp.ge.s32.totalorder %v857, 0
      %vm866 = vcmp.ge.s32.totalorder %v858, 0
      %vm867 = vcmp.ge.s32.totalorder %v859, 0
      %vm868 = vcmp.ge.s32.totalorder %v860, 0
      %v869 = vsel %vm861, 1, 0
      %v870 = vsel %vm862, 1, 0
      %v871 = vsel %vm863, 1, 0
      %v872 = vsel %vm864, 1, 0
      %v873 = vsel %vm865, 1, 0
      %v874 = vsel %vm866, 1, 0
      %v875 = vsel %vm867, 1, 0
      %v876 = vsel %vm868, 1, 0
      %877 = vrot.lane.b32.xlu0 %v869, 1
      %v878 = vpop.permute.xlu0 %877
      %879 = vrot.lane.b32.xlu0 %v870, 1
      %v880 = vpop.permute.xlu0 %879
      %881 = vrot.lane.b32.xlu0 %v871, 1
      %v882 = vpop.permute.xlu0 %881
      %883 = vrot.lane.b32.xlu0 %v872, 1
      %v884 = vpop.permute.xlu0 %883
      %885 = vrot.lane.b32.xlu0 %v873, 1
      %v886 = vpop.permute.xlu0 %885
      %887 = vrot.lane.b32.xlu0 %v874, 1
      %v888 = vpop.permute.xlu0 %887
      %889 = vrot.lane.b32.xlu0 %v875, 1
      %v890 = vpop.permute.xlu0 %889
      %891 = vrot.lane.b32.xlu0 %v876, 1
      %v892 = vpop.permute.xlu0 %891
      %vm893 = vcmp.ne.s32.totalorder %v878, 0
      %vm894 = vcmp.ne.s32.totalorder %v880, 0
      %vm895 = vcmp.ne.s32.totalorder %v882, 0
      %vm896 = vcmp.ne.s32.totalorder %v884, 0
      %vm897 = vcmp.ne.s32.totalorder %v886, 0
      %vm898 = vcmp.ne.s32.totalorder %v888, 0
      %vm899 = vcmp.ne.s32.totalorder %v890, 0
      %vm900 = vcmp.ne.s32.totalorder %v892, 0
      %vm901 = vmand %vm165, %vm893
      %vm902 = vmand %vm166, %vm894
      %vm903 = vmand %vm167, %vm895
      %vm904 = vmand %vm168, %vm896
      %vm905 = vmand %vm169, %vm897
      %vm906 = vmand %vm170, %vm898
      %vm907 = vmand %vm171, %vm899
      %vm908 = vmand %vm172, %vm900
      %vm909 = vcmp.lt.s32.totalorder %v853, 64
      %vm910 = vcmp.lt.s32.totalorder %v854, 64
      %vm911 = vcmp.lt.s32.totalorder %v855, 64
      %vm912 = vcmp.lt.s32.totalorder %v856, 64
      %vm913 = vcmp.lt.s32.totalorder %v857, 64
      %vm914 = vcmp.lt.s32.totalorder %v858, 64
      %vm915 = vcmp.lt.s32.totalorder %v859, 64
      %vm916 = vcmp.lt.s32.totalorder %v860, 64
      %v917 = vsel %vm909, 1, 0
      %v918 = vsel %vm910, 1, 0
      %v919 = vsel %vm911, 1, 0
      %v920 = vsel %vm912, 1, 0
      %v921 = vsel %vm913, 1, 0
      %v922 = vsel %vm914, 1, 0
      %v923 = vsel %vm915, 1, 0
      %v924 = vsel %vm916, 1, 0
      %925 = vrot.lane.b32.xlu0 %v917, 1
      %v926 = vpop.permute.xlu0 %925
      %927 = vrot.lane.b32.xlu0 %v918, 1
      %v928 = vpop.permute.xlu0 %927
      %929 = vrot.lane.b32.xlu0 %v919, 1
      %v930 = vpop.permute.xlu0 %929
      %931 = vrot.lane.b32.xlu0 %v920, 1
      %v932 = vpop.permute.xlu0 %931
      %933 = vrot.lane.b32.xlu0 %v921, 1
      %v934 = vpop.permute.xlu0 %933
      %935 = vrot.lane.b32.xlu0 %v922, 1
      %v936 = vpop.permute.xlu0 %935
      %937 = vrot.lane.b32.xlu0 %v923, 1
      %v938 = vpop.permute.xlu0 %937
      %939 = vrot.lane.b32.xlu0 %v924, 1
      %v940 = vpop.permute.xlu0 %939
      %vm941 = vcmp.ne.s32.totalorder %v926, 0
      %vm942 = vcmp.ne.s32.totalorder %v928, 0
      %vm943 = vcmp.ne.s32.totalorder %v930, 0
      %vm944 = vcmp.ne.s32.totalorder %v932, 0
      %vm945 = vcmp.ne.s32.totalorder %v934, 0
      %vm946 = vcmp.ne.s32.totalorder %v936, 0
      %vm947 = vcmp.ne.s32.totalorder %v938, 0
      %vm948 = vcmp.ne.s32.totalorder %v940, 0
      %vm949 = vmand %vm901, %vm941
      %vm950 = vmand %vm902, %vm942
      %vm951 = vmand %vm903, %vm943
      %vm952 = vmand %vm904, %vm944
      %vm953 = vmand %vm905, %vm945
      %vm954 = vmand %vm906, %vm946
      %vm955 = vmand %vm907, %vm947
      %vm956 = vmand %vm908, %vm948
      %v957 = vsel %vm949, %v141, 0
      %v958 = vsel %vm950, %v142, 0
      %v959 = vsel %vm951, %v143, 0
      %v960 = vsel %vm952, %v144, 0
      %v961 = vsel %vm953, %v145, 0
      %v962 = vsel %vm954, %v146, 0
      %v963 = vsel %vm955, %v147, 0
      %v964 = vsel %vm956, %v148, 0
      %965 = vrot.lane.b32.xlu0 %v853, 1
      %v966 = vpop.permute.xlu0 %965
      %967 = vrot.lane.b32.xlu0 %v854, 1
      %v968 = vpop.permute.xlu0 %967
      %969 = vrot.lane.b32.xlu0 %v855, 1
      %v970 = vpop.permute.xlu0 %969
      %971 = vrot.lane.b32.xlu0 %v856, 1
      %v972 = vpop.permute.xlu0 %971
      %973 = vrot.lane.b32.xlu0 %v857, 1
      %v974 = vpop.permute.xlu0 %973
      %975 = vrot.lane.b32.xlu0 %v858, 1
      %v976 = vpop.permute.xlu0 %975
      %977 = vrot.lane.b32.xlu0 %v859, 1
      %v978 = vpop.permute.xlu0 %977
      %979 = vrot.lane.b32.xlu0 %v860, 1
      %v980 = vpop.permute.xlu0 %979
      %v981 = vsel %vm949, %v966, 0
      %v982 = vsel %vm950, %v968, 0
      %v983 = vsel %vm951, %v970, 0
      %v984 = vsel %vm952, %v972, 0
      %v985 = vsel %vm953, %v974, 0
      %v986 = vsel %vm954, %v976, 0
      %v987 = vsel %vm955, %v978, 0
      %v988 = vsel %vm956, %v980, 0
      %v989 = vadd.s32 %v981, 192
      %v990 = vadd.s32 %v982, 192
      %v991 = vadd.s32 %v983, 192
      %v992 = vadd.s32 %v984, 192
      %v993 = vadd.s32 %v985, 192
      %v994 = vadd.s32 %v986, 192
      %v995 = vadd.s32 %v987, 192
      %v996 = vadd.s32 %v988, 192
      %v997 = vmul.f32 %v117, -0.5
      %v998 = vmul.f32 %v118, -0.5
      %v999 = vmul.f32 %v119, -0.5
      %v1000 = vmul.f32 %v120, -0.5
      %v1001 = vmul.f32 %v121, -0.5
      %v1002 = vmul.f32 %v122, -0.5
      %v1003 = vmul.f32 %v123, -0.5
      %v1004 = vmul.f32 %v124, -0.5
      %v1005 = vsub.f32 %v997, %v598
      %v1006 = vsub.f32 %v998, %v600
      %v1007 = vsub.f32 %v999, %v602
      %v1008 = vsub.f32 %v1000, %v604
      %v1009 = vsub.f32 %v1001, %v606
      %v1010 = vsub.f32 %v1002, %v608
      %v1011 = vsub.f32 %v1003, %v610
      %v1012 = vsub.f32 %v1004, %v612
      %v1013 = vadd.f32 %v1005, 2.0
      %v1014 = vadd.f32 %v1006, 2.0
      %v1015 = vadd.f32 %v1007, 2.0
      %v1016 = vadd.f32 %v1008, 2.0
      %v1017 = vadd.f32 %v1009, 2.0
      %v1018 = vadd.f32 %v1010, 2.0
      %v1019 = vadd.f32 %v1011, 2.0
      %v1020 = vadd.f32 %v1012, 2.0
      %v1021 = vmul.f32 %v1013, 16.0
      %v1022 = vmul.f32 %v1014, 16.0
      %v1023 = vmul.f32 %v1015, 16.0
      %v1024 = vmul.f32 %v1016, 16.0
      %v1025 = vmul.f32 %v1017, 16.0
      %v1026 = vmul.f32 %v1018, 16.0
      %v1027 = vmul.f32 %v1019, 16.0
      %v1028 = vmul.f32 %v1020, 16.0
      %v1029 = vcvt.f32.s32.ties.to.even %v1021
      %v1030 = vcvt.f32.s32.ties.to.even %v1022
      %v1031 = vcvt.f32.s32.ties.to.even %v1023
      %v1032 = vcvt.f32.s32.ties.to.even %v1024
      %v1033 = vcvt.f32.s32.ties.to.even %v1025
      %v1034 = vcvt.f32.s32.ties.to.even %v1026
      %v1035 = vcvt.f32.s32.ties.to.even %v1027
      %v1036 = vcvt.f32.s32.ties.to.even %v1028
      %vm1037 = vcmp.ge.s32.totalorder %v1029, 0
      %vm1038 = vcmp.ge.s32.totalorder %v1030, 0
      %vm1039 = vcmp.ge.s32.totalorder %v1031, 0
      %vm1040 = vcmp.ge.s32.totalorder %v1032, 0
      %vm1041 = vcmp.ge.s32.totalorder %v1033, 0
      %vm1042 = vcmp.ge.s32.totalorder %v1034, 0
      %vm1043 = vcmp.ge.s32.totalorder %v1035, 0
      %vm1044 = vcmp.ge.s32.totalorder %v1036, 0
      %v1045 = vsel %vm1037, 1, 0
      %v1046 = vsel %vm1038, 1, 0
      %v1047 = vsel %vm1039, 1, 0
      %v1048 = vsel %vm1040, 1, 0
      %v1049 = vsel %vm1041, 1, 0
      %v1050 = vsel %vm1042, 1, 0
      %v1051 = vsel %vm1043, 1, 0
      %v1052 = vsel %vm1044, 1, 0
      %1053 = vrot.lane.b32.xlu0 %v1045, 1
      %v1054 = vpop.permute.xlu0 %1053
      %1055 = vrot.lane.b32.xlu0 %v1046, 1
      %v1056 = vpop.permute.xlu0 %1055
      %1057 = vrot.lane.b32.xlu0 %v1047, 1
      %v1058 = vpop.permute.xlu0 %1057
      %1059 = vrot.lane.b32.xlu0 %v1048, 1
      %v1060 = vpop.permute.xlu0 %1059
      %1061 = vrot.lane.b32.xlu0 %v1049, 1
      %v1062 = vpop.permute.xlu0 %1061
      %1063 = vrot.lane.b32.xlu0 %v1050, 1
      %v1064 = vpop.permute.xlu0 %1063
      %1065 = vrot.lane.b32.xlu0 %v1051, 1
      %v1066 = vpop.permute.xlu0 %1065
      %1067 = vrot.lane.b32.xlu0 %v1052, 1
      %v1068 = vpop.permute.xlu0 %1067
      %vm1069 = vcmp.ne.s32.totalorder %v1054, 0
      %vm1070 = vcmp.ne.s32.totalorder %v1056, 0
      %vm1071 = vcmp.ne.s32.totalorder %v1058, 0
      %vm1072 = vcmp.ne.s32.totalorder %v1060, 0
      %vm1073 = vcmp.ne.s32.totalorder %v1062, 0
      %vm1074 = vcmp.ne.s32.totalorder %v1064, 0
      %vm1075 = vcmp.ne.s32.totalorder %v1066, 0
      %vm1076 = vcmp.ne.s32.totalorder %v1068, 0
      %vm1077 = vmand %vm165, %vm1069
      %vm1078 = vmand %vm166, %vm1070
      %vm1079 = vmand %vm167, %vm1071
      %vm1080 = vmand %vm168, %vm1072
      %vm1081 = vmand %vm169, %vm1073
      %vm1082 = vmand %vm170, %vm1074
      %vm1083 = vmand %vm171, %vm1075
      %vm1084 = vmand %vm172, %vm1076
      %vm1085 = vcmp.lt.s32.totalorder %v1029, 64
      %vm1086 = vcmp.lt.s32.totalorder %v1030, 64
      %vm1087 = vcmp.lt.s32.totalorder %v1031, 64
      %vm1088 = vcmp.lt.s32.totalorder %v1032, 64
      %vm1089 = vcmp.lt.s32.totalorder %v1033, 64
      %vm1090 = vcmp.lt.s32.totalorder %v1034, 64
      %vm1091 = vcmp.lt.s32.totalorder %v1035, 64
      %vm1092 = vcmp.lt.s32.totalorder %v1036, 64
      %v1093 = vsel %vm1085, 1, 0
      %v1094 = vsel %vm1086, 1, 0
      %v1095 = vsel %vm1087, 1, 0
      %v1096 = vsel %vm1088, 1, 0
      %v1097 = vsel %vm1089, 1, 0
      %v1098 = vsel %vm1090, 1, 0
      %v1099 = vsel %vm1091, 1, 0
      %v1100 = vsel %vm1092, 1, 0
      %1101 = vrot.lane.b32.xlu0 %v1093, 1
      %v1102 = vpop.permute.xlu0 %1101
      %1103 = vrot.lane.b32.xlu0 %v1094, 1
      %v1104 = vpop.permute.xlu0 %1103
      %1105 = vrot.lane.b32.xlu0 %v1095, 1
      %v1106 = vpop.permute.xlu0 %1105
      %1107 = vrot.lane.b32.xlu0 %v1096, 1
      %v1108 = vpop.permute.xlu0 %1107
      %1109 = vrot.lane.b32.xlu0 %v1097, 1
      %v1110 = vpop.permute.xlu0 %1109
      %1111 = vrot.lane.b32.xlu0 %v1098, 1
      %v1112 = vpop.permute.xlu0 %1111
      %1113 = vrot.lane.b32.xlu0 %v1099, 1
      %v1114 = vpop.permute.xlu0 %1113
      %1115 = vrot.lane.b32.xlu0 %v1100, 1
      %v1116 = vpop.permute.xlu0 %1115
      %vm1117 = vcmp.ne.s32.totalorder %v1102, 0
      %vm1118 = vcmp.ne.s32.totalorder %v1104, 0
      %vm1119 = vcmp.ne.s32.totalorder %v1106, 0
      %vm1120 = vcmp.ne.s32.totalorder %v1108, 0
      %vm1121 = vcmp.ne.s32.totalorder %v1110, 0
      %vm1122 = vcmp.ne.s32.totalorder %v1112, 0
      %vm1123 = vcmp.ne.s32.totalorder %v1114, 0
      %vm1124 = vcmp.ne.s32.totalorder %v1116, 0
      %vm1125 = vmand %vm1077, %vm1117
      %vm1126 = vmand %vm1078, %vm1118
      %vm1127 = vmand %vm1079, %vm1119
      %vm1128 = vmand %vm1080, %vm1120
      %vm1129 = vmand %vm1081, %vm1121
      %vm1130 = vmand %vm1082, %vm1122
      %vm1131 = vmand %vm1083, %vm1123
      %vm1132 = vmand %vm1084, %vm1124
      %v1133 = vsel %vm1125, %v141, 0
      %v1134 = vsel %vm1126, %v142, 0
      %v1135 = vsel %vm1127, %v143, 0
      %v1136 = vsel %vm1128, %v144, 0
      %v1137 = vsel %vm1129, %v145, 0
      %v1138 = vsel %vm1130, %v146, 0
      %v1139 = vsel %vm1131, %v147, 0
      %v1140 = vsel %vm1132, %v148, 0
      %1141 = vrot.lane.b32.xlu0 %v1029, 1
      %v1142 = vpop.permute.xlu0 %1141
      %1143 = vrot.lane.b32.xlu0 %v1030, 1
      %v1144 = vpop.permute.xlu0 %1143
      %1145 = vrot.lane.b32.xlu0 %v1031, 1
      %v1146 = vpop.permute.xlu0 %1145
      %1147 = vrot.lane.b32.xlu0 %v1032, 1
      %v1148 = vpop.permute.xlu0 %1147
      %1149 = vrot.lane.b32.xlu0 %v1033, 1
      %v1150 = vpop.permute.xlu0 %1149
      %1151 = vrot.lane.b32.xlu0 %v1034, 1
      %v1152 = vpop.permute.xlu0 %1151
      %1153 = vrot.lane.b32.xlu0 %v1035, 1
      %v1154 = vpop.permute.xlu0 %1153
      %1155 = vrot.lane.b32.xlu0 %v1036, 1
      %v1156 = vpop.permute.xlu0 %1155
      %v1157 = vsel %vm1125, %v1142, 0
      %v1158 = vsel %vm1126, %v1144, 0
      %v1159 = vsel %vm1127, %v1146, 0
      %v1160 = vsel %vm1128, %v1148, 0
      %v1161 = vsel %vm1129, %v1150, 0
      %v1162 = vsel %vm1130, %v1152, 0
      %v1163 = vsel %vm1131, %v1154, 0
      %v1164 = vsel %vm1132, %v1156, 0
      %v1165 = vadd.s32 %v1157, 256
      %v1166 = vadd.s32 %v1158, 256
      %v1167 = vadd.s32 %v1159, 256
      %v1168 = vadd.s32 %v1160, 256
      %v1169 = vadd.s32 %v1161, 256
      %v1170 = vadd.s32 %v1162, 256
      %v1171 = vadd.s32 %v1163, 256
      %v1172 = vadd.s32 %v1164, 256
      %v1173 = vmul.f32 %v117, -0.8660254
      %v1174 = vmul.f32 %v118, -0.8660254
      %v1175 = vmul.f32 %v119, -0.8660254
      %v1176 = vmul.f32 %v120, -0.8660254
      %v1177 = vmul.f32 %v121, -0.8660254
      %v1178 = vmul.f32 %v122, -0.8660254
      %v1179 = vmul.f32 %v123, -0.8660254
      %v1180 = vmul.f32 %v124, -0.8660254
      %v1181 = vsub.f32 %v1173, %v398
      %v1182 = vsub.f32 %v1174, %v400
      %v1183 = vsub.f32 %v1175, %v402
      %v1184 = vsub.f32 %v1176, %v404
      %v1185 = vsub.f32 %v1177, %v406
      %v1186 = vsub.f32 %v1178, %v408
      %v1187 = vsub.f32 %v1179, %v410
      %v1188 = vsub.f32 %v1180, %v412
      %v1189 = vadd.f32 %v1181, 2.0
      %v1190 = vadd.f32 %v1182, 2.0
      %v1191 = vadd.f32 %v1183, 2.0
      %v1192 = vadd.f32 %v1184, 2.0
      %v1193 = vadd.f32 %v1185, 2.0
      %v1194 = vadd.f32 %v1186, 2.0
      %v1195 = vadd.f32 %v1187, 2.0
      %v1196 = vadd.f32 %v1188, 2.0
      %v1197 = vmul.f32 %v1189, 16.0
      %v1198 = vmul.f32 %v1190, 16.0
      %v1199 = vmul.f32 %v1191, 16.0
      %v1200 = vmul.f32 %v1192, 16.0
      %v1201 = vmul.f32 %v1193, 16.0
      %v1202 = vmul.f32 %v1194, 16.0
      %v1203 = vmul.f32 %v1195, 16.0
      %v1204 = vmul.f32 %v1196, 16.0
      %v1205 = vcvt.f32.s32.ties.to.even %v1197
      %v1206 = vcvt.f32.s32.ties.to.even %v1198
      %v1207 = vcvt.f32.s32.ties.to.even %v1199
      %v1208 = vcvt.f32.s32.ties.to.even %v1200
      %v1209 = vcvt.f32.s32.ties.to.even %v1201
      %v1210 = vcvt.f32.s32.ties.to.even %v1202
      %v1211 = vcvt.f32.s32.ties.to.even %v1203
      %v1212 = vcvt.f32.s32.ties.to.even %v1204
      %vm1213 = vcmp.ge.s32.totalorder %v1205, 0
      %vm1214 = vcmp.ge.s32.totalorder %v1206, 0
      %vm1215 = vcmp.ge.s32.totalorder %v1207, 0
      %vm1216 = vcmp.ge.s32.totalorder %v1208, 0
      %vm1217 = vcmp.ge.s32.totalorder %v1209, 0
      %vm1218 = vcmp.ge.s32.totalorder %v1210, 0
      %vm1219 = vcmp.ge.s32.totalorder %v1211, 0
      %vm1220 = vcmp.ge.s32.totalorder %v1212, 0
      %v1221 = vsel %vm1213, 1, 0
      %v1222 = vsel %vm1214, 1, 0
      %v1223 = vsel %vm1215, 1, 0
      %v1224 = vsel %vm1216, 1, 0
      %v1225 = vsel %vm1217, 1, 0
      %v1226 = vsel %vm1218, 1, 0
      %v1227 = vsel %vm1219, 1, 0
      %v1228 = vsel %vm1220, 1, 0
      %1229 = vrot.lane.b32.xlu0 %v1221, 1
      %v1230 = vpop.permute.xlu0 %1229
      %1231 = vrot.lane.b32.xlu0 %v1222, 1
      %v1232 = vpop.permute.xlu0 %1231
      %1233 = vrot.lane.b32.xlu0 %v1223, 1
      %v1234 = vpop.permute.xlu0 %1233
      %1235 = vrot.lane.b32.xlu0 %v1224, 1
      %v1236 = vpop.permute.xlu0 %1235
      %1237 = vrot.lane.b32.xlu0 %v1225, 1
      %v1238 = vpop.permute.xlu0 %1237
      %1239 = vrot.lane.b32.xlu0 %v1226, 1
      %v1240 = vpop.permute.xlu0 %1239
      %1241 = vrot.lane.b32.xlu0 %v1227, 1
      %v1242 = vpop.permute.xlu0 %1241
      %1243 = vrot.lane.b32.xlu0 %v1228, 1
      %v1244 = vpop.permute.xlu0 %1243
      %vm1245 = vcmp.ne.s32.totalorder %v1230, 0
      %vm1246 = vcmp.ne.s32.totalorder %v1232, 0
      %vm1247 = vcmp.ne.s32.totalorder %v1234, 0
      %vm1248 = vcmp.ne.s32.totalorder %v1236, 0
      %vm1249 = vcmp.ne.s32.totalorder %v1238, 0
      %vm1250 = vcmp.ne.s32.totalorder %v1240, 0
      %vm1251 = vcmp.ne.s32.totalorder %v1242, 0
      %vm1252 = vcmp.ne.s32.totalorder %v1244, 0
      %vm1253 = vmand %vm165, %vm1245
      %vm1254 = vmand %vm166, %vm1246
      %vm1255 = vmand %vm167, %vm1247
      %vm1256 = vmand %vm168, %vm1248
      %vm1257 = vmand %vm169, %vm1249
      %vm1258 = vmand %vm170, %vm1250
      %vm1259 = vmand %vm171, %vm1251
      %vm1260 = vmand %vm172, %vm1252
      %vm1261 = vcmp.lt.s32.totalorder %v1205, 64
      %vm1262 = vcmp.lt.s32.totalorder %v1206, 64
      %vm1263 = vcmp.lt.s32.totalorder %v1207, 64
      %vm1264 = vcmp.lt.s32.totalorder %v1208, 64
      %vm1265 = vcmp.lt.s32.totalorder %v1209, 64
      %vm1266 = vcmp.lt.s32.totalorder %v1210, 64
      %vm1267 = vcmp.lt.s32.totalorder %v1211, 64
      %vm1268 = vcmp.lt.s32.totalorder %v1212, 64
      %v1269 = vsel %vm1261, 1, 0
      %v1270 = vsel %vm1262, 1, 0
      %v1271 = vsel %vm1263, 1, 0
      %v1272 = vsel %vm1264, 1, 0
      %v1273 = vsel %vm1265, 1, 0
      %v1274 = vsel %vm1266, 1, 0
      %v1275 = vsel %vm1267, 1, 0
      %v1276 = vsel %vm1268, 1, 0
      %1277 = vrot.lane.b32.xlu0 %v1269, 1
      %v1278 = vpop.permute.xlu0 %1277
      %1279 = vrot.lane.b32.xlu0 %v1270, 1
      %v1280 = vpop.permute.xlu0 %1279
      %1281 = vrot.lane.b32.xlu0 %v1271, 1
      %v1282 = vpop.permute.xlu0 %1281
      %1283 = vrot.lane.b32.xlu0 %v1272, 1
      %v1284 = vpop.permute.xlu0 %1283
      %1285 = vrot.lane.b32.xlu0 %v1273, 1
      %v1286 = vpop.permute.xlu0 %1285
      %1287 = vrot.lane.b32.xlu0 %v1274, 1
      %v1288 = vpop.permute.xlu0 %1287
      %1289 = vrot.lane.b32.xlu0 %v1275, 1
      %v1290 = vpop.permute.xlu0 %1289
      %1291 = vrot.lane.b32.xlu0 %v1276, 1
      %v1292 = vpop.permute.xlu0 %1291
      %vm1293 = vcmp.ne.s32.totalorder %v1278, 0
      %vm1294 = vcmp.ne.s32.totalorder %v1280, 0
      %vm1295 = vcmp.ne.s32.totalorder %v1282, 0
      %vm1296 = vcmp.ne.s32.totalorder %v1284, 0
      %vm1297 = vcmp.ne.s32.totalorder %v1286, 0
      %vm1298 = vcmp.ne.s32.totalorder %v1288, 0
      %vm1299 = vcmp.ne.s32.totalorder %v1290, 0
      %vm1300 = vcmp.ne.s32.totalorder %v1292, 0
      %vm1301 = vmand %vm1253, %vm1293
      %vm1302 = vmand %vm1254, %vm1294
      %vm1303 = vmand %vm1255, %vm1295
      %vm1304 = vmand %vm1256, %vm1296
      %vm1305 = vmand %vm1257, %vm1297
      %vm1306 = vmand %vm1258, %vm1298
      %vm1307 = vmand %vm1259, %vm1299
      %vm1308 = vmand %vm1260, %vm1300
      %v1309 = vsel %vm1301, %v141, 0
      %v1310 = vsel %vm1302, %v142, 0
      %v1311 = vsel %vm1303, %v143, 0
      %v1312 = vsel %vm1304, %v144, 0
      %v1313 = vsel %vm1305, %v145, 0
      %v1314 = vsel %vm1306, %v146, 0
      %v1315 = vsel %vm1307, %v147, 0
      %v1316 = vsel %vm1308, %v148, 0
      %1317 = vrot.lane.b32.xlu0 %v1205, 1
      %v1318 = vpop.permute.xlu0 %1317
      %1319 = vrot.lane.b32.xlu0 %v1206, 1
      %v1320 = vpop.permute.xlu0 %1319
      %1321 = vrot.lane.b32.xlu0 %v1207, 1
      %v1322 = vpop.permute.xlu0 %1321
      %1323 = vrot.lane.b32.xlu0 %v1208, 1
      %v1324 = vpop.permute.xlu0 %1323
      %1325 = vrot.lane.b32.xlu0 %v1209, 1
      %v1326 = vpop.permute.xlu0 %1325
      %1327 = vrot.lane.b32.xlu0 %v1210, 1
      %v1328 = vpop.permute.xlu0 %1327
      %1329 = vrot.lane.b32.xlu0 %v1211, 1
      %v1330 = vpop.permute.xlu0 %1329
      %1331 = vrot.lane.b32.xlu0 %v1212, 1
      %v1332 = vpop.permute.xlu0 %1331
      %v1333 = vsel %vm1301, %v1318, 0
      %v1334 = vsel %vm1302, %v1320, 0
      %v1335 = vsel %vm1303, %v1322, 0
      %v1336 = vsel %vm1304, %v1324, 0
      %v1337 = vsel %vm1305, %v1326, 0
      %v1338 = vsel %vm1306, %v1328, 0
      %v1339 = vsel %vm1307, %v1330, 0
      %v1340 = vsel %vm1308, %v1332, 0
      %v1341 = vadd.s32 %v1333, 320
      %v1342 = vadd.s32 %v1334, 320
      %v1343 = vadd.s32 %v1335, 320
      %v1344 = vadd.s32 %v1336, 320
      %v1345 = vadd.s32 %v1337, 320
      %v1346 = vadd.s32 %v1338, 320
      %v1347 = vadd.s32 %v1339, 320
      %v1348 = vadd.s32 %v1340, 320
      %v1349 = vmul.f32 %v117, -1.0
      %v1350 = vmul.f32 %v118, -1.0
      %v1351 = vmul.f32 %v119, -1.0
      %v1352 = vmul.f32 %v120, -1.0
      %v1353 = vmul.f32 %v121, -1.0
      %v1354 = vmul.f32 %v122, -1.0
      %v1355 = vmul.f32 %v123, -1.0
      %v1356 = vmul.f32 %v124, -1.0
      %v1357 = vmul.f32 %v117, 1.2246469e-16
      %v1358 = vmul.f32 %v118, 1.2246469e-16
      %v1359 = vmul.f32 %v119, 1.2246469e-16
      %v1360 = vmul.f32 %v120, 1.2246469e-16
      %v1361 = vmul.f32 %v121, 1.2246469e-16
      %v1362 = vmul.f32 %v122, 1.2246469e-16
      %v1363 = vmul.f32 %v123, 1.2246469e-16
      %v1364 = vmul.f32 %v124, 1.2246469e-16
      %1373 = vrot.lane.b32.xlu0 %v1357, 126
      %v1374 = vpop.permute.xlu0 %1373
      %1375 = vrot.lane.b32.xlu0 %v1358, 126
      %v1376 = vpop.permute.xlu0 %1375
      %1377 = vrot.lane.b32.xlu0 %v1359, 126
      %v1378 = vpop.permute.xlu0 %1377
      %1379 = vrot.lane.b32.xlu0 %v1360, 126
      %v1380 = vpop.permute.xlu0 %1379
      %1381 = vrot.lane.b32.xlu0 %v1361, 126
      %v1382 = vpop.permute.xlu0 %1381
      %1383 = vrot.lane.b32.xlu0 %v1362, 126
      %v1384 = vpop.permute.xlu0 %1383
      %1385 = vrot.lane.b32.xlu0 %v1363, 126
      %v1386 = vpop.permute.xlu0 %1385
      %1387 = vrot.lane.b32.xlu0 %v1364, 126
      %v1388 = vpop.permute.xlu0 %1387
      %v1397 = vsub.f32 %v1349, %v1374
      %v1398 = vsub.f32 %v1350, %v1376
      %v1399 = vsub.f32 %v1351, %v1378
      %v1400 = vsub.f32 %v1352, %v1380
      %v1401 = vsub.f32 %v1353, %v1382
      %v1402 = vsub.f32 %v1354, %v1384
      %v1403 = vsub.f32 %v1355, %v1386
      %v1404 = vsub.f32 %v1356, %v1388
      %v1405 = vadd.f32 %v1397, 2.0
      %v1406 = vadd.f32 %v1398, 2.0
      %v1407 = vadd.f32 %v1399, 2.0
      %v1408 = vadd.f32 %v1400, 2.0
      %v1409 = vadd.f32 %v1401, 2.0
      %v1410 = vadd.f32 %v1402, 2.0
      %v1411 = vadd.f32 %v1403, 2.0
      %v1412 = vadd.f32 %v1404, 2.0
      %v1413 = vmul.f32 %v1405, 16.0
      %v1414 = vmul.f32 %v1406, 16.0
      %v1415 = vmul.f32 %v1407, 16.0
      %v1416 = vmul.f32 %v1408, 16.0
      %v1417 = vmul.f32 %v1409, 16.0
      %v1418 = vmul.f32 %v1410, 16.0
      %v1419 = vmul.f32 %v1411, 16.0
      %v1420 = vmul.f32 %v1412, 16.0
      %v1421 = vcvt.f32.s32.ties.to.even %v1413
      %v1422 = vcvt.f32.s32.ties.to.even %v1414
      %v1423 = vcvt.f32.s32.ties.to.even %v1415
      %v1424 = vcvt.f32.s32.ties.to.even %v1416
      %v1425 = vcvt.f32.s32.ties.to.even %v1417
      %v1426 = vcvt.f32.s32.ties.to.even %v1418
      %v1427 = vcvt.f32.s32.ties.to.even %v1419
      %v1428 = vcvt.f32.s32.ties.to.even %v1420
      %vm1429 = vcmp.ge.s32.totalorder %v1421, 0
      %vm1430 = vcmp.ge.s32.totalorder %v1422, 0
      %vm1431 = vcmp.ge.s32.totalorder %v1423, 0
      %vm1432 = vcmp.ge.s32.totalorder %v1424, 0
      %vm1433 = vcmp.ge.s32.totalorder %v1425, 0
      %vm1434 = vcmp.ge.s32.totalorder %v1426, 0
      %vm1435 = vcmp.ge.s32.totalorder %v1427, 0
      %vm1436 = vcmp.ge.s32.totalorder %v1428, 0
      %v1437 = vsel %vm1429, 1, 0
      %v1438 = vsel %vm1430, 1, 0
      %v1439 = vsel %vm1431, 1, 0
      %v1440 = vsel %vm1432, 1, 0
      %v1441 = vsel %vm1433, 1, 0
      %v1442 = vsel %vm1434, 1, 0
      %v1443 = vsel %vm1435, 1, 0
      %v1444 = vsel %vm1436, 1, 0
      %1445 = vrot.lane.b32.xlu0 %v1437, 1
      %v1446 = vpop.permute.xlu0 %1445
      %1447 = vrot.lane.b32.xlu0 %v1438, 1
      %v1448 = vpop.permute.xlu0 %1447
      %1449 = vrot.lane.b32.xlu0 %v1439, 1
      %v1450 = vpop.permute.xlu0 %1449
      %1451 = vrot.lane.b32.xlu0 %v1440, 1
      %v1452 = vpop.permute.xlu0 %1451
      %1453 = vrot.lane.b32.xlu0 %v1441, 1
      %v1454 = vpop.permute.xlu0 %1453
      %1455 = vrot.lane.b32.xlu0 %v1442, 1
      %v1456 = vpop.permute.xlu0 %1455
      %1457 = vrot.lane.b32.xlu0 %v1443, 1
      %v1458 = vpop.permute.xlu0 %1457
      %1459 = vrot.lane.b32.xlu0 %v1444, 1
      %v1460 = vpop.permute.xlu0 %1459
      %vm1461 = vcmp.ne.s32.totalorder %v1446, 0
      %vm1462 = vcmp.ne.s32.totalorder %v1448, 0
      %vm1463 = vcmp.ne.s32.totalorder %v1450, 0
      %vm1464 = vcmp.ne.s32.totalorder %v1452, 0
      %vm1465 = vcmp.ne.s32.totalorder %v1454, 0
      %vm1466 = vcmp.ne.s32.totalorder %v1456, 0
      %vm1467 = vcmp.ne.s32.totalorder %v1458, 0
      %vm1468 = vcmp.ne.s32.totalorder %v1460, 0
      %vm1469 = vmand %vm165, %vm1461
      %vm1470 = vmand %vm166, %vm1462
      %vm1471 = vmand %vm167, %vm1463
      %vm1472 = vmand %vm168, %vm1464
      %vm1473 = vmand %vm169, %vm1465
      %vm1474 = vmand %vm170, %vm1466
      %vm1475 = vmand %vm171, %vm1467
      %vm1476 = vmand %vm172, %vm1468
      %vm1477 = vcmp.lt.s32.totalorder %v1421, 64
      %vm1478 = vcmp.lt.s32.totalorder %v1422, 64
      %vm1479 = vcmp.lt.s32.totalorder %v1423, 64
      %vm1480 = vcmp.lt.s32.totalorder %v1424, 64
      %vm1481 = vcmp.lt.s32.totalorder %v1425, 64
      %vm1482 = vcmp.lt.s32.totalorder %v1426, 64
      %vm1483 = vcmp.lt.s32.totalorder %v1427, 64
      %vm1484 = vcmp.lt.s32.totalorder %v1428, 64
      %v1485 = vsel %vm1477, 1, 0
      %v1486 = vsel %vm1478, 1, 0
      %v1487 = vsel %vm1479, 1, 0
      %v1488 = vsel %vm1480, 1, 0
      %v1489 = vsel %vm1481, 1, 0
      %v1490 = vsel %vm1482, 1, 0
      %v1491 = vsel %vm1483, 1, 0
      %v1492 = vsel %vm1484, 1, 0
      %1493 = vrot.lane.b32.xlu0 %v1485, 1
      %v1494 = vpop.permute.xlu0 %1493
      %1495 = vrot.lane.b32.xlu0 %v1486, 1
      %v1496 = vpop.permute.xlu0 %1495
      %1497 = vrot.lane.b32.xlu0 %v1487, 1
      %v1498 = vpop.permute.xlu0 %1497
      %1499 = vrot.lane.b32.xlu0 %v1488, 1
      %v1500 = vpop.permute.xlu0 %1499
      %1501 = vrot.lane.b32.xlu0 %v1489, 1
      %v1502 = vpop.permute.xlu0 %1501
      %1503 = vrot.lane.b32.xlu0 %v1490, 1
      %v1504 = vpop.permute.xlu0 %1503
      %1505 = vrot.lane.b32.xlu0 %v1491, 1
      %v1506 = vpop.permute.xlu0 %1505
      %1507 = vrot.lane.b32.xlu0 %v1492, 1
      %v1508 = vpop.permute.xlu0 %1507
      %vm1509 = vcmp.ne.s32.totalorder %v1494, 0
      %vm1510 = vcmp.ne.s32.totalorder %v1496, 0
      %vm1511 = vcmp.ne.s32.totalorder %v1498, 0
      %vm1512 = vcmp.ne.s32.totalorder %v1500, 0
      %vm1513 = vcmp.ne.s32.totalorder %v1502, 0
      %vm1514 = vcmp.ne.s32.totalorder %v1504, 0
      %vm1515 = vcmp.ne.s32.totalorder %v1506, 0
      %vm1516 = vcmp.ne.s32.totalorder %v1508, 0
      %vm1517 = vmand %vm1469, %vm1509
      %vm1518 = vmand %vm1470, %vm1510
      %vm1519 = vmand %vm1471, %vm1511
      %vm1520 = vmand %vm1472, %vm1512
      %vm1521 = vmand %vm1473, %vm1513
      %vm1522 = vmand %vm1474, %vm1514
      %vm1523 = vmand %vm1475, %vm1515
      %vm1524 = vmand %vm1476, %vm1516
      %v1525 = vsel %vm1517, %v141, 0
      %v1526 = vsel %vm1518, %v142, 0
      %v1527 = vsel %vm1519, %v143, 0
      %v1528 = vsel %vm1520, %v144, 0
      %v1529 = vsel %vm1521, %v145, 0
      %v1530 = vsel %vm1522, %v146, 0
      %v1531 = vsel %vm1523, %v147, 0
      %v1532 = vsel %vm1524, %v148, 0
      %1533 = vrot.lane.b32.xlu0 %v1421, 1
      %v1534 = vpop.permute.xlu0 %1533
      %1535 = vrot.lane.b32.xlu0 %v1422, 1
      %v1536 = vpop.permute.xlu0 %1535
      %1537 = vrot.lane.b32.xlu0 %v1423, 1
      %v1538 = vpop.permute.xlu0 %1537
      %1539 = vrot.lane.b32.xlu0 %v1424, 1
      %v1540 = vpop.permute.xlu0 %1539
      %1541 = vrot.lane.b32.xlu0 %v1425, 1
      %v1542 = vpop.permute.xlu0 %1541
      %1543 = vrot.lane.b32.xlu0 %v1426, 1
      %v1544 = vpop.permute.xlu0 %1543
      %1545 = vrot.lane.b32.xlu0 %v1427, 1
      %v1546 = vpop.permute.xlu0 %1545
      %1547 = vrot.lane.b32.xlu0 %v1428, 1
      %v1548 = vpop.permute.xlu0 %1547
      %v1549 = vsel %vm1517, %v1534, 0
      %v1550 = vsel %vm1518, %v1536, 0
      %v1551 = vsel %vm1519, %v1538, 0
      %v1552 = vsel %vm1520, %v1540, 0
      %v1553 = vsel %vm1521, %v1542, 0
      %v1554 = vsel %vm1522, %v1544, 0
      %v1555 = vsel %vm1523, %v1546, 0
      %v1556 = vsel %vm1524, %v1548, 0
      %v1557 = vadd.s32 %v1549, 384
      %v1558 = vadd.s32 %v1550, 384
      %v1559 = vadd.s32 %v1551, 384
      %v1560 = vadd.s32 %v1552, 384
      %v1561 = vadd.s32 %v1553, 384
      %v1562 = vadd.s32 %v1554, 384
      %v1563 = vadd.s32 %v1555, 384
      %v1564 = vadd.s32 %v1556, 384
      %1573 = vrot.lane.b32.xlu0 %v997, 126
      %v1574 = vpop.permute.xlu0 %1573
      %1575 = vrot.lane.b32.xlu0 %v998, 126
      %v1576 = vpop.permute.xlu0 %1575
      %1577 = vrot.lane.b32.xlu0 %v999, 126
      %v1578 = vpop.permute.xlu0 %1577
      %1579 = vrot.lane.b32.xlu0 %v1000, 126
      %v1580 = vpop.permute.xlu0 %1579
      %1581 = vrot.lane.b32.xlu0 %v1001, 126
      %v1582 = vpop.permute.xlu0 %1581
      %1583 = vrot.lane.b32.xlu0 %v1002, 126
      %v1584 = vpop.permute.xlu0 %1583
      %1585 = vrot.lane.b32.xlu0 %v1003, 126
      %v1586 = vpop.permute.xlu0 %1585
      %1587 = vrot.lane.b32.xlu0 %v1004, 126
      %v1588 = vpop.permute.xlu0 %1587
      %v1597 = vsub.f32 %v1173, %v1574
      %v1598 = vsub.f32 %v1174, %v1576
      %v1599 = vsub.f32 %v1175, %v1578
      %v1600 = vsub.f32 %v1176, %v1580
      %v1601 = vsub.f32 %v1177, %v1582
      %v1602 = vsub.f32 %v1178, %v1584
      %v1603 = vsub.f32 %v1179, %v1586
      %v1604 = vsub.f32 %v1180, %v1588
      %v1605 = vadd.f32 %v1597, 2.0
      %v1606 = vadd.f32 %v1598, 2.0
      %v1607 = vadd.f32 %v1599, 2.0
      %v1608 = vadd.f32 %v1600, 2.0
      %v1609 = vadd.f32 %v1601, 2.0
      %v1610 = vadd.f32 %v1602, 2.0
      %v1611 = vadd.f32 %v1603, 2.0
      %v1612 = vadd.f32 %v1604, 2.0
      %v1613 = vmul.f32 %v1605, 16.0
      %v1614 = vmul.f32 %v1606, 16.0
      %v1615 = vmul.f32 %v1607, 16.0
      %v1616 = vmul.f32 %v1608, 16.0
      %v1617 = vmul.f32 %v1609, 16.0
      %v1618 = vmul.f32 %v1610, 16.0
      %v1619 = vmul.f32 %v1611, 16.0
      %v1620 = vmul.f32 %v1612, 16.0
      %v1621 = vcvt.f32.s32.ties.to.even %v1613
      %v1622 = vcvt.f32.s32.ties.to.even %v1614
      %v1623 = vcvt.f32.s32.ties.to.even %v1615
      %v1624 = vcvt.f32.s32.ties.to.even %v1616
      %v1625 = vcvt.f32.s32.ties.to.even %v1617
      %v1626 = vcvt.f32.s32.ties.to.even %v1618
      %v1627 = vcvt.f32.s32.ties.to.even %v1619
      %v1628 = vcvt.f32.s32.ties.to.even %v1620
      %vm1629 = vcmp.ge.s32.totalorder %v1621, 0
      %vm1630 = vcmp.ge.s32.totalorder %v1622, 0
      %vm1631 = vcmp.ge.s32.totalorder %v1623, 0
      %vm1632 = vcmp.ge.s32.totalorder %v1624, 0
      %vm1633 = vcmp.ge.s32.totalorder %v1625, 0
      %vm1634 = vcmp.ge.s32.totalorder %v1626, 0
      %vm1635 = vcmp.ge.s32.totalorder %v1627, 0
      %vm1636 = vcmp.ge.s32.totalorder %v1628, 0
      %v1637 = vsel %vm1629, 1, 0
      %v1638 = vsel %vm1630, 1, 0
      %v1639 = vsel %vm1631, 1, 0
      %v1640 = vsel %vm1632, 1, 0
      %v1641 = vsel %vm1633, 1, 0
      %v1642 = vsel %vm1634, 1, 0
      %v1643 = vsel %vm1635, 1, 0
      %v1644 = vsel %vm1636, 1, 0
      %1645 = vrot.lane.b32.xlu0 %v1637, 1
      %v1646 = vpop.permute.xlu0 %1645
      %1647 = vrot.lane.b32.xlu0 %v1638, 1
      %v1648 = vpop.permute.xlu0 %1647
      %1649 = vrot.lane.b32.xlu0 %v1639, 1
      %v1650 = vpop.permute.xlu0 %1649
      %1651 = vrot.lane.b32.xlu0 %v1640, 1
      %v1652 = vpop.permute.xlu0 %1651
      %1653 = vrot.lane.b32.xlu0 %v1641, 1
      %v1654 = vpop.permute.xlu0 %1653
      %1655 = vrot.lane.b32.xlu0 %v1642, 1
      %v1656 = vpop.permute.xlu0 %1655
      %1657 = vrot.lane.b32.xlu0 %v1643, 1
      %v1658 = vpop.permute.xlu0 %1657
      %1659 = vrot.lane.b32.xlu0 %v1644, 1
      %v1660 = vpop.permute.xlu0 %1659
      %vm1661 = vcmp.ne.s32.totalorder %v1646, 0
      %vm1662 = vcmp.ne.s32.totalorder %v1648, 0
      %vm1663 = vcmp.ne.s32.totalorder %v1650, 0
      %vm1664 = vcmp.ne.s32.totalorder %v1652, 0
      %vm1665 = vcmp.ne.s32.totalorder %v1654, 0
      %vm1666 = vcmp.ne.s32.totalorder %v1656, 0
      %vm1667 = vcmp.ne.s32.totalorder %v1658, 0
      %vm1668 = vcmp.ne.s32.totalorder %v1660, 0
      %vm1669 = vmand %vm165, %vm1661
      %vm1670 = vmand %vm166, %vm1662
      %vm1671 = vmand %vm167, %vm1663
      %vm1672 = vmand %vm168, %vm1664
      %vm1673 = vmand %vm169, %vm1665
      %vm1674 = vmand %vm170, %vm1666
      %vm1675 = vmand %vm171, %vm1667
      %vm1676 = vmand %vm172, %vm1668
      %vm1677 = vcmp.lt.s32.totalorder %v1621, 64
      %vm1678 = vcmp.lt.s32.totalorder %v1622, 64
      %vm1679 = vcmp.lt.s32.totalorder %v1623, 64
      %vm1680 = vcmp.lt.s32.totalorder %v1624, 64
      %vm1681 = vcmp.lt.s32.totalorder %v1625, 64
      %vm1682 = vcmp.lt.s32.totalorder %v1626, 64
      %vm1683 = vcmp.lt.s32.totalorder %v1627, 64
      %vm1684 = vcmp.lt.s32.totalorder %v1628, 64
      %v1685 = vsel %vm1677, 1, 0
      %v1686 = vsel %vm1678, 1, 0
      %v1687 = vsel %vm1679, 1, 0
      %v1688 = vsel %vm1680, 1, 0
      %v1689 = vsel %vm1681, 1, 0
      %v1690 = vsel %vm1682, 1, 0
      %v1691 = vsel %vm1683, 1, 0
      %v1692 = vsel %vm1684, 1, 0
      %1693 = vrot.lane.b32.xlu0 %v1685, 1
      %v1694 = vpop.permute.xlu0 %1693
      %1695 = vrot.lane.b32.xlu0 %v1686, 1
      %v1696 = vpop.permute.xlu0 %1695
      %1697 = vrot.lane.b32.xlu0 %v1687, 1
      %v1698 = vpop.permute.xlu0 %1697
      %1699 = vrot.lane.b32.xlu0 %v1688, 1
      %v1700 = vpop.permute.xlu0 %1699
      %1701 = vrot.lane.b32.xlu0 %v1689, 1
      %v1702 = vpop.permute.xlu0 %1701
      %1703 = vrot.lane.b32.xlu0 %v1690, 1
      %v1704 = vpop.permute.xlu0 %1703
      %1705 = vrot.lane.b32.xlu0 %v1691, 1
      %v1706 = vpop.permute.xlu0 %1705
      %1707 = vrot.lane.b32.xlu0 %v1692, 1
      %v1708 = vpop.permute.xlu0 %1707
      %vm1709 = vcmp.ne.s32.totalorder %v1694, 0
      %vm1710 = vcmp.ne.s32.totalorder %v1696, 0
      %vm1711 = vcmp.ne.s32.totalorder %v1698, 0
      %vm1712 = vcmp.ne.s32.totalorder %v1700, 0
      %vm1713 = vcmp.ne.s32.totalorder %v1702, 0
      %vm1714 = vcmp.ne.s32.totalorder %v1704, 0
      %vm1715 = vcmp.ne.s32.totalorder %v1706, 0
      %vm1716 = vcmp.ne.s32.totalorder %v1708, 0
      %vm1717 = vmand %vm1669, %vm1709
      %vm1718 = vmand %vm1670, %vm1710
      %vm1719 = vmand %vm1671, %vm1711
      %vm1720 = vmand %vm1672, %vm1712
      %vm1721 = vmand %vm1673, %vm1713
      %vm1722 = vmand %vm1674, %vm1714
      %vm1723 = vmand %vm1675, %vm1715
      %vm1724 = vmand %vm1676, %vm1716
      %v1725 = vsel %vm1717, %v141, 0
      %v1726 = vsel %vm1718, %v142, 0
      %v1727 = vsel %vm1719, %v143, 0
      %v1728 = vsel %vm1720, %v144, 0
      %v1729 = vsel %vm1721, %v145, 0
      %v1730 = vsel %vm1722, %v146, 0
      %v1731 = vsel %vm1723, %v147, 0
      %v1732 = vsel %vm1724, %v148, 0
      %1733 = vrot.lane.b32.xlu0 %v1621, 1
      %v1734 = vpop.permute.xlu0 %1733
      %1735 = vrot.lane.b32.xlu0 %v1622, 1
      %v1736 = vpop.permute.xlu0 %1735
      %1737 = vrot.lane.b32.xlu0 %v1623, 1
      %v1738 = vpop.permute.xlu0 %1737
      %1739 = vrot.lane.b32.xlu0 %v1624, 1
      %v1740 = vpop.permute.xlu0 %1739
      %1741 = vrot.lane.b32.xlu0 %v1625, 1
      %v1742 = vpop.permute.xlu0 %1741
      %1743 = vrot.lane.b32.xlu0 %v1626, 1
      %v1744 = vpop.permute.xlu0 %1743
      %1745 = vrot.lane.b32.xlu0 %v1627, 1
      %v1746 = vpop.permute.xlu0 %1745
      %1747 = vrot.lane.b32.xlu0 %v1628, 1
      %v1748 = vpop.permute.xlu0 %1747
      %v1749 = vsel %vm1717, %v1734, 0
      %v1750 = vsel %vm1718, %v1736, 0
      %v1751 = vsel %vm1719, %v1738, 0
      %v1752 = vsel %vm1720, %v1740, 0
      %v1753 = vsel %vm1721, %v1742, 0
      %v1754 = vsel %vm1722, %v1744, 0
      %v1755 = vsel %vm1723, %v1746, 0
      %v1756 = vsel %vm1724, %v1748, 0
      %v1757 = vadd.s32 %v1749, 448
      %v1758 = vadd.s32 %v1750, 448
      %v1759 = vadd.s32 %v1751, 448
      %v1760 = vadd.s32 %v1752, 448
      %v1761 = vadd.s32 %v1753, 448
      %v1762 = vadd.s32 %v1754, 448
      %v1763 = vadd.s32 %v1755, 448
      %v1764 = vadd.s32 %v1756, 448
      %1773 = vrot.lane.b32.xlu0 %v1173, 126
      %v1774 = vpop.permute.xlu0 %1773
      %1775 = vrot.lane.b32.xlu0 %v1174, 126
      %v1776 = vpop.permute.xlu0 %1775
      %1777 = vrot.lane.b32.xlu0 %v1175, 126
      %v1778 = vpop.permute.xlu0 %1777
      %1779 = vrot.lane.b32.xlu0 %v1176, 126
      %v1780 = vpop.permute.xlu0 %1779
      %1781 = vrot.lane.b32.xlu0 %v1177, 126
      %v1782 = vpop.permute.xlu0 %1781
      %1783 = vrot.lane.b32.xlu0 %v1178, 126
      %v1784 = vpop.permute.xlu0 %1783
      %1785 = vrot.lane.b32.xlu0 %v1179, 126
      %v1786 = vpop.permute.xlu0 %1785
      %1787 = vrot.lane.b32.xlu0 %v1180, 126
      %v1788 = vpop.permute.xlu0 %1787
      %v1797 = vsub.f32 %v997, %v1774
      %v1798 = vsub.f32 %v998, %v1776
      %v1799 = vsub.f32 %v999, %v1778
      %v1800 = vsub.f32 %v1000, %v1780
      %v1801 = vsub.f32 %v1001, %v1782
      %v1802 = vsub.f32 %v1002, %v1784
      %v1803 = vsub.f32 %v1003, %v1786
      %v1804 = vsub.f32 %v1004, %v1788
      %v1805 = vadd.f32 %v1797, 2.0
      %v1806 = vadd.f32 %v1798, 2.0
      %v1807 = vadd.f32 %v1799, 2.0
      %v1808 = vadd.f32 %v1800, 2.0
      %v1809 = vadd.f32 %v1801, 2.0
      %v1810 = vadd.f32 %v1802, 2.0
      %v1811 = vadd.f32 %v1803, 2.0
      %v1812 = vadd.f32 %v1804, 2.0
      %v1813 = vmul.f32 %v1805, 16.0
      %v1814 = vmul.f32 %v1806, 16.0
      %v1815 = vmul.f32 %v1807, 16.0
      %v1816 = vmul.f32 %v1808, 16.0
      %v1817 = vmul.f32 %v1809, 16.0
      %v1818 = vmul.f32 %v1810, 16.0
      %v1819 = vmul.f32 %v1811, 16.0
      %v1820 = vmul.f32 %v1812, 16.0
      %v1821 = vcvt.f32.s32.ties.to.even %v1813
      %v1822 = vcvt.f32.s32.ties.to.even %v1814
      %v1823 = vcvt.f32.s32.ties.to.even %v1815
      %v1824 = vcvt.f32.s32.ties.to.even %v1816
      %v1825 = vcvt.f32.s32.ties.to.even %v1817
      %v1826 = vcvt.f32.s32.ties.to.even %v1818
      %v1827 = vcvt.f32.s32.ties.to.even %v1819
      %v1828 = vcvt.f32.s32.ties.to.even %v1820
      %vm1829 = vcmp.ge.s32.totalorder %v1821, 0
      %vm1830 = vcmp.ge.s32.totalorder %v1822, 0
      %vm1831 = vcmp.ge.s32.totalorder %v1823, 0
      %vm1832 = vcmp.ge.s32.totalorder %v1824, 0
      %vm1833 = vcmp.ge.s32.totalorder %v1825, 0
      %vm1834 = vcmp.ge.s32.totalorder %v1826, 0
      %vm1835 = vcmp.ge.s32.totalorder %v1827, 0
      %vm1836 = vcmp.ge.s32.totalorder %v1828, 0
      %v1837 = vsel %vm1829, 1, 0
      %v1838 = vsel %vm1830, 1, 0
      %v1839 = vsel %vm1831, 1, 0
      %v1840 = vsel %vm1832, 1, 0
      %v1841 = vsel %vm1833, 1, 0
      %v1842 = vsel %vm1834, 1, 0
      %v1843 = vsel %vm1835, 1, 0
      %v1844 = vsel %vm1836, 1, 0
      %1845 = vrot.lane.b32.xlu0 %v1837, 1
      %v1846 = vpop.permute.xlu0 %1845
      %1847 = vrot.lane.b32.xlu0 %v1838, 1
      %v1848 = vpop.permute.xlu0 %1847
      %1849 = vrot.lane.b32.xlu0 %v1839, 1
      %v1850 = vpop.permute.xlu0 %1849
      %1851 = vrot.lane.b32.xlu0 %v1840, 1
      %v1852 = vpop.permute.xlu0 %1851
      %1853 = vrot.lane.b32.xlu0 %v1841, 1
      %v1854 = vpop.permute.xlu0 %1853
      %1855 = vrot.lane.b32.xlu0 %v1842, 1
      %v1856 = vpop.permute.xlu0 %1855
      %1857 = vrot.lane.b32.xlu0 %v1843, 1
      %v1858 = vpop.permute.xlu0 %1857
      %1859 = vrot.lane.b32.xlu0 %v1844, 1
      %v1860 = vpop.permute.xlu0 %1859
      %vm1861 = vcmp.ne.s32.totalorder %v1846, 0
      %vm1862 = vcmp.ne.s32.totalorder %v1848, 0
      %vm1863 = vcmp.ne.s32.totalorder %v1850, 0
      %vm1864 = vcmp.ne.s32.totalorder %v1852, 0
      %vm1865 = vcmp.ne.s32.totalorder %v1854, 0
      %vm1866 = vcmp.ne.s32.totalorder %v1856, 0
      %vm1867 = vcmp.ne.s32.totalorder %v1858, 0
      %vm1868 = vcmp.ne.s32.totalorder %v1860, 0
      %vm1869 = vmand %vm165, %vm1861
      %vm1870 = vmand %vm166, %vm1862
      %vm1871 = vmand %vm167, %vm1863
      %vm1872 = vmand %vm168, %vm1864
      %vm1873 = vmand %vm169, %vm1865
      %vm1874 = vmand %vm170, %vm1866
      %vm1875 = vmand %vm171, %vm1867
      %vm1876 = vmand %vm172, %vm1868
      %vm1877 = vcmp.lt.s32.totalorder %v1821, 64
      %vm1878 = vcmp.lt.s32.totalorder %v1822, 64
      %vm1879 = vcmp.lt.s32.totalorder %v1823, 64
      %vm1880 = vcmp.lt.s32.totalorder %v1824, 64
      %vm1881 = vcmp.lt.s32.totalorder %v1825, 64
      %vm1882 = vcmp.lt.s32.totalorder %v1826, 64
      %vm1883 = vcmp.lt.s32.totalorder %v1827, 64
      %vm1884 = vcmp.lt.s32.totalorder %v1828, 64
      %v1885 = vsel %vm1877, 1, 0
      %v1886 = vsel %vm1878, 1, 0
      %v1887 = vsel %vm1879, 1, 0
      %v1888 = vsel %vm1880, 1, 0
      %v1889 = vsel %vm1881, 1, 0
      %v1890 = vsel %vm1882, 1, 0
      %v1891 = vsel %vm1883, 1, 0
      %v1892 = vsel %vm1884, 1, 0
      %1893 = vrot.lane.b32.xlu0 %v1885, 1
      %v1894 = vpop.permute.xlu0 %1893
      %1895 = vrot.lane.b32.xlu0 %v1886, 1
      %v1896 = vpop.permute.xlu0 %1895
      %1897 = vrot.lane.b32.xlu0 %v1887, 1
      %v1898 = vpop.permute.xlu0 %1897
      %1899 = vrot.lane.b32.xlu0 %v1888, 1
      %v1900 = vpop.permute.xlu0 %1899
      %1901 = vrot.lane.b32.xlu0 %v1889, 1
      %v1902 = vpop.permute.xlu0 %1901
      %1903 = vrot.lane.b32.xlu0 %v1890, 1
      %v1904 = vpop.permute.xlu0 %1903
      %1905 = vrot.lane.b32.xlu0 %v1891, 1
      %v1906 = vpop.permute.xlu0 %1905
      %1907 = vrot.lane.b32.xlu0 %v1892, 1
      %v1908 = vpop.permute.xlu0 %1907
      %vm1909 = vcmp.ne.s32.totalorder %v1894, 0
      %vm1910 = vcmp.ne.s32.totalorder %v1896, 0
      %vm1911 = vcmp.ne.s32.totalorder %v1898, 0
      %vm1912 = vcmp.ne.s32.totalorder %v1900, 0
      %vm1913 = vcmp.ne.s32.totalorder %v1902, 0
      %vm1914 = vcmp.ne.s32.totalorder %v1904, 0
      %vm1915 = vcmp.ne.s32.totalorder %v1906, 0
      %vm1916 = vcmp.ne.s32.totalorder %v1908, 0
      %vm1917 = vmand %vm1869, %vm1909
      %vm1918 = vmand %vm1870, %vm1910
      %vm1919 = vmand %vm1871, %vm1911
      %vm1920 = vmand %vm1872, %vm1912
      %vm1921 = vmand %vm1873, %vm1913
      %vm1922 = vmand %vm1874, %vm1914
      %vm1923 = vmand %vm1875, %vm1915
      %vm1924 = vmand %vm1876, %vm1916
      %v1925 = vsel %vm1917, %v141, 0
      %v1926 = vsel %vm1918, %v142, 0
      %v1927 = vsel %vm1919, %v143, 0
      %v1928 = vsel %vm1920, %v144, 0
      %v1929 = vsel %vm1921, %v145, 0
      %v1930 = vsel %vm1922, %v146, 0
      %v1931 = vsel %vm1923, %v147, 0
      %v1932 = vsel %vm1924, %v148, 0
      %1933 = vrot.lane.b32.xlu0 %v1821, 1
      %v1934 = vpop.permute.xlu0 %1933
      %1935 = vrot.lane.b32.xlu0 %v1822, 1
      %v1936 = vpop.permute.xlu0 %1935
      %1937 = vrot.lane.b32.xlu0 %v1823, 1
      %v1938 = vpop.permute.xlu0 %1937
      %1939 = vrot.lane.b32.xlu0 %v1824, 1
      %v1940 = vpop.permute.xlu0 %1939
      %1941 = vrot.lane.b32.xlu0 %v1825, 1
      %v1942 = vpop.permute.xlu0 %1941
      %1943 = vrot.lane.b32.xlu0 %v1826, 1
      %v1944 = vpop.permute.xlu0 %1943
      %1945 = vrot.lane.b32.xlu0 %v1827, 1
      %v1946 = vpop.permute.xlu0 %1945
      %1947 = vrot.lane.b32.xlu0 %v1828, 1
      %v1948 = vpop.permute.xlu0 %1947
      %v1949 = vsel %vm1917, %v1934, 0
      %v1950 = vsel %vm1918, %v1936, 0
      %v1951 = vsel %vm1919, %v1938, 0
      %v1952 = vsel %vm1920, %v1940, 0
      %v1953 = vsel %vm1921, %v1942, 0
      %v1954 = vsel %vm1922, %v1944, 0
      %v1955 = vsel %vm1923, %v1946, 0
      %v1956 = vsel %vm1924, %v1948, 0
      %v1957 = vadd.s32 %v1949, 512
      %v1958 = vadd.s32 %v1950, 512
      %v1959 = vadd.s32 %v1951, 512
      %v1960 = vadd.s32 %v1952, 512
      %v1961 = vadd.s32 %v1953, 512
      %v1962 = vadd.s32 %v1954, 512
      %v1963 = vadd.s32 %v1955, 512
      %v1964 = vadd.s32 %v1956, 512
      %v1965 = vmul.f32 %v117, -1.8369701e-16
      %v1966 = vmul.f32 %v118, -1.8369701e-16
      %v1967 = vmul.f32 %v119, -1.8369701e-16
      %v1968 = vmul.f32 %v120, -1.8369701e-16
      %v1969 = vmul.f32 %v121, -1.8369701e-16
      %v1970 = vmul.f32 %v122, -1.8369701e-16
      %v1971 = vmul.f32 %v123, -1.8369701e-16
      %v1972 = vmul.f32 %v124, -1.8369701e-16
      %1981 = vrot.lane.b32.xlu0 %v1349, 126
      %v1982 = vpop.permute.xlu0 %1981
      %1983 = vrot.lane.b32.xlu0 %v1350, 126
      %v1984 = vpop.permute.xlu0 %1983
      %1985 = vrot.lane.b32.xlu0 %v1351, 126
      %v1986 = vpop.permute.xlu0 %1985
      %1987 = vrot.lane.b32.xlu0 %v1352, 126
      %v1988 = vpop.permute.xlu0 %1987
      %1989 = vrot.lane.b32.xlu0 %v1353, 126
      %v1990 = vpop.permute.xlu0 %1989
      %1991 = vrot.lane.b32.xlu0 %v1354, 126
      %v1992 = vpop.permute.xlu0 %1991
      %1993 = vrot.lane.b32.xlu0 %v1355, 126
      %v1994 = vpop.permute.xlu0 %1993
      %1995 = vrot.lane.b32.xlu0 %v1356, 126
      %v1996 = vpop.permute.xlu0 %1995
      %v2005 = vsub.f32 %v1965, %v1982
      %v2006 = vsub.f32 %v1966, %v1984
      %v2007 = vsub.f32 %v1967, %v1986
      %v2008 = vsub.f32 %v1968, %v1988
      %v2009 = vsub.f32 %v1969, %v1990
      %v2010 = vsub.f32 %v1970, %v1992
      %v2011 = vsub.f32 %v1971, %v1994
      %v2012 = vsub.f32 %v1972, %v1996
      %v2013 = vadd.f32 %v2005, 2.0
      %v2014 = vadd.f32 %v2006, 2.0
      %v2015 = vadd.f32 %v2007, 2.0
      %v2016 = vadd.f32 %v2008, 2.0
      %v2017 = vadd.f32 %v2009, 2.0
      %v2018 = vadd.f32 %v2010, 2.0
      %v2019 = vadd.f32 %v2011, 2.0
      %v2020 = vadd.f32 %v2012, 2.0
      %v2021 = vmul.f32 %v2013, 16.0
      %v2022 = vmul.f32 %v2014, 16.0
      %v2023 = vmul.f32 %v2015, 16.0
      %v2024 = vmul.f32 %v2016, 16.0
      %v2025 = vmul.f32 %v2017, 16.0
      %v2026 = vmul.f32 %v2018, 16.0
      %v2027 = vmul.f32 %v2019, 16.0
      %v2028 = vmul.f32 %v2020, 16.0
      %v2029 = vcvt.f32.s32.ties.to.even %v2021
      %v2030 = vcvt.f32.s32.ties.to.even %v2022
      %v2031 = vcvt.f32.s32.ties.to.even %v2023
      %v2032 = vcvt.f32.s32.ties.to.even %v2024
      %v2033 = vcvt.f32.s32.ties.to.even %v2025
      %v2034 = vcvt.f32.s32.ties.to.even %v2026
      %v2035 = vcvt.f32.s32.ties.to.even %v2027
      %v2036 = vcvt.f32.s32.ties.to.even %v2028
      %vm2037 = vcmp.ge.s32.totalorder %v2029, 0
      %vm2038 = vcmp.ge.s32.totalorder %v2030, 0
      %vm2039 = vcmp.ge.s32.totalorder %v2031, 0
      %vm2040 = vcmp.ge.s32.totalorder %v2032, 0
      %vm2041 = vcmp.ge.s32.totalorder %v2033, 0
      %vm2042 = vcmp.ge.s32.totalorder %v2034, 0
      %vm2043 = vcmp.ge.s32.totalorder %v2035, 0
      %vm2044 = vcmp.ge.s32.totalorder %v2036, 0
      %v2045 = vsel %vm2037, 1, 0
      %v2046 = vsel %vm2038, 1, 0
      %v2047 = vsel %vm2039, 1, 0
      %v2048 = vsel %vm2040, 1, 0
      %v2049 = vsel %vm2041, 1, 0
      %v2050 = vsel %vm2042, 1, 0
      %v2051 = vsel %vm2043, 1, 0
      %v2052 = vsel %vm2044, 1, 0
      %2053 = vrot.lane.b32.xlu0 %v2045, 1
      %v2054 = vpop.permute.xlu0 %2053
      %2055 = vrot.lane.b32.xlu0 %v2046, 1
      %v2056 = vpop.permute.xlu0 %2055
      %2057 = vrot.lane.b32.xlu0 %v2047, 1
      %v2058 = vpop.permute.xlu0 %2057
      %2059 = vrot.lane.b32.xlu0 %v2048, 1
      %v2060 = vpop.permute.xlu0 %2059
      %2061 = vrot.lane.b32.xlu0 %v2049, 1
      %v2062 = vpop.permute.xlu0 %2061
      %2063 = vrot.lane.b32.xlu0 %v2050, 1
      %v2064 = vpop.permute.xlu0 %2063
      %2065 = vrot.lane.b32.xlu0 %v2051, 1
      %v2066 = vpop.permute.xlu0 %2065
      %2067 = vrot.lane.b32.xlu0 %v2052, 1
      %v2068 = vpop.permute.xlu0 %2067
      %vm2069 = vcmp.ne.s32.totalorder %v2054, 0
      %vm2070 = vcmp.ne.s32.totalorder %v2056, 0
      %vm2071 = vcmp.ne.s32.totalorder %v2058, 0
      %vm2072 = vcmp.ne.s32.totalorder %v2060, 0
      %vm2073 = vcmp.ne.s32.totalorder %v2062, 0
      %vm2074 = vcmp.ne.s32.totalorder %v2064, 0
      %vm2075 = vcmp.ne.s32.totalorder %v2066, 0
      %vm2076 = vcmp.ne.s32.totalorder %v2068, 0
      %vm2077 = vmand %vm165, %vm2069
      %vm2078 = vmand %vm166, %vm2070
      %vm2079 = vmand %vm167, %vm2071
      %vm2080 = vmand %vm168, %vm2072
      %vm2081 = vmand %vm169, %vm2073
      %vm2082 = vmand %vm170, %vm2074
      %vm2083 = vmand %vm171, %vm2075
      %vm2084 = vmand %vm172, %vm2076
      %vm2085 = vcmp.lt.s32.totalorder %v2029, 64
      %vm2086 = vcmp.lt.s32.totalorder %v2030, 64
      %vm2087 = vcmp.lt.s32.totalorder %v2031, 64
      %vm2088 = vcmp.lt.s32.totalorder %v2032, 64
      %vm2089 = vcmp.lt.s32.totalorder %v2033, 64
      %vm2090 = vcmp.lt.s32.totalorder %v2034, 64
      %vm2091 = vcmp.lt.s32.totalorder %v2035, 64
      %vm2092 = vcmp.lt.s32.totalorder %v2036, 64
      %v2093 = vsel %vm2085, 1, 0
      %v2094 = vsel %vm2086, 1, 0
      %v2095 = vsel %vm2087, 1, 0
      %v2096 = vsel %vm2088, 1, 0
      %v2097 = vsel %vm2089, 1, 0
      %v2098 = vsel %vm2090, 1, 0
      %v2099 = vsel %vm2091, 1, 0
      %v2100 = vsel %vm2092, 1, 0
      %2101 = vrot.lane.b32.xlu0 %v2093, 1
      %v2102 = vpop.permute.xlu0 %2101
      %2103 = vrot.lane.b32.xlu0 %v2094, 1
      %v2104 = vpop.permute.xlu0 %2103
      %2105 = vrot.lane.b32.xlu0 %v2095, 1
      %v2106 = vpop.permute.xlu0 %2105
      %2107 = vrot.lane.b32.xlu0 %v2096, 1
      %v2108 = vpop.permute.xlu0 %2107
      %2109 = vrot.lane.b32.xlu0 %v2097, 1
      %v2110 = vpop.permute.xlu0 %2109
      %2111 = vrot.lane.b32.xlu0 %v2098, 1
      %v2112 = vpop.permute.xlu0 %2111
      %2113 = vrot.lane.b32.xlu0 %v2099, 1
      %v2114 = vpop.permute.xlu0 %2113
      %2115 = vrot.lane.b32.xlu0 %v2100, 1
      %v2116 = vpop.permute.xlu0 %2115
      %vm2117 = vcmp.ne.s32.totalorder %v2102, 0
      %vm2118 = vcmp.ne.s32.totalorder %v2104, 0
      %vm2119 = vcmp.ne.s32.totalorder %v2106, 0
      %vm2120 = vcmp.ne.s32.totalorder %v2108, 0
      %vm2121 = vcmp.ne.s32.totalorder %v2110, 0
      %vm2122 = vcmp.ne.s32.totalorder %v2112, 0
      %vm2123 = vcmp.ne.s32.totalorder %v2114, 0
      %vm2124 = vcmp.ne.s32.totalorder %v2116, 0
      %vm2125 = vmand %vm2077, %vm2117
      %vm2126 = vmand %vm2078, %vm2118
      %vm2127 = vmand %vm2079, %vm2119
      %vm2128 = vmand %vm2080, %vm2120
      %vm2129 = vmand %vm2081, %vm2121
      %vm2130 = vmand %vm2082, %vm2122
      %vm2131 = vmand %vm2083, %vm2123
      %vm2132 = vmand %vm2084, %vm2124
      %v2133 = vsel %vm2125, %v141, 0
      %v2134 = vsel %vm2126, %v142, 0
      %v2135 = vsel %vm2127, %v143, 0
      %v2136 = vsel %vm2128, %v144, 0
      %v2137 = vsel %vm2129, %v145, 0
      %v2138 = vsel %vm2130, %v146, 0
      %v2139 = vsel %vm2131, %v147, 0
      %v2140 = vsel %vm2132, %v148, 0
      %2141 = vrot.lane.b32.xlu0 %v2029, 1
      %v2142 = vpop.permute.xlu0 %2141
      %2143 = vrot.lane.b32.xlu0 %v2030, 1
      %v2144 = vpop.permute.xlu0 %2143
      %2145 = vrot.lane.b32.xlu0 %v2031, 1
      %v2146 = vpop.permute.xlu0 %2145
      %2147 = vrot.lane.b32.xlu0 %v2032, 1
      %v2148 = vpop.permute.xlu0 %2147
      %2149 = vrot.lane.b32.xlu0 %v2033, 1
      %v2150 = vpop.permute.xlu0 %2149
      %2151 = vrot.lane.b32.xlu0 %v2034, 1
      %v2152 = vpop.permute.xlu0 %2151
      %2153 = vrot.lane.b32.xlu0 %v2035, 1
      %v2154 = vpop.permute.xlu0 %2153
      %2155 = vrot.lane.b32.xlu0 %v2036, 1
      %v2156 = vpop.permute.xlu0 %2155
      %v2157 = vsel %vm2125, %v2142, 0
      %v2158 = vsel %vm2126, %v2144, 0
      %v2159 = vsel %vm2127, %v2146, 0
      %v2160 = vsel %vm2128, %v2148, 0
      %v2161 = vsel %vm2129, %v2150, 0
      %v2162 = vsel %vm2130, %v2152, 0
      %v2163 = vsel %vm2131, %v2154, 0
      %v2164 = vsel %vm2132, %v2156, 0
      %v2165 = vadd.s32 %v2157, 576
      %v2166 = vadd.s32 %v2158, 576
      %v2167 = vadd.s32 %v2159, 576
      %v2168 = vadd.s32 %v2160, 576
      %v2169 = vadd.s32 %v2161, 576
      %v2170 = vadd.s32 %v2162, 576
      %v2171 = vadd.s32 %v2163, 576
      %v2172 = vadd.s32 %v2164, 576
      %v2173 = vsub.f32 %v381, %v1774
      %v2174 = vsub.f32 %v382, %v1776
      %v2175 = vsub.f32 %v383, %v1778
      %v2176 = vsub.f32 %v384, %v1780
      %v2177 = vsub.f32 %v385, %v1782
      %v2178 = vsub.f32 %v386, %v1784
      %v2179 = vsub.f32 %v387, %v1786
      %v2180 = vsub.f32 %v388, %v1788
      %v2181 = vadd.f32 %v2173, 2.0
      %v2182 = vadd.f32 %v2174, 2.0
      %v2183 = vadd.f32 %v2175, 2.0
      %v2184 = vadd.f32 %v2176, 2.0
      %v2185 = vadd.f32 %v2177, 2.0
      %v2186 = vadd.f32 %v2178, 2.0
      %v2187 = vadd.f32 %v2179, 2.0
      %v2188 = vadd.f32 %v2180, 2.0
      %v2189 = vmul.f32 %v2181, 16.0
      %v2190 = vmul.f32 %v2182, 16.0
      %v2191 = vmul.f32 %v2183, 16.0
      %v2192 = vmul.f32 %v2184, 16.0
      %v2193 = vmul.f32 %v2185, 16.0
      %v2194 = vmul.f32 %v2186, 16.0
      %v2195 = vmul.f32 %v2187, 16.0
      %v2196 = vmul.f32 %v2188, 16.0
      %v2197 = vcvt.f32.s32.ties.to.even %v2189
      %v2198 = vcvt.f32.s32.ties.to.even %v2190
      %v2199 = vcvt.f32.s32.ties.to.even %v2191
      %v2200 = vcvt.f32.s32.ties.to.even %v2192
      %v2201 = vcvt.f32.s32.ties.to.even %v2193
      %v2202 = vcvt.f32.s32.ties.to.even %v2194
      %v2203 = vcvt.f32.s32.ties.to.even %v2195
      %v2204 = vcvt.f32.s32.ties.to.even %v2196
      %vm2205 = vcmp.ge.s32.totalorder %v2197, 0
      %vm2206 = vcmp.ge.s32.totalorder %v2198, 0
      %vm2207 = vcmp.ge.s32.totalorder %v2199, 0
      %vm2208 = vcmp.ge.s32.totalorder %v2200, 0
      %vm2209 = vcmp.ge.s32.totalorder %v2201, 0
      %vm2210 = vcmp.ge.s32.totalorder %v2202, 0
      %vm2211 = vcmp.ge.s32.totalorder %v2203, 0
      %vm2212 = vcmp.ge.s32.totalorder %v2204, 0
      %v2213 = vsel %vm2205, 1, 0
      %v2214 = vsel %vm2206, 1, 0
      %v2215 = vsel %vm2207, 1, 0
      %v2216 = vsel %vm2208, 1, 0
      %v2217 = vsel %vm2209, 1, 0
      %v2218 = vsel %vm2210, 1, 0
      %v2219 = vsel %vm2211, 1, 0
      %v2220 = vsel %vm2212, 1, 0
      %2221 = vrot.lane.b32.xlu0 %v2213, 1
      %v2222 = vpop.permute.xlu0 %2221
      %2223 = vrot.lane.b32.xlu0 %v2214, 1
      %v2224 = vpop.permute.xlu0 %2223
      %2225 = vrot.lane.b32.xlu0 %v2215, 1
      %v2226 = vpop.permute.xlu0 %2225
      %2227 = vrot.lane.b32.xlu0 %v2216, 1
      %v2228 = vpop.permute.xlu0 %2227
      %2229 = vrot.lane.b32.xlu0 %v2217, 1
      %v2230 = vpop.permute.xlu0 %2229
      %2231 = vrot.lane.b32.xlu0 %v2218, 1
      %v2232 = vpop.permute.xlu0 %2231
      %2233 = vrot.lane.b32.xlu0 %v2219, 1
      %v2234 = vpop.permute.xlu0 %2233
      %2235 = vrot.lane.b32.xlu0 %v2220, 1
      %v2236 = vpop.permute.xlu0 %2235
      %vm2237 = vcmp.ne.s32.totalorder %v2222, 0
      %vm2238 = vcmp.ne.s32.totalorder %v2224, 0
      %vm2239 = vcmp.ne.s32.totalorder %v2226, 0
      %vm2240 = vcmp.ne.s32.totalorder %v2228, 0
      %vm2241 = vcmp.ne.s32.totalorder %v2230, 0
      %vm2242 = vcmp.ne.s32.totalorder %v2232, 0
      %vm2243 = vcmp.ne.s32.totalorder %v2234, 0
      %vm2244 = vcmp.ne.s32.totalorder %v2236, 0
      %vm2245 = vmand %vm165, %vm2237
      %vm2246 = vmand %vm166, %vm2238
      %vm2247 = vmand %vm167, %vm2239
      %vm2248 = vmand %vm168, %vm2240
      %vm2249 = vmand %vm169, %vm2241
      %vm2250 = vmand %vm170, %vm2242
      %vm2251 = vmand %vm171, %vm2243
      %vm2252 = vmand %vm172, %vm2244
      %vm2253 = vcmp.lt.s32.totalorder %v2197, 64
      %vm2254 = vcmp.lt.s32.totalorder %v2198, 64
      %vm2255 = vcmp.lt.s32.totalorder %v2199, 64
      %vm2256 = vcmp.lt.s32.totalorder %v2200, 64
      %vm2257 = vcmp.lt.s32.totalorder %v2201, 64
      %vm2258 = vcmp.lt.s32.totalorder %v2202, 64
      %vm2259 = vcmp.lt.s32.totalorder %v2203, 64
      %vm2260 = vcmp.lt.s32.totalorder %v2204, 64
      %v2261 = vsel %vm2253, 1, 0
      %v2262 = vsel %vm2254, 1, 0
      %v2263 = vsel %vm2255, 1, 0
      %v2264 = vsel %vm2256, 1, 0
      %v2265 = vsel %vm2257, 1, 0
      %v2266 = vsel %vm2258, 1, 0
      %v2267 = vsel %vm2259, 1, 0
      %v2268 = vsel %vm2260, 1, 0
      %2269 = vrot.lane.b32.xlu0 %v2261, 1
      %v2270 = vpop.permute.xlu0 %2269
      %2271 = vrot.lane.b32.xlu0 %v2262, 1
      %v2272 = vpop.permute.xlu0 %2271
      %2273 = vrot.lane.b32.xlu0 %v2263, 1
      %v2274 = vpop.permute.xlu0 %2273
      %2275 = vrot.lane.b32.xlu0 %v2264, 1
      %v2276 = vpop.permute.xlu0 %2275
      %2277 = vrot.lane.b32.xlu0 %v2265, 1
      %v2278 = vpop.permute.xlu0 %2277
      %2279 = vrot.lane.b32.xlu0 %v2266, 1
      %v2280 = vpop.permute.xlu0 %2279
      %2281 = vrot.lane.b32.xlu0 %v2267, 1
      %v2282 = vpop.permute.xlu0 %2281
      %2283 = vrot.lane.b32.xlu0 %v2268, 1
      %v2284 = vpop.permute.xlu0 %2283
      %vm2285 = vcmp.ne.s32.totalorder %v2270, 0
      %vm2286 = vcmp.ne.s32.totalorder %v2272, 0
      %vm2287 = vcmp.ne.s32.totalorder %v2274, 0
      %vm2288 = vcmp.ne.s32.totalorder %v2276, 0
      %vm2289 = vcmp.ne.s32.totalorder %v2278, 0
      %vm2290 = vcmp.ne.s32.totalorder %v2280, 0
      %vm2291 = vcmp.ne.s32.totalorder %v2282, 0
      %vm2292 = vcmp.ne.s32.totalorder %v2284, 0
      %vm2293 = vmand %vm2245, %vm2285
      %vm2294 = vmand %vm2246, %vm2286
      %vm2295 = vmand %vm2247, %vm2287
      %vm2296 = vmand %vm2248, %vm2288
      %vm2297 = vmand %vm2249, %vm2289
      %vm2298 = vmand %vm2250, %vm2290
      %vm2299 = vmand %vm2251, %vm2291
      %vm2300 = vmand %vm2252, %vm2292
      %v2301 = vsel %vm2293, %v141, 0
      %v2302 = vsel %vm2294, %v142, 0
      %v2303 = vsel %vm2295, %v143, 0
      %v2304 = vsel %vm2296, %v144, 0
      %v2305 = vsel %vm2297, %v145, 0
      %v2306 = vsel %vm2298, %v146, 0
      %v2307 = vsel %vm2299, %v147, 0
      %v2308 = vsel %vm2300, %v148, 0
      %2309 = vrot.lane.b32.xlu0 %v2197, 1
      %v2310 = vpop.permute.xlu0 %2309
      %2311 = vrot.lane.b32.xlu0 %v2198, 1
      %v2312 = vpop.permute.xlu0 %2311
      %2313 = vrot.lane.b32.xlu0 %v2199, 1
      %v2314 = vpop.permute.xlu0 %2313
      %2315 = vrot.lane.b32.xlu0 %v2200, 1
      %v2316 = vpop.permute.xlu0 %2315
      %2317 = vrot.lane.b32.xlu0 %v2201, 1
      %v2318 = vpop.permute.xlu0 %2317
      %2319 = vrot.lane.b32.xlu0 %v2202, 1
      %v2320 = vpop.permute.xlu0 %2319
      %2321 = vrot.lane.b32.xlu0 %v2203, 1
      %v2322 = vpop.permute.xlu0 %2321
      %2323 = vrot.lane.b32.xlu0 %v2204, 1
      %v2324 = vpop.permute.xlu0 %2323
      %v2325 = vsel %vm2293, %v2310, 0
      %v2326 = vsel %vm2294, %v2312, 0
      %v2327 = vsel %vm2295, %v2314, 0
      %v2328 = vsel %vm2296, %v2316, 0
      %v2329 = vsel %vm2297, %v2318, 0
      %v2330 = vsel %vm2298, %v2320, 0
      %v2331 = vsel %vm2299, %v2322, 0
      %v2332 = vsel %vm2300, %v2324, 0
      %v2333 = vadd.s32 %v2325, 640
      %v2334 = vadd.s32 %v2326, 640
      %v2335 = vadd.s32 %v2327, 640
      %v2336 = vadd.s32 %v2328, 640
      %v2337 = vadd.s32 %v2329, 640
      %v2338 = vadd.s32 %v2330, 640
      %v2339 = vadd.s32 %v2331, 640
      %v2340 = vadd.s32 %v2332, 640
      %v2341 = vsub.f32 %v373, %v1574
      %v2342 = vsub.f32 %v374, %v1576
      %v2343 = vsub.f32 %v375, %v1578
      %v2344 = vsub.f32 %v376, %v1580
      %v2345 = vsub.f32 %v377, %v1582
      %v2346 = vsub.f32 %v378, %v1584
      %v2347 = vsub.f32 %v379, %v1586
      %v2348 = vsub.f32 %v380, %v1588
      %v2349 = vadd.f32 %v2341, 2.0
      %v2350 = vadd.f32 %v2342, 2.0
      %v2351 = vadd.f32 %v2343, 2.0
      %v2352 = vadd.f32 %v2344, 2.0
      %v2353 = vadd.f32 %v2345, 2.0
      %v2354 = vadd.f32 %v2346, 2.0
      %v2355 = vadd.f32 %v2347, 2.0
      %v2356 = vadd.f32 %v2348, 2.0
      %v2357 = vmul.f32 %v2349, 16.0
      %v2358 = vmul.f32 %v2350, 16.0
      %v2359 = vmul.f32 %v2351, 16.0
      %v2360 = vmul.f32 %v2352, 16.0
      %v2361 = vmul.f32 %v2353, 16.0
      %v2362 = vmul.f32 %v2354, 16.0
      %v2363 = vmul.f32 %v2355, 16.0
      %v2364 = vmul.f32 %v2356, 16.0
      %v2365 = vcvt.f32.s32.ties.to.even %v2357
      %v2366 = vcvt.f32.s32.ties.to.even %v2358
      %v2367 = vcvt.f32.s32.ties.to.even %v2359
      %v2368 = vcvt.f32.s32.ties.to.even %v2360
      %v2369 = vcvt.f32.s32.ties.to.even %v2361
      %v2370 = vcvt.f32.s32.ties.to.even %v2362
      %v2371 = vcvt.f32.s32.ties.to.even %v2363
      %v2372 = vcvt.f32.s32.ties.to.even %v2364
      %vm2373 = vcmp.ge.s32.totalorder %v2365, 0
      %vm2374 = vcmp.ge.s32.totalorder %v2366, 0
      %vm2375 = vcmp.ge.s32.totalorder %v2367, 0
      %vm2376 = vcmp.ge.s32.totalorder %v2368, 0
      %vm2377 = vcmp.ge.s32.totalorder %v2369, 0
      %vm2378 = vcmp.ge.s32.totalorder %v2370, 0
      %vm2379 = vcmp.ge.s32.totalorder %v2371, 0
      %vm2380 = vcmp.ge.s32.totalorder %v2372, 0
      %v2381 = vsel %vm2373, 1, 0
      %v2382 = vsel %vm2374, 1, 0
      %v2383 = vsel %vm2375, 1, 0
      %v2384 = vsel %vm2376, 1, 0
      %v2385 = vsel %vm2377, 1, 0
      %v2386 = vsel %vm2378, 1, 0
      %v2387 = vsel %vm2379, 1, 0
      %v2388 = vsel %vm2380, 1, 0
      %2389 = vrot.lane.b32.xlu0 %v2381, 1
      %v2390 = vpop.permute.xlu0 %2389
      %2391 = vrot.lane.b32.xlu0 %v2382, 1
      %v2392 = vpop.permute.xlu0 %2391
      %2393 = vrot.lane.b32.xlu0 %v2383, 1
      %v2394 = vpop.permute.xlu0 %2393
      %2395 = vrot.lane.b32.xlu0 %v2384, 1
      %v2396 = vpop.permute.xlu0 %2395
      %2397 = vrot.lane.b32.xlu0 %v2385, 1
      %v2398 = vpop.permute.xlu0 %2397
      %2399 = vrot.lane.b32.xlu0 %v2386, 1
      %v2400 = vpop.permute.xlu0 %2399
      %2401 = vrot.lane.b32.xlu0 %v2387, 1
      %v2402 = vpop.permute.xlu0 %2401
      %2403 = vrot.lane.b32.xlu0 %v2388, 1
      %v2404 = vpop.permute.xlu0 %2403
      %vm2405 = vcmp.ne.s32.totalorder %v2390, 0
      %vm2406 = vcmp.ne.s32.totalorder %v2392, 0
      %vm2407 = vcmp.ne.s32.totalorder %v2394, 0
      %vm2408 = vcmp.ne.s32.totalorder %v2396, 0
      %vm2409 = vcmp.ne.s32.totalorder %v2398, 0
      %vm2410 = vcmp.ne.s32.totalorder %v2400, 0
      %vm2411 = vcmp.ne.s32.totalorder %v2402, 0
      %vm2412 = vcmp.ne.s32.totalorder %v2404, 0
      %vm2413 = vmand %vm165, %vm2405
      %vm2414 = vmand %vm166, %vm2406
      %vm2415 = vmand %vm167, %vm2407
      %vm2416 = vmand %vm168, %vm2408
      %vm2417 = vmand %vm169, %vm2409
      %vm2418 = vmand %vm170, %vm2410
      %vm2419 = vmand %vm171, %vm2411
      %vm2420 = vmand %vm172, %vm2412
      %vm2421 = vcmp.lt.s32.totalorder %v2365, 64
      %vm2422 = vcmp.lt.s32.totalorder %v2366, 64
      %vm2423 = vcmp.lt.s32.totalorder %v2367, 64
      %vm2424 = vcmp.lt.s32.totalorder %v2368, 64
      %vm2425 = vcmp.lt.s32.totalorder %v2369, 64
      %vm2426 = vcmp.lt.s32.totalorder %v2370, 64
      %vm2427 = vcmp.lt.s32.totalorder %v2371, 64
      %vm2428 = vcmp.lt.s32.totalorder %v2372, 64
      %v2429 = vsel %vm2421, 1, 0
      %v2430 = vsel %vm2422, 1, 0
      %v2431 = vsel %vm2423, 1, 0
      %v2432 = vsel %vm2424, 1, 0
      %v2433 = vsel %vm2425, 1, 0
      %v2434 = vsel %vm2426, 1, 0
      %v2435 = vsel %vm2427, 1, 0
      %v2436 = vsel %vm2428, 1, 0
      %2437 = vrot.lane.b32.xlu0 %v2429, 1
      %v2438 = vpop.permute.xlu0 %2437
      %2439 = vrot.lane.b32.xlu0 %v2430, 1
      %v2440 = vpop.permute.xlu0 %2439
      %2441 = vrot.lane.b32.xlu0 %v2431, 1
      %v2442 = vpop.permute.xlu0 %2441
      %2443 = vrot.lane.b32.xlu0 %v2432, 1
      %v2444 = vpop.permute.xlu0 %2443
      %2445 = vrot.lane.b32.xlu0 %v2433, 1
      %v2446 = vpop.permute.xlu0 %2445
      %2447 = vrot.lane.b32.xlu0 %v2434, 1
      %v2448 = vpop.permute.xlu0 %2447
      %2449 = vrot.lane.b32.xlu0 %v2435, 1
      %v2450 = vpop.permute.xlu0 %2449
      %2451 = vrot.lane.b32.xlu0 %v2436, 1
      %v2452 = vpop.permute.xlu0 %2451
      %vm2453 = vcmp.ne.s32.totalorder %v2438, 0
      %vm2454 = vcmp.ne.s32.totalorder %v2440, 0
      %vm2455 = vcmp.ne.s32.totalorder %v2442, 0
      %vm2456 = vcmp.ne.s32.totalorder %v2444, 0
      %vm2457 = vcmp.ne.s32.totalorder %v2446, 0
      %vm2458 = vcmp.ne.s32.totalorder %v2448, 0
      %vm2459 = vcmp.ne.s32.totalorder %v2450, 0
      %vm2460 = vcmp.ne.s32.totalorder %v2452, 0
      %vm2461 = vmand %vm2413, %vm2453
      %vm2462 = vmand %vm2414, %vm2454
      %vm2463 = vmand %vm2415, %vm2455
      %vm2464 = vmand %vm2416, %vm2456
      %vm2465 = vmand %vm2417, %vm2457
      %vm2466 = vmand %vm2418, %vm2458
      %vm2467 = vmand %vm2419, %vm2459
      %vm2468 = vmand %vm2420, %vm2460
      %v2469 = vsel %vm2461, %v141, 0
      %v2470 = vsel %vm2462, %v142, 0
      %v2471 = vsel %vm2463, %v143, 0
      %v2472 = vsel %vm2464, %v144, 0
      %v2473 = vsel %vm2465, %v145, 0
      %v2474 = vsel %vm2466, %v146, 0
      %v2475 = vsel %vm2467, %v147, 0
      %v2476 = vsel %vm2468, %v148, 0
      %2477 = vrot.lane.b32.xlu0 %v2365, 1
      %v2478 = vpop.permute.xlu0 %2477
      %2479 = vrot.lane.b32.xlu0 %v2366, 1
      %v2480 = vpop.permute.xlu0 %2479
      %2481 = vrot.lane.b32.xlu0 %v2367, 1
      %v2482 = vpop.permute.xlu0 %2481
      %2483 = vrot.lane.b32.xlu0 %v2368, 1
      %v2484 = vpop.permute.xlu0 %2483
      %2485 = vrot.lane.b32.xlu0 %v2369, 1
      %v2486 = vpop.permute.xlu0 %2485
      %2487 = vrot.lane.b32.xlu0 %v2370, 1
      %v2488 = vpop.permute.xlu0 %2487
      %2489 = vrot.lane.b32.xlu0 %v2371, 1
      %v2490 = vpop.permute.xlu0 %2489
      %2491 = vrot.lane.b32.xlu0 %v2372, 1
      %v2492 = vpop.permute.xlu0 %2491
      %v2493 = vsel %vm2461, %v2478, 0
      %v2494 = vsel %vm2462, %v2480, 0
      %v2495 = vsel %vm2463, %v2482, 0
      %v2496 = vsel %vm2464, %v2484, 0
      %v2497 = vsel %vm2465, %v2486, 0
      %v2498 = vsel %vm2466, %v2488, 0
      %v2499 = vsel %vm2467, %v2490, 0
      %v2500 = vsel %vm2468, %v2492, 0
      %v2501 = vadd.s32 %v2493, 704
      %v2502 = vadd.s32 %v2494, 704
      %v2503 = vadd.s32 %v2495, 704
      %v2504 = vadd.s32 %v2496, 704
      %v2505 = vadd.s32 %v2497, 704
      %v2506 = vadd.s32 %v2498, 704
      %v2507 = vadd.s32 %v2499, 704
      %v2508 = vadd.s32 %v2500, 704
      %v2509 = vlaneseq
      %v2510 = vand.u32 %v2509, 127
      %v2511 = vadd.s32 %v2510, 128
      %v2512 = vadd.s32 %v2510, 256
      %v2513 = vadd.s32 %v2510, 384
      %v2514 = vadd.s32 %v2510, 512
      %v2515 = vadd.s32 %v2510, 640
      %2516 = vset.pattern.permute.xlu0 1
      %2517 = vperm.xlu0 %2516, %v341
      %v2518 = vpop.permute.xlu0 %2517
      %2519 = vset.pattern.permute.xlu0 1
      %2520 = vperm.xlu0 %2519, %v342
      %v2521 = vpop.permute.xlu0 %2520
      %2522 = vset.pattern.permute.xlu0 1
      %2523 = vperm.xlu0 %2522, %v343
      %v2524 = vpop.permute.xlu0 %2523
      %2525 = vset.pattern.permute.xlu0 1
      %2526 = vperm.xlu0 %2525, %v344
      %v2527 = vpop.permute.xlu0 %2526
      %2528 = vset.pattern.permute.xlu0 1
      %2529 = vperm.xlu0 %2528, %v345
      %v2530 = vpop.permute.xlu0 %2529
      %2531 = vset.pattern.permute.xlu0 1
      %2532 = vperm.xlu0 %2531, %v346
      %v2533 = vpop.permute.xlu0 %2532
      %2534 = vset.pattern.permute.xlu0 1
      %2535 = vperm.xlu0 %2534, %v347
      %v2536 = vpop.permute.xlu0 %2535
      %2537 = vset.pattern.permute.xlu0 1
      %2538 = vperm.xlu0 %2537, %v348
      %v2539 = vpop.permute.xlu0 %2538
      %2540 = vset.pattern.permute.xlu0 1
      %2541 = vperm.xlu0 %2540, %v549
      %v2542 = vpop.permute.xlu0 %2541
      %2543 = vset.pattern.permute.xlu0 1
      %2544 = vperm.xlu0 %2543, %v550
      %v2545 = vpop.permute.xlu0 %2544
      %2546 = vset.pattern.permute.xlu0 1
      %2547 = vperm.xlu0 %2546, %v551
      %v2548 = vpop.permute.xlu0 %2547
      %2549 = vset.pattern.permute.xlu0 1
      %2550 = vperm.xlu0 %2549, %v552
      %v2551 = vpop.permute.xlu0 %2550
      %2552 = vset.pattern.permute.xlu0 1
      %2553 = vperm.xlu0 %2552, %v553
      %v2554 = vpop.permute.xlu0 %2553
      %2555 = vset.pattern.permute.xlu0 1
      %2556 = vperm.xlu0 %2555, %v554
      %v2557 = vpop.permute.xlu0 %2556
      %2558 = vset.pattern.permute.xlu0 1
      %2559 = vperm.xlu0 %2558, %v555
      %v2560 = vpop.permute.xlu0 %2559
      %2561 = vset.pattern.permute.xlu0 1
      %2562 = vperm.xlu0 %2561, %v556
      %v2563 = vpop.permute.xlu0 %2562
      %2564 = vset.pattern.permute.xlu0 1
      %2565 = vperm.xlu0 %2564, %v749
      %v2566 = vpop.permute.xlu0 %2565
      %2567 = vset.pattern.permute.xlu0 1
      %2568 = vperm.xlu0 %2567, %v750
      %v2569 = vpop.permute.xlu0 %2568
      %2570 = vset.pattern.permute.xlu0 1
      %2571 = vperm.xlu0 %2570, %v751
      %v2572 = vpop.permute.xlu0 %2571
      %2573 = vset.pattern.permute.xlu0 1
      %2574 = vperm.xlu0 %2573, %v752
      %v2575 = vpop.permute.xlu0 %2574
      %2576 = vset.pattern.permute.xlu0 1
      %2577 = vperm.xlu0 %2576, %v753
      %v2578 = vpop.permute.xlu0 %2577
      %2579 = vset.pattern.permute.xlu0 1
      %2580 = vperm.xlu0 %2579, %v754
      %v2581 = vpop.permute.xlu0 %2580
      %2582 = vset.pattern.permute.xlu0 1
      %2583 = vperm.xlu0 %2582, %v755
      %v2584 = vpop.permute.xlu0 %2583
      %2585 = vset.pattern.permute.xlu0 1
      %2586 = vperm.xlu0 %2585, %v756
      %v2587 = vpop.permute.xlu0 %2586
      %2588 = vset.pattern.permute.xlu0 1
      %2589 = vperm.xlu0 %2588, %v957
      %v2590 = vpop.permute.xlu0 %2589
      %2591 = vset.pattern.permute.xlu0 1
      %2592 = vperm.xlu0 %2591, %v958
      %v2593 = vpop.permute.xlu0 %2592
      %2594 = vset.pattern.permute.xlu0 1
      %2595 = vperm.xlu0 %2594, %v959
      %v2596 = vpop.permute.xlu0 %2595
      %2597 = vset.pattern.permute.xlu0 1
      %2598 = vperm.xlu0 %2597, %v960
      %v2599 = vpop.permute.xlu0 %2598
      %2600 = vset.pattern.permute.xlu0 1
      %2601 = vperm.xlu0 %2600, %v961
      %v2602 = vpop.permute.xlu0 %2601
      %2603 = vset.pattern.permute.xlu0 1
      %2604 = vperm.xlu0 %2603, %v962
      %v2605 = vpop.permute.xlu0 %2604
      %2606 = vset.pattern.permute.xlu0 1
      %2607 = vperm.xlu0 %2606, %v963
      %v2608 = vpop.permute.xlu0 %2607
      %2609 = vset.pattern.permute.xlu0 1
      %2610 = vperm.xlu0 %2609, %v964
      %v2611 = vpop.permute.xlu0 %2610
      %2612 = vset.pattern.permute.xlu0 1
      %2613 = vperm.xlu0 %2612, %v1133
      %v2614 = vpop.permute.xlu0 %2613
      %2615 = vset.pattern.permute.xlu0 1
      %2616 = vperm.xlu0 %2615, %v1134
      %v2617 = vpop.permute.xlu0 %2616
      %2618 = vset.pattern.permute.xlu0 1
      %2619 = vperm.xlu0 %2618, %v1135
      %v2620 = vpop.permute.xlu0 %2619
      %2621 = vset.pattern.permute.xlu0 1
      %2622 = vperm.xlu0 %2621, %v1136
      %v2623 = vpop.permute.xlu0 %2622
      %2624 = vset.pattern.permute.xlu0 1
      %2625 = vperm.xlu0 %2624, %v1137
      %v2626 = vpop.permute.xlu0 %2625
      %2627 = vset.pattern.permute.xlu0 1
      %2628 = vperm.xlu0 %2627, %v1138
      %v2629 = vpop.permute.xlu0 %2628
      %2630 = vset.pattern.permute.xlu0 1
      %2631 = vperm.xlu0 %2630, %v1139
      %v2632 = vpop.permute.xlu0 %2631
      %2633 = vset.pattern.permute.xlu0 1
      %2634 = vperm.xlu0 %2633, %v1140
      %v2635 = vpop.permute.xlu0 %2634
      %2636 = vset.pattern.permute.xlu0 1
      %2637 = vperm.xlu0 %2636, %v1309
      %v2638 = vpop.permute.xlu0 %2637
      %2639 = vset.pattern.permute.xlu0 1
      %2640 = vperm.xlu0 %2639, %v1310
      %v2641 = vpop.permute.xlu0 %2640
      %2642 = vset.pattern.permute.xlu0 1
      %2643 = vperm.xlu0 %2642, %v1311
      %v2644 = vpop.permute.xlu0 %2643
      %2645 = vset.pattern.permute.xlu0 1
      %2646 = vperm.xlu0 %2645, %v1312
      %v2647 = vpop.permute.xlu0 %2646
      %2648 = vset.pattern.permute.xlu0 1
      %2649 = vperm.xlu0 %2648, %v1313
      %v2650 = vpop.permute.xlu0 %2649
      %2651 = vset.pattern.permute.xlu0 1
      %2652 = vperm.xlu0 %2651, %v1314
      %v2653 = vpop.permute.xlu0 %2652
      %2654 = vset.pattern.permute.xlu0 1
      %2655 = vperm.xlu0 %2654, %v1315
      %v2656 = vpop.permute.xlu0 %2655
      %2657 = vset.pattern.permute.xlu0 1
      %2658 = vperm.xlu0 %2657, %v1316
      %v2659 = vpop.permute.xlu0 %2658
      %2660 = vset.pattern.permute.xlu0 1
      %2661 = vperm.xlu0 %2660, %v1525
      %v2662 = vpop.permute.xlu0 %2661
      %2663 = vset.pattern.permute.xlu0 1
      %2664 = vperm.xlu0 %2663, %v1526
      %v2665 = vpop.permute.xlu0 %2664
      %2666 = vset.pattern.permute.xlu0 1
      %2667 = vperm.xlu0 %2666, %v1527
      %v2668 = vpop.permute.xlu0 %2667
      %2669 = vset.pattern.permute.xlu0 1
      %2670 = vperm.xlu0 %2669, %v1528
      %v2671 = vpop.permute.xlu0 %2670
      %2672 = vset.pattern.permute.xlu0 1
      %2673 = vperm.xlu0 %2672, %v1529
      %v2674 = vpop.permute.xlu0 %2673
      %2675 = vset.pattern.permute.xlu0 1
      %2676 = vperm.xlu0 %2675, %v1530
      %v2677 = vpop.permute.xlu0 %2676
      %2678 = vset.pattern.permute.xlu0 1
      %2679 = vperm.xlu0 %2678, %v1531
      %v2680 = vpop.permute.xlu0 %2679
      %2681 = vset.pattern.permute.xlu0 1
      %2682 = vperm.xlu0 %2681, %v1532
      %v2683 = vpop.permute.xlu0 %2682
      %2684 = vset.pattern.permute.xlu0 1
      %2685 = vperm.xlu0 %2684, %v1725
      %v2686 = vpop.permute.xlu0 %2685
      %2687 = vset.pattern.permute.xlu0 1
      %2688 = vperm.xlu0 %2687, %v1726
      %v2689 = vpop.permute.xlu0 %2688
      %2690 = vset.pattern.permute.xlu0 1
      %2691 = vperm.xlu0 %2690, %v1727
      %v2692 = vpop.permute.xlu0 %2691
      %2693 = vset.pattern.permute.xlu0 1
      %2694 = vperm.xlu0 %2693, %v1728
      %v2695 = vpop.permute.xlu0 %2694
      %2696 = vset.pattern.permute.xlu0 1
      %2697 = vperm.xlu0 %2696, %v1729
      %v2698 = vpop.permute.xlu0 %2697
      %2699 = vset.pattern.permute.xlu0 1
      %2700 = vperm.xlu0 %2699, %v1730
      %v2701 = vpop.permute.xlu0 %2700
      %2702 = vset.pattern.permute.xlu0 1
      %2703 = vperm.xlu0 %2702, %v1731
      %v2704 = vpop.permute.xlu0 %2703
      %2705 = vset.pattern.permute.xlu0 1
      %2706 = vperm.xlu0 %2705, %v1732
      %v2707 = vpop.permute.xlu0 %2706
      %2708 = vset.pattern.permute.xlu0 1
      %2709 = vperm.xlu0 %2708, %v1925
      %v2710 = vpop.permute.xlu0 %2709
      %2711 = vset.pattern.permute.xlu0 1
      %2712 = vperm.xlu0 %2711, %v1926
      %v2713 = vpop.permute.xlu0 %2712
      %2714 = vset.pattern.permute.xlu0 1
      %2715 = vperm.xlu0 %2714, %v1927
      %v2716 = vpop.permute.xlu0 %2715
      %2717 = vset.pattern.permute.xlu0 1
      %2718 = vperm.xlu0 %2717, %v1928
      %v2719 = vpop.permute.xlu0 %2718
      %2720 = vset.pattern.permute.xlu0 1
      %2721 = vperm.xlu0 %2720, %v1929
      %v2722 = vpop.permute.xlu0 %2721
      %2723 = vset.pattern.permute.xlu0 1
      %2724 = vperm.xlu0 %2723, %v1930
      %v2725 = vpop.permute.xlu0 %2724
      %2726 = vset.pattern.permute.xlu0 1
      %2727 = vperm.xlu0 %2726, %v1931
      %v2728 = vpop.permute.xlu0 %2727
      %2729 = vset.pattern.permute.xlu0 1
      %2730 = vperm.xlu0 %2729, %v1932
      %v2731 = vpop.permute.xlu0 %2730
      %2732 = vset.pattern.permute.xlu0 1
      %2733 = vperm.xlu0 %2732, %v2133
      %v2734 = vpop.permute.xlu0 %2733
      %2735 = vset.pattern.permute.xlu0 1
      %2736 = vperm.xlu0 %2735, %v2134
      %v2737 = vpop.permute.xlu0 %2736
      %2738 = vset.pattern.permute.xlu0 1
      %2739 = vperm.xlu0 %2738, %v2135
      %v2740 = vpop.permute.xlu0 %2739
      %2741 = vset.pattern.permute.xlu0 1
      %2742 = vperm.xlu0 %2741, %v2136
      %v2743 = vpop.permute.xlu0 %2742
      %2744 = vset.pattern.permute.xlu0 1
      %2745 = vperm.xlu0 %2744, %v2137
      %v2746 = vpop.permute.xlu0 %2745
      %2747 = vset.pattern.permute.xlu0 1
      %2748 = vperm.xlu0 %2747, %v2138
      %v2749 = vpop.permute.xlu0 %2748
      %2750 = vset.pattern.permute.xlu0 1
      %2751 = vperm.xlu0 %2750, %v2139
      %v2752 = vpop.permute.xlu0 %2751
      %2753 = vset.pattern.permute.xlu0 1
      %2754 = vperm.xlu0 %2753, %v2140
      %v2755 = vpop.permute.xlu0 %2754
      %2756 = vset.pattern.permute.xlu0 1
      %2757 = vperm.xlu0 %2756, %v2301
      %v2758 = vpop.permute.xlu0 %2757
      %2759 = vset.pattern.permute.xlu0 1
      %2760 = vperm.xlu0 %2759, %v2302
      %v2761 = vpop.permute.xlu0 %2760
      %2762 = vset.pattern.permute.xlu0 1
      %2763 = vperm.xlu0 %2762, %v2303
      %v2764 = vpop.permute.xlu0 %2763
      %2765 = vset.pattern.permute.xlu0 1
      %2766 = vperm.xlu0 %2765, %v2304
      %v2767 = vpop.permute.xlu0 %2766
      %2768 = vset.pattern.permute.xlu0 1
      %2769 = vperm.xlu0 %2768, %v2305
      %v2770 = vpop.permute.xlu0 %2769
      %2771 = vset.pattern.permute.xlu0 1
      %2772 = vperm.xlu0 %2771, %v2306
      %v2773 = vpop.permute.xlu0 %2772
      %2774 = vset.pattern.permute.xlu0 1
      %2775 = vperm.xlu0 %2774, %v2307
      %v2776 = vpop.permute.xlu0 %2775
      %2777 = vset.pattern.permute.xlu0 1
      %2778 = vperm.xlu0 %2777, %v2308
      %v2779 = vpop.permute.xlu0 %2778
      %2780 = vset.pattern.permute.xlu0 1
      %2781 = vperm.xlu0 %2780, %v2469
      %v2782 = vpop.permute.xlu0 %2781
      %2783 = vset.pattern.permute.xlu0 1
      %2784 = vperm.xlu0 %2783, %v2470
      %v2785 = vpop.permute.xlu0 %2784
      %2786 = vset.pattern.permute.xlu0 1
      %2787 = vperm.xlu0 %2786, %v2471
      %v2788 = vpop.permute.xlu0 %2787
      %2789 = vset.pattern.permute.xlu0 1
      %2790 = vperm.xlu0 %2789, %v2472
      %v2791 = vpop.permute.xlu0 %2790
      %2792 = vset.pattern.permute.xlu0 1
      %2793 = vperm.xlu0 %2792, %v2473
      %v2794 = vpop.permute.xlu0 %2793
      %2795 = vset.pattern.permute.xlu0 1
      %2796 = vperm.xlu0 %2795, %v2474
      %v2797 = vpop.permute.xlu0 %2796
      %2798 = vset.pattern.permute.xlu0 1
      %2799 = vperm.xlu0 %2798, %v2475
      %v2800 = vpop.permute.xlu0 %2799
      %2801 = vset.pattern.permute.xlu0 1
      %2802 = vperm.xlu0 %2801, %v2476
      %v2803 = vpop.permute.xlu0 %2802
      %vm2804 = vcmp.eq.s32.totalorder %v2518, %v2510
      %vm2805 = vcmp.eq.s32.totalorder %v2521, %v2510
      %vm2806 = vcmp.eq.s32.totalorder %v2524, %v2510
      %vm2807 = vcmp.eq.s32.totalorder %v2527, %v2510
      %vm2808 = vcmp.eq.s32.totalorder %v2530, %v2510
      %vm2809 = vcmp.eq.s32.totalorder %v2533, %v2510
      %vm2810 = vcmp.eq.s32.totalorder %v2536, %v2510
      %vm2811 = vcmp.eq.s32.totalorder %v2539, %v2510
      %vm2812 = vcmp.eq.s32.totalorder %v2542, %v2510
      %vm2813 = vcmp.eq.s32.totalorder %v2545, %v2510
      %vm2814 = vcmp.eq.s32.totalorder %v2548, %v2510
      %vm2815 = vcmp.eq.s32.totalorder %v2551, %v2510
      %vm2816 = vcmp.eq.s32.totalorder %v2554, %v2510
      %vm2817 = vcmp.eq.s32.totalorder %v2557, %v2510
      %vm2818 = vcmp.eq.s32.totalorder %v2560, %v2510
      %vm2819 = vcmp.eq.s32.totalorder %v2563, %v2510
      %vm2820 = vcmp.eq.s32.totalorder %v2566, %v2510
      %vm2821 = vcmp.eq.s32.totalorder %v2569, %v2510
      %vm2822 = vcmp.eq.s32.totalorder %v2572, %v2510
      %vm2823 = vcmp.eq.s32.totalorder %v2575, %v2510
      %vm2824 = vcmp.eq.s32.totalorder %v2578, %v2510
      %vm2825 = vcmp.eq.s32.totalorder %v2581, %v2510
      %vm2826 = vcmp.eq.s32.totalorder %v2584, %v2510
      %vm2827 = vcmp.eq.s32.totalorder %v2587, %v2510
      %vm2828 = vcmp.eq.s32.totalorder %v2590, %v2510
      %vm2829 = vcmp.eq.s32.totalorder %v2593, %v2510
      %vm2830 = vcmp.eq.s32.totalorder %v2596, %v2510
      %vm2831 = vcmp.eq.s32.totalorder %v2599, %v2510
      %vm2832 = vcmp.eq.s32.totalorder %v2602, %v2510
      %vm2833 = vcmp.eq.s32.totalorder %v2605, %v2510
      %vm2834 = vcmp.eq.s32.totalorder %v2608, %v2510
      %vm2835 = vcmp.eq.s32.totalorder %v2611, %v2510
      %vm2836 = vcmp.eq.s32.totalorder %v2614, %v2510
      %vm2837 = vcmp.eq.s32.totalorder %v2617, %v2510
      %vm2838 = vcmp.eq.s32.totalorder %v2620, %v2510
      %vm2839 = vcmp.eq.s32.totalorder %v2623, %v2510
      %vm2840 = vcmp.eq.s32.totalorder %v2626, %v2510
      %vm2841 = vcmp.eq.s32.totalorder %v2629, %v2510
      %vm2842 = vcmp.eq.s32.totalorder %v2632, %v2510
      %vm2843 = vcmp.eq.s32.totalorder %v2635, %v2510
      %vm2844 = vcmp.eq.s32.totalorder %v2638, %v2510
      %vm2845 = vcmp.eq.s32.totalorder %v2641, %v2510
      %vm2846 = vcmp.eq.s32.totalorder %v2644, %v2510
      %vm2847 = vcmp.eq.s32.totalorder %v2647, %v2510
      %vm2848 = vcmp.eq.s32.totalorder %v2650, %v2510
      %vm2849 = vcmp.eq.s32.totalorder %v2653, %v2510
      %vm2850 = vcmp.eq.s32.totalorder %v2656, %v2510
      %vm2851 = vcmp.eq.s32.totalorder %v2659, %v2510
      %vm2852 = vcmp.eq.s32.totalorder %v2662, %v2510
      %vm2853 = vcmp.eq.s32.totalorder %v2665, %v2510
      %vm2854 = vcmp.eq.s32.totalorder %v2668, %v2510
      %vm2855 = vcmp.eq.s32.totalorder %v2671, %v2510
      %vm2856 = vcmp.eq.s32.totalorder %v2674, %v2510
      %vm2857 = vcmp.eq.s32.totalorder %v2677, %v2510
      %vm2858 = vcmp.eq.s32.totalorder %v2680, %v2510
      %vm2859 = vcmp.eq.s32.totalorder %v2683, %v2510
      %vm2860 = vcmp.eq.s32.totalorder %v2686, %v2510
      %vm2861 = vcmp.eq.s32.totalorder %v2689, %v2510
      %vm2862 = vcmp.eq.s32.totalorder %v2692, %v2510
      %vm2863 = vcmp.eq.s32.totalorder %v2695, %v2510
      %vm2864 = vcmp.eq.s32.totalorder %v2698, %v2510
      %vm2865 = vcmp.eq.s32.totalorder %v2701, %v2510
      %vm2866 = vcmp.eq.s32.totalorder %v2704, %v2510
      %vm2867 = vcmp.eq.s32.totalorder %v2707, %v2510
      %vm2868 = vcmp.eq.s32.totalorder %v2710, %v2510
      %vm2869 = vcmp.eq.s32.totalorder %v2713, %v2510
      %vm2870 = vcmp.eq.s32.totalorder %v2716, %v2510
      %vm2871 = vcmp.eq.s32.totalorder %v2719, %v2510
      %vm2872 = vcmp.eq.s32.totalorder %v2722, %v2510
      %vm2873 = vcmp.eq.s32.totalorder %v2725, %v2510
      %vm2874 = vcmp.eq.s32.totalorder %v2728, %v2510
      %vm2875 = vcmp.eq.s32.totalorder %v2731, %v2510
      %vm2876 = vcmp.eq.s32.totalorder %v2734, %v2510
      %vm2877 = vcmp.eq.s32.totalorder %v2737, %v2510
      %vm2878 = vcmp.eq.s32.totalorder %v2740, %v2510
      %vm2879 = vcmp.eq.s32.totalorder %v2743, %v2510
      %vm2880 = vcmp.eq.s32.totalorder %v2746, %v2510
      %vm2881 = vcmp.eq.s32.totalorder %v2749, %v2510
      %vm2882 = vcmp.eq.s32.totalorder %v2752, %v2510
      %vm2883 = vcmp.eq.s32.totalorder %v2755, %v2510
      %vm2884 = vcmp.eq.s32.totalorder %v2758, %v2510
      %vm2885 = vcmp.eq.s32.totalorder %v2761, %v2510
      %vm2886 = vcmp.eq.s32.totalorder %v2764, %v2510
      %vm2887 = vcmp.eq.s32.totalorder %v2767, %v2510
      %vm2888 = vcmp.eq.s32.totalorder %v2770, %v2510
      %vm2889 = vcmp.eq.s32.totalorder %v2773, %v2510
      %vm2890 = vcmp.eq.s32.totalorder %v2776, %v2510
      %vm2891 = vcmp.eq.s32.totalorder %v2779, %v2510
      %vm2892 = vcmp.eq.s32.totalorder %v2782, %v2510
      %vm2893 = vcmp.eq.s32.totalorder %v2785, %v2510
      %vm2894 = vcmp.eq.s32.totalorder %v2788, %v2510
      %vm2895 = vcmp.eq.s32.totalorder %v2791, %v2510
      %vm2896 = vcmp.eq.s32.totalorder %v2794, %v2510
      %vm2897 = vcmp.eq.s32.totalorder %v2797, %v2510
      %vm2898 = vcmp.eq.s32.totalorder %v2800, %v2510
      %vm2899 = vcmp.eq.s32.totalorder %v2803, %v2510
      %v2900 = vsel %vm2804, 1, 0
      %v2901 = vsel %vm2805, 1, 0
      %v2902 = vsel %vm2806, 1, 0
      %v2903 = vsel %vm2807, 1, 0
      %v2904 = vsel %vm2808, 1, 0
      %v2905 = vsel %vm2809, 1, 0
      %v2906 = vsel %vm2810, 1, 0
      %v2907 = vsel %vm2811, 1, 0
      %v2908 = vsel %vm2812, 1, 0
      %v2909 = vsel %vm2813, 1, 0
      %v2910 = vsel %vm2814, 1, 0
      %v2911 = vsel %vm2815, 1, 0
      %v2912 = vsel %vm2816, 1, 0
      %v2913 = vsel %vm2817, 1, 0
      %v2914 = vsel %vm2818, 1, 0
      %v2915 = vsel %vm2819, 1, 0
      %v2916 = vsel %vm2820, 1, 0
      %v2917 = vsel %vm2821, 1, 0
      %v2918 = vsel %vm2822, 1, 0
      %v2919 = vsel %vm2823, 1, 0
      %v2920 = vsel %vm2824, 1, 0
      %v2921 = vsel %vm2825, 1, 0
      %v2922 = vsel %vm2826, 1, 0
      %v2923 = vsel %vm2827, 1, 0
      %v2924 = vsel %vm2828, 1, 0
      %v2925 = vsel %vm2829, 1, 0
      %v2926 = vsel %vm2830, 1, 0
      %v2927 = vsel %vm2831, 1, 0
      %v2928 = vsel %vm2832, 1, 0
      %v2929 = vsel %vm2833, 1, 0
      %v2930 = vsel %vm2834, 1, 0
      %v2931 = vsel %vm2835, 1, 0
      %v2932 = vsel %vm2836, 1, 0
      %v2933 = vsel %vm2837, 1, 0
      %v2934 = vsel %vm2838, 1, 0
      %v2935 = vsel %vm2839, 1, 0
      %v2936 = vsel %vm2840, 1, 0
      %v2937 = vsel %vm2841, 1, 0
      %v2938 = vsel %vm2842, 1, 0
      %v2939 = vsel %vm2843, 1, 0
      %v2940 = vsel %vm2844, 1, 0
      %v2941 = vsel %vm2845, 1, 0
      %v2942 = vsel %vm2846, 1, 0
      %v2943 = vsel %vm2847, 1, 0
      %v2944 = vsel %vm2848, 1, 0
      %v2945 = vsel %vm2849, 1, 0
      %v2946 = vsel %vm2850, 1, 0
      %v2947 = vsel %vm2851, 1, 0
      %v2948 = vsel %vm2852, 1, 0
      %v2949 = vsel %vm2853, 1, 0
      %v2950 = vsel %vm2854, 1, 0
      %v2951 = vsel %vm2855, 1, 0
      %v2952 = vsel %vm2856, 1, 0
      %v2953 = vsel %vm2857, 1, 0
      %v2954 = vsel %vm2858, 1, 0
      %v2955 = vsel %vm2859, 1, 0
      %v2956 = vsel %vm2860, 1, 0
      %v2957 = vsel %vm2861, 1, 0
      %v2958 = vsel %vm2862, 1, 0
      %v2959 = vsel %vm2863, 1, 0
      %v2960 = vsel %vm2864, 1, 0
      %v2961 = vsel %vm2865, 1, 0
      %v2962 = vsel %vm2866, 1, 0
      %v2963 = vsel %vm2867, 1, 0
      %v2964 = vsel %vm2868, 1, 0
      %v2965 = vsel %vm2869, 1, 0
      %v2966 = vsel %vm2870, 1, 0
      %v2967 = vsel %vm2871, 1, 0
      %v2968 = vsel %vm2872, 1, 0
      %v2969 = vsel %vm2873, 1, 0
      %v2970 = vsel %vm2874, 1, 0
      %v2971 = vsel %vm2875, 1, 0
      %v2972 = vsel %vm2876, 1, 0
      %v2973 = vsel %vm2877, 1, 0
      %v2974 = vsel %vm2878, 1, 0
      %v2975 = vsel %vm2879, 1, 0
      %v2976 = vsel %vm2880, 1, 0
      %v2977 = vsel %vm2881, 1, 0
      %v2978 = vsel %vm2882, 1, 0
      %v2979 = vsel %vm2883, 1, 0
      %v2980 = vsel %vm2884, 1, 0
      %v2981 = vsel %vm2885, 1, 0
      %v2982 = vsel %vm2886, 1, 0
      %v2983 = vsel %vm2887, 1, 0
      %v2984 = vsel %vm2888, 1, 0
      %v2985 = vsel %vm2889, 1, 0
      %v2986 = vsel %vm2890, 1, 0
      %v2987 = vsel %vm2891, 1, 0
      %v2988 = vsel %vm2892, 1, 0
      %v2989 = vsel %vm2893, 1, 0
      %v2990 = vsel %vm2894, 1, 0
      %v2991 = vsel %vm2895, 1, 0
      %v2992 = vsel %vm2896, 1, 0
      %v2993 = vsel %vm2897, 1, 0
      %v2994 = vsel %vm2898, 1, 0
      %v2995 = vsel %vm2899, 1, 0
      %v2996 = vcvt.s32.f32 %v2900
      %v2997 = vcvt.s32.f32 %v2901
      %v2998 = vcvt.s32.f32 %v2902
      %v2999 = vcvt.s32.f32 %v2903
      %v3000 = vcvt.s32.f32 %v2904
      %v3001 = vcvt.s32.f32 %v2905
      %v3002 = vcvt.s32.f32 %v2906
      %v3003 = vcvt.s32.f32 %v2907
      %v3004 = vcvt.s32.f32 %v2908
      %v3005 = vcvt.s32.f32 %v2909
      %v3006 = vcvt.s32.f32 %v2910
      %v3007 = vcvt.s32.f32 %v2911
      %v3008 = vcvt.s32.f32 %v2912
      %v3009 = vcvt.s32.f32 %v2913
      %v3010 = vcvt.s32.f32 %v2914
      %v3011 = vcvt.s32.f32 %v2915
      %v3012 = vcvt.s32.f32 %v2916
      %v3013 = vcvt.s32.f32 %v2917
      %v3014 = vcvt.s32.f32 %v2918
      %v3015 = vcvt.s32.f32 %v2919
      %v3016 = vcvt.s32.f32 %v2920
      %v3017 = vcvt.s32.f32 %v2921
      %v3018 = vcvt.s32.f32 %v2922
      %v3019 = vcvt.s32.f32 %v2923
      %v3020 = vcvt.s32.f32 %v2924
      %v3021 = vcvt.s32.f32 %v2925
      %v3022 = vcvt.s32.f32 %v2926
      %v3023 = vcvt.s32.f32 %v2927
      %v3024 = vcvt.s32.f32 %v2928
      %v3025 = vcvt.s32.f32 %v2929
      %v3026 = vcvt.s32.f32 %v2930
      %v3027 = vcvt.s32.f32 %v2931
      %v3028 = vcvt.s32.f32 %v2932
      %v3029 = vcvt.s32.f32 %v2933
      %v3030 = vcvt.s32.f32 %v2934
      %v3031 = vcvt.s32.f32 %v2935
      %v3032 = vcvt.s32.f32 %v2936
      %v3033 = vcvt.s32.f32 %v2937
      %v3034 = vcvt.s32.f32 %v2938
      %v3035 = vcvt.s32.f32 %v2939
      %v3036 = vcvt.s32.f32 %v2940
      %v3037 = vcvt.s32.f32 %v2941
      %v3038 = vcvt.s32.f32 %v2942
      %v3039 = vcvt.s32.f32 %v2943
      %v3040 = vcvt.s32.f32 %v2944
      %v3041 = vcvt.s32.f32 %v2945
      %v3042 = vcvt.s32.f32 %v2946
      %v3043 = vcvt.s32.f32 %v2947
      %v3044 = vcvt.s32.f32 %v2948
      %v3045 = vcvt.s32.f32 %v2949
      %v3046 = vcvt.s32.f32 %v2950
      %v3047 = vcvt.s32.f32 %v2951
      %v3048 = vcvt.s32.f32 %v2952
      %v3049 = vcvt.s32.f32 %v2953
      %v3050 = vcvt.s32.f32 %v2954
      %v3051 = vcvt.s32.f32 %v2955
      %v3052 = vcvt.s32.f32 %v2956
      %v3053 = vcvt.s32.f32 %v2957
      %v3054 = vcvt.s32.f32 %v2958
      %v3055 = vcvt.s32.f32 %v2959
      %v3056 = vcvt.s32.f32 %v2960
      %v3057 = vcvt.s32.f32 %v2961
      %v3058 = vcvt.s32.f32 %v2962
      %v3059 = vcvt.s32.f32 %v2963
      %v3060 = vcvt.s32.f32 %v2964
      %v3061 = vcvt.s32.f32 %v2965
      %v3062 = vcvt.s32.f32 %v2966
      %v3063 = vcvt.s32.f32 %v2967
      %v3064 = vcvt.s32.f32 %v2968
      %v3065 = vcvt.s32.f32 %v2969
      %v3066 = vcvt.s32.f32 %v2970
      %v3067 = vcvt.s32.f32 %v2971
      %v3068 = vcvt.s32.f32 %v2972
      %v3069 = vcvt.s32.f32 %v2973
      %v3070 = vcvt.s32.f32 %v2974
      %v3071 = vcvt.s32.f32 %v2975
      %v3072 = vcvt.s32.f32 %v2976
      %v3073 = vcvt.s32.f32 %v2977
      %v3074 = vcvt.s32.f32 %v2978
      %v3075 = vcvt.s32.f32 %v2979
      %v3076 = vcvt.s32.f32 %v2980
      %v3077 = vcvt.s32.f32 %v2981
      %v3078 = vcvt.s32.f32 %v2982
      %v3079 = vcvt.s32.f32 %v2983
      %v3080 = vcvt.s32.f32 %v2984
      %v3081 = vcvt.s32.f32 %v2985
      %v3082 = vcvt.s32.f32 %v2986
      %v3083 = vcvt.s32.f32 %v2987
      %v3084 = vcvt.s32.f32 %v2988
      %v3085 = vcvt.s32.f32 %v2989
      %v3086 = vcvt.s32.f32 %v2990
      %v3087 = vcvt.s32.f32 %v2991
      %v3088 = vcvt.s32.f32 %v2992
      %v3089 = vcvt.s32.f32 %v2993
      %v3090 = vcvt.s32.f32 %v2994
      %v3091 = vcvt.s32.f32 %v2995
      %v3092 = vpack.c.bf16 %v2997, %v2996
      %v3093 = vpack.c.bf16 %v2999, %v2998
      %v3094 = vpack.c.bf16 %v3001, %v3000
      %v3095 = vpack.c.bf16 %v3003, %v3002
      %v3096 = vpack.c.bf16 %v3005, %v3004
      %v3097 = vpack.c.bf16 %v3007, %v3006
      %v3098 = vpack.c.bf16 %v3009, %v3008
      %v3099 = vpack.c.bf16 %v3011, %v3010
      %v3100 = vpack.c.bf16 %v3013, %v3012
      %v3101 = vpack.c.bf16 %v3015, %v3014
      %v3102 = vpack.c.bf16 %v3017, %v3016
      %v3103 = vpack.c.bf16 %v3019, %v3018
      %v3104 = vpack.c.bf16 %v3021, %v3020
      %v3105 = vpack.c.bf16 %v3023, %v3022
      %v3106 = vpack.c.bf16 %v3025, %v3024
      %v3107 = vpack.c.bf16 %v3027, %v3026
      %v3108 = vpack.c.bf16 %v3029, %v3028
      %v3109 = vpack.c.bf16 %v3031, %v3030
      %v3110 = vpack.c.bf16 %v3033, %v3032
      %v3111 = vpack.c.bf16 %v3035, %v3034
      %v3112 = vpack.c.bf16 %v3037, %v3036
      %v3113 = vpack.c.bf16 %v3039, %v3038
      %v3114 = vpack.c.bf16 %v3041, %v3040
      %v3115 = vpack.c.bf16 %v3043, %v3042
      %v3116 = vpack.c.bf16 %v3045, %v3044
      %v3117 = vpack.c.bf16 %v3047, %v3046
      %v3118 = vpack.c.bf16 %v3049, %v3048
      %v3119 = vpack.c.bf16 %v3051, %v3050
      %v3120 = vpack.c.bf16 %v3053, %v3052
      %v3121 = vpack.c.bf16 %v3055, %v3054
      %v3122 = vpack.c.bf16 %v3057, %v3056
      %v3123 = vpack.c.bf16 %v3059, %v3058
      %v3124 = vpack.c.bf16 %v3061, %v3060
      %v3125 = vpack.c.bf16 %v3063, %v3062
      %v3126 = vpack.c.bf16 %v3065, %v3064
      %v3127 = vpack.c.bf16 %v3067, %v3066
      %v3128 = vpack.c.bf16 %v3069, %v3068
      %v3129 = vpack.c.bf16 %v3071, %v3070
      %v3130 = vpack.c.bf16 %v3073, %v3072
      %v3131 = vpack.c.bf16 %v3075, %v3074
      %v3132 = vpack.c.bf16 %v3077, %v3076
      %v3133 = vpack.c.bf16 %v3079, %v3078
      %v3134 = vpack.c.bf16 %v3081, %v3080
      %v3135 = vpack.c.bf16 %v3083, %v3082
      %v3136 = vpack.c.bf16 %v3085, %v3084
      %v3137 = vpack.c.bf16 %v3087, %v3086
      %v3138 = vpack.c.bf16 %v3089, %v3088
      %v3139 = vpack.c.bf16 %v3091, %v3090
      %3140 = vset.pattern.permute.xlu0 1
      %3141 = vperm.xlu0 %3140, %v365
      %v3142 = vpop.permute.xlu0 %3141
      %3143 = vset.pattern.permute.xlu0 1
      %3144 = vperm.xlu0 %3143, %v366
      %v3145 = vpop.permute.xlu0 %3144
      %3146 = vset.pattern.permute.xlu0 1
      %3147 = vperm.xlu0 %3146, %v367
      %v3148 = vpop.permute.xlu0 %3147
      %3149 = vset.pattern.permute.xlu0 1
      %3150 = vperm.xlu0 %3149, %v368
      %v3151 = vpop.permute.xlu0 %3150
      %3152 = vset.pattern.permute.xlu0 1
      %3153 = vperm.xlu0 %3152, %v369
      %v3154 = vpop.permute.xlu0 %3153
      %3155 = vset.pattern.permute.xlu0 1
      %3156 = vperm.xlu0 %3155, %v370
      %v3157 = vpop.permute.xlu0 %3156
      %3158 = vset.pattern.permute.xlu0 1
      %3159 = vperm.xlu0 %3158, %v371
      %v3160 = vpop.permute.xlu0 %3159
      %3161 = vset.pattern.permute.xlu0 1
      %3162 = vperm.xlu0 %3161, %v372
      %v3163 = vpop.permute.xlu0 %3162
      %3164 = vset.pattern.permute.xlu0 1
      %3165 = vperm.xlu0 %3164, %v581
      %v3166 = vpop.permute.xlu0 %3165
      %3167 = vset.pattern.permute.xlu0 1
      %3168 = vperm.xlu0 %3167, %v582
      %v3169 = vpop.permute.xlu0 %3168
      %3170 = vset.pattern.permute.xlu0 1
      %3171 = vperm.xlu0 %3170, %v583
      %v3172 = vpop.permute.xlu0 %3171
      %3173 = vset.pattern.permute.xlu0 1
      %3174 = vperm.xlu0 %3173, %v584
      %v3175 = vpop.permute.xlu0 %3174
      %3176 = vset.pattern.permute.xlu0 1
      %3177 = vperm.xlu0 %3176, %v585
      %v3178 = vpop.permute.xlu0 %3177
      %3179 = vset.pattern.permute.xlu0 1
      %3180 = vperm.xlu0 %3179, %v586
      %v3181 = vpop.permute.xlu0 %3180
      %3182 = vset.pattern.permute.xlu0 1
      %3183 = vperm.xlu0 %3182, %v587
      %v3184 = vpop.permute.xlu0 %3183
      %3185 = vset.pattern.permute.xlu0 1
      %3186 = vperm.xlu0 %3185, %v588
      %v3187 = vpop.permute.xlu0 %3186
      %3188 = vset.pattern.permute.xlu0 1
      %3189 = vperm.xlu0 %3188, %v781
      %v3190 = vpop.permute.xlu0 %3189
      %3191 = vset.pattern.permute.xlu0 1
      %3192 = vperm.xlu0 %3191, %v782
      %v3193 = vpop.permute.xlu0 %3192
      %3194 = vset.pattern.permute.xlu0 1
      %3195 = vperm.xlu0 %3194, %v783
      %v3196 = vpop.permute.xlu0 %3195
      %3197 = vset.pattern.permute.xlu0 1
      %3198 = vperm.xlu0 %3197, %v784
      %v3199 = vpop.permute.xlu0 %3198
      %3200 = vset.pattern.permute.xlu0 1
      %3201 = vperm.xlu0 %3200, %v785
      %v3202 = vpop.permute.xlu0 %3201
      %3203 = vset.pattern.permute.xlu0 1
      %3204 = vperm.xlu0 %3203, %v786
      %v3205 = vpop.permute.xlu0 %3204
      %3206 = vset.pattern.permute.xlu0 1
      %3207 = vperm.xlu0 %3206, %v787
      %v3208 = vpop.permute.xlu0 %3207
      %3209 = vset.pattern.permute.xlu0 1
      %3210 = vperm.xlu0 %3209, %v788
      %v3211 = vpop.permute.xlu0 %3210
      %3212 = vset.pattern.permute.xlu0 1
      %3213 = vperm.xlu0 %3212, %v989
      %v3214 = vpop.permute.xlu0 %3213
      %3215 = vset.pattern.permute.xlu0 1
      %3216 = vperm.xlu0 %3215, %v990
      %v3217 = vpop.permute.xlu0 %3216
      %3218 = vset.pattern.permute.xlu0 1
      %3219 = vperm.xlu0 %3218, %v991
      %v3220 = vpop.permute.xlu0 %3219
      %3221 = vset.pattern.permute.xlu0 1
      %3222 = vperm.xlu0 %3221, %v992
      %v3223 = vpop.permute.xlu0 %3222
      %3224 = vset.pattern.permute.xlu0 1
      %3225 = vperm.xlu0 %3224, %v993
      %v3226 = vpop.permute.xlu0 %3225
      %3227 = vset.pattern.permute.xlu0 1
      %3228 = vperm.xlu0 %3227, %v994
      %v3229 = vpop.permute.xlu0 %3228
      %3230 = vset.pattern.permute.xlu0 1
      %3231 = vperm.xlu0 %3230, %v995
      %v3232 = vpop.permute.xlu0 %3231
      %3233 = vset.pattern.permute.xlu0 1
      %3234 = vperm.xlu0 %3233, %v996
      %v3235 = vpop.permute.xlu0 %3234
      %3236 = vset.pattern.permute.xlu0 1
      %3237 = vperm.xlu0 %3236, %v1165
      %v3238 = vpop.permute.xlu0 %3237
      %3239 = vset.pattern.permute.xlu0 1
      %3240 = vperm.xlu0 %3239, %v1166
      %v3241 = vpop.permute.xlu0 %3240
      %3242 = vset.pattern.permute.xlu0 1
      %3243 = vperm.xlu0 %3242, %v1167
      %v3244 = vpop.permute.xlu0 %3243
      %3245 = vset.pattern.permute.xlu0 1
      %3246 = vperm.xlu0 %3245, %v1168
      %v3247 = vpop.permute.xlu0 %3246
      %3248 = vset.pattern.permute.xlu0 1
      %3249 = vperm.xlu0 %3248, %v1169
      %v3250 = vpop.permute.xlu0 %3249
      %3251 = vset.pattern.permute.xlu0 1
      %3252 = vperm.xlu0 %3251, %v1170
      %v3253 = vpop.permute.xlu0 %3252
      %3254 = vset.pattern.permute.xlu0 1
      %3255 = vperm.xlu0 %3254, %v1171
      %v3256 = vpop.permute.xlu0 %3255
      %3257 = vset.pattern.permute.xlu0 1
      %3258 = vperm.xlu0 %3257, %v1172
      %v3259 = vpop.permute.xlu0 %3258
      %3260 = vset.pattern.permute.xlu0 1
      %3261 = vperm.xlu0 %3260, %v1341
      %v3262 = vpop.permute.xlu0 %3261
      %3263 = vset.pattern.permute.xlu0 1
      %3264 = vperm.xlu0 %3263, %v1342
      %v3265 = vpop.permute.xlu0 %3264
      %3266 = vset.pattern.permute.xlu0 1
      %3267 = vperm.xlu0 %3266, %v1343
      %v3268 = vpop.permute.xlu0 %3267
      %3269 = vset.pattern.permute.xlu0 1
      %3270 = vperm.xlu0 %3269, %v1344
      %v3271 = vpop.permute.xlu0 %3270
      %3272 = vset.pattern.permute.xlu0 1
      %3273 = vperm.xlu0 %3272, %v1345
      %v3274 = vpop.permute.xlu0 %3273
      %3275 = vset.pattern.permute.xlu0 1
      %3276 = vperm.xlu0 %3275, %v1346
      %v3277 = vpop.permute.xlu0 %3276
      %3278 = vset.pattern.permute.xlu0 1
      %3279 = vperm.xlu0 %3278, %v1347
      %v3280 = vpop.permute.xlu0 %3279
      %3281 = vset.pattern.permute.xlu0 1
      %3282 = vperm.xlu0 %3281, %v1348
      %v3283 = vpop.permute.xlu0 %3282
      %3284 = vset.pattern.permute.xlu0 1
      %3285 = vperm.xlu0 %3284, %v1557
      %v3286 = vpop.permute.xlu0 %3285
      %3287 = vset.pattern.permute.xlu0 1
      %3288 = vperm.xlu0 %3287, %v1558
      %v3289 = vpop.permute.xlu0 %3288
      %3290 = vset.pattern.permute.xlu0 1
      %3291 = vperm.xlu0 %3290, %v1559
      %v3292 = vpop.permute.xlu0 %3291
      %3293 = vset.pattern.permute.xlu0 1
      %3294 = vperm.xlu0 %3293, %v1560
      %v3295 = vpop.permute.xlu0 %3294
      %3296 = vset.pattern.permute.xlu0 1
      %3297 = vperm.xlu0 %3296, %v1561
      %v3298 = vpop.permute.xlu0 %3297
      %3299 = vset.pattern.permute.xlu0 1
      %3300 = vperm.xlu0 %3299, %v1562
      %v3301 = vpop.permute.xlu0 %3300
      %3302 = vset.pattern.permute.xlu0 1
      %3303 = vperm.xlu0 %3302, %v1563
      %v3304 = vpop.permute.xlu0 %3303
      %3305 = vset.pattern.permute.xlu0 1
      %3306 = vperm.xlu0 %3305, %v1564
      %v3307 = vpop.permute.xlu0 %3306
      %3308 = vset.pattern.permute.xlu0 1
      %3309 = vperm.xlu0 %3308, %v1757
      %v3310 = vpop.permute.xlu0 %3309
      %3311 = vset.pattern.permute.xlu0 1
      %3312 = vperm.xlu0 %3311, %v1758
      %v3313 = vpop.permute.xlu0 %3312
      %3314 = vset.pattern.permute.xlu0 1
      %3315 = vperm.xlu0 %3314, %v1759
      %v3316 = vpop.permute.xlu0 %3315
      %3317 = vset.pattern.permute.xlu0 1
      %3318 = vperm.xlu0 %3317, %v1760
      %v3319 = vpop.permute.xlu0 %3318
      %3320 = vset.pattern.permute.xlu0 1
      %3321 = vperm.xlu0 %3320, %v1761
      %v3322 = vpop.permute.xlu0 %3321
      %3323 = vset.pattern.permute.xlu0 1
      %3324 = vperm.xlu0 %3323, %v1762
      %v3325 = vpop.permute.xlu0 %3324
      %3326 = vset.pattern.permute.xlu0 1
      %3327 = vperm.xlu0 %3326, %v1763
      %v3328 = vpop.permute.xlu0 %3327
      %3329 = vset.pattern.permute.xlu0 1
      %3330 = vperm.xlu0 %3329, %v1764
      %v3331 = vpop.permute.xlu0 %3330
      %3332 = vset.pattern.permute.xlu0 1
      %3333 = vperm.xlu0 %3332, %v1957
      %v3334 = vpop.permute.xlu0 %3333
      %3335 = vset.pattern.permute.xlu0 1
      %3336 = vperm.xlu0 %3335, %v1958
      %v3337 = vpop.permute.xlu0 %3336
      %3338 = vset.pattern.permute.xlu0 1
      %3339 = vperm.xlu0 %3338, %v1959
      %v3340 = vpop.permute.xlu0 %3339
      %3341 = vset.pattern.permute.xlu0 1
      %3342 = vperm.xlu0 %3341, %v1960
      %v3343 = vpop.permute.xlu0 %3342
      %3344 = vset.pattern.permute.xlu0 1
      %3345 = vperm.xlu0 %3344, %v1961
      %v3346 = vpop.permute.xlu0 %3345
      %3347 = vset.pattern.permute.xlu0 1
      %3348 = vperm.xlu0 %3347, %v1962
      %v3349 = vpop.permute.xlu0 %3348
      %3350 = vset.pattern.permute.xlu0 1
      %3351 = vperm.xlu0 %3350, %v1963
      %v3352 = vpop.permute.xlu0 %3351
      %3353 = vset.pattern.permute.xlu0 1
      %3354 = vperm.xlu0 %3353, %v1964
      %v3355 = vpop.permute.xlu0 %3354
      %3356 = vset.pattern.permute.xlu0 1
      %3357 = vperm.xlu0 %3356, %v2165
      %v3358 = vpop.permute.xlu0 %3357
      %3359 = vset.pattern.permute.xlu0 1
      %3360 = vperm.xlu0 %3359, %v2166
      %v3361 = vpop.permute.xlu0 %3360
      %3362 = vset.pattern.permute.xlu0 1
      %3363 = vperm.xlu0 %3362, %v2167
      %v3364 = vpop.permute.xlu0 %3363
      %3365 = vset.pattern.permute.xlu0 1
      %3366 = vperm.xlu0 %3365, %v2168
      %v3367 = vpop.permute.xlu0 %3366
      %3368 = vset.pattern.permute.xlu0 1
      %3369 = vperm.xlu0 %3368, %v2169
      %v3370 = vpop.permute.xlu0 %3369
      %3371 = vset.pattern.permute.xlu0 1
      %3372 = vperm.xlu0 %3371, %v2170
      %v3373 = vpop.permute.xlu0 %3372
      %3374 = vset.pattern.permute.xlu0 1
      %3375 = vperm.xlu0 %3374, %v2171
      %v3376 = vpop.permute.xlu0 %3375
      %3377 = vset.pattern.permute.xlu0 1
      %3378 = vperm.xlu0 %3377, %v2172
      %v3379 = vpop.permute.xlu0 %3378
      %3380 = vset.pattern.permute.xlu0 1
      %3381 = vperm.xlu0 %3380, %v2333
      %v3382 = vpop.permute.xlu0 %3381
      %3383 = vset.pattern.permute.xlu0 1
      %3384 = vperm.xlu0 %3383, %v2334
      %v3385 = vpop.permute.xlu0 %3384
      %3386 = vset.pattern.permute.xlu0 1
      %3387 = vperm.xlu0 %3386, %v2335
      %v3388 = vpop.permute.xlu0 %3387
      %3389 = vset.pattern.permute.xlu0 1
      %3390 = vperm.xlu0 %3389, %v2336
      %v3391 = vpop.permute.xlu0 %3390
      %3392 = vset.pattern.permute.xlu0 1
      %3393 = vperm.xlu0 %3392, %v2337
      %v3394 = vpop.permute.xlu0 %3393
      %3395 = vset.pattern.permute.xlu0 1
      %3396 = vperm.xlu0 %3395, %v2338
      %v3397 = vpop.permute.xlu0 %3396
      %3398 = vset.pattern.permute.xlu0 1
      %3399 = vperm.xlu0 %3398, %v2339
      %v3400 = vpop.permute.xlu0 %3399
      %3401 = vset.pattern.permute.xlu0 1
      %3402 = vperm.xlu0 %3401, %v2340
      %v3403 = vpop.permute.xlu0 %3402
      %3404 = vset.pattern.permute.xlu0 1
      %3405 = vperm.xlu0 %3404, %v2501
      %v3406 = vpop.permute.xlu0 %3405
      %3407 = vset.pattern.permute.xlu0 1
      %3408 = vperm.xlu0 %3407, %v2502
      %v3409 = vpop.permute.xlu0 %3408
      %3410 = vset.pattern.permute.xlu0 1
      %3411 = vperm.xlu0 %3410, %v2503
      %v3412 = vpop.permute.xlu0 %3411
      %3413 = vset.pattern.permute.xlu0 1
      %3414 = vperm.xlu0 %3413, %v2504
      %v3415 = vpop.permute.xlu0 %3414
      %3416 = vset.pattern.permute.xlu0 1
      %3417 = vperm.xlu0 %3416, %v2505
      %v3418 = vpop.permute.xlu0 %3417
      %3419 = vset.pattern.permute.xlu0 1
      %3420 = vperm.xlu0 %3419, %v2506
      %v3421 = vpop.permute.xlu0 %3420
      %3422 = vset.pattern.permute.xlu0 1
      %3423 = vperm.xlu0 %3422, %v2507
      %v3424 = vpop.permute.xlu0 %3423
      %3425 = vset.pattern.permute.xlu0 1
      %3426 = vperm.xlu0 %3425, %v2508
      %v3427 = vpop.permute.xlu0 %3426
      %vm3428 = vcmp.eq.s32.totalorder %v3142, %v2510
      %vm3429 = vcmp.eq.s32.totalorder %v3142, %v2511
      %vm3430 = vcmp.eq.s32.totalorder %v3142, %v2512
      %vm3431 = vcmp.eq.s32.totalorder %v3142, %v2513
      %vm3432 = vcmp.eq.s32.totalorder %v3142, %v2514
      %vm3433 = vcmp.eq.s32.totalorder %v3142, %v2515
      %vm3434 = vcmp.eq.s32.totalorder %v3145, %v2510
      %vm3435 = vcmp.eq.s32.totalorder %v3145, %v2511
      %vm3436 = vcmp.eq.s32.totalorder %v3145, %v2512
      %vm3437 = vcmp.eq.s32.totalorder %v3145, %v2513
      %vm3438 = vcmp.eq.s32.totalorder %v3145, %v2514
      %vm3439 = vcmp.eq.s32.totalorder %v3145, %v2515
      %vm3440 = vcmp.eq.s32.totalorder %v3148, %v2510
      %vm3441 = vcmp.eq.s32.totalorder %v3148, %v2511
      %vm3442 = vcmp.eq.s32.totalorder %v3148, %v2512
      %vm3443 = vcmp.eq.s32.totalorder %v3148, %v2513
      %vm3444 = vcmp.eq.s32.totalorder %v3148, %v2514
      %vm3445 = vcmp.eq.s32.totalorder %v3148, %v2515
      %vm3446 = vcmp.eq.s32.totalorder %v3151, %v2510
      %vm3447 = vcmp.eq.s32.totalorder %v3151, %v2511
      %vm3448 = vcmp.eq.s32.totalorder %v3151, %v2512
      %vm3449 = vcmp.eq.s32.totalorder %v3151, %v2513
      %vm3450 = vcmp.eq.s32.totalorder %v3151, %v2514
      %vm3451 = vcmp.eq.s32.totalorder %v3151, %v2515
      %vm3452 = vcmp.eq.s32.totalorder %v3154, %v2510
      %vm3453 = vcmp.eq.s32.totalorder %v3154, %v2511
      %vm3454 = vcmp.eq.s32.totalorder %v3154, %v2512
      %vm3455 = vcmp.eq.s32.totalorder %v3154, %v2513
      %vm3456 = vcmp.eq.s32.totalorder %v3154, %v2514
      %vm3457 = vcmp.eq.s32.totalorder %v3154, %v2515
      %vm3458 = vcmp.eq.s32.totalorder %v3157, %v2510
      %vm3459 = vcmp.eq.s32.totalorder %v3157, %v2511
      %vm3460 = vcmp.eq.s32.totalorder %v3157, %v2512
      %vm3461 = vcmp.eq.s32.totalorder %v3157, %v2513
      %vm3462 = vcmp.eq.s32.totalorder %v3157, %v2514
      %vm3463 = vcmp.eq.s32.totalorder %v3157, %v2515
      %vm3464 = vcmp.eq.s32.totalorder %v3160, %v2510
      %vm3465 = vcmp.eq.s32.totalorder %v3160, %v2511
      %vm3466 = vcmp.eq.s32.totalorder %v3160, %v2512
      %vm3467 = vcmp.eq.s32.totalorder %v3160, %v2513
      %vm3468 = vcmp.eq.s32.totalorder %v3160, %v2514
      %vm3469 = vcmp.eq.s32.totalorder %v3160, %v2515
      %vm3470 = vcmp.eq.s32.totalorder %v3163, %v2510
      %vm3471 = vcmp.eq.s32.totalorder %v3163, %v2511
      %vm3472 = vcmp.eq.s32.totalorder %v3163, %v2512
      %vm3473 = vcmp.eq.s32.totalorder %v3163, %v2513
      %vm3474 = vcmp.eq.s32.totalorder %v3163, %v2514
      %vm3475 = vcmp.eq.s32.totalorder %v3163, %v2515
      %vm3476 = vcmp.eq.s32.totalorder %v3166, %v2510
      %vm3477 = vcmp.eq.s32.totalorder %v3166, %v2511
      %vm3478 = vcmp.eq.s32.totalorder %v3166, %v2512
      %vm3479 = vcmp.eq.s32.totalorder %v3166, %v2513
      %vm3480 = vcmp.eq.s32.totalorder %v3166, %v2514
      %vm3481 = vcmp.eq.s32.totalorder %v3166, %v2515
      %vm3482 = vcmp.eq.s32.totalorder %v3169, %v2510
      %vm3483 = vcmp.eq.s32.totalorder %v3169, %v2511
      %vm3484 = vcmp.eq.s32.totalorder %v3169, %v2512
      %vm3485 = vcmp.eq.s32.totalorder %v3169, %v2513
      %vm3486 = vcmp.eq.s32.totalorder %v3169, %v2514
      %vm3487 = vcmp.eq.s32.totalorder %v3169, %v2515
      %vm3488 = vcmp.eq.s32.totalorder %v3172, %v2510
      %vm3489 = vcmp.eq.s32.totalorder %v3172, %v2511
      %vm3490 = vcmp.eq.s32.totalorder %v3172, %v2512
      %vm3491 = vcmp.eq.s32.totalorder %v3172, %v2513
      %vm3492 = vcmp.eq.s32.totalorder %v3172, %v2514
      %vm3493 = vcmp.eq.s32.totalorder %v3172, %v2515
      %vm3494 = vcmp.eq.s32.totalorder %v3175, %v2510
      %vm3495 = vcmp.eq.s32.totalorder %v3175, %v2511
      %vm3496 = vcmp.eq.s32.totalorder %v3175, %v2512
      %vm3497 = vcmp.eq.s32.totalorder %v3175, %v2513
      %vm3498 = vcmp.eq.s32.totalorder %v3175, %v2514
      %vm3499 = vcmp.eq.s32.totalorder %v3175, %v2515
      %vm3500 = vcmp.eq.s32.totalorder %v3178, %v2510
      %vm3501 = vcmp.eq.s32.totalorder %v3178, %v2511
      %vm3502 = vcmp.eq.s32.totalorder %v3178, %v2512
      %vm3503 = vcmp.eq.s32.totalorder %v3178, %v2513
      %vm3504 = vcmp.eq.s32.totalorder %v3178, %v2514
      %vm3505 = vcmp.eq.s32.totalorder %v3178, %v2515
      %vm3506 = vcmp.eq.s32.totalorder %v3181, %v2510
      %vm3507 = vcmp.eq.s32.totalorder %v3181, %v2511
      %vm3508 = vcmp.eq.s32.totalorder %v3181, %v2512
      %vm3509 = vcmp.eq.s32.totalorder %v3181, %v2513
      %vm3510 = vcmp.eq.s32.totalorder %v3181, %v2514
      %vm3511 = vcmp.eq.s32.totalorder %v3181, %v2515
      %vm3512 = vcmp.eq.s32.totalorder %v3184, %v2510
      %vm3513 = vcmp.eq.s32.totalorder %v3184, %v2511
      %vm3514 = vcmp.eq.s32.totalorder %v3184, %v2512
      %vm3515 = vcmp.eq.s32.totalorder %v3184, %v2513
      %vm3516 = vcmp.eq.s32.totalorder %v3184, %v2514
      %vm3517 = vcmp.eq.s32.totalorder %v3184, %v2515
      %vm3518 = vcmp.eq.s32.totalorder %v3187, %v2510
      %vm3519 = vcmp.eq.s32.totalorder %v3187, %v2511
      %vm3520 = vcmp.eq.s32.totalorder %v3187, %v2512
      %vm3521 = vcmp.eq.s32.totalorder %v3187, %v2513
      %vm3522 = vcmp.eq.s32.totalorder %v3187, %v2514
      %vm3523 = vcmp.eq.s32.totalorder %v3187, %v2515
      %vm3524 = vcmp.eq.s32.totalorder %v3190, %v2510
      %vm3525 = vcmp.eq.s32.totalorder %v3190, %v2511
      %vm3526 = vcmp.eq.s32.totalorder %v3190, %v2512
      %vm3527 = vcmp.eq.s32.totalorder %v3190, %v2513
      %vm3528 = vcmp.eq.s32.totalorder %v3190, %v2514
      %vm3529 = vcmp.eq.s32.totalorder %v3190, %v2515
      %vm3530 = vcmp.eq.s32.totalorder %v3193, %v2510
      %vm3531 = vcmp.eq.s32.totalorder %v3193, %v2511
      %vm3532 = vcmp.eq.s32.totalorder %v3193, %v2512
      %vm3533 = vcmp.eq.s32.totalorder %v3193, %v2513
      %vm3534 = vcmp.eq.s32.totalorder %v3193, %v2514
      %vm3535 = vcmp.eq.s32.totalorder %v3193, %v2515
      %vm3536 = vcmp.eq.s32.totalorder %v3196, %v2510
      %vm3537 = vcmp.eq.s32.totalorder %v3196, %v2511
      %vm3538 = vcmp.eq.s32.totalorder %v3196, %v2512
      %vm3539 = vcmp.eq.s32.totalorder %v3196, %v2513
      %vm3540 = vcmp.eq.s32.totalorder %v3196, %v2514
      %vm3541 = vcmp.eq.s32.totalorder %v3196, %v2515
      %vm3542 = vcmp.eq.s32.totalorder %v3199, %v2510
      %vm3543 = vcmp.eq.s32.totalorder %v3199, %v2511
      %vm3544 = vcmp.eq.s32.totalorder %v3199, %v2512
      %vm3545 = vcmp.eq.s32.totalorder %v3199, %v2513
      %vm3546 = vcmp.eq.s32.totalorder %v3199, %v2514
      %vm3547 = vcmp.eq.s32.totalorder %v3199, %v2515
      %vm3548 = vcmp.eq.s32.totalorder %v3202, %v2510
      %vm3549 = vcmp.eq.s32.totalorder %v3202, %v2511
      %vm3550 = vcmp.eq.s32.totalorder %v3202, %v2512
      %vm3551 = vcmp.eq.s32.totalorder %v3202, %v2513
      %vm3552 = vcmp.eq.s32.totalorder %v3202, %v2514
      %vm3553 = vcmp.eq.s32.totalorder %v3202, %v2515
      %vm3554 = vcmp.eq.s32.totalorder %v3205, %v2510
      %vm3555 = vcmp.eq.s32.totalorder %v3205, %v2511
      %vm3556 = vcmp.eq.s32.totalorder %v3205, %v2512
      %vm3557 = vcmp.eq.s32.totalorder %v3205, %v2513
      %vm3558 = vcmp.eq.s32.totalorder %v3205, %v2514
      %vm3559 = vcmp.eq.s32.totalorder %v3205, %v2515
      %vm3560 = vcmp.eq.s32.totalorder %v3208, %v2510
      %vm3561 = vcmp.eq.s32.totalorder %v3208, %v2511
      %vm3562 = vcmp.eq.s32.totalorder %v3208, %v2512
      %vm3563 = vcmp.eq.s32.totalorder %v3208, %v2513
      %vm3564 = vcmp.eq.s32.totalorder %v3208, %v2514
      %vm3565 = vcmp.eq.s32.totalorder %v3208, %v2515
      %vm3566 = vcmp.eq.s32.totalorder %v3211, %v2510
      %vm3567 = vcmp.eq.s32.totalorder %v3211, %v2511
      %vm3568 = vcmp.eq.s32.totalorder %v3211, %v2512
      %vm3569 = vcmp.eq.s32.totalorder %v3211, %v2513
      %vm3570 = vcmp.eq.s32.totalorder %v3211, %v2514
      %vm3571 = vcmp.eq.s32.totalorder %v3211, %v2515
      %vm3572 = vcmp.eq.s32.totalorder %v3214, %v2510
      %vm3573 = vcmp.eq.s32.totalorder %v3214, %v2511
      %vm3574 = vcmp.eq.s32.totalorder %v3214, %v2512
      %vm3575 = vcmp.eq.s32.totalorder %v3214, %v2513
      %vm3576 = vcmp.eq.s32.totalorder %v3214, %v2514
      %vm3577 = vcmp.eq.s32.totalorder %v3214, %v2515
      %vm3578 = vcmp.eq.s32.totalorder %v3217, %v2510
      %vm3579 = vcmp.eq.s32.totalorder %v3217, %v2511
      %vm3580 = vcmp.eq.s32.totalorder %v3217, %v2512
      %vm3581 = vcmp.eq.s32.totalorder %v3217, %v2513
      %vm3582 = vcmp.eq.s32.totalorder %v3217, %v2514
      %vm3583 = vcmp.eq.s32.totalorder %v3217, %v2515
      %vm3584 = vcmp.eq.s32.totalorder %v3220, %v2510
      %vm3585 = vcmp.eq.s32.totalorder %v3220, %v2511
      %vm3586 = vcmp.eq.s32.totalorder %v3220, %v2512
      %vm3587 = vcmp.eq.s32.totalorder %v3220, %v2513
      %vm3588 = vcmp.eq.s32.totalorder %v3220, %v2514
      %vm3589 = vcmp.eq.s32.totalorder %v3220, %v2515
      %vm3590 = vcmp.eq.s32.totalorder %v3223, %v2510
      %vm3591 = vcmp.eq.s32.totalorder %v3223, %v2511
      %vm3592 = vcmp.eq.s32.totalorder %v3223, %v2512
      %vm3593 = vcmp.eq.s32.totalorder %v3223, %v2513
      %vm3594 = vcmp.eq.s32.totalorder %v3223, %v2514
      %vm3595 = vcmp.eq.s32.totalorder %v3223, %v2515
      %vm3596 = vcmp.eq.s32.totalorder %v3226, %v2510
      %vm3597 = vcmp.eq.s32.totalorder %v3226, %v2511
      %vm3598 = vcmp.eq.s32.totalorder %v3226, %v2512
      %vm3599 = vcmp.eq.s32.totalorder %v3226, %v2513
      %vm3600 = vcmp.eq.s32.totalorder %v3226, %v2514
      %vm3601 = vcmp.eq.s32.totalorder %v3226, %v2515
      %vm3602 = vcmp.eq.s32.totalorder %v3229, %v2510
      %vm3603 = vcmp.eq.s32.totalorder %v3229, %v2511
      %vm3604 = vcmp.eq.s32.totalorder %v3229, %v2512
      %vm3605 = vcmp.eq.s32.totalorder %v3229, %v2513
      %vm3606 = vcmp.eq.s32.totalorder %v3229, %v2514
      %vm3607 = vcmp.eq.s32.totalorder %v3229, %v2515
      %vm3608 = vcmp.eq.s32.totalorder %v3232, %v2510
      %vm3609 = vcmp.eq.s32.totalorder %v3232, %v2511
      %vm3610 = vcmp.eq.s32.totalorder %v3232, %v2512
      %vm3611 = vcmp.eq.s32.totalorder %v3232, %v2513
      %vm3612 = vcmp.eq.s32.totalorder %v3232, %v2514
      %vm3613 = vcmp.eq.s32.totalorder %v3232, %v2515
      %vm3614 = vcmp.eq.s32.totalorder %v3235, %v2510
      %vm3615 = vcmp.eq.s32.totalorder %v3235, %v2511
      %vm3616 = vcmp.eq.s32.totalorder %v3235, %v2512
      %vm3617 = vcmp.eq.s32.totalorder %v3235, %v2513
      %vm3618 = vcmp.eq.s32.totalorder %v3235, %v2514
      %vm3619 = vcmp.eq.s32.totalorder %v3235, %v2515
      %vm3620 = vcmp.eq.s32.totalorder %v3238, %v2510
      %vm3621 = vcmp.eq.s32.totalorder %v3238, %v2511
      %vm3622 = vcmp.eq.s32.totalorder %v3238, %v2512
      %vm3623 = vcmp.eq.s32.totalorder %v3238, %v2513
      %vm3624 = vcmp.eq.s32.totalorder %v3238, %v2514
      %vm3625 = vcmp.eq.s32.totalorder %v3238, %v2515
      %vm3626 = vcmp.eq.s32.totalorder %v3241, %v2510
      %vm3627 = vcmp.eq.s32.totalorder %v3241, %v2511
      %vm3628 = vcmp.eq.s32.totalorder %v3241, %v2512
      %vm3629 = vcmp.eq.s32.totalorder %v3241, %v2513
      %vm3630 = vcmp.eq.s32.totalorder %v3241, %v2514
      %vm3631 = vcmp.eq.s32.totalorder %v3241, %v2515
      %vm3632 = vcmp.eq.s32.totalorder %v3244, %v2510
      %vm3633 = vcmp.eq.s32.totalorder %v3244, %v2511
      %vm3634 = vcmp.eq.s32.totalorder %v3244, %v2512
      %vm3635 = vcmp.eq.s32.totalorder %v3244, %v2513
      %vm3636 = vcmp.eq.s32.totalorder %v3244, %v2514
      %vm3637 = vcmp.eq.s32.totalorder %v3244, %v2515
      %vm3638 = vcmp.eq.s32.totalorder %v3247, %v2510
      %vm3639 = vcmp.eq.s32.totalorder %v3247, %v2511
      %vm3640 = vcmp.eq.s32.totalorder %v3247, %v2512
      %vm3641 = vcmp.eq.s32.totalorder %v3247, %v2513
      %vm3642 = vcmp.eq.s32.totalorder %v3247, %v2514
      %vm3643 = vcmp.eq.s32.totalorder %v3247, %v2515
      %vm3644 = vcmp.eq.s32.totalorder %v3250, %v2510
      %vm3645 = vcmp.eq.s32.totalorder %v3250, %v2511
      %vm3646 = vcmp.eq.s32.totalorder %v3250, %v2512
      %vm3647 = vcmp.eq.s32.totalorder %v3250, %v2513
      %vm3648 = vcmp.eq.s32.totalorder %v3250, %v2514
      %vm3649 = vcmp.eq.s32.totalorder %v3250, %v2515
      %vm3650 = vcmp.eq.s32.totalorder %v3253, %v2510
      %vm3651 = vcmp.eq.s32.totalorder %v3253, %v2511
      %vm3652 = vcmp.eq.s32.totalorder %v3253, %v2512
      %vm3653 = vcmp.eq.s32.totalorder %v3253, %v2513
      %vm3654 = vcmp.eq.s32.totalorder %v3253, %v2514
      %vm3655 = vcmp.eq.s32.totalorder %v3253, %v2515
      %vm3656 = vcmp.eq.s32.totalorder %v3256, %v2510
      %vm3657 = vcmp.eq.s32.totalorder %v3256, %v2511
      %vm3658 = vcmp.eq.s32.totalorder %v3256, %v2512
      %vm3659 = vcmp.eq.s32.totalorder %v3256, %v2513
      %vm3660 = vcmp.eq.s32.totalorder %v3256, %v2514
      %vm3661 = vcmp.eq.s32.totalorder %v3256, %v2515
      %vm3662 = vcmp.eq.s32.totalorder %v3259, %v2510
      %vm3663 = vcmp.eq.s32.totalorder %v3259, %v2511
      %vm3664 = vcmp.eq.s32.totalorder %v3259, %v2512
      %vm3665 = vcmp.eq.s32.totalorder %v3259, %v2513
      %vm3666 = vcmp.eq.s32.totalorder %v3259, %v2514
      %vm3667 = vcmp.eq.s32.totalorder %v3259, %v2515
      %vm3668 = vcmp.eq.s32.totalorder %v3262, %v2510
      %vm3669 = vcmp.eq.s32.totalorder %v3262, %v2511
      %vm3670 = vcmp.eq.s32.totalorder %v3262, %v2512
      %vm3671 = vcmp.eq.s32.totalorder %v3262, %v2513
      %vm3672 = vcmp.eq.s32.totalorder %v3262, %v2514
      %vm3673 = vcmp.eq.s32.totalorder %v3262, %v2515
      %vm3674 = vcmp.eq.s32.totalorder %v3265, %v2510
      %vm3675 = vcmp.eq.s32.totalorder %v3265, %v2511
      %vm3676 = vcmp.eq.s32.totalorder %v3265, %v2512
      %vm3677 = vcmp.eq.s32.totalorder %v3265, %v2513
      %vm3678 = vcmp.eq.s32.totalorder %v3265, %v2514
      %vm3679 = vcmp.eq.s32.totalorder %v3265, %v2515
      %vm3680 = vcmp.eq.s32.totalorder %v3268, %v2510
      %vm3681 = vcmp.eq.s32.totalorder %v3268, %v2511
      %vm3682 = vcmp.eq.s32.totalorder %v3268, %v2512
      %vm3683 = vcmp.eq.s32.totalorder %v3268, %v2513
      %vm3684 = vcmp.eq.s32.totalorder %v3268, %v2514
      %vm3685 = vcmp.eq.s32.totalorder %v3268, %v2515
      %vm3686 = vcmp.eq.s32.totalorder %v3271, %v2510
      %vm3687 = vcmp.eq.s32.totalorder %v3271, %v2511
      %vm3688 = vcmp.eq.s32.totalorder %v3271, %v2512
      %vm3689 = vcmp.eq.s32.totalorder %v3271, %v2513
      %vm3690 = vcmp.eq.s32.totalorder %v3271, %v2514
      %vm3691 = vcmp.eq.s32.totalorder %v3271, %v2515
      %vm3692 = vcmp.eq.s32.totalorder %v3274, %v2510
      %vm3693 = vcmp.eq.s32.totalorder %v3274, %v2511
      %vm3694 = vcmp.eq.s32.totalorder %v3274, %v2512
      %vm3695 = vcmp.eq.s32.totalorder %v3274, %v2513
      %vm3696 = vcmp.eq.s32.totalorder %v3274, %v2514
      %vm3697 = vcmp.eq.s32.totalorder %v3274, %v2515
      %vm3698 = vcmp.eq.s32.totalorder %v3277, %v2510
      %vm3699 = vcmp.eq.s32.totalorder %v3277, %v2511
      %vm3700 = vcmp.eq.s32.totalorder %v3277, %v2512
      %vm3701 = vcmp.eq.s32.totalorder %v3277, %v2513
      %vm3702 = vcmp.eq.s32.totalorder %v3277, %v2514
      %vm3703 = vcmp.eq.s32.totalorder %v3277, %v2515
      %vm3704 = vcmp.eq.s32.totalorder %v3280, %v2510
      %vm3705 = vcmp.eq.s32.totalorder %v3280, %v2511
      %vm3706 = vcmp.eq.s32.totalorder %v3280, %v2512
      %vm3707 = vcmp.eq.s32.totalorder %v3280, %v2513
      %vm3708 = vcmp.eq.s32.totalorder %v3280, %v2514
      %vm3709 = vcmp.eq.s32.totalorder %v3280, %v2515
      %vm3710 = vcmp.eq.s32.totalorder %v3283, %v2510
      %vm3711 = vcmp.eq.s32.totalorder %v3283, %v2511
      %vm3712 = vcmp.eq.s32.totalorder %v3283, %v2512
      %vm3713 = vcmp.eq.s32.totalorder %v3283, %v2513
      %vm3714 = vcmp.eq.s32.totalorder %v3283, %v2514
      %vm3715 = vcmp.eq.s32.totalorder %v3283, %v2515
      %vm3716 = vcmp.eq.s32.totalorder %v3286, %v2510
      %vm3717 = vcmp.eq.s32.totalorder %v3286, %v2511
      %vm3718 = vcmp.eq.s32.totalorder %v3286, %v2512
      %vm3719 = vcmp.eq.s32.totalorder %v3286, %v2513
      %vm3720 = vcmp.eq.s32.totalorder %v3286, %v2514
      %vm3721 = vcmp.eq.s32.totalorder %v3286, %v2515
      %vm3722 = vcmp.eq.s32.totalorder %v3289, %v2510
      %vm3723 = vcmp.eq.s32.totalorder %v3289, %v2511
      %vm3724 = vcmp.eq.s32.totalorder %v3289, %v2512
      %vm3725 = vcmp.eq.s32.totalorder %v3289, %v2513
      %vm3726 = vcmp.eq.s32.totalorder %v3289, %v2514
      %vm3727 = vcmp.eq.s32.totalorder %v3289, %v2515
      %vm3728 = vcmp.eq.s32.totalorder %v3292, %v2510
      %vm3729 = vcmp.eq.s32.totalorder %v3292, %v2511
      %vm3730 = vcmp.eq.s32.totalorder %v3292, %v2512
      %vm3731 = vcmp.eq.s32.totalorder %v3292, %v2513
      %vm3732 = vcmp.eq.s32.totalorder %v3292, %v2514
      %vm3733 = vcmp.eq.s32.totalorder %v3292, %v2515
      %vm3734 = vcmp.eq.s32.totalorder %v3295, %v2510
      %vm3735 = vcmp.eq.s32.totalorder %v3295, %v2511
      %vm3736 = vcmp.eq.s32.totalorder %v3295, %v2512
      %vm3737 = vcmp.eq.s32.totalorder %v3295, %v2513
      %vm3738 = vcmp.eq.s32.totalorder %v3295, %v2514
      %vm3739 = vcmp.eq.s32.totalorder %v3295, %v2515
      %vm3740 = vcmp.eq.s32.totalorder %v3298, %v2510
      %vm3741 = vcmp.eq.s32.totalorder %v3298, %v2511
      %vm3742 = vcmp.eq.s32.totalorder %v3298, %v2512
      %vm3743 = vcmp.eq.s32.totalorder %v3298, %v2513
      %vm3744 = vcmp.eq.s32.totalorder %v3298, %v2514
      %vm3745 = vcmp.eq.s32.totalorder %v3298, %v2515
      %vm3746 = vcmp.eq.s32.totalorder %v3301, %v2510
      %vm3747 = vcmp.eq.s32.totalorder %v3301, %v2511
      %vm3748 = vcmp.eq.s32.totalorder %v3301, %v2512
      %vm3749 = vcmp.eq.s32.totalorder %v3301, %v2513
      %vm3750 = vcmp.eq.s32.totalorder %v3301, %v2514
      %vm3751 = vcmp.eq.s32.totalorder %v3301, %v2515
      %vm3752 = vcmp.eq.s32.totalorder %v3304, %v2510
      %vm3753 = vcmp.eq.s32.totalorder %v3304, %v2511
      %vm3754 = vcmp.eq.s32.totalorder %v3304, %v2512
      %vm3755 = vcmp.eq.s32.totalorder %v3304, %v2513
      %vm3756 = vcmp.eq.s32.totalorder %v3304, %v2514
      %vm3757 = vcmp.eq.s32.totalorder %v3304, %v2515
      %vm3758 = vcmp.eq.s32.totalorder %v3307, %v2510
      %vm3759 = vcmp.eq.s32.totalorder %v3307, %v2511
      %vm3760 = vcmp.eq.s32.totalorder %v3307, %v2512
      %vm3761 = vcmp.eq.s32.totalorder %v3307, %v2513
      %vm3762 = vcmp.eq.s32.totalorder %v3307, %v2514
      %vm3763 = vcmp.eq.s32.totalorder %v3307, %v2515
      %vm3764 = vcmp.eq.s32.totalorder %v3310, %v2510
      %vm3765 = vcmp.eq.s32.totalorder %v3310, %v2511
      %vm3766 = vcmp.eq.s32.totalorder %v3310, %v2512
      %vm3767 = vcmp.eq.s32.totalorder %v3310, %v2513
      %vm3768 = vcmp.eq.s32.totalorder %v3310, %v2514
      %vm3769 = vcmp.eq.s32.totalorder %v3310, %v2515
      %vm3770 = vcmp.eq.s32.totalorder %v3313, %v2510
      %vm3771 = vcmp.eq.s32.totalorder %v3313, %v2511
      %vm3772 = vcmp.eq.s32.totalorder %v3313, %v2512
      %vm3773 = vcmp.eq.s32.totalorder %v3313, %v2513
      %vm3774 = vcmp.eq.s32.totalorder %v3313, %v2514
      %vm3775 = vcmp.eq.s32.totalorder %v3313, %v2515
      %vm3776 = vcmp.eq.s32.totalorder %v3316, %v2510
      %vm3777 = vcmp.eq.s32.totalorder %v3316, %v2511
      %vm3778 = vcmp.eq.s32.totalorder %v3316, %v2512
      %vm3779 = vcmp.eq.s32.totalorder %v3316, %v2513
      %vm3780 = vcmp.eq.s32.totalorder %v3316, %v2514
      %vm3781 = vcmp.eq.s32.totalorder %v3316, %v2515
      %vm3782 = vcmp.eq.s32.totalorder %v3319, %v2510
      %vm3783 = vcmp.eq.s32.totalorder %v3319, %v2511
      %vm3784 = vcmp.eq.s32.totalorder %v3319, %v2512
      %vm3785 = vcmp.eq.s32.totalorder %v3319, %v2513
      %vm3786 = vcmp.eq.s32.totalorder %v3319, %v2514
      %vm3787 = vcmp.eq.s32.totalorder %v3319, %v2515
      %vm3788 = vcmp.eq.s32.totalorder %v3322, %v2510
      %vm3789 = vcmp.eq.s32.totalorder %v3322, %v2511
      %vm3790 = vcmp.eq.s32.totalorder %v3322, %v2512
      %vm3791 = vcmp.eq.s32.totalorder %v3322, %v2513
      %vm3792 = vcmp.eq.s32.totalorder %v3322, %v2514
      %vm3793 = vcmp.eq.s32.totalorder %v3322, %v2515
      %vm3794 = vcmp.eq.s32.totalorder %v3325, %v2510
      %vm3795 = vcmp.eq.s32.totalorder %v3325, %v2511
      %vm3796 = vcmp.eq.s32.totalorder %v3325, %v2512
      %vm3797 = vcmp.eq.s32.totalorder %v3325, %v2513
      %vm3798 = vcmp.eq.s32.totalorder %v3325, %v2514
      %vm3799 = vcmp.eq.s32.totalorder %v3325, %v2515
      %vm3800 = vcmp.eq.s32.totalorder %v3328, %v2510
      %vm3801 = vcmp.eq.s32.totalorder %v3328, %v2511
      %vm3802 = vcmp.eq.s32.totalorder %v3328, %v2512
      %vm3803 = vcmp.eq.s32.totalorder %v3328, %v2513
      %vm3804 = vcmp.eq.s32.totalorder %v3328, %v2514
      %vm3805 = vcmp.eq.s32.totalorder %v3328, %v2515
      %vm3806 = vcmp.eq.s32.totalorder %v3331, %v2510
      %vm3807 = vcmp.eq.s32.totalorder %v3331, %v2511
      %vm3808 = vcmp.eq.s32.totalorder %v3331, %v2512
      %vm3809 = vcmp.eq.s32.totalorder %v3331, %v2513
      %vm3810 = vcmp.eq.s32.totalorder %v3331, %v2514
      %vm3811 = vcmp.eq.s32.totalorder %v3331, %v2515
      %vm3812 = vcmp.eq.s32.totalorder %v3334, %v2510
      %vm3813 = vcmp.eq.s32.totalorder %v3334, %v2511
      %vm3814 = vcmp.eq.s32.totalorder %v3334, %v2512
      %vm3815 = vcmp.eq.s32.totalorder %v3334, %v2513
      %vm3816 = vcmp.eq.s32.totalorder %v3334, %v2514
      %vm3817 = vcmp.eq.s32.totalorder %v3334, %v2515
      %vm3818 = vcmp.eq.s32.totalorder %v3337, %v2510
      %vm3819 = vcmp.eq.s32.totalorder %v3337, %v2511
      %vm3820 = vcmp.eq.s32.totalorder %v3337, %v2512
      %vm3821 = vcmp.eq.s32.totalorder %v3337, %v2513
      %vm3822 = vcmp.eq.s32.totalorder %v3337, %v2514
      %vm3823 = vcmp.eq.s32.totalorder %v3337, %v2515
      %vm3824 = vcmp.eq.s32.totalorder %v3340, %v2510
      %vm3825 = vcmp.eq.s32.totalorder %v3340, %v2511
      %vm3826 = vcmp.eq.s32.totalorder %v3340, %v2512
      %vm3827 = vcmp.eq.s32.totalorder %v3340, %v2513
      %vm3828 = vcmp.eq.s32.totalorder %v3340, %v2514
      %vm3829 = vcmp.eq.s32.totalorder %v3340, %v2515
      %vm3830 = vcmp.eq.s32.totalorder %v3343, %v2510
      %vm3831 = vcmp.eq.s32.totalorder %v3343, %v2511
      %vm3832 = vcmp.eq.s32.totalorder %v3343, %v2512
      %vm3833 = vcmp.eq.s32.totalorder %v3343, %v2513
      %vm3834 = vcmp.eq.s32.totalorder %v3343, %v2514
      %vm3835 = vcmp.eq.s32.totalorder %v3343, %v2515
      %vm3836 = vcmp.eq.s32.totalorder %v3346, %v2510
      %vm3837 = vcmp.eq.s32.totalorder %v3346, %v2511
      %vm3838 = vcmp.eq.s32.totalorder %v3346, %v2512
      %vm3839 = vcmp.eq.s32.totalorder %v3346, %v2513
      %vm3840 = vcmp.eq.s32.totalorder %v3346, %v2514
      %vm3841 = vcmp.eq.s32.totalorder %v3346, %v2515
      %vm3842 = vcmp.eq.s32.totalorder %v3349, %v2510
      %vm3843 = vcmp.eq.s32.totalorder %v3349, %v2511
      %vm3844 = vcmp.eq.s32.totalorder %v3349, %v2512
      %vm3845 = vcmp.eq.s32.totalorder %v3349, %v2513
      %vm3846 = vcmp.eq.s32.totalorder %v3349, %v2514
      %vm3847 = vcmp.eq.s32.totalorder %v3349, %v2515
      %vm3848 = vcmp.eq.s32.totalorder %v3352, %v2510
      %vm3849 = vcmp.eq.s32.totalorder %v3352, %v2511
      %vm3850 = vcmp.eq.s32.totalorder %v3352, %v2512
      %vm3851 = vcmp.eq.s32.totalorder %v3352, %v2513
      %vm3852 = vcmp.eq.s32.totalorder %v3352, %v2514
      %vm3853 = vcmp.eq.s32.totalorder %v3352, %v2515
      %vm3854 = vcmp.eq.s32.totalorder %v3355, %v2510
      %vm3855 = vcmp.eq.s32.totalorder %v3355, %v2511
      %vm3856 = vcmp.eq.s32.totalorder %v3355, %v2512
      %vm3857 = vcmp.eq.s32.totalorder %v3355, %v2513
      %vm3858 = vcmp.eq.s32.totalorder %v3355, %v2514
      %vm3859 = vcmp.eq.s32.totalorder %v3355, %v2515
      %vm3860 = vcmp.eq.s32.totalorder %v3358, %v2510
      %vm3861 = vcmp.eq.s32.totalorder %v3358, %v2511
      %vm3862 = vcmp.eq.s32.totalorder %v3358, %v2512
      %vm3863 = vcmp.eq.s32.totalorder %v3358, %v2513
      %vm3864 = vcmp.eq.s32.totalorder %v3358, %v2514
      %vm3865 = vcmp.eq.s32.totalorder %v3358, %v2515
      %vm3866 = vcmp.eq.s32.totalorder %v3361, %v2510
      %vm3867 = vcmp.eq.s32.totalorder %v3361, %v2511
      %vm3868 = vcmp.eq.s32.totalorder %v3361, %v2512
      %vm3869 = vcmp.eq.s32.totalorder %v3361, %v2513
      %vm3870 = vcmp.eq.s32.totalorder %v3361, %v2514
      %vm3871 = vcmp.eq.s32.totalorder %v3361, %v2515
      %vm3872 = vcmp.eq.s32.totalorder %v3364, %v2510
      %vm3873 = vcmp.eq.s32.totalorder %v3364, %v2511
      %vm3874 = vcmp.eq.s32.totalorder %v3364, %v2512
      %vm3875 = vcmp.eq.s32.totalorder %v3364, %v2513
      %vm3876 = vcmp.eq.s32.totalorder %v3364, %v2514
      %vm3877 = vcmp.eq.s32.totalorder %v3364, %v2515
      %vm3878 = vcmp.eq.s32.totalorder %v3367, %v2510
      %vm3879 = vcmp.eq.s32.totalorder %v3367, %v2511
      %vm3880 = vcmp.eq.s32.totalorder %v3367, %v2512
      %vm3881 = vcmp.eq.s32.totalorder %v3367, %v2513
      %vm3882 = vcmp.eq.s32.totalorder %v3367, %v2514
      %vm3883 = vcmp.eq.s32.totalorder %v3367, %v2515
      %vm3884 = vcmp.eq.s32.totalorder %v3370, %v2510
      %vm3885 = vcmp.eq.s32.totalorder %v3370, %v2511
      %vm3886 = vcmp.eq.s32.totalorder %v3370, %v2512
      %vm3887 = vcmp.eq.s32.totalorder %v3370, %v2513
      %vm3888 = vcmp.eq.s32.totalorder %v3370, %v2514
      %vm3889 = vcmp.eq.s32.totalorder %v3370, %v2515
      %vm3890 = vcmp.eq.s32.totalorder %v3373, %v2510
      %vm3891 = vcmp.eq.s32.totalorder %v3373, %v2511
      %vm3892 = vcmp.eq.s32.totalorder %v3373, %v2512
      %vm3893 = vcmp.eq.s32.totalorder %v3373, %v2513
      %vm3894 = vcmp.eq.s32.totalorder %v3373, %v2514
      %vm3895 = vcmp.eq.s32.totalorder %v3373, %v2515
      %vm3896 = vcmp.eq.s32.totalorder %v3376, %v2510
      %vm3897 = vcmp.eq.s32.totalorder %v3376, %v2511
      %vm3898 = vcmp.eq.s32.totalorder %v3376, %v2512
      %vm3899 = vcmp.eq.s32.totalorder %v3376, %v2513
      %vm3900 = vcmp.eq.s32.totalorder %v3376, %v2514
      %vm3901 = vcmp.eq.s32.totalorder %v3376, %v2515
      %vm3902 = vcmp.eq.s32.totalorder %v3379, %v2510
      %vm3903 = vcmp.eq.s32.totalorder %v3379, %v2511
      %vm3904 = vcmp.eq.s32.totalorder %v3379, %v2512
      %vm3905 = vcmp.eq.s32.totalorder %v3379, %v2513
      %vm3906 = vcmp.eq.s32.totalorder %v3379, %v2514
      %vm3907 = vcmp.eq.s32.totalorder %v3379, %v2515
      %vm3908 = vcmp.eq.s32.totalorder %v3382, %v2510
      %vm3909 = vcmp.eq.s32.totalorder %v3382, %v2511
      %vm3910 = vcmp.eq.s32.totalorder %v3382, %v2512
      %vm3911 = vcmp.eq.s32.totalorder %v3382, %v2513
      %vm3912 = vcmp.eq.s32.totalorder %v3382, %v2514
      %vm3913 = vcmp.eq.s32.totalorder %v3382, %v2515
      %vm3914 = vcmp.eq.s32.totalorder %v3385, %v2510
      %vm3915 = vcmp.eq.s32.totalorder %v3385, %v2511
      %vm3916 = vcmp.eq.s32.totalorder %v3385, %v2512
      %vm3917 = vcmp.eq.s32.totalorder %v3385, %v2513
      %vm3918 = vcmp.eq.s32.totalorder %v3385, %v2514
      %vm3919 = vcmp.eq.s32.totalorder %v3385, %v2515
      %vm3920 = vcmp.eq.s32.totalorder %v3388, %v2510
      %vm3921 = vcmp.eq.s32.totalorder %v3388, %v2511
      %vm3922 = vcmp.eq.s32.totalorder %v3388, %v2512
      %vm3923 = vcmp.eq.s32.totalorder %v3388, %v2513
      %vm3924 = vcmp.eq.s32.totalorder %v3388, %v2514
      %vm3925 = vcmp.eq.s32.totalorder %v3388, %v2515
      %vm3926 = vcmp.eq.s32.totalorder %v3391, %v2510
      %vm3927 = vcmp.eq.s32.totalorder %v3391, %v2511
      %vm3928 = vcmp.eq.s32.totalorder %v3391, %v2512
      %vm3929 = vcmp.eq.s32.totalorder %v3391, %v2513
      %vm3930 = vcmp.eq.s32.totalorder %v3391, %v2514
      %vm3931 = vcmp.eq.s32.totalorder %v3391, %v2515
      %vm3932 = vcmp.eq.s32.totalorder %v3394, %v2510
      %vm3933 = vcmp.eq.s32.totalorder %v3394, %v2511
      %vm3934 = vcmp.eq.s32.totalorder %v3394, %v2512
      %vm3935 = vcmp.eq.s32.totalorder %v3394, %v2513
      %vm3936 = vcmp.eq.s32.totalorder %v3394, %v2514
      %vm3937 = vcmp.eq.s32.totalorder %v3394, %v2515
      %vm3938 = vcmp.eq.s32.totalorder %v3397, %v2510
      %vm3939 = vcmp.eq.s32.totalorder %v3397, %v2511
      %vm3940 = vcmp.eq.s32.totalorder %v3397, %v2512
      %vm3941 = vcmp.eq.s32.totalorder %v3397, %v2513
      %vm3942 = vcmp.eq.s32.totalorder %v3397, %v2514
      %vm3943 = vcmp.eq.s32.totalorder %v3397, %v2515
      %vm3944 = vcmp.eq.s32.totalorder %v3400, %v2510
      %vm3945 = vcmp.eq.s32.totalorder %v3400, %v2511
      %vm3946 = vcmp.eq.s32.totalorder %v3400, %v2512
      %vm3947 = vcmp.eq.s32.totalorder %v3400, %v2513
      %vm3948 = vcmp.eq.s32.totalorder %v3400, %v2514
      %vm3949 = vcmp.eq.s32.totalorder %v3400, %v2515
      %vm3950 = vcmp.eq.s32.totalorder %v3403, %v2510
      %vm3951 = vcmp.eq.s32.totalorder %v3403, %v2511
      %vm3952 = vcmp.eq.s32.totalorder %v3403, %v2512
      %vm3953 = vcmp.eq.s32.totalorder %v3403, %v2513
      %vm3954 = vcmp.eq.s32.totalorder %v3403, %v2514
      %vm3955 = vcmp.eq.s32.totalorder %v3403, %v2515
      %vm3956 = vcmp.eq.s32.totalorder %v3406, %v2510
      %vm3957 = vcmp.eq.s32.totalorder %v3406, %v2511
      %vm3958 = vcmp.eq.s32.totalorder %v3406, %v2512
      %vm3959 = vcmp.eq.s32.totalorder %v3406, %v2513
      %vm3960 = vcmp.eq.s32.totalorder %v3406, %v2514
      %vm3961 = vcmp.eq.s32.totalorder %v3406, %v2515
      %vm3962 = vcmp.eq.s32.totalorder %v3409, %v2510
      %vm3963 = vcmp.eq.s32.totalorder %v3409, %v2511
      %vm3964 = vcmp.eq.s32.totalorder %v3409, %v2512
      %vm3965 = vcmp.eq.s32.totalorder %v3409, %v2513
      %vm3966 = vcmp.eq.s32.totalorder %v3409, %v2514
      %vm3967 = vcmp.eq.s32.totalorder %v3409, %v2515
      %vm3968 = vcmp.eq.s32.totalorder %v3412, %v2510
      %vm3969 = vcmp.eq.s32.totalorder %v3412, %v2511
      %vm3970 = vcmp.eq.s32.totalorder %v3412, %v2512
      %vm3971 = vcmp.eq.s32.totalorder %v3412, %v2513
      %vm3972 = vcmp.eq.s32.totalorder %v3412, %v2514
      %vm3973 = vcmp.eq.s32.totalorder %v3412, %v2515
      %vm3974 = vcmp.eq.s32.totalorder %v3415, %v2510
      %vm3975 = vcmp.eq.s32.totalorder %v3415, %v2511
      %vm3976 = vcmp.eq.s32.totalorder %v3415, %v2512
      %vm3977 = vcmp.eq.s32.totalorder %v3415, %v2513
      %vm3978 = vcmp.eq.s32.totalorder %v3415, %v2514
      %vm3979 = vcmp.eq.s32.totalorder %v3415, %v2515
      %vm3980 = vcmp.eq.s32.totalorder %v3418, %v2510
      %vm3981 = vcmp.eq.s32.totalorder %v3418, %v2511
      %vm3982 = vcmp.eq.s32.totalorder %v3418, %v2512
      %vm3983 = vcmp.eq.s32.totalorder %v3418, %v2513
      %vm3984 = vcmp.eq.s32.totalorder %v3418, %v2514
      %vm3985 = vcmp.eq.s32.totalorder %v3418, %v2515
      %vm3986 = vcmp.eq.s32.totalorder %v3421, %v2510
      %vm3987 = vcmp.eq.s32.totalorder %v3421, %v2511
      %vm3988 = vcmp.eq.s32.totalorder %v3421, %v2512
      %vm3989 = vcmp.eq.s32.totalorder %v3421, %v2513
      %vm3990 = vcmp.eq.s32.totalorder %v3421, %v2514
      %vm3991 = vcmp.eq.s32.totalorder %v3421, %v2515
      %vm3992 = vcmp.eq.s32.totalorder %v3424, %v2510
      %vm3993 = vcmp.eq.s32.totalorder %v3424, %v2511
      %vm3994 = vcmp.eq.s32.totalorder %v3424, %v2512
      %vm3995 = vcmp.eq.s32.totalorder %v3424, %v2513
      %vm3996 = vcmp.eq.s32.totalorder %v3424, %v2514
      %vm3997 = vcmp.eq.s32.totalorder %v3424, %v2515
      %vm3998 = vcmp.eq.s32.totalorder %v3427, %v2510
      %vm3999 = vcmp.eq.s32.totalorder %v3427, %v2511
      %vm4000 = vcmp.eq.s32.totalorder %v3427, %v2512
      %vm4001 = vcmp.eq.s32.totalorder %v3427, %v2513
      %vm4002 = vcmp.eq.s32.totalorder %v3427, %v2514
      %vm4003 = vcmp.eq.s32.totalorder %v3427, %v2515
      %v4004 = vsel %vm3428, 1, 0
      %v4005 = vsel %vm3429, 1, 0
      %v4006 = vsel %vm3430, 1, 0
      %v4007 = vsel %vm3431, 1, 0
      %v4008 = vsel %vm3432, 1, 0
      %v4009 = vsel %vm3433, 1, 0
      %v4010 = vsel %vm3434, 1, 0
      %v4011 = vsel %vm3435, 1, 0
      %v4012 = vsel %vm3436, 1, 0
      %v4013 = vsel %vm3437, 1, 0
      %v4014 = vsel %vm3438, 1, 0
      %v4015 = vsel %vm3439, 1, 0
      %v4016 = vsel %vm3440, 1, 0
      %v4017 = vsel %vm3441, 1, 0
      %v4018 = vsel %vm3442, 1, 0
      %v4019 = vsel %vm3443, 1, 0
      %v4020 = vsel %vm3444, 1, 0
      %v4021 = vsel %vm3445, 1, 0
      %v4022 = vsel %vm3446, 1, 0
      %v4023 = vsel %vm3447, 1, 0
      %v4024 = vsel %vm3448, 1, 0
      %v4025 = vsel %vm3449, 1, 0
      %v4026 = vsel %vm3450, 1, 0
      %v4027 = vsel %vm3451, 1, 0
      %v4028 = vsel %vm3452, 1, 0
      %v4029 = vsel %vm3453, 1, 0
      %v4030 = vsel %vm3454, 1, 0
      %v4031 = vsel %vm3455, 1, 0
      %v4032 = vsel %vm3456, 1, 0
      %v4033 = vsel %vm3457, 1, 0
      %v4034 = vsel %vm3458, 1, 0
      %v4035 = vsel %vm3459, 1, 0
      %v4036 = vsel %vm3460, 1, 0
      %v4037 = vsel %vm3461, 1, 0
      %v4038 = vsel %vm3462, 1, 0
      %v4039 = vsel %vm3463, 1, 0
      %v4040 = vsel %vm3464, 1, 0
      %v4041 = vsel %vm3465, 1, 0
      %v4042 = vsel %vm3466, 1, 0
      %v4043 = vsel %vm3467, 1, 0
      %v4044 = vsel %vm3468, 1, 0
      %v4045 = vsel %vm3469, 1, 0
      %v4046 = vsel %vm3470, 1, 0
      %v4047 = vsel %vm3471, 1, 0
      %v4048 = vsel %vm3472, 1, 0
      %v4049 = vsel %vm3473, 1, 0
      %v4050 = vsel %vm3474, 1, 0
      %v4051 = vsel %vm3475, 1, 0
      %v4052 = vsel %vm3476, 1, 0
      %v4053 = vsel %vm3477, 1, 0
      %v4054 = vsel %vm3478, 1, 0
      %v4055 = vsel %vm3479, 1, 0
      %v4056 = vsel %vm3480, 1, 0
      %v4057 = vsel %vm3481, 1, 0
      %v4058 = vsel %vm3482, 1, 0
      %v4059 = vsel %vm3483, 1, 0
      %v4060 = vsel %vm3484, 1, 0
      %v4061 = vsel %vm3485, 1, 0
      %v4062 = vsel %vm3486, 1, 0
      %v4063 = vsel %vm3487, 1, 0
      %v4064 = vsel %vm3488, 1, 0
      %v4065 = vsel %vm3489, 1, 0
      %v4066 = vsel %vm3490, 1, 0
      %v4067 = vsel %vm3491, 1, 0
      %v4068 = vsel %vm3492, 1, 0
      %v4069 = vsel %vm3493, 1, 0
      %v4070 = vsel %vm3494, 1, 0
      %v4071 = vsel %vm3495, 1, 0
      %v4072 = vsel %vm3496, 1, 0
      %v4073 = vsel %vm3497, 1, 0
      %v4074 = vsel %vm3498, 1, 0
      %v4075 = vsel %vm3499, 1, 0
      %v4076 = vsel %vm3500, 1, 0
      %v4077 = vsel %vm3501, 1, 0
      %v4078 = vsel %vm3502, 1, 0
      %v4079 = vsel %vm3503, 1, 0
      %v4080 = vsel %vm3504, 1, 0
      %v4081 = vsel %vm3505, 1, 0
      %v4082 = vsel %vm3506, 1, 0
      %v4083 = vsel %vm3507, 1, 0
      %v4084 = vsel %vm3508, 1, 0
      %v4085 = vsel %vm3509, 1, 0
      %v4086 = vsel %vm3510, 1, 0
      %v4087 = vsel %vm3511, 1, 0
      %v4088 = vsel %vm3512, 1, 0
      %v4089 = vsel %vm3513, 1, 0
      %v4090 = vsel %vm3514, 1, 0
      %v4091 = vsel %vm3515, 1, 0
      %v4092 = vsel %vm3516, 1, 0
      %v4093 = vsel %vm3517, 1, 0
      %v4094 = vsel %vm3518, 1, 0
      %v4095 = vsel %vm3519, 1, 0
      %v4096 = vsel %vm3520, 1, 0
      %v4097 = vsel %vm3521, 1, 0
      %v4098 = vsel %vm3522, 1, 0
      %v4099 = vsel %vm3523, 1, 0
      %v4100 = vsel %vm3524, 1, 0
      %v4101 = vsel %vm3525, 1, 0
      %v4102 = vsel %vm3526, 1, 0
      %v4103 = vsel %vm3527, 1, 0
      %v4104 = vsel %vm3528, 1, 0
      %v4105 = vsel %vm3529, 1, 0
      %v4106 = vsel %vm3530, 1, 0
      %v4107 = vsel %vm3531, 1, 0
      %v4108 = vsel %vm3532, 1, 0
      %v4109 = vsel %vm3533, 1, 0
      %v4110 = vsel %vm3534, 1, 0
      %v4111 = vsel %vm3535, 1, 0
      %v4112 = vsel %vm3536, 1, 0
      %v4113 = vsel %vm3537, 1, 0
      %v4114 = vsel %vm3538, 1, 0
      %v4115 = vsel %vm3539, 1, 0
      %v4116 = vsel %vm3540, 1, 0
      %v4117 = vsel %vm3541, 1, 0
      %v4118 = vsel %vm3542, 1, 0
      %v4119 = vsel %vm3543, 1, 0
      %v4120 = vsel %vm3544, 1, 0
      %v4121 = vsel %vm3545, 1, 0
      %v4122 = vsel %vm3546, 1, 0
      %v4123 = vsel %vm3547, 1, 0
      %v4124 = vsel %vm3548, 1, 0
      %v4125 = vsel %vm3549, 1, 0
      %v4126 = vsel %vm3550, 1, 0
      %v4127 = vsel %vm3551, 1, 0
      %v4128 = vsel %vm3552, 1, 0
      %v4129 = vsel %vm3553, 1, 0
      %v4130 = vsel %vm3554, 1, 0
      %v4131 = vsel %vm3555, 1, 0
      %v4132 = vsel %vm3556, 1, 0
      %v4133 = vsel %vm3557, 1, 0
      %v4134 = vsel %vm3558, 1, 0
      %v4135 = vsel %vm3559, 1, 0
      %v4136 = vsel %vm3560, 1, 0
      %v4137 = vsel %vm3561, 1, 0
      %v4138 = vsel %vm3562, 1, 0
      %v4139 = vsel %vm3563, 1, 0
      %v4140 = vsel %vm3564, 1, 0
      %v4141 = vsel %vm3565, 1, 0
      %v4142 = vsel %vm3566, 1, 0
      %v4143 = vsel %vm3567, 1, 0
      %v4144 = vsel %vm3568, 1, 0
      %v4145 = vsel %vm3569, 1, 0
      %v4146 = vsel %vm3570, 1, 0
      %v4147 = vsel %vm3571, 1, 0
      %v4148 = vsel %vm3572, 1, 0
      %v4149 = vsel %vm3573, 1, 0
      %v4150 = vsel %vm3574, 1, 0
      %v4151 = vsel %vm3575, 1, 0
      %v4152 = vsel %vm3576, 1, 0
      %v4153 = vsel %vm3577, 1, 0
      %v4154 = vsel %vm3578, 1, 0
      %v4155 = vsel %vm3579, 1, 0
      %v4156 = vsel %vm3580, 1, 0
      %v4157 = vsel %vm3581, 1, 0
      %v4158 = vsel %vm3582, 1, 0
      %v4159 = vsel %vm3583, 1, 0
      %v4160 = vsel %vm3584, 1, 0
      %v4161 = vsel %vm3585, 1, 0
      %v4162 = vsel %vm3586, 1, 0
      %v4163 = vsel %vm3587, 1, 0
      %v4164 = vsel %vm3588, 1, 0
      %v4165 = vsel %vm3589, 1, 0
      %v4166 = vsel %vm3590, 1, 0
      %v4167 = vsel %vm3591, 1, 0
      %v4168 = vsel %vm3592, 1, 0
      %v4169 = vsel %vm3593, 1, 0
      %v4170 = vsel %vm3594, 1, 0
      %v4171 = vsel %vm3595, 1, 0
      %v4172 = vsel %vm3596, 1, 0
      %v4173 = vsel %vm3597, 1, 0
      %v4174 = vsel %vm3598, 1, 0
      %v4175 = vsel %vm3599, 1, 0
      %v4176 = vsel %vm3600, 1, 0
      %v4177 = vsel %vm3601, 1, 0
      %v4178 = vsel %vm3602, 1, 0
      %v4179 = vsel %vm3603, 1, 0
      %v4180 = vsel %vm3604, 1, 0
      %v4181 = vsel %vm3605, 1, 0
      %v4182 = vsel %vm3606, 1, 0
      %v4183 = vsel %vm3607, 1, 0
      %v4184 = vsel %vm3608, 1, 0
      %v4185 = vsel %vm3609, 1, 0
      %v4186 = vsel %vm3610, 1, 0
      %v4187 = vsel %vm3611, 1, 0
      %v4188 = vsel %vm3612, 1, 0
      %v4189 = vsel %vm3613, 1, 0
      %v4190 = vsel %vm3614, 1, 0
      %v4191 = vsel %vm3615, 1, 0
      %v4192 = vsel %vm3616, 1, 0
      %v4193 = vsel %vm3617, 1, 0
      %v4194 = vsel %vm3618, 1, 0
      %v4195 = vsel %vm3619, 1, 0
      %v4196 = vsel %vm3620, 1, 0
      %v4197 = vsel %vm3621, 1, 0
      %v4198 = vsel %vm3622, 1, 0
      %v4199 = vsel %vm3623, 1, 0
      %v4200 = vsel %vm3624, 1, 0
      %v4201 = vsel %vm3625, 1, 0
      %v4202 = vsel %vm3626, 1, 0
      %v4203 = vsel %vm3627, 1, 0
      %v4204 = vsel %vm3628, 1, 0
      %v4205 = vsel %vm3629, 1, 0
      %v4206 = vsel %vm3630, 1, 0
      %v4207 = vsel %vm3631, 1, 0
      %v4208 = vsel %vm3632, 1, 0
      %v4209 = vsel %vm3633, 1, 0
      %v4210 = vsel %vm3634, 1, 0
      %v4211 = vsel %vm3635, 1, 0
      %v4212 = vsel %vm3636, 1, 0
      %v4213 = vsel %vm3637, 1, 0
      %v4214 = vsel %vm3638, 1, 0
      %v4215 = vsel %vm3639, 1, 0
      %v4216 = vsel %vm3640, 1, 0
      %v4217 = vsel %vm3641, 1, 0
      %v4218 = vsel %vm3642, 1, 0
      %v4219 = vsel %vm3643, 1, 0
      %v4220 = vsel %vm3644, 1, 0
      %v4221 = vsel %vm3645, 1, 0
      %v4222 = vsel %vm3646, 1, 0
      %v4223 = vsel %vm3647, 1, 0
      %v4224 = vsel %vm3648, 1, 0
      %v4225 = vsel %vm3649, 1, 0
      %v4226 = vsel %vm3650, 1, 0
      %v4227 = vsel %vm3651, 1, 0
      %v4228 = vsel %vm3652, 1, 0
      %v4229 = vsel %vm3653, 1, 0
      %v4230 = vsel %vm3654, 1, 0
      %v4231 = vsel %vm3655, 1, 0
      %v4232 = vsel %vm3656, 1, 0
      %v4233 = vsel %vm3657, 1, 0
      %v4234 = vsel %vm3658, 1, 0
      %v4235 = vsel %vm3659, 1, 0
      %v4236 = vsel %vm3660, 1, 0
      %v4237 = vsel %vm3661, 1, 0
      %v4238 = vsel %vm3662, 1, 0
      %v4239 = vsel %vm3663, 1, 0
      %v4240 = vsel %vm3664, 1, 0
      %v4241 = vsel %vm3665, 1, 0
      %v4242 = vsel %vm3666, 1, 0
      %v4243 = vsel %vm3667, 1, 0
      %v4244 = vsel %vm3668, 1, 0
      %v4245 = vsel %vm3669, 1, 0
      %v4246 = vsel %vm3670, 1, 0
      %v4247 = vsel %vm3671, 1, 0
      %v4248 = vsel %vm3672, 1, 0
      %v4249 = vsel %vm3673, 1, 0
      %v4250 = vsel %vm3674, 1, 0
      %v4251 = vsel %vm3675, 1, 0
      %v4252 = vsel %vm3676, 1, 0
      %v4253 = vsel %vm3677, 1, 0
      %v4254 = vsel %vm3678, 1, 0
      %v4255 = vsel %vm3679, 1, 0
      %v4256 = vsel %vm3680, 1, 0
      %v4257 = vsel %vm3681, 1, 0
      %v4258 = vsel %vm3682, 1, 0
      %v4259 = vsel %vm3683, 1, 0
      %v4260 = vsel %vm3684, 1, 0
      %v4261 = vsel %vm3685, 1, 0
      %v4262 = vsel %vm3686, 1, 0
      %v4263 = vsel %vm3687, 1, 0
      %v4264 = vsel %vm3688, 1, 0
      %v4265 = vsel %vm3689, 1, 0
      %v4266 = vsel %vm3690, 1, 0
      %v4267 = vsel %vm3691, 1, 0
      %v4268 = vsel %vm3692, 1, 0
      %v4269 = vsel %vm3693, 1, 0
      %v4270 = vsel %vm3694, 1, 0
      %v4271 = vsel %vm3695, 1, 0
      %v4272 = vsel %vm3696, 1, 0
      %v4273 = vsel %vm3697, 1, 0
      %v4274 = vsel %vm3698, 1, 0
      %v4275 = vsel %vm3699, 1, 0
      %v4276 = vsel %vm3700, 1, 0
      %v4277 = vsel %vm3701, 1, 0
      %v4278 = vsel %vm3702, 1, 0
      %v4279 = vsel %vm3703, 1, 0
      %v4280 = vsel %vm3704, 1, 0
      %v4281 = vsel %vm3705, 1, 0
      %v4282 = vsel %vm3706, 1, 0
      %v4283 = vsel %vm3707, 1, 0
      %v4284 = vsel %vm3708, 1, 0
      %v4285 = vsel %vm3709, 1, 0
      %v4286 = vsel %vm3710, 1, 0
      %v4287 = vsel %vm3711, 1, 0
      %v4288 = vsel %vm3712, 1, 0
      %v4289 = vsel %vm3713, 1, 0
      %v4290 = vsel %vm3714, 1, 0
      %v4291 = vsel %vm3715, 1, 0
      %v4292 = vsel %vm3716, 1, 0
      %v4293 = vsel %vm3717, 1, 0
      %v4294 = vsel %vm3718, 1, 0
      %v4295 = vsel %vm3719, 1, 0
      %v4296 = vsel %vm3720, 1, 0
      %v4297 = vsel %vm3721, 1, 0
      %v4298 = vsel %vm3722, 1, 0
      %v4299 = vsel %vm3723, 1, 0
      %v4300 = vsel %vm3724, 1, 0
      %v4301 = vsel %vm3725, 1, 0
      %v4302 = vsel %vm3726, 1, 0
      %v4303 = vsel %vm3727, 1, 0
      %v4304 = vsel %vm3728, 1, 0
      %v4305 = vsel %vm3729, 1, 0
      %v4306 = vsel %vm3730, 1, 0
      %v4307 = vsel %vm3731, 1, 0
      %v4308 = vsel %vm3732, 1, 0
      %v4309 = vsel %vm3733, 1, 0
      %v4310 = vsel %vm3734, 1, 0
      %v4311 = vsel %vm3735, 1, 0
      %v4312 = vsel %vm3736, 1, 0
      %v4313 = vsel %vm3737, 1, 0
      %v4314 = vsel %vm3738, 1, 0
      %v4315 = vsel %vm3739, 1, 0
      %v4316 = vsel %vm3740, 1, 0
      %v4317 = vsel %vm3741, 1, 0
      %v4318 = vsel %vm3742, 1, 0
      %v4319 = vsel %vm3743, 1, 0
      %v4320 = vsel %vm3744, 1, 0
      %v4321 = vsel %vm3745, 1, 0
      %v4322 = vsel %vm3746, 1, 0
      %v4323 = vsel %vm3747, 1, 0
      %v4324 = vsel %vm3748, 1, 0
      %v4325 = vsel %vm3749, 1, 0
      %v4326 = vsel %vm3750, 1, 0
      %v4327 = vsel %vm3751, 1, 0
      %v4328 = vsel %vm3752, 1, 0
      %v4329 = vsel %vm3753, 1, 0
      %v4330 = vsel %vm3754, 1, 0
      %v4331 = vsel %vm3755, 1, 0
      %v4332 = vsel %vm3756, 1, 0
      %v4333 = vsel %vm3757, 1, 0
      %v4334 = vsel %vm3758, 1, 0
      %v4335 = vsel %vm3759, 1, 0
      %v4336 = vsel %vm3760, 1, 0
      %v4337 = vsel %vm3761, 1, 0
      %v4338 = vsel %vm3762, 1, 0
      %v4339 = vsel %vm3763, 1, 0
      %v4340 = vsel %vm3764, 1, 0
      %v4341 = vsel %vm3765, 1, 0
      %v4342 = vsel %vm3766, 1, 0
      %v4343 = vsel %vm3767, 1, 0
      %v4344 = vsel %vm3768, 1, 0
      %v4345 = vsel %vm3769, 1, 0
      %v4346 = vsel %vm3770, 1, 0
      %v4347 = vsel %vm3771, 1, 0
      %v4348 = vsel %vm3772, 1, 0
      %v4349 = vsel %vm3773, 1, 0
      %v4350 = vsel %vm3774, 1, 0
      %v4351 = vsel %vm3775, 1, 0
      %v4352 = vsel %vm3776, 1, 0
      %v4353 = vsel %vm3777, 1, 0
      %v4354 = vsel %vm3778, 1, 0
      %v4355 = vsel %vm3779, 1, 0
      %v4356 = vsel %vm3780, 1, 0
      %v4357 = vsel %vm3781, 1, 0
      %v4358 = vsel %vm3782, 1, 0
      %v4359 = vsel %vm3783, 1, 0
      %v4360 = vsel %vm3784, 1, 0
      %v4361 = vsel %vm3785, 1, 0
      %v4362 = vsel %vm3786, 1, 0
      %v4363 = vsel %vm3787, 1, 0
      %v4364 = vsel %vm3788, 1, 0
      %v4365 = vsel %vm3789, 1, 0
      %v4366 = vsel %vm3790, 1, 0
      %v4367 = vsel %vm3791, 1, 0
      %v4368 = vsel %vm3792, 1, 0
      %v4369 = vsel %vm3793, 1, 0
      %v4370 = vsel %vm3794, 1, 0
      %v4371 = vsel %vm3795, 1, 0
      %v4372 = vsel %vm3796, 1, 0
      %v4373 = vsel %vm3797, 1, 0
      %v4374 = vsel %vm3798, 1, 0
      %v4375 = vsel %vm3799, 1, 0
      %v4376 = vsel %vm3800, 1, 0
      %v4377 = vsel %vm3801, 1, 0
      %v4378 = vsel %vm3802, 1, 0
      %v4379 = vsel %vm3803, 1, 0
      %v4380 = vsel %vm3804, 1, 0
      %v4381 = vsel %vm3805, 1, 0
      %v4382 = vsel %vm3806, 1, 0
      %v4383 = vsel %vm3807, 1, 0
      %v4384 = vsel %vm3808, 1, 0
      %v4385 = vsel %vm3809, 1, 0
      %v4386 = vsel %vm3810, 1, 0
      %v4387 = vsel %vm3811, 1, 0
      %v4388 = vsel %vm3812, 1, 0
      %v4389 = vsel %vm3813, 1, 0
      %v4390 = vsel %vm3814, 1, 0
      %v4391 = vsel %vm3815, 1, 0
      %v4392 = vsel %vm3816, 1, 0
      %v4393 = vsel %vm3817, 1, 0
      %v4394 = vsel %vm3818, 1, 0
      %v4395 = vsel %vm3819, 1, 0
      %v4396 = vsel %vm3820, 1, 0
      %v4397 = vsel %vm3821, 1, 0
      %v4398 = vsel %vm3822, 1, 0
      %v4399 = vsel %vm3823, 1, 0
      %v4400 = vsel %vm3824, 1, 0
      %v4401 = vsel %vm3825, 1, 0
      %v4402 = vsel %vm3826, 1, 0
      %v4403 = vsel %vm3827, 1, 0
      %v4404 = vsel %vm3828, 1, 0
      %v4405 = vsel %vm3829, 1, 0
      %v4406 = vsel %vm3830, 1, 0
      %v4407 = vsel %vm3831, 1, 0
      %v4408 = vsel %vm3832, 1, 0
      %v4409 = vsel %vm3833, 1, 0
      %v4410 = vsel %vm3834, 1, 0
      %v4411 = vsel %vm3835, 1, 0
      %v4412 = vsel %vm3836, 1, 0
      %v4413 = vsel %vm3837, 1, 0
      %v4414 = vsel %vm3838, 1, 0
      %v4415 = vsel %vm3839, 1, 0
      %v4416 = vsel %vm3840, 1, 0
      %v4417 = vsel %vm3841, 1, 0
      %v4418 = vsel %vm3842, 1, 0
      %v4419 = vsel %vm3843, 1, 0
      %v4420 = vsel %vm3844, 1, 0
      %v4421 = vsel %vm3845, 1, 0
      %v4422 = vsel %vm3846, 1, 0
      %v4423 = vsel %vm3847, 1, 0
      %v4424 = vsel %vm3848, 1, 0
      %v4425 = vsel %vm3849, 1, 0
      %v4426 = vsel %vm3850, 1, 0
      %v4427 = vsel %vm3851, 1, 0
      %v4428 = vsel %vm3852, 1, 0
      %v4429 = vsel %vm3853, 1, 0
      %v4430 = vsel %vm3854, 1, 0
      %v4431 = vsel %vm3855, 1, 0
      %v4432 = vsel %vm3856, 1, 0
      %v4433 = vsel %vm3857, 1, 0
      %v4434 = vsel %vm3858, 1, 0
      %v4435 = vsel %vm3859, 1, 0
      %v4436 = vsel %vm3860, 1, 0
      %v4437 = vsel %vm3861, 1, 0
      %v4438 = vsel %vm3862, 1, 0
      %v4439 = vsel %vm3863, 1, 0
      %v4440 = vsel %vm3864, 1, 0
      %v4441 = vsel %vm3865, 1, 0
      %v4442 = vsel %vm3866, 1, 0
      %v4443 = vsel %vm3867, 1, 0
      %v4444 = vsel %vm3868, 1, 0
      %v4445 = vsel %vm3869, 1, 0
      %v4446 = vsel %vm3870, 1, 0
      %v4447 = vsel %vm3871, 1, 0
      %v4448 = vsel %vm3872, 1, 0
      %v4449 = vsel %vm3873, 1, 0
      %v4450 = vsel %vm3874, 1, 0
      %v4451 = vsel %vm3875, 1, 0
      %v4452 = vsel %vm3876, 1, 0
      %v4453 = vsel %vm3877, 1, 0
      %v4454 = vsel %vm3878, 1, 0
      %v4455 = vsel %vm3879, 1, 0
      %v4456 = vsel %vm3880, 1, 0
      %v4457 = vsel %vm3881, 1, 0
      %v4458 = vsel %vm3882, 1, 0
      %v4459 = vsel %vm3883, 1, 0
      %v4460 = vsel %vm3884, 1, 0
      %v4461 = vsel %vm3885, 1, 0
      %v4462 = vsel %vm3886, 1, 0
      %v4463 = vsel %vm3887, 1, 0
      %v4464 = vsel %vm3888, 1, 0
      %v4465 = vsel %vm3889, 1, 0
      %v4466 = vsel %vm3890, 1, 0
      %v4467 = vsel %vm3891, 1, 0
      %v4468 = vsel %vm3892, 1, 0
      %v4469 = vsel %vm3893, 1, 0
      %v4470 = vsel %vm3894, 1, 0
      %v4471 = vsel %vm3895, 1, 0
      %v4472 = vsel %vm3896, 1, 0
      %v4473 = vsel %vm3897, 1, 0
      %v4474 = vsel %vm3898, 1, 0
      %v4475 = vsel %vm3899, 1, 0
      %v4476 = vsel %vm3900, 1, 0
      %v4477 = vsel %vm3901, 1, 0
      %v4478 = vsel %vm3902, 1, 0
      %v4479 = vsel %vm3903, 1, 0
      %v4480 = vsel %vm3904, 1, 0
      %v4481 = vsel %vm3905, 1, 0
      %v4482 = vsel %vm3906, 1, 0
      %v4483 = vsel %vm3907, 1, 0
      %v4484 = vsel %vm3908, 1, 0
      %v4485 = vsel %vm3909, 1, 0
      %v4486 = vsel %vm3910, 1, 0
      %v4487 = vsel %vm3911, 1, 0
      %v4488 = vsel %vm3912, 1, 0
      %v4489 = vsel %vm3913, 1, 0
      %v4490 = vsel %vm3914, 1, 0
      %v4491 = vsel %vm3915, 1, 0
      %v4492 = vsel %vm3916, 1, 0
      %v4493 = vsel %vm3917, 1, 0
      %v4494 = vsel %vm3918, 1, 0
      %v4495 = vsel %vm3919, 1, 0
      %v4496 = vsel %vm3920, 1, 0
      %v4497 = vsel %vm3921, 1, 0
      %v4498 = vsel %vm3922, 1, 0
      %v4499 = vsel %vm3923, 1, 0
      %v4500 = vsel %vm3924, 1, 0
      %v4501 = vsel %vm3925, 1, 0
      %v4502 = vsel %vm3926, 1, 0
      %v4503 = vsel %vm3927, 1, 0
      %v4504 = vsel %vm3928, 1, 0
      %v4505 = vsel %vm3929, 1, 0
      %v4506 = vsel %vm3930, 1, 0
      %v4507 = vsel %vm3931, 1, 0
      %v4508 = vsel %vm3932, 1, 0
      %v4509 = vsel %vm3933, 1, 0
      %v4510 = vsel %vm3934, 1, 0
      %v4511 = vsel %vm3935, 1, 0
      %v4512 = vsel %vm3936, 1, 0
      %v4513 = vsel %vm3937, 1, 0
      %v4514 = vsel %vm3938, 1, 0
      %v4515 = vsel %vm3939, 1, 0
      %v4516 = vsel %vm3940, 1, 0
      %v4517 = vsel %vm3941, 1, 0
      %v4518 = vsel %vm3942, 1, 0
      %v4519 = vsel %vm3943, 1, 0
      %v4520 = vsel %vm3944, 1, 0
      %v4521 = vsel %vm3945, 1, 0
      %v4522 = vsel %vm3946, 1, 0
      %v4523 = vsel %vm3947, 1, 0
      %v4524 = vsel %vm3948, 1, 0
      %v4525 = vsel %vm3949, 1, 0
      %v4526 = vsel %vm3950, 1, 0
      %v4527 = vsel %vm3951, 1, 0
      %v4528 = vsel %vm3952, 1, 0
      %v4529 = vsel %vm3953, 1, 0
      %v4530 = vsel %vm3954, 1, 0
      %v4531 = vsel %vm3955, 1, 0
      %v4532 = vsel %vm3956, 1, 0
      %v4533 = vsel %vm3957, 1, 0
      %v4534 = vsel %vm3958, 1, 0
      %v4535 = vsel %vm3959, 1, 0
      %v4536 = vsel %vm3960, 1, 0
      %v4537 = vsel %vm3961, 1, 0
      %v4538 = vsel %vm3962, 1, 0
      %v4539 = vsel %vm3963, 1, 0
      %v4540 = vsel %vm3964, 1, 0
      %v4541 = vsel %vm3965, 1, 0
      %v4542 = vsel %vm3966, 1, 0
      %v4543 = vsel %vm3967, 1, 0
      %v4544 = vsel %vm3968, 1, 0
      %v4545 = vsel %vm3969, 1, 0
      %v4546 = vsel %vm3970, 1, 0
      %v4547 = vsel %vm3971, 1, 0
      %v4548 = vsel %vm3972, 1, 0
      %v4549 = vsel %vm3973, 1, 0
      %v4550 = vsel %vm3974, 1, 0
      %v4551 = vsel %vm3975, 1, 0
      %v4552 = vsel %vm3976, 1, 0
      %v4553 = vsel %vm3977, 1, 0
      %v4554 = vsel %vm3978, 1, 0
      %v4555 = vsel %vm3979, 1, 0
      %v4556 = vsel %vm3980, 1, 0
      %v4557 = vsel %vm3981, 1, 0
      %v4558 = vsel %vm3982, 1, 0
      %v4559 = vsel %vm3983, 1, 0
      %v4560 = vsel %vm3984, 1, 0
      %v4561 = vsel %vm3985, 1, 0
      %v4562 = vsel %vm3986, 1, 0
      %v4563 = vsel %vm3987, 1, 0
      %v4564 = vsel %vm3988, 1, 0
      %v4565 = vsel %vm3989, 1, 0
      %v4566 = vsel %vm3990, 1, 0
      %v4567 = vsel %vm3991, 1, 0
      %v4568 = vsel %vm3992, 1, 0
      %v4569 = vsel %vm3993, 1, 0
      %v4570 = vsel %vm3994, 1, 0
      %v4571 = vsel %vm3995, 1, 0
      %v4572 = vsel %vm3996, 1, 0
      %v4573 = vsel %vm3997, 1, 0
      %v4574 = vsel %vm3998, 1, 0
      %v4575 = vsel %vm3999, 1, 0
      %v4576 = vsel %vm4000, 1, 0
      %v4577 = vsel %vm4001, 1, 0
      %v4578 = vsel %vm4002, 1, 0
      %v4579 = vsel %vm4003, 1, 0
      %v4580 = vcvt.s32.f32 %v4004
      %v4581 = vcvt.s32.f32 %v4005
      %v4582 = vcvt.s32.f32 %v4006
      %v4583 = vcvt.s32.f32 %v4007
      %v4584 = vcvt.s32.f32 %v4008
      %v4585 = vcvt.s32.f32 %v4009
      %v4586 = vcvt.s32.f32 %v4010
      %v4587 = vcvt.s32.f32 %v4011
      %v4588 = vcvt.s32.f32 %v4012
      %v4589 = vcvt.s32.f32 %v4013
      %v4590 = vcvt.s32.f32 %v4014
      %v4591 = vcvt.s32.f32 %v4015
      %v4592 = vcvt.s32.f32 %v4016
      %v4593 = vcvt.s32.f32 %v4017
      %v4594 = vcvt.s32.f32 %v4018
      %v4595 = vcvt.s32.f32 %v4019
      %v4596 = vcvt.s32.f32 %v4020
      %v4597 = vcvt.s32.f32 %v4021
      %v4598 = vcvt.s32.f32 %v4022
      %v4599 = vcvt.s32.f32 %v4023
      %v4600 = vcvt.s32.f32 %v4024
      %v4601 = vcvt.s32.f32 %v4025
      %v4602 = vcvt.s32.f32 %v4026
      %v4603 = vcvt.s32.f32 %v4027
      %v4604 = vcvt.s32.f32 %v4028
      %v4605 = vcvt.s32.f32 %v4029
      %v4606 = vcvt.s32.f32 %v4030
      %v4607 = vcvt.s32.f32 %v4031
      %v4608 = vcvt.s32.f32 %v4032
      %v4609 = vcvt.s32.f32 %v4033
      %v4610 = vcvt.s32.f32 %v4034
      %v4611 = vcvt.s32.f32 %v4035
      %v4612 = vcvt.s32.f32 %v4036
      %v4613 = vcvt.s32.f32 %v4037
      %v4614 = vcvt.s32.f32 %v4038
      %v4615 = vcvt.s32.f32 %v4039
      %v4616 = vcvt.s32.f32 %v4040
      %v4617 = vcvt.s32.f32 %v4041
      %v4618 = vcvt.s32.f32 %v4042
      %v4619 = vcvt.s32.f32 %v4043
      %v4620 = vcvt.s32.f32 %v4044
      %v4621 = vcvt.s32.f32 %v4045
      %v4622 = vcvt.s32.f32 %v4046
      %v4623 = vcvt.s32.f32 %v4047
      %v4624 = vcvt.s32.f32 %v4048
      %v4625 = vcvt.s32.f32 %v4049
      %v4626 = vcvt.s32.f32 %v4050
      %v4627 = vcvt.s32.f32 %v4051
      %v4628 = vcvt.s32.f32 %v4052
      %v4629 = vcvt.s32.f32 %v4053
      %v4630 = vcvt.s32.f32 %v4054
      %v4631 = vcvt.s32.f32 %v4055
      %v4632 = vcvt.s32.f32 %v4056
      %v4633 = vcvt.s32.f32 %v4057
      %v4634 = vcvt.s32.f32 %v4058
      %v4635 = vcvt.s32.f32 %v4059
      %v4636 = vcvt.s32.f32 %v4060
      %v4637 = vcvt.s32.f32 %v4061
      %v4638 = vcvt.s32.f32 %v4062
      %v4639 = vcvt.s32.f32 %v4063
      %v4640 = vcvt.s32.f32 %v4064
      %v4641 = vcvt.s32.f32 %v4065
      %v4642 = vcvt.s32.f32 %v4066
      %v4643 = vcvt.s32.f32 %v4067
      %v4644 = vcvt.s32.f32 %v4068
      %v4645 = vcvt.s32.f32 %v4069
      %v4646 = vcvt.s32.f32 %v4070
      %v4647 = vcvt.s32.f32 %v4071
      %v4648 = vcvt.s32.f32 %v4072
      %v4649 = vcvt.s32.f32 %v4073
      %v4650 = vcvt.s32.f32 %v4074
      %v4651 = vcvt.s32.f32 %v4075
      %v4652 = vcvt.s32.f32 %v4076
      %v4653 = vcvt.s32.f32 %v4077
      %v4654 = vcvt.s32.f32 %v4078
      %v4655 = vcvt.s32.f32 %v4079
      %v4656 = vcvt.s32.f32 %v4080
      %v4657 = vcvt.s32.f32 %v4081
      %v4658 = vcvt.s32.f32 %v4082
      %v4659 = vcvt.s32.f32 %v4083
      %v4660 = vcvt.s32.f32 %v4084
      %v4661 = vcvt.s32.f32 %v4085
      %v4662 = vcvt.s32.f32 %v4086
      %v4663 = vcvt.s32.f32 %v4087
      %v4664 = vcvt.s32.f32 %v4088
      %v4665 = vcvt.s32.f32 %v4089
      %v4666 = vcvt.s32.f32 %v4090
      %v4667 = vcvt.s32.f32 %v4091
      %v4668 = vcvt.s32.f32 %v4092
      %v4669 = vcvt.s32.f32 %v4093
      %v4670 = vcvt.s32.f32 %v4094
      %v4671 = vcvt.s32.f32 %v4095
      %v4672 = vcvt.s32.f32 %v4096
      %v4673 = vcvt.s32.f32 %v4097
      %v4674 = vcvt.s32.f32 %v4098
      %v4675 = vcvt.s32.f32 %v4099
      %v4676 = vcvt.s32.f32 %v4100
      %v4677 = vcvt.s32.f32 %v4101
      %v4678 = vcvt.s32.f32 %v4102
      %v4679 = vcvt.s32.f32 %v4103
      %v4680 = vcvt.s32.f32 %v4104
      %v4681 = vcvt.s32.f32 %v4105
      %v4682 = vcvt.s32.f32 %v4106
      %v4683 = vcvt.s32.f32 %v4107
      %v4684 = vcvt.s32.f32 %v4108
      %v4685 = vcvt.s32.f32 %v4109
      %v4686 = vcvt.s32.f32 %v4110
      %v4687 = vcvt.s32.f32 %v4111
      %v4688 = vcvt.s32.f32 %v4112
      %v4689 = vcvt.s32.f32 %v4113
      %v4690 = vcvt.s32.f32 %v4114
      %v4691 = vcvt.s32.f32 %v4115
      %v4692 = vcvt.s32.f32 %v4116
      %v4693 = vcvt.s32.f32 %v4117
      %v4694 = vcvt.s32.f32 %v4118
      %v4695 = vcvt.s32.f32 %v4119
      %v4696 = vcvt.s32.f32 %v4120
      %v4697 = vcvt.s32.f32 %v4121
      %v4698 = vcvt.s32.f32 %v4122
      %v4699 = vcvt.s32.f32 %v4123
      %v4700 = vcvt.s32.f32 %v4124
      %v4701 = vcvt.s32.f32 %v4125
      %v4702 = vcvt.s32.f32 %v4126
      %v4703 = vcvt.s32.f32 %v4127
      %v4704 = vcvt.s32.f32 %v4128
      %v4705 = vcvt.s32.f32 %v4129
      %v4706 = vcvt.s32.f32 %v4130
      %v4707 = vcvt.s32.f32 %v4131
      %v4708 = vcvt.s32.f32 %v4132
      %v4709 = vcvt.s32.f32 %v4133
      %v4710 = vcvt.s32.f32 %v4134
      %v4711 = vcvt.s32.f32 %v4135
      %v4712 = vcvt.s32.f32 %v4136
      %v4713 = vcvt.s32.f32 %v4137
      %v4714 = vcvt.s32.f32 %v4138
      %v4715 = vcvt.s32.f32 %v4139
      %v4716 = vcvt.s32.f32 %v4140
      %v4717 = vcvt.s32.f32 %v4141
      %v4718 = vcvt.s32.f32 %v4142
      %v4719 = vcvt.s32.f32 %v4143
      %v4720 = vcvt.s32.f32 %v4144
      %v4721 = vcvt.s32.f32 %v4145
      %v4722 = vcvt.s32.f32 %v4146
      %v4723 = vcvt.s32.f32 %v4147
      %v4724 = vcvt.s32.f32 %v4148
      %v4725 = vcvt.s32.f32 %v4149
      %v4726 = vcvt.s32.f32 %v4150
      %v4727 = vcvt.s32.f32 %v4151
      %v4728 = vcvt.s32.f32 %v4152
      %v4729 = vcvt.s32.f32 %v4153
      %v4730 = vcvt.s32.f32 %v4154
      %v4731 = vcvt.s32.f32 %v4155
      %v4732 = vcvt.s32.f32 %v4156
      %v4733 = vcvt.s32.f32 %v4157
      %v4734 = vcvt.s32.f32 %v4158
      %v4735 = vcvt.s32.f32 %v4159
      %v4736 = vcvt.s32.f32 %v4160
      %v4737 = vcvt.s32.f32 %v4161
      %v4738 = vcvt.s32.f32 %v4162
      %v4739 = vcvt.s32.f32 %v4163
      %v4740 = vcvt.s32.f32 %v4164
      %v4741 = vcvt.s32.f32 %v4165
      %v4742 = vcvt.s32.f32 %v4166
      %v4743 = vcvt.s32.f32 %v4167
      %v4744 = vcvt.s32.f32 %v4168
      %v4745 = vcvt.s32.f32 %v4169
      %v4746 = vcvt.s32.f32 %v4170
      %v4747 = vcvt.s32.f32 %v4171
      %v4748 = vcvt.s32.f32 %v4172
      %v4749 = vcvt.s32.f32 %v4173
      %v4750 = vcvt.s32.f32 %v4174
      %v4751 = vcvt.s32.f32 %v4175
      %v4752 = vcvt.s32.f32 %v4176
      %v4753 = vcvt.s32.f32 %v4177
      %v4754 = vcvt.s32.f32 %v4178
      %v4755 = vcvt.s32.f32 %v4179
      %v4756 = vcvt.s32.f32 %v4180
      %v4757 = vcvt.s32.f32 %v4181
      %v4758 = vcvt.s32.f32 %v4182
      %v4759 = vcvt.s32.f32 %v4183
      %v4760 = vcvt.s32.f32 %v4184
      %v4761 = vcvt.s32.f32 %v4185
      %v4762 = vcvt.s32.f32 %v4186
      %v4763 = vcvt.s32.f32 %v4187
      %v4764 = vcvt.s32.f32 %v4188
      %v4765 = vcvt.s32.f32 %v4189
      %v4766 = vcvt.s32.f32 %v4190
      %v4767 = vcvt.s32.f32 %v4191
      %v4768 = vcvt.s32.f32 %v4192
      %v4769 = vcvt.s32.f32 %v4193
      %v4770 = vcvt.s32.f32 %v4194
      %v4771 = vcvt.s32.f32 %v4195
      %v4772 = vcvt.s32.f32 %v4196
      %v4773 = vcvt.s32.f32 %v4197
      %v4774 = vcvt.s32.f32 %v4198
      %v4775 = vcvt.s32.f32 %v4199
      %v4776 = vcvt.s32.f32 %v4200
      %v4777 = vcvt.s32.f32 %v4201
      %v4778 = vcvt.s32.f32 %v4202
      %v4779 = vcvt.s32.f32 %v4203
      %v4780 = vcvt.s32.f32 %v4204
      %v4781 = vcvt.s32.f32 %v4205
      %v4782 = vcvt.s32.f32 %v4206
      %v4783 = vcvt.s32.f32 %v4207
      %v4784 = vcvt.s32.f32 %v4208
      %v4785 = vcvt.s32.f32 %v4209
      %v4786 = vcvt.s32.f32 %v4210
      %v4787 = vcvt.s32.f32 %v4211
      %v4788 = vcvt.s32.f32 %v4212
      %v4789 = vcvt.s32.f32 %v4213
      %v4790 = vcvt.s32.f32 %v4214
      %v4791 = vcvt.s32.f32 %v4215
      %v4792 = vcvt.s32.f32 %v4216
      %v4793 = vcvt.s32.f32 %v4217
      %v4794 = vcvt.s32.f32 %v4218
      %v4795 = vcvt.s32.f32 %v4219
      %v4796 = vcvt.s32.f32 %v4220
      %v4797 = vcvt.s32.f32 %v4221
      %v4798 = vcvt.s32.f32 %v4222
      %v4799 = vcvt.s32.f32 %v4223
      %v4800 = vcvt.s32.f32 %v4224
      %v4801 = vcvt.s32.f32 %v4225
      %v4802 = vcvt.s32.f32 %v4226
      %v4803 = vcvt.s32.f32 %v4227
      %v4804 = vcvt.s32.f32 %v4228
      %v4805 = vcvt.s32.f32 %v4229
      %v4806 = vcvt.s32.f32 %v4230
      %v4807 = vcvt.s32.f32 %v4231
      %v4808 = vcvt.s32.f32 %v4232
      %v4809 = vcvt.s32.f32 %v4233
      %v4810 = vcvt.s32.f32 %v4234
      %v4811 = vcvt.s32.f32 %v4235
      %v4812 = vcvt.s32.f32 %v4236
      %v4813 = vcvt.s32.f32 %v4237
      %v4814 = vcvt.s32.f32 %v4238
      %v4815 = vcvt.s32.f32 %v4239
      %v4816 = vcvt.s32.f32 %v4240
      %v4817 = vcvt.s32.f32 %v4241
      %v4818 = vcvt.s32.f32 %v4242
      %v4819 = vcvt.s32.f32 %v4243
      %v4820 = vcvt.s32.f32 %v4244
      %v4821 = vcvt.s32.f32 %v4245
      %v4822 = vcvt.s32.f32 %v4246
      %v4823 = vcvt.s32.f32 %v4247
      %v4824 = vcvt.s32.f32 %v4248
      %v4825 = vcvt.s32.f32 %v4249
      %v4826 = vcvt.s32.f32 %v4250
      %v4827 = vcvt.s32.f32 %v4251
      %v4828 = vcvt.s32.f32 %v4252
      %v4829 = vcvt.s32.f32 %v4253
      %v4830 = vcvt.s32.f32 %v4254
      %v4831 = vcvt.s32.f32 %v4255
      %v4832 = vcvt.s32.f32 %v4256
      %v4833 = vcvt.s32.f32 %v4257
      %v4834 = vcvt.s32.f32 %v4258
      %v4835 = vcvt.s32.f32 %v4259
      %v4836 = vcvt.s32.f32 %v4260
      %v4837 = vcvt.s32.f32 %v4261
      %v4838 = vcvt.s32.f32 %v4262
      %v4839 = vcvt.s32.f32 %v4263
      %v4840 = vcvt.s32.f32 %v4264
      %v4841 = vcvt.s32.f32 %v4265
      %v4842 = vcvt.s32.f32 %v4266
      %v4843 = vcvt.s32.f32 %v4267
      %v4844 = vcvt.s32.f32 %v4268
      %v4845 = vcvt.s32.f32 %v4269
      %v4846 = vcvt.s32.f32 %v4270
      %v4847 = vcvt.s32.f32 %v4271
      %v4848 = vcvt.s32.f32 %v4272
      %v4849 = vcvt.s32.f32 %v4273
      %v4850 = vcvt.s32.f32 %v4274
      %v4851 = vcvt.s32.f32 %v4275
      %v4852 = vcvt.s32.f32 %v4276
      %v4853 = vcvt.s32.f32 %v4277
      %v4854 = vcvt.s32.f32 %v4278
      %v4855 = vcvt.s32.f32 %v4279
      %v4856 = vcvt.s32.f32 %v4280
      %v4857 = vcvt.s32.f32 %v4281
      %v4858 = vcvt.s32.f32 %v4282
      %v4859 = vcvt.s32.f32 %v4283
      %v4860 = vcvt.s32.f32 %v4284
      %v4861 = vcvt.s32.f32 %v4285
      %v4862 = vcvt.s32.f32 %v4286
      %v4863 = vcvt.s32.f32 %v4287
      %v4864 = vcvt.s32.f32 %v4288
      %v4865 = vcvt.s32.f32 %v4289
      %v4866 = vcvt.s32.f32 %v4290
      %v4867 = vcvt.s32.f32 %v4291
      %v4868 = vcvt.s32.f32 %v4292
      %v4869 = vcvt.s32.f32 %v4293
      %v4870 = vcvt.s32.f32 %v4294
      %v4871 = vcvt.s32.f32 %v4295
      %v4872 = vcvt.s32.f32 %v4296
      %v4873 = vcvt.s32.f32 %v4297
      %v4874 = vcvt.s32.f32 %v4298
      %v4875 = vcvt.s32.f32 %v4299
      %v4876 = vcvt.s32.f32 %v4300
      %v4877 = vcvt.s32.f32 %v4301
      %v4878 = vcvt.s32.f32 %v4302
      %v4879 = vcvt.s32.f32 %v4303
      %v4880 = vcvt.s32.f32 %v4304
      %v4881 = vcvt.s32.f32 %v4305
      %v4882 = vcvt.s32.f32 %v4306
      %v4883 = vcvt.s32.f32 %v4307
      %v4884 = vcvt.s32.f32 %v4308
      %v4885 = vcvt.s32.f32 %v4309
      %v4886 = vcvt.s32.f32 %v4310
      %v4887 = vcvt.s32.f32 %v4311
      %v4888 = vcvt.s32.f32 %v4312
      %v4889 = vcvt.s32.f32 %v4313
      %v4890 = vcvt.s32.f32 %v4314
      %v4891 = vcvt.s32.f32 %v4315
      %v4892 = vcvt.s32.f32 %v4316
      %v4893 = vcvt.s32.f32 %v4317
      %v4894 = vcvt.s32.f32 %v4318
      %v4895 = vcvt.s32.f32 %v4319
      %v4896 = vcvt.s32.f32 %v4320
      %v4897 = vcvt.s32.f32 %v4321
      %v4898 = vcvt.s32.f32 %v4322
      %v4899 = vcvt.s32.f32 %v4323
      %v4900 = vcvt.s32.f32 %v4324
      %v4901 = vcvt.s32.f32 %v4325
      %v4902 = vcvt.s32.f32 %v4326
      %v4903 = vcvt.s32.f32 %v4327
      %v4904 = vcvt.s32.f32 %v4328
      %v4905 = vcvt.s32.f32 %v4329
      %v4906 = vcvt.s32.f32 %v4330
      %v4907 = vcvt.s32.f32 %v4331
      %v4908 = vcvt.s32.f32 %v4332
      %v4909 = vcvt.s32.f32 %v4333
      %v4910 = vcvt.s32.f32 %v4334
      %v4911 = vcvt.s32.f32 %v4335
      %v4912 = vcvt.s32.f32 %v4336
      %v4913 = vcvt.s32.f32 %v4337
      %v4914 = vcvt.s32.f32 %v4338
      %v4915 = vcvt.s32.f32 %v4339
      %v4916 = vcvt.s32.f32 %v4340
      %v4917 = vcvt.s32.f32 %v4341
      %v4918 = vcvt.s32.f32 %v4342
      %v4919 = vcvt.s32.f32 %v4343
      %v4920 = vcvt.s32.f32 %v4344
      %v4921 = vcvt.s32.f32 %v4345
      %v4922 = vcvt.s32.f32 %v4346
      %v4923 = vcvt.s32.f32 %v4347
      %v4924 = vcvt.s32.f32 %v4348
      %v4925 = vcvt.s32.f32 %v4349
      %v4926 = vcvt.s32.f32 %v4350
      %v4927 = vcvt.s32.f32 %v4351
      %v4928 = vcvt.s32.f32 %v4352
      %v4929 = vcvt.s32.f32 %v4353
      %v4930 = vcvt.s32.f32 %v4354
      %v4931 = vcvt.s32.f32 %v4355
      %v4932 = vcvt.s32.f32 %v4356
      %v4933 = vcvt.s32.f32 %v4357
      %v4934 = vcvt.s32.f32 %v4358
      %v4935 = vcvt.s32.f32 %v4359
      %v4936 = vcvt.s32.f32 %v4360
      %v4937 = vcvt.s32.f32 %v4361
      %v4938 = vcvt.s32.f32 %v4362
      %v4939 = vcvt.s32.f32 %v4363
      %v4940 = vcvt.s32.f32 %v4364
      %v4941 = vcvt.s32.f32 %v4365
      %v4942 = vcvt.s32.f32 %v4366
      %v4943 = vcvt.s32.f32 %v4367
      %v4944 = vcvt.s32.f32 %v4368
      %v4945 = vcvt.s32.f32 %v4369
      %v4946 = vcvt.s32.f32 %v4370
      %v4947 = vcvt.s32.f32 %v4371
      %v4948 = vcvt.s32.f32 %v4372
      %v4949 = vcvt.s32.f32 %v4373
      %v4950 = vcvt.s32.f32 %v4374
      %v4951 = vcvt.s32.f32 %v4375
      %v4952 = vcvt.s32.f32 %v4376
      %v4953 = vcvt.s32.f32 %v4377
      %v4954 = vcvt.s32.f32 %v4378
      %v4955 = vcvt.s32.f32 %v4379
      %v4956 = vcvt.s32.f32 %v4380
      %v4957 = vcvt.s32.f32 %v4381
      %v4958 = vcvt.s32.f32 %v4382
      %v4959 = vcvt.s32.f32 %v4383
      %v4960 = vcvt.s32.f32 %v4384
      %v4961 = vcvt.s32.f32 %v4385
      %v4962 = vcvt.s32.f32 %v4386
      %v4963 = vcvt.s32.f32 %v4387
      %v4964 = vcvt.s32.f32 %v4388
      %v4965 = vcvt.s32.f32 %v4389
      %v4966 = vcvt.s32.f32 %v4390
      %v4967 = vcvt.s32.f32 %v4391
      %v4968 = vcvt.s32.f32 %v4392
      %v4969 = vcvt.s32.f32 %v4393
      %v4970 = vcvt.s32.f32 %v4394
      %v4971 = vcvt.s32.f32 %v4395
      %v4972 = vcvt.s32.f32 %v4396
      %v4973 = vcvt.s32.f32 %v4397
      %v4974 = vcvt.s32.f32 %v4398
      %v4975 = vcvt.s32.f32 %v4399
      %v4976 = vcvt.s32.f32 %v4400
      %v4977 = vcvt.s32.f32 %v4401
      %v4978 = vcvt.s32.f32 %v4402
      %v4979 = vcvt.s32.f32 %v4403
      %v4980 = vcvt.s32.f32 %v4404
      %v4981 = vcvt.s32.f32 %v4405
      %v4982 = vcvt.s32.f32 %v4406
      %v4983 = vcvt.s32.f32 %v4407
      %v4984 = vcvt.s32.f32 %v4408
      %v4985 = vcvt.s32.f32 %v4409
      %v4986 = vcvt.s32.f32 %v4410
      %v4987 = vcvt.s32.f32 %v4411
      %v4988 = vcvt.s32.f32 %v4412
      %v4989 = vcvt.s32.f32 %v4413
      %v4990 = vcvt.s32.f32 %v4414
      %v4991 = vcvt.s32.f32 %v4415
      %v4992 = vcvt.s32.f32 %v4416
      %v4993 = vcvt.s32.f32 %v4417
      %v4994 = vcvt.s32.f32 %v4418
      %v4995 = vcvt.s32.f32 %v4419
      %v4996 = vcvt.s32.f32 %v4420
      %v4997 = vcvt.s32.f32 %v4421
      %v4998 = vcvt.s32.f32 %v4422
      %v4999 = vcvt.s32.f32 %v4423
      %v5000 = vcvt.s32.f32 %v4424
      %v5001 = vcvt.s32.f32 %v4425
      %v5002 = vcvt.s32.f32 %v4426
      %v5003 = vcvt.s32.f32 %v4427
      %v5004 = vcvt.s32.f32 %v4428
      %v5005 = vcvt.s32.f32 %v4429
      %v5006 = vcvt.s32.f32 %v4430
      %v5007 = vcvt.s32.f32 %v4431
      %v5008 = vcvt.s32.f32 %v4432
      %v5009 = vcvt.s32.f32 %v4433
      %v5010 = vcvt.s32.f32 %v4434
      %v5011 = vcvt.s32.f32 %v4435
      %v5012 = vcvt.s32.f32 %v4436
      %v5013 = vcvt.s32.f32 %v4437
      %v5014 = vcvt.s32.f32 %v4438
      %v5015 = vcvt.s32.f32 %v4439
      %v5016 = vcvt.s32.f32 %v4440
      %v5017 = vcvt.s32.f32 %v4441
      %v5018 = vcvt.s32.f32 %v4442
      %v5019 = vcvt.s32.f32 %v4443
      %v5020 = vcvt.s32.f32 %v4444
      %v5021 = vcvt.s32.f32 %v4445
      %v5022 = vcvt.s32.f32 %v4446
      %v5023 = vcvt.s32.f32 %v4447
      %v5024 = vcvt.s32.f32 %v4448
      %v5025 = vcvt.s32.f32 %v4449
      %v5026 = vcvt.s32.f32 %v4450
      %v5027 = vcvt.s32.f32 %v4451
      %v5028 = vcvt.s32.f32 %v4452
      %v5029 = vcvt.s32.f32 %v4453
      %v5030 = vcvt.s32.f32 %v4454
      %v5031 = vcvt.s32.f32 %v4455
      %v5032 = vcvt.s32.f32 %v4456
      %v5033 = vcvt.s32.f32 %v4457
      %v5034 = vcvt.s32.f32 %v4458
      %v5035 = vcvt.s32.f32 %v4459
      %v5036 = vcvt.s32.f32 %v4460
      %v5037 = vcvt.s32.f32 %v4461
      %v5038 = vcvt.s32.f32 %v4462
      %v5039 = vcvt.s32.f32 %v4463
      %v5040 = vcvt.s32.f32 %v4464
      %v5041 = vcvt.s32.f32 %v4465
      %v5042 = vcvt.s32.f32 %v4466
      %v5043 = vcvt.s32.f32 %v4467
      %v5044 = vcvt.s32.f32 %v4468
      %v5045 = vcvt.s32.f32 %v4469
      %v5046 = vcvt.s32.f32 %v4470
      %v5047 = vcvt.s32.f32 %v4471
      %v5048 = vcvt.s32.f32 %v4472
      %v5049 = vcvt.s32.f32 %v4473
      %v5050 = vcvt.s32.f32 %v4474
      %v5051 = vcvt.s32.f32 %v4475
      %v5052 = vcvt.s32.f32 %v4476
      %v5053 = vcvt.s32.f32 %v4477
      %v5054 = vcvt.s32.f32 %v4478
      %v5055 = vcvt.s32.f32 %v4479
      %v5056 = vcvt.s32.f32 %v4480
      %v5057 = vcvt.s32.f32 %v4481
      %v5058 = vcvt.s32.f32 %v4482
      %v5059 = vcvt.s32.f32 %v4483
      %v5060 = vcvt.s32.f32 %v4484
      %v5061 = vcvt.s32.f32 %v4485
      %v5062 = vcvt.s32.f32 %v4486
      %v5063 = vcvt.s32.f32 %v4487
      %v5064 = vcvt.s32.f32 %v4488
      %v5065 = vcvt.s32.f32 %v4489
      %v5066 = vcvt.s32.f32 %v4490
      %v5067 = vcvt.s32.f32 %v4491
      %v5068 = vcvt.s32.f32 %v4492
      %v5069 = vcvt.s32.f32 %v4493
      %v5070 = vcvt.s32.f32 %v4494
      %v5071 = vcvt.s32.f32 %v4495
      %v5072 = vcvt.s32.f32 %v4496
      %v5073 = vcvt.s32.f32 %v4497
      %v5074 = vcvt.s32.f32 %v4498
      %v5075 = vcvt.s32.f32 %v4499
      %v5076 = vcvt.s32.f32 %v4500
      %v5077 = vcvt.s32.f32 %v4501
      %v5078 = vcvt.s32.f32 %v4502
      %v5079 = vcvt.s32.f32 %v4503
      %v5080 = vcvt.s32.f32 %v4504
      %v5081 = vcvt.s32.f32 %v4505
      %v5082 = vcvt.s32.f32 %v4506
      %v5083 = vcvt.s32.f32 %v4507
      %v5084 = vcvt.s32.f32 %v4508
      %v5085 = vcvt.s32.f32 %v4509
      %v5086 = vcvt.s32.f32 %v4510
      %v5087 = vcvt.s32.f32 %v4511
      %v5088 = vcvt.s32.f32 %v4512
      %v5089 = vcvt.s32.f32 %v4513
      %v5090 = vcvt.s32.f32 %v4514
      %v5091 = vcvt.s32.f32 %v4515
      %v5092 = vcvt.s32.f32 %v4516
      %v5093 = vcvt.s32.f32 %v4517
      %v5094 = vcvt.s32.f32 %v4518
      %v5095 = vcvt.s32.f32 %v4519
      %v5096 = vcvt.s32.f32 %v4520
      %v5097 = vcvt.s32.f32 %v4521
      %v5098 = vcvt.s32.f32 %v4522
      %v5099 = vcvt.s32.f32 %v4523
      %v5100 = vcvt.s32.f32 %v4524
      %v5101 = vcvt.s32.f32 %v4525
      %v5102 = vcvt.s32.f32 %v4526
      %v5103 = vcvt.s32.f32 %v4527
      %v5104 = vcvt.s32.f32 %v4528
      %v5105 = vcvt.s32.f32 %v4529
      %v5106 = vcvt.s32.f32 %v4530
      %v5107 = vcvt.s32.f32 %v4531
      %v5108 = vcvt.s32.f32 %v4532
      %v5109 = vcvt.s32.f32 %v4533
      %v5110 = vcvt.s32.f32 %v4534
      %v5111 = vcvt.s32.f32 %v4535
      %v5112 = vcvt.s32.f32 %v4536
      %v5113 = vcvt.s32.f32 %v4537
      %v5114 = vcvt.s32.f32 %v4538
      %v5115 = vcvt.s32.f32 %v4539
      %v5116 = vcvt.s32.f32 %v4540
      %v5117 = vcvt.s32.f32 %v4541
      %v5118 = vcvt.s32.f32 %v4542
      %v5119 = vcvt.s32.f32 %v4543
      %v5120 = vcvt.s32.f32 %v4544
      %v5121 = vcvt.s32.f32 %v4545
      %v5122 = vcvt.s32.f32 %v4546
      %v5123 = vcvt.s32.f32 %v4547
      %v5124 = vcvt.s32.f32 %v4548
      %v5125 = vcvt.s32.f32 %v4549
      %v5126 = vcvt.s32.f32 %v4550
      %v5127 = vcvt.s32.f32 %v4551
      %v5128 = vcvt.s32.f32 %v4552
      %v5129 = vcvt.s32.f32 %v4553
      %v5130 = vcvt.s32.f32 %v4554
      %v5131 = vcvt.s32.f32 %v4555
      %v5132 = vcvt.s32.f32 %v4556
      %v5133 = vcvt.s32.f32 %v4557
      %v5134 = vcvt.s32.f32 %v4558
      %v5135 = vcvt.s32.f32 %v4559
      %v5136 = vcvt.s32.f32 %v4560
      %v5137 = vcvt.s32.f32 %v4561
      %v5138 = vcvt.s32.f32 %v4562
      %v5139 = vcvt.s32.f32 %v4563
      %v5140 = vcvt.s32.f32 %v4564
      %v5141 = vcvt.s32.f32 %v4565
      %v5142 = vcvt.s32.f32 %v4566
      %v5143 = vcvt.s32.f32 %v4567
      %v5144 = vcvt.s32.f32 %v4568
      %v5145 = vcvt.s32.f32 %v4569
      %v5146 = vcvt.s32.f32 %v4570
      %v5147 = vcvt.s32.f32 %v4571
      %v5148 = vcvt.s32.f32 %v4572
      %v5149 = vcvt.s32.f32 %v4573
      %v5150 = vcvt.s32.f32 %v4574
      %v5151 = vcvt.s32.f32 %v4575
      %v5152 = vcvt.s32.f32 %v4576
      %v5153 = vcvt.s32.f32 %v4577
      %v5154 = vcvt.s32.f32 %v4578
      %v5155 = vcvt.s32.f32 %v4579
      %v5156 = vpack.c.bf16 %v4586, %v4580
      %v5157 = vpack.c.bf16 %v4587, %v4581
      %v5158 = vpack.c.bf16 %v4588, %v4582
      %v5159 = vpack.c.bf16 %v4589, %v4583
      %v5160 = vpack.c.bf16 %v4590, %v4584
      %v5161 = vpack.c.bf16 %v4591, %v4585
      %v5162 = vpack.c.bf16 %v4598, %v4592
      %v5163 = vpack.c.bf16 %v4599, %v4593
      %v5164 = vpack.c.bf16 %v4600, %v4594
      %v5165 = vpack.c.bf16 %v4601, %v4595
      %v5166 = vpack.c.bf16 %v4602, %v4596
      %v5167 = vpack.c.bf16 %v4603, %v4597
      %v5168 = vpack.c.bf16 %v4610, %v4604
      %v5169 = vpack.c.bf16 %v4611, %v4605
      %v5170 = vpack.c.bf16 %v4612, %v4606
      %v5171 = vpack.c.bf16 %v4613, %v4607
      %v5172 = vpack.c.bf16 %v4614, %v4608
      %v5173 = vpack.c.bf16 %v4615, %v4609
      %v5174 = vpack.c.bf16 %v4622, %v4616
      %v5175 = vpack.c.bf16 %v4623, %v4617
      %v5176 = vpack.c.bf16 %v4624, %v4618
      %v5177 = vpack.c.bf16 %v4625, %v4619
      %v5178 = vpack.c.bf16 %v4626, %v4620
      %v5179 = vpack.c.bf16 %v4627, %v4621
      %v5180 = vpack.c.bf16 %v4634, %v4628
      %v5181 = vpack.c.bf16 %v4635, %v4629
      %v5182 = vpack.c.bf16 %v4636, %v4630
      %v5183 = vpack.c.bf16 %v4637, %v4631
      %v5184 = vpack.c.bf16 %v4638, %v4632
      %v5185 = vpack.c.bf16 %v4639, %v4633
      %v5186 = vpack.c.bf16 %v4646, %v4640
      %v5187 = vpack.c.bf16 %v4647, %v4641
      %v5188 = vpack.c.bf16 %v4648, %v4642
      %v5189 = vpack.c.bf16 %v4649, %v4643
      %v5190 = vpack.c.bf16 %v4650, %v4644
      %v5191 = vpack.c.bf16 %v4651, %v4645
      %v5192 = vpack.c.bf16 %v4658, %v4652
      %v5193 = vpack.c.bf16 %v4659, %v4653
      %v5194 = vpack.c.bf16 %v4660, %v4654
      %v5195 = vpack.c.bf16 %v4661, %v4655
      %v5196 = vpack.c.bf16 %v4662, %v4656
      %v5197 = vpack.c.bf16 %v4663, %v4657
      %v5198 = vpack.c.bf16 %v4670, %v4664
      %v5199 = vpack.c.bf16 %v4671, %v4665
      %v5200 = vpack.c.bf16 %v4672, %v4666
      %v5201 = vpack.c.bf16 %v4673, %v4667
      %v5202 = vpack.c.bf16 %v4674, %v4668
      %v5203 = vpack.c.bf16 %v4675, %v4669
      %v5204 = vpack.c.bf16 %v4682, %v4676
      %v5205 = vpack.c.bf16 %v4683, %v4677
      %v5206 = vpack.c.bf16 %v4684, %v4678
      %v5207 = vpack.c.bf16 %v4685, %v4679
      %v5208 = vpack.c.bf16 %v4686, %v4680
      %v5209 = vpack.c.bf16 %v4687, %v4681
      %v5210 = vpack.c.bf16 %v4694, %v4688
      %v5211 = vpack.c.bf16 %v4695, %v4689
      %v5212 = vpack.c.bf16 %v4696, %v4690
      %v5213 = vpack.c.bf16 %v4697, %v4691
      %v5214 = vpack.c.bf16 %v4698, %v4692
      %v5215 = vpack.c.bf16 %v4699, %v4693
      %v5216 = vpack.c.bf16 %v4706, %v4700
      %v5217 = vpack.c.bf16 %v4707, %v4701
      %v5218 = vpack.c.bf16 %v4708, %v4702
      %v5219 = vpack.c.bf16 %v4709, %v4703
      %v5220 = vpack.c.bf16 %v4710, %v4704
      %v5221 = vpack.c.bf16 %v4711, %v4705
      %v5222 = vpack.c.bf16 %v4718, %v4712
      %v5223 = vpack.c.bf16 %v4719, %v4713
      %v5224 = vpack.c.bf16 %v4720, %v4714
      %v5225 = vpack.c.bf16 %v4721, %v4715
      %v5226 = vpack.c.bf16 %v4722, %v4716
      %v5227 = vpack.c.bf16 %v4723, %v4717
      %v5228 = vpack.c.bf16 %v4730, %v4724
      %v5229 = vpack.c.bf16 %v4731, %v4725
      %v5230 = vpack.c.bf16 %v4732, %v4726
      %v5231 = vpack.c.bf16 %v4733, %v4727
      %v5232 = vpack.c.bf16 %v4734, %v4728
      %v5233 = vpack.c.bf16 %v4735, %v4729
      %v5234 = vpack.c.bf16 %v4742, %v4736
      %v5235 = vpack.c.bf16 %v4743, %v4737
      %v5236 = vpack.c.bf16 %v4744, %v4738
      %v5237 = vpack.c.bf16 %v4745, %v4739
      %v5238 = vpack.c.bf16 %v4746, %v4740
      %v5239 = vpack.c.bf16 %v4747, %v4741
      %v5240 = vpack.c.bf16 %v4754, %v4748
      %v5241 = vpack.c.bf16 %v4755, %v4749
      %v5242 = vpack.c.bf16 %v4756, %v4750
      %v5243 = vpack.c.bf16 %v4757, %v4751
      %v5244 = vpack.c.bf16 %v4758, %v4752
      %v5245 = vpack.c.bf16 %v4759, %v4753
      %v5246 = vpack.c.bf16 %v4766, %v4760
      %v5247 = vpack.c.bf16 %v4767, %v4761
      %v5248 = vpack.c.bf16 %v4768, %v4762
      %v5249 = vpack.c.bf16 %v4769, %v4763
      %v5250 = vpack.c.bf16 %v4770, %v4764
      %v5251 = vpack.c.bf16 %v4771, %v4765
      %v5252 = vpack.c.bf16 %v4778, %v4772
      %v5253 = vpack.c.bf16 %v4779, %v4773
      %v5254 = vpack.c.bf16 %v4780, %v4774
      %v5255 = vpack.c.bf16 %v4781, %v4775
      %v5256 = vpack.c.bf16 %v4782, %v4776
      %v5257 = vpack.c.bf16 %v4783, %v4777
      %v5258 = vpack.c.bf16 %v4790, %v4784
      %v5259 = vpack.c.bf16 %v4791, %v4785
      %v5260 = vpack.c.bf16 %v4792, %v4786
      %v5261 = vpack.c.bf16 %v4793, %v4787
      %v5262 = vpack.c.bf16 %v4794, %v4788
      %v5263 = vpack.c.bf16 %v4795, %v4789
      %v5264 = vpack.c.bf16 %v4802, %v4796
      %v5265 = vpack.c.bf16 %v4803, %v4797
      %v5266 = vpack.c.bf16 %v4804, %v4798
      %v5267 = vpack.c.bf16 %v4805, %v4799
      %v5268 = vpack.c.bf16 %v4806, %v4800
      %v5269 = vpack.c.bf16 %v4807, %v4801
      %v5270 = vpack.c.bf16 %v4814, %v4808
      %v5271 = vpack.c.bf16 %v4815, %v4809
      %v5272 = vpack.c.bf16 %v4816, %v4810
      %v5273 = vpack.c.bf16 %v4817, %v4811
      %v5274 = vpack.c.bf16 %v4818, %v4812
      %v5275 = vpack.c.bf16 %v4819, %v4813
      %v5276 = vpack.c.bf16 %v4826, %v4820
      %v5277 = vpack.c.bf16 %v4827, %v4821
      %v5278 = vpack.c.bf16 %v4828, %v4822
      %v5279 = vpack.c.bf16 %v4829, %v4823
      %v5280 = vpack.c.bf16 %v4830, %v4824
      %v5281 = vpack.c.bf16 %v4831, %v4825
      %v5282 = vpack.c.bf16 %v4838, %v4832
      %v5283 = vpack.c.bf16 %v4839, %v4833
      %v5284 = vpack.c.bf16 %v4840, %v4834
      %v5285 = vpack.c.bf16 %v4841, %v4835
      %v5286 = vpack.c.bf16 %v4842, %v4836
      %v5287 = vpack.c.bf16 %v4843, %v4837
      %v5288 = vpack.c.bf16 %v4850, %v4844
      %v5289 = vpack.c.bf16 %v4851, %v4845
      %v5290 = vpack.c.bf16 %v4852, %v4846
      %v5291 = vpack.c.bf16 %v4853, %v4847
      %v5292 = vpack.c.bf16 %v4854, %v4848
      %v5293 = vpack.c.bf16 %v4855, %v4849
      %v5294 = vpack.c.bf16 %v4862, %v4856
      %v5295 = vpack.c.bf16 %v4863, %v4857
      %v5296 = vpack.c.bf16 %v4864, %v4858
      %v5297 = vpack.c.bf16 %v4865, %v4859
      %v5298 = vpack.c.bf16 %v4866, %v4860
      %v5299 = vpack.c.bf16 %v4867, %v4861
      %v5300 = vpack.c.bf16 %v4874, %v4868
      %v5301 = vpack.c.bf16 %v4875, %v4869
      %v5302 = vpack.c.bf16 %v4876, %v4870
      %v5303 = vpack.c.bf16 %v4877, %v4871
      %v5304 = vpack.c.bf16 %v4878, %v4872
      %v5305 = vpack.c.bf16 %v4879, %v4873
      %v5306 = vpack.c.bf16 %v4886, %v4880
      %v5307 = vpack.c.bf16 %v4887, %v4881
      %v5308 = vpack.c.bf16 %v4888, %v4882
      %v5309 = vpack.c.bf16 %v4889, %v4883
      %v5310 = vpack.c.bf16 %v4890, %v4884
      %v5311 = vpack.c.bf16 %v4891, %v4885
      %v5312 = vpack.c.bf16 %v4898, %v4892
      %v5313 = vpack.c.bf16 %v4899, %v4893
      %v5314 = vpack.c.bf16 %v4900, %v4894
      %v5315 = vpack.c.bf16 %v4901, %v4895
      %v5316 = vpack.c.bf16 %v4902, %v4896
      %v5317 = vpack.c.bf16 %v4903, %v4897
      %v5318 = vpack.c.bf16 %v4910, %v4904
      %v5319 = vpack.c.bf16 %v4911, %v4905
      %v5320 = vpack.c.bf16 %v4912, %v4906
      %v5321 = vpack.c.bf16 %v4913, %v4907
      %v5322 = vpack.c.bf16 %v4914, %v4908
      %v5323 = vpack.c.bf16 %v4915, %v4909
      %v5324 = vpack.c.bf16 %v4922, %v4916
      %v5325 = vpack.c.bf16 %v4923, %v4917
      %v5326 = vpack.c.bf16 %v4924, %v4918
      %v5327 = vpack.c.bf16 %v4925, %v4919
      %v5328 = vpack.c.bf16 %v4926, %v4920
      %v5329 = vpack.c.bf16 %v4927, %v4921
      %v5330 = vpack.c.bf16 %v4934, %v4928
      %v5331 = vpack.c.bf16 %v4935, %v4929
      %v5332 = vpack.c.bf16 %v4936, %v4930
      %v5333 = vpack.c.bf16 %v4937, %v4931
      %v5334 = vpack.c.bf16 %v4938, %v4932
      %v5335 = vpack.c.bf16 %v4939, %v4933
      %v5336 = vpack.c.bf16 %v4946, %v4940
      %v5337 = vpack.c.bf16 %v4947, %v4941
      %v5338 = vpack.c.bf16 %v4948, %v4942
      %v5339 = vpack.c.bf16 %v4949, %v4943
      %v5340 = vpack.c.bf16 %v4950, %v4944
      %v5341 = vpack.c.bf16 %v4951, %v4945
      %v5342 = vpack.c.bf16 %v4958, %v4952
      %v5343 = vpack.c.bf16 %v4959, %v4953
      %v5344 = vpack.c.bf16 %v4960, %v4954
      %v5345 = vpack.c.bf16 %v4961, %v4955
      %v5346 = vpack.c.bf16 %v4962, %v4956
      %v5347 = vpack.c.bf16 %v4963, %v4957
      %v5348 = vpack.c.bf16 %v4970, %v4964
      %v5349 = vpack.c.bf16 %v4971, %v4965
      %v5350 = vpack.c.bf16 %v4972, %v4966
      %v5351 = vpack.c.bf16 %v4973, %v4967
      %v5352 = vpack.c.bf16 %v4974, %v4968
      %v5353 = vpack.c.bf16 %v4975, %v4969
      %v5354 = vpack.c.bf16 %v4982, %v4976
      %v5355 = vpack.c.bf16 %v4983, %v4977
      %v5356 = vpack.c.bf16 %v4984, %v4978
      %v5357 = vpack.c.bf16 %v4985, %v4979
      %v5358 = vpack.c.bf16 %v4986, %v4980
      %v5359 = vpack.c.bf16 %v4987, %v4981
      %v5360 = vpack.c.bf16 %v4994, %v4988
      %v5361 = vpack.c.bf16 %v4995, %v4989
      %v5362 = vpack.c.bf16 %v4996, %v4990
      %v5363 = vpack.c.bf16 %v4997, %v4991
      %v5364 = vpack.c.bf16 %v4998, %v4992
      %v5365 = vpack.c.bf16 %v4999, %v4993
      %v5366 = vpack.c.bf16 %v5006, %v5000
      %v5367 = vpack.c.bf16 %v5007, %v5001
      %v5368 = vpack.c.bf16 %v5008, %v5002
      %v5369 = vpack.c.bf16 %v5009, %v5003
      %v5370 = vpack.c.bf16 %v5010, %v5004
      %v5371 = vpack.c.bf16 %v5011, %v5005
      %v5372 = vpack.c.bf16 %v5018, %v5012
      %v5373 = vpack.c.bf16 %v5019, %v5013
      %v5374 = vpack.c.bf16 %v5020, %v5014
      %v5375 = vpack.c.bf16 %v5021, %v5015
      %v5376 = vpack.c.bf16 %v5022, %v5016
      %v5377 = vpack.c.bf16 %v5023, %v5017
      %v5378 = vpack.c.bf16 %v5030, %v5024
      %v5379 = vpack.c.bf16 %v5031, %v5025
      %v5380 = vpack.c.bf16 %v5032, %v5026
      %v5381 = vpack.c.bf16 %v5033, %v5027
      %v5382 = vpack.c.bf16 %v5034, %v5028
      %v5383 = vpack.c.bf16 %v5035, %v5029
      %v5384 = vpack.c.bf16 %v5042, %v5036
      %v5385 = vpack.c.bf16 %v5043, %v5037
      %v5386 = vpack.c.bf16 %v5044, %v5038
      %v5387 = vpack.c.bf16 %v5045, %v5039
      %v5388 = vpack.c.bf16 %v5046, %v5040
      %v5389 = vpack.c.bf16 %v5047, %v5041
      %v5390 = vpack.c.bf16 %v5054, %v5048
      %v5391 = vpack.c.bf16 %v5055, %v5049
      %v5392 = vpack.c.bf16 %v5056, %v5050
      %v5393 = vpack.c.bf16 %v5057, %v5051
      %v5394 = vpack.c.bf16 %v5058, %v5052
      %v5395 = vpack.c.bf16 %v5059, %v5053
      %v5396 = vpack.c.bf16 %v5066, %v5060
      %v5397 = vpack.c.bf16 %v5067, %v5061
      %v5398 = vpack.c.bf16 %v5068, %v5062
      %v5399 = vpack.c.bf16 %v5069, %v5063
      %v5400 = vpack.c.bf16 %v5070, %v5064
      %v5401 = vpack.c.bf16 %v5071, %v5065
      %v5402 = vpack.c.bf16 %v5078, %v5072
      %v5403 = vpack.c.bf16 %v5079, %v5073
      %v5404 = vpack.c.bf16 %v5080, %v5074
      %v5405 = vpack.c.bf16 %v5081, %v5075
      %v5406 = vpack.c.bf16 %v5082, %v5076
      %v5407 = vpack.c.bf16 %v5083, %v5077
      %v5408 = vpack.c.bf16 %v5090, %v5084
      %v5409 = vpack.c.bf16 %v5091, %v5085
      %v5410 = vpack.c.bf16 %v5092, %v5086
      %v5411 = vpack.c.bf16 %v5093, %v5087
      %v5412 = vpack.c.bf16 %v5094, %v5088
      %v5413 = vpack.c.bf16 %v5095, %v5089
      %v5414 = vpack.c.bf16 %v5102, %v5096
      %v5415 = vpack.c.bf16 %v5103, %v5097
      %v5416 = vpack.c.bf16 %v5104, %v5098
      %v5417 = vpack.c.bf16 %v5105, %v5099
      %v5418 = vpack.c.bf16 %v5106, %v5100
      %v5419 = vpack.c.bf16 %v5107, %v5101
      %v5420 = vpack.c.bf16 %v5114, %v5108
      %v5421 = vpack.c.bf16 %v5115, %v5109
      %v5422 = vpack.c.bf16 %v5116, %v5110
      %v5423 = vpack.c.bf16 %v5117, %v5111
      %v5424 = vpack.c.bf16 %v5118, %v5112
      %v5425 = vpack.c.bf16 %v5119, %v5113
      %v5426 = vpack.c.bf16 %v5126, %v5120
      %v5427 = vpack.c.bf16 %v5127, %v5121
      %v5428 = vpack.c.bf16 %v5128, %v5122
      %v5429 = vpack.c.bf16 %v5129, %v5123
      %v5430 = vpack.c.bf16 %v5130, %v5124
      %v5431 = vpack.c.bf16 %v5131, %v5125
      %v5432 = vpack.c.bf16 %v5138, %v5132
      %v5433 = vpack.c.bf16 %v5139, %v5133
      %v5434 = vpack.c.bf16 %v5140, %v5134
      %v5435 = vpack.c.bf16 %v5141, %v5135
      %v5436 = vpack.c.bf16 %v5142, %v5136
      %v5437 = vpack.c.bf16 %v5143, %v5137
      %v5438 = vpack.c.bf16 %v5150, %v5144
      %v5439 = vpack.c.bf16 %v5151, %v5145
      %v5440 = vpack.c.bf16 %v5152, %v5146
      %v5441 = vpack.c.bf16 %v5153, %v5147
      %v5442 = vpack.c.bf16 %v5154, %v5148
      %v5443 = vpack.c.bf16 %v5155, %v5149
      %5444 = vxpose.xlu0.c.b16.start [1/8] %v3092, 128
      %5445 = vxpose.xlu0.c.b16.cont [2/8] %v3093, 128
      %5446 = vxpose.xlu0.c.b16.cont [3/8] %v3094, 128
      %5447 = vxpose.xlu0.c.b16.cont [4/8] %v3095, 128
      %5448 = vxpose.xlu0.c.b16.cont [5/8] %v3096, 128
      %5449 = vxpose.xlu0.c.b16.cont [6/8] %v3097, 128
      %5450 = vxpose.xlu0.c.b16.cont [7/8] %v3098, 128
      %5451 = vxpose.xlu0.c.b16.end [8/8] %v3099, 128
      %v5452 = vpop.trf.xlu0
      %v5453 = vpop.trf.xlu0
      %v5454 = vpop.trf.xlu0
      %v5455 = vpop.trf.xlu0
      %v5456 = vpop.trf.xlu0
      %v5457 = vpop.trf.xlu0
      %v5458 = vpop.trf.xlu0
      %v5459 = vpop.trf.xlu0
      %5460 = vxpose.xlu0.c.b16.start [1/8] %v3100, 128
      %5461 = vxpose.xlu0.c.b16.cont [2/8] %v3101, 128
      %5462 = vxpose.xlu0.c.b16.cont [3/8] %v3102, 128
      %5463 = vxpose.xlu0.c.b16.cont [4/8] %v3103, 128
      %5464 = vxpose.xlu0.c.b16.cont [5/8] %v3104, 128
      %5465 = vxpose.xlu0.c.b16.cont [6/8] %v3105, 128
      %5466 = vxpose.xlu0.c.b16.cont [7/8] %v3106, 128
      %5467 = vxpose.xlu0.c.b16.end [8/8] %v3107, 128
      %v5468 = vpop.trf.xlu0
      %v5469 = vpop.trf.xlu0
      %v5470 = vpop.trf.xlu0
      %v5471 = vpop.trf.xlu0
      %v5472 = vpop.trf.xlu0
      %v5473 = vpop.trf.xlu0
      %v5474 = vpop.trf.xlu0
      %v5475 = vpop.trf.xlu0
      %5476 = vxpose.xlu0.c.b16.start [1/8] %v3108, 128
      %5477 = vxpose.xlu0.c.b16.cont [2/8] %v3109, 128
      %5478 = vxpose.xlu0.c.b16.cont [3/8] %v3110, 128
      %5479 = vxpose.xlu0.c.b16.cont [4/8] %v3111, 128
      %5480 = vxpose.xlu0.c.b16.cont [5/8] %v3112, 128
      %5481 = vxpose.xlu0.c.b16.cont [6/8] %v3113, 128
      %5482 = vxpose.xlu0.c.b16.cont [7/8] %v3114, 128
      %5483 = vxpose.xlu0.c.b16.end [8/8] %v3115, 128
      %v5484 = vpop.trf.xlu0
      %v5485 = vpop.trf.xlu0
      %v5486 = vpop.trf.xlu0
      %v5487 = vpop.trf.xlu0
      %v5488 = vpop.trf.xlu0
      %v5489 = vpop.trf.xlu0
      %v5490 = vpop.trf.xlu0
      %v5491 = vpop.trf.xlu0
      %5492 = vxpose.xlu0.c.b16.start [1/8] %v3116, 128
      %5493 = vxpose.xlu0.c.b16.cont [2/8] %v3117, 128
      %5494 = vxpose.xlu0.c.b16.cont [3/8] %v3118, 128
      %5495 = vxpose.xlu0.c.b16.cont [4/8] %v3119, 128
      %5496 = vxpose.xlu0.c.b16.cont [5/8] %v3120, 128
      %5497 = vxpose.xlu0.c.b16.cont [6/8] %v3121, 128
      %5498 = vxpose.xlu0.c.b16.cont [7/8] %v3122, 128
      %5499 = vxpose.xlu0.c.b16.end [8/8] %v3123, 128
      %v5500 = vpop.trf.xlu0
      %v5501 = vpop.trf.xlu0
      %v5502 = vpop.trf.xlu0
      %v5503 = vpop.trf.xlu0
      %v5504 = vpop.trf.xlu0
      %v5505 = vpop.trf.xlu0
      %v5506 = vpop.trf.xlu0
      %v5507 = vpop.trf.xlu0
      %5508 = vxpose.xlu0.c.b16.start [1/8] %v3124, 128
      %5509 = vxpose.xlu0.c.b16.cont [2/8] %v3125, 128
      %5510 = vxpose.xlu0.c.b16.cont [3/8] %v3126, 128
      %5511 = vxpose.xlu0.c.b16.cont [4/8] %v3127, 128
      %5512 = vxpose.xlu0.c.b16.cont [5/8] %v3128, 128
      %5513 = vxpose.xlu0.c.b16.cont [6/8] %v3129, 128
      %5514 = vxpose.xlu0.c.b16.cont [7/8] %v3130, 128
      %5515 = vxpose.xlu0.c.b16.end [8/8] %v3131, 128
      %v5516 = vpop.trf.xlu0
      %v5517 = vpop.trf.xlu0
      %v5518 = vpop.trf.xlu0
      %v5519 = vpop.trf.xlu0
      %v5520 = vpop.trf.xlu0
      %v5521 = vpop.trf.xlu0
      %v5522 = vpop.trf.xlu0
      %v5523 = vpop.trf.xlu0
      %5524 = vxpose.xlu0.c.b16.start [1/8] %v3132, 128
      %5525 = vxpose.xlu0.c.b16.cont [2/8] %v3133, 128
      %5526 = vxpose.xlu0.c.b16.cont [3/8] %v3134, 128
      %5527 = vxpose.xlu0.c.b16.cont [4/8] %v3135, 128
      %5528 = vxpose.xlu0.c.b16.cont [5/8] %v3136, 128
      %5529 = vxpose.xlu0.c.b16.cont [6/8] %v3137, 128
      %5530 = vxpose.xlu0.c.b16.cont [7/8] %v3138, 128
      %5531 = vxpose.xlu0.c.b16.end [8/8] %v3139, 128
      %v5532 = vpop.trf.xlu0
      %v5533 = vpop.trf.xlu0
      %v5534 = vpop.trf.xlu0
      %v5535 = vpop.trf.xlu0
      %v5536 = vpop.trf.xlu0
      %v5537 = vpop.trf.xlu0
      %v5538 = vpop.trf.xlu0
      %v5539 = vpop.trf.xlu0
      %5540 = vmatprep.subr.bf16.mxu0 %v5157
      %5541 = vmatpush1.bf16.msra.mxu0 %v5156
      %5542 = vmatprep.subr.bf16.mxu0 %v5163
      %5543 = vmatpush1.bf16.msra.mxu0 %v5162
      %5544 = vmatprep.subr.bf16.mxu0 %v5169
      %5545 = vmatpush1.bf16.msra.mxu0 %v5168
      %5546 = vmatprep.subr.bf16.mxu0 %v5175
      %5547 = vmatpush1.bf16.msra.mxu0 %v5174
      %5548 = vmatprep.subr.bf16.mxu0 %v5181
      %5549 = vmatpush1.bf16.msra.mxu0 %v5180
      %5550 = vmatprep.subr.bf16.mxu0 %v5187
      %5551 = vmatpush1.bf16.msra.mxu0 %v5186
      %5552 = vmatprep.subr.bf16.mxu0 %v5193
      %5553 = vmatpush1.bf16.msra.mxu0 %v5192
      %5554 = vmatprep.subr.bf16.mxu0 %v5199
      %5555 = vmatpush1.bf16.msra.mxu0 %v5198
      %5556 = vmatprep.subr.bf16.mxu0 %v5205
      %5557 = vmatpush1.bf16.msra.mxu0 %v5204
      %5558 = vmatprep.subr.bf16.mxu0 %v5211
      %5559 = vmatpush1.bf16.msra.mxu0 %v5210
      %5560 = vmatprep.subr.bf16.mxu0 %v5217
      %5561 = vmatpush1.bf16.msra.mxu0 %v5216
      %5562 = vmatprep.subr.bf16.mxu0 %v5223
      %5563 = vmatpush1.bf16.msra.mxu0 %v5222
      %5564 = vmatprep.subr.bf16.mxu0 %v5229
      %5565 = vmatpush1.bf16.msra.mxu0 %v5228
      %5566 = vmatprep.subr.bf16.mxu0 %v5235
      %5567 = vmatpush1.bf16.msra.mxu0 %v5234
      %5568 = vmatprep.subr.bf16.mxu0 %v5241
      %5569 = vmatpush1.bf16.msra.mxu0 %v5240
      %5570 = vmatprep.subr.bf16.mxu0 %v5247
      %5571 = vmatpush1.bf16.msra.mxu0 %v5246
      %5572 = vmatprep.mubr.bf16.mxu0 %v5468
      %5573 = vmatmul.mubr.bf16.gmra.mrb[0].mxu0 %v5452
      %v5574 = vpop.f32.mrb[0].mxu0
      %v5575 = vadd.f32 0.0, %v5574
      %v5576 = vpop.f32.mrb[0].mxu0
      %v5577 = vadd.f32 0.0, %v5576
      %v5578 = vpop.f32.mrb[0].mxu0
      %v5579 = vadd.f32 0.0, %v5578
      %v5580 = vpop.f32.mrb[0].mxu0
      %v5581 = vadd.f32 0.0, %v5580
      %5582 = vmatprep.mubr.bf16.mxu0 %v5469
      %5583 = vmatmul.mubr.bf16.gmra.mrb[0].mxu0 %v5453
      %v5584 = vpop.f32.mrb[0].mxu0
      %v5585 = vadd.f32 0.0, %v5584
      %v5586 = vpop.f32.mrb[0].mxu0
      %v5587 = vadd.f32 0.0, %v5586
      %v5588 = vpop.f32.mrb[0].mxu0
      %v5589 = vadd.f32 0.0, %v5588
      %v5590 = vpop.f32.mrb[0].mxu0
      %v5591 = vadd.f32 0.0, %v5590
      %5592 = vmatprep.mubr.bf16.mxu0 %v5470
      %5593 = vmatmul.mubr.bf16.gmra.mrb[0].mxu0 %v5454
      %v5594 = vpop.f32.mrb[0].mxu0
      %v5595 = vadd.f32 0.0, %v5594
      %v5596 = vpop.f32.mrb[0].mxu0
      %v5597 = vadd.f32 0.0, %v5596
      %v5598 = vpop.f32.mrb[0].mxu0
      %v5599 = vadd.f32 0.0, %v5598
      %v5600 = vpop.f32.mrb[0].mxu0
      %v5601 = vadd.f32 0.0, %v5600
      %5602 = vmatprep.mubr.bf16.mxu0 %v5471
      %5603 = vmatmul.mubr.bf16.gmra.mrb[0].mxu0 %v5455
      %v5604 = vpop.f32.mrb[0].mxu0
      %v5605 = vadd.f32 0.0, %v5604
      %v5606 = vpop.f32.mrb[0].mxu0
      %v5607 = vadd.f32 0.0, %v5606
      %v5608 = vpop.f32.mrb[0].mxu0
      %v5609 = vadd.f32 0.0, %v5608
      %v5610 = vpop.f32.mrb[0].mxu0
      %v5611 = vadd.f32 0.0, %v5610
      %5612 = vdwg.mxu0
      %5613 = vmatprep.subr.bf16.mxu0 %v5253
      %5614 = vmatpush1.bf16.msra.mxu0 %v5252
      %5615 = vmatprep.subr.bf16.mxu0 %v5259
      %5616 = vmatpush1.bf16.msra.mxu0 %v5258
      %5617 = vmatprep.subr.bf16.mxu0 %v5265
      %5618 = vmatpush1.bf16.msra.mxu0 %v5264
      %5619 = vmatprep.subr.bf16.mxu0 %v5271
      %5620 = vmatpush1.bf16.msra.mxu0 %v5270
      %5621 = vmatprep.subr.bf16.mxu0 %v5277
      %5622 = vmatpush1.bf16.msra.mxu0 %v5276
      %5623 = vmatprep.subr.bf16.mxu0 %v5283
      %5624 = vmatpush1.bf16.msra.mxu0 %v5282
      %5625 = vmatprep.subr.bf16.mxu0 %v5289
      %5626 = vmatpush1.bf16.msra.mxu0 %v5288
      %5627 = vmatprep.subr.bf16.mxu0 %v5295
      %5628 = vmatpush1.bf16.msra.mxu0 %v5294
      %5629 = vmatprep.subr.bf16.mxu0 %v5301
      %5630 = vmatpush1.bf16.msra.mxu0 %v5300
      %5631 = vmatprep.subr.bf16.mxu0 %v5307
      %5632 = vmatpush1.bf16.msra.mxu0 %v5306
      %5633 = vmatprep.subr.bf16.mxu0 %v5313
      %5634 = vmatpush1.bf16.msra.mxu0 %v5312
      %5635 = vmatprep.subr.bf16.mxu0 %v5319
      %5636 = vmatpush1.bf16.msra.mxu0 %v5318
      %5637 = vmatprep.subr.bf16.mxu0 %v5325
      %5638 = vmatpush1.bf16.msra.mxu0 %v5324
      %5639 = vmatprep.subr.bf16.mxu0 %v5331
      %5640 = vmatpush1.bf16.msra.mxu0 %v5330
      %5641 = vmatprep.subr.bf16.mxu0 %v5337
      %5642 = vmatpush1.bf16.msra.mxu0 %v5336
      %5643 = vmatprep.subr.bf16.mxu0 %v5343
      %5644 = vmatpush1.bf16.msra.mxu0 %v5342
      %5645 = vmatprep.mubr.bf16.mxu0 %v5500
      %5646 = vmatmul.mubr.bf16.gmra.mrb[0].mxu0 %v5484
      %v5647 = vpop.f32.mrb[0].mxu0
      %v5648 = vadd.f32 %v5575, %v5647
      %v5649 = vpop.f32.mrb[0].mxu0
      %v5650 = vadd.f32 %v5577, %v5649
      %v5651 = vpop.f32.mrb[0].mxu0
      %v5652 = vadd.f32 %v5579, %v5651
      %v5653 = vpop.f32.mrb[0].mxu0
      %v5654 = vadd.f32 %v5581, %v5653
      %5655 = vmatprep.mubr.bf16.mxu0 %v5501
      %5656 = vmatmul.mubr.bf16.gmra.mrb[0].mxu0 %v5485
      %v5657 = vpop.f32.mrb[0].mxu0
      %v5658 = vadd.f32 %v5585, %v5657
      %v5659 = vpop.f32.mrb[0].mxu0
      %v5660 = vadd.f32 %v5587, %v5659
      %v5661 = vpop.f32.mrb[0].mxu0
      %v5662 = vadd.f32 %v5589, %v5661
      %v5663 = vpop.f32.mrb[0].mxu0
      %v5664 = vadd.f32 %v5591, %v5663
      %5665 = vmatprep.mubr.bf16.mxu0 %v5502
      %5666 = vmatmul.mubr.bf16.gmra.mrb[0].mxu0 %v5486
      %v5667 = vpop.f32.mrb[0].mxu0
      %v5668 = vadd.f32 %v5595, %v5667
      %v5669 = vpop.f32.mrb[0].mxu0
      %v5670 = vadd.f32 %v5597, %v5669
      %v5671 = vpop.f32.mrb[0].mxu0
      %v5672 = vadd.f32 %v5599, %v5671
      %v5673 = vpop.f32.mrb[0].mxu0
      %v5674 = vadd.f32 %v5601, %v5673
      %5675 = vmatprep.mubr.bf16.mxu0 %v5503
      %5676 = vmatmul.mubr.bf16.gmra.mrb[0].mxu0 %v5487
      %v5677 = vpop.f32.mrb[0].mxu0
      %v5678 = vadd.f32 %v5605, %v5677
      %v5679 = vpop.f32.mrb[0].mxu0
      %v5680 = vadd.f32 %v5607, %v5679
      %v5681 = vpop.f32.mrb[0].mxu0
      %v5682 = vadd.f32 %v5609, %v5681
      %v5683 = vpop.f32.mrb[0].mxu0
      %v5684 = vadd.f32 %v5611, %v5683
      %5685 = vdwg.mxu0
      %5686 = vmatprep.subr.bf16.mxu0 %v5349
      %5687 = vmatpush1.bf16.msra.mxu0 %v5348
      %5688 = vmatprep.subr.bf16.mxu0 %v5355
      %5689 = vmatpush1.bf16.msra.mxu0 %v5354
      %5690 = vmatprep.subr.bf16.mxu0 %v5361
      %5691 = vmatpush1.bf16.msra.mxu0 %v5360
      %5692 = vmatprep.subr.bf16.mxu0 %v5367
      %5693 = vmatpush1.bf16.msra.mxu0 %v5366
      %5694 = vmatprep.subr.bf16.mxu0 %v5373
      %5695 = vmatpush1.bf16.msra.mxu0 %v5372
      %5696 = vmatprep.subr.bf16.mxu0 %v5379
      %5697 = vmatpush1.bf16.msra.mxu0 %v5378
      %5698 = vmatprep.subr.bf16.mxu0 %v5385
      %5699 = vmatpush1.bf16.msra.mxu0 %v5384
      %5700 = vmatprep.subr.bf16.mxu0 %v5391
      %5701 = vmatpush1.bf16.msra.mxu0 %v5390
      %5702 = vmatprep.subr.bf16.mxu0 %v5397
      %5703 = vmatpush1.bf16.msra.mxu0 %v5396
      %5704 = vmatprep.subr.bf16.mxu0 %v5403
      %5705 = vmatpush1.bf16.msra.mxu0 %v5402
      %5706 = vmatprep.subr.bf16.mxu0 %v5409
      %5707 = vmatpush1.bf16.msra.mxu0 %v5408
      %5708 = vmatprep.subr.bf16.mxu0 %v5415
      %5709 = vmatpush1.bf16.msra.mxu0 %v5414
      %5710 = vmatprep.subr.bf16.mxu0 %v5421
      %5711 = vmatpush1.bf16.msra.mxu0 %v5420
      %5712 = vmatprep.subr.bf16.mxu0 %v5427
      %5713 = vmatpush1.bf16.msra.mxu0 %v5426
      %5714 = vmatprep.subr.bf16.mxu0 %v5433
      %5715 = vmatpush1.bf16.msra.mxu0 %v5432
      %5716 = vmatprep.subr.bf16.mxu0 %v5439
      %5717 = vmatpush1.bf16.msra.mxu0 %v5438
      %5718 = vmatprep.mubr.bf16.mxu0 %v5532
      %5719 = vmatmul.mubr.bf16.gmra.mrb[0].mxu0 %v5516
      %v5720 = vpop.f32.mrb[0].mxu0
      %v5721 = vadd.f32 %v5648, %v5720
      %v5722 = vpop.f32.mrb[0].mxu0
      %v5723 = vadd.f32 %v5650, %v5722
      %v5724 = vpop.f32.mrb[0].mxu0
      %v5725 = vadd.f32 %v5652, %v5724
      %v5726 = vpop.f32.mrb[0].mxu0
      %v5727 = vadd.f32 %v5654, %v5726
      %5728 = vmatprep.mubr.bf16.mxu0 %v5533
      %5729 = vmatmul.mubr.bf16.gmra.mrb[0].mxu0 %v5517
      %v5730 = vpop.f32.mrb[0].mxu0
      %v5731 = vadd.f32 %v5658, %v5730
      %v5732 = vpop.f32.mrb[0].mxu0
      %v5733 = vadd.f32 %v5660, %v5732
      %v5734 = vpop.f32.mrb[0].mxu0
      %v5735 = vadd.f32 %v5662, %v5734
      %v5736 = vpop.f32.mrb[0].mxu0
      %v5737 = vadd.f32 %v5664, %v5736
      %5738 = vmatprep.mubr.bf16.mxu0 %v5534
      %5739 = vmatmul.mubr.bf16.gmra.mrb[0].mxu0 %v5518
      %v5740 = vpop.f32.mrb[0].mxu0
      %v5741 = vadd.f32 %v5668, %v5740
      %v5742 = vpop.f32.mrb[0].mxu0
      %v5743 = vadd.f32 %v5670, %v5742
      %v5744 = vpop.f32.mrb[0].mxu0
      %v5745 = vadd.f32 %v5672, %v5744
      %v5746 = vpop.f32.mrb[0].mxu0
      %v5747 = vadd.f32 %v5674, %v5746
      %5748 = vmatprep.mubr.bf16.mxu0 %v5535
      %5749 = vmatmul.mubr.bf16.gmra.mrb[0].mxu0 %v5519
      %v5750 = vpop.f32.mrb[0].mxu0
      %v5751 = vadd.f32 %v5678, %v5750
      %v5752 = vpop.f32.mrb[0].mxu0
      %v5753 = vadd.f32 %v5680, %v5752
      %v5754 = vpop.f32.mrb[0].mxu0
      %v5755 = vadd.f32 %v5682, %v5754
      %v5756 = vpop.f32.mrb[0].mxu0
      %v5757 = vadd.f32 %v5684, %v5756
      %5758 = vdwg.mxu0
      %5759 = vmatprep.subr.bf16.mxu0 %v5159
      %5760 = vmatpush1.bf16.msra.mxu0 %v5158
      %5761 = vmatprep.subr.bf16.mxu0 %v5165
      %5762 = vmatpush1.bf16.msra.mxu0 %v5164
      %5763 = vmatprep.subr.bf16.mxu0 %v5171
      %5764 = vmatpush1.bf16.msra.mxu0 %v5170
      %5765 = vmatprep.subr.bf16.mxu0 %v5177
      %5766 = vmatpush1.bf16.msra.mxu0 %v5176
      %5767 = vmatprep.subr.bf16.mxu0 %v5183
      %5768 = vmatpush1.bf16.msra.mxu0 %v5182
      %5769 = vmatprep.subr.bf16.mxu0 %v5189
      %5770 = vmatpush1.bf16.msra.mxu0 %v5188
      %5771 = vmatprep.subr.bf16.mxu0 %v5195
      %5772 = vmatpush1.bf16.msra.mxu0 %v5194
      %5773 = vmatprep.subr.bf16.mxu0 %v5201
      %5774 = vmatpush1.bf16.msra.mxu0 %v5200
      %5775 = vmatprep.subr.bf16.mxu0 %v5207
      %5776 = vmatpush1.bf16.msra.mxu0 %v5206
      %5777 = vmatprep.subr.bf16.mxu0 %v5213
      %5778 = vmatpush1.bf16.msra.mxu0 %v5212
      %5779 = vmatprep.subr.bf16.mxu0 %v5219
      %5780 = vmatpush1.bf16.msra.mxu0 %v5218
      %5781 = vmatprep.subr.bf16.mxu0 %v5225
      %5782 = vmatpush1.bf16.msra.mxu0 %v5224
      %5783 = vmatprep.subr.bf16.mxu0 %v5231
      %5784 = vmatpush1.bf16.msra.mxu0 %v5230
      %5785 = vmatprep.subr.bf16.mxu0 %v5237
      %5786 = vmatpush1.bf16.msra.mxu0 %v5236
      %5787 = vmatprep.subr.bf16.mxu0 %v5243
      %5788 = vmatpush1.bf16.msra.mxu0 %v5242
      %5789 = vmatprep.subr.bf16.mxu0 %v5249
      %5790 = vmatpush1.bf16.msra.mxu0 %v5248
      %5791 = vmatprep.mubr.bf16.mxu0 %v5468
      %5792 = vmatmul.mubr.bf16.gmra.mrb[0].mxu0 %v5452
      %v5793 = vpop.f32.mrb[0].mxu0
      %v5794 = vadd.f32 0.0, %v5793
      %v5795 = vpop.f32.mrb[0].mxu0
      %v5796 = vadd.f32 0.0, %v5795
      %v5797 = vpop.f32.mrb[0].mxu0
      %v5798 = vadd.f32 0.0, %v5797
      %v5799 = vpop.f32.mrb[0].mxu0
      %v5800 = vadd.f32 0.0, %v5799
      %5801 = vmatprep.mubr.bf16.mxu0 %v5469
      %5802 = vmatmul.mubr.bf16.gmra.mrb[0].mxu0 %v5453
      %v5803 = vpop.f32.mrb[0].mxu0
      %v5804 = vadd.f32 0.0, %v5803
      %v5805 = vpop.f32.mrb[0].mxu0
      %v5806 = vadd.f32 0.0, %v5805
      %v5807 = vpop.f32.mrb[0].mxu0
      %v5808 = vadd.f32 0.0, %v5807
      %v5809 = vpop.f32.mrb[0].mxu0
      %v5810 = vadd.f32 0.0, %v5809
      %5811 = vmatprep.mubr.bf16.mxu0 %v5470
      %5812 = vmatmul.mubr.bf16.gmra.mrb[0].mxu0 %v5454
      %v5813 = vpop.f32.mrb[0].mxu0
      %v5814 = vadd.f32 0.0, %v5813
      %v5815 = vpop.f32.mrb[0].mxu0
      %v5816 = vadd.f32 0.0, %v5815
      %v5817 = vpop.f32.mrb[0].mxu0
      %v5818 = vadd.f32 0.0, %v5817
      %v5819 = vpop.f32.mrb[0].mxu0
      %v5820 = vadd.f32 0.0, %v5819
      %5821 = vmatprep.mubr.bf16.mxu0 %v5471
      %5822 = vmatmul.mubr.bf16.gmra.mrb[0].mxu0 %v5455
      %v5823 = vpop.f32.mrb[0].mxu0
      %v5824 = vadd.f32 0.0, %v5823
      %v5825 = vpop.f32.mrb[0].mxu0
      %v5826 = vadd.f32 0.0, %v5825
      %v5827 = vpop.f32.mrb[0].mxu0
      %v5828 = vadd.f32 0.0, %v5827
      %v5829 = vpop.f32.mrb[0].mxu0
      %v5830 = vadd.f32 0.0, %v5829
      %5831 = vdwg.mxu0
      %5832 = vmatprep.subr.bf16.mxu0 %v5255
      %5833 = vmatpush1.bf16.msra.mxu0 %v5254
      %5834 = vmatprep.subr.bf16.mxu0 %v5261
      %5835 = vmatpush1.bf16.msra.mxu0 %v5260
      %5836 = vmatprep.subr.bf16.mxu0 %v5267
      %5837 = vmatpush1.bf16.msra.mxu0 %v5266
      %5838 = vmatprep.subr.bf16.mxu0 %v5273
      %5839 = vmatpush1.bf16.msra.mxu0 %v5272
      %5840 = vmatprep.subr.bf16.mxu0 %v5279
      %5841 = vmatpush1.bf16.msra.mxu0 %v5278
      %5842 = vmatprep.subr.bf16.mxu0 %v5285
      %5843 = vmatpush1.bf16.msra.mxu0 %v5284
      %5844 = vmatprep.subr.bf16.mxu0 %v5291
      %5845 = vmatpush1.bf16.msra.mxu0 %v5290
      %5846 = vmatprep.subr.bf16.mxu0 %v5297
      %5847 = vmatpush1.bf16.msra.mxu0 %v5296
      %5848 = vmatprep.subr.bf16.mxu0 %v5303
      %5849 = vmatpush1.bf16.msra.mxu0 %v5302
      %5850 = vmatprep.subr.bf16.mxu0 %v5309
      %5851 = vmatpush1.bf16.msra.mxu0 %v5308
      %5852 = vmatprep.subr.bf16.mxu0 %v5315
      %5853 = vmatpush1.bf16.msra.mxu0 %v5314
      %5854 = vmatprep.subr.bf16.mxu0 %v5321
      %5855 = vmatpush1.bf16.msra.mxu0 %v5320
      %5856 = vmatprep.subr.bf16.mxu0 %v5327
      %5857 = vmatpush1.bf16.msra.mxu0 %v5326
      %5858 = vmatprep.subr.bf16.mxu0 %v5333
      %5859 = vmatpush1.bf16.msra.mxu0 %v5332
      %5860 = vmatprep.subr.bf16.mxu0 %v5339
      %5861 = vmatpush1.bf16.msra.mxu0 %v5338
      %5862 = vmatprep.subr.bf16.mxu0 %v5345
      %5863 = vmatpush1.bf16.msra.mxu0 %v5344
      %5864 = vmatprep.mubr.bf16.mxu0 %v5500
      %5865 = vmatmul.mubr.bf16.gmra.mrb[0].mxu0 %v5484
      %v5866 = vpop.f32.mrb[0].mxu0
      %v5867 = vadd.f32 %v5794, %v5866
      %v5868 = vpop.f32.mrb[0].mxu0
      %v5869 = vadd.f32 %v5796, %v5868
      %v5870 = vpop.f32.mrb[0].mxu0
      %v5871 = vadd.f32 %v5798, %v5870
      %v5872 = vpop.f32.mrb[0].mxu0
      %v5873 = vadd.f32 %v5800, %v5872
      %5874 = vmatprep.mubr.bf16.mxu0 %v5501
      %5875 = vmatmul.mubr.bf16.gmra.mrb[0].mxu0 %v5485
      %v5876 = vpop.f32.mrb[0].mxu0
      %v5877 = vadd.f32 %v5804, %v5876
      %v5878 = vpop.f32.mrb[0].mxu0
      %v5879 = vadd.f32 %v5806, %v5878
      %v5880 = vpop.f32.mrb[0].mxu0
      %v5881 = vadd.f32 %v5808, %v5880
      %v5882 = vpop.f32.mrb[0].mxu0
      %v5883 = vadd.f32 %v5810, %v5882
      %5884 = vmatprep.mubr.bf16.mxu0 %v5502
      %5885 = vmatmul.mubr.bf16.gmra.mrb[0].mxu0 %v5486
      %v5886 = vpop.f32.mrb[0].mxu0
      %v5887 = vadd.f32 %v5814, %v5886
      %v5888 = vpop.f32.mrb[0].mxu0
      %v5889 = vadd.f32 %v5816, %v5888
      %v5890 = vpop.f32.mrb[0].mxu0
      %v5891 = vadd.f32 %v5818, %v5890
      %v5892 = vpop.f32.mrb[0].mxu0
      %v5893 = vadd.f32 %v5820, %v5892
      %5894 = vmatprep.mubr.bf16.mxu0 %v5503
      %5895 = vmatmul.mubr.bf16.gmra.mrb[0].mxu0 %v5487
      %v5896 = vpop.f32.mrb[0].mxu0
      %v5897 = vadd.f32 %v5824, %v5896
      %v5898 = vpop.f32.mrb[0].mxu0
      %v5899 = vadd.f32 %v5826, %v5898
      %v5900 = vpop.f32.mrb[0].mxu0
      %v5901 = vadd.f32 %v5828, %v5900
      %v5902 = vpop.f32.mrb[0].mxu0
      %v5903 = vadd.f32 %v5830, %v5902
      %5904 = vdwg.mxu0
      %5905 = vmatprep.subr.bf16.mxu0 %v5351
      %5906 = vmatpush1.bf16.msra.mxu0 %v5350
      %5907 = vmatprep.subr.bf16.mxu0 %v5357
      %5908 = vmatpush1.bf16.msra.mxu0 %v5356
      %5909 = vmatprep.subr.bf16.mxu0 %v5363
      %5910 = vmatpush1.bf16.msra.mxu0 %v5362
      %5911 = vmatprep.subr.bf16.mxu0 %v5369
      %5912 = vmatpush1.bf16.msra.mxu0 %v5368
      %5913 = vmatprep.subr.bf16.mxu0 %v5375
      %5914 = vmatpush1.bf16.msra.mxu0 %v5374
      %5915 = vmatprep.subr.bf16.mxu0 %v5381
      %5916 = vmatpush1.bf16.msra.mxu0 %v5380
      %5917 = vmatprep.subr.bf16.mxu0 %v5387
      %5918 = vmatpush1.bf16.msra.mxu0 %v5386
      %5919 = vmatprep.subr.bf16.mxu0 %v5393
      %5920 = vmatpush1.bf16.msra.mxu0 %v5392
      %5921 = vmatprep.subr.bf16.mxu0 %v5399
      %5922 = vmatpush1.bf16.msra.mxu0 %v5398
      %5923 = vmatprep.subr.bf16.mxu0 %v5405
      %5924 = vmatpush1.bf16.msra.mxu0 %v5404
      %5925 = vmatprep.subr.bf16.mxu0 %v5411
      %5926 = vmatpush1.bf16.msra.mxu0 %v5410
      %5927 = vmatprep.subr.bf16.mxu0 %v5417
      %5928 = vmatpush1.bf16.msra.mxu0 %v5416
      %5929 = vmatprep.subr.bf16.mxu0 %v5423
      %5930 = vmatpush1.bf16.msra.mxu0 %v5422
      %5931 = vmatprep.subr.bf16.mxu0 %v5429
      %5932 = vmatpush1.bf16.msra.mxu0 %v5428
      %5933 = vmatprep.subr.bf16.mxu0 %v5435
      %5934 = vmatpush1.bf16.msra.mxu0 %v5434
      %5935 = vmatprep.subr.bf16.mxu0 %v5441
      %5936 = vmatpush1.bf16.msra.mxu0 %v5440
      %5937 = vmatprep.mubr.bf16.mxu0 %v5532
      %5938 = vmatmul.mubr.bf16.gmra.mrb[0].mxu0 %v5516
      %v5939 = vpop.f32.mrb[0].mxu0
      %v5940 = vadd.f32 %v5867, %v5939
      %v5941 = vpop.f32.mrb[0].mxu0
      %v5942 = vadd.f32 %v5869, %v5941
      %v5943 = vpop.f32.mrb[0].mxu0
      %v5944 = vadd.f32 %v5871, %v5943
      %v5945 = vpop.f32.mrb[0].mxu0
      %v5946 = vadd.f32 %v5873, %v5945
      %5947 = vmatprep.mubr.bf16.mxu0 %v5533
      %5948 = vmatmul.mubr.bf16.gmra.mrb[0].mxu0 %v5517
      %v5949 = vpop.f32.mrb[0].mxu0
      %v5950 = vadd.f32 %v5877, %v5949
      %v5951 = vpop.f32.mrb[0].mxu0
      %v5952 = vadd.f32 %v5879, %v5951
      %v5953 = vpop.f32.mrb[0].mxu0
      %v5954 = vadd.f32 %v5881, %v5953
      %v5955 = vpop.f32.mrb[0].mxu0
      %v5956 = vadd.f32 %v5883, %v5955
      %5957 = vmatprep.mubr.bf16.mxu0 %v5534
      %5958 = vmatmul.mubr.bf16.gmra.mrb[0].mxu0 %v5518
      %v5959 = vpop.f32.mrb[0].mxu0
      %v5960 = vadd.f32 %v5887, %v5959
      %v5961 = vpop.f32.mrb[0].mxu0
      %v5962 = vadd.f32 %v5889, %v5961
      %v5963 = vpop.f32.mrb[0].mxu0
      %v5964 = vadd.f32 %v5891, %v5963
      %v5965 = vpop.f32.mrb[0].mxu0
      %v5966 = vadd.f32 %v5893, %v5965
      %5967 = vmatprep.mubr.bf16.mxu0 %v5535
      %5968 = vmatmul.mubr.bf16.gmra.mrb[0].mxu0 %v5519
      %v5969 = vpop.f32.mrb[0].mxu0
      %v5970 = vadd.f32 %v5897, %v5969
      %v5971 = vpop.f32.mrb[0].mxu0
      %v5972 = vadd.f32 %v5899, %v5971
      %v5973 = vpop.f32.mrb[0].mxu0
      %v5974 = vadd.f32 %v5901, %v5973
      %v5975 = vpop.f32.mrb[0].mxu0
      %v5976 = vadd.f32 %v5903, %v5975
      %5977 = vdwg.mxu0
      %5978 = vmatprep.subr.bf16.mxu0 %v5161
      %5979 = vmatpush1.bf16.msra.mxu0 %v5160
      %5980 = vmatprep.subr.bf16.mxu0 %v5167
      %5981 = vmatpush1.bf16.msra.mxu0 %v5166
      %5982 = vmatprep.subr.bf16.mxu0 %v5173
      %5983 = vmatpush1.bf16.msra.mxu0 %v5172
      %5984 = vmatprep.subr.bf16.mxu0 %v5179
      %5985 = vmatpush1.bf16.msra.mxu0 %v5178
      %5986 = vmatprep.subr.bf16.mxu0 %v5185
      %5987 = vmatpush1.bf16.msra.mxu0 %v5184
      %5988 = vmatprep.subr.bf16.mxu0 %v5191
      %5989 = vmatpush1.bf16.msra.mxu0 %v5190
      %5990 = vmatprep.subr.bf16.mxu0 %v5197
      %5991 = vmatpush1.bf16.msra.mxu0 %v5196
      %5992 = vmatprep.subr.bf16.mxu0 %v5203
      %5993 = vmatpush1.bf16.msra.mxu0 %v5202
      %5994 = vmatprep.subr.bf16.mxu0 %v5209
      %5995 = vmatpush1.bf16.msra.mxu0 %v5208
      %5996 = vmatprep.subr.bf16.mxu0 %v5215
      %5997 = vmatpush1.bf16.msra.mxu0 %v5214
      %5998 = vmatprep.subr.bf16.mxu0 %v5221
      %5999 = vmatpush1.bf16.msra.mxu0 %v5220
      %6000 = vmatprep.subr.bf16.mxu0 %v5227
      %6001 = vmatpush1.bf16.msra.mxu0 %v5226
      %6002 = vmatprep.subr.bf16.mxu0 %v5233
      %6003 = vmatpush1.bf16.msra.mxu0 %v5232
      %6004 = vmatprep.subr.bf16.mxu0 %v5239
      %6005 = vmatpush1.bf16.msra.mxu0 %v5238
      %6006 = vmatprep.subr.bf16.mxu0 %v5245
      %6007 = vmatpush1.bf16.msra.mxu0 %v5244
      %6008 = vmatprep.subr.bf16.mxu0 %v5251
      %6009 = vmatpush1.bf16.msra.mxu0 %v5250
      %6010 = vmatprep.mubr.bf16.mxu0 %v5468
      %6011 = vmatmul.mubr.bf16.gmra.mrb[0].mxu0 %v5452
      %v6012 = vpop.f32.mrb[0].mxu0
      %v6013 = vadd.f32 0.0, %v6012
      %v6014 = vpop.f32.mrb[0].mxu0
      %v6015 = vadd.f32 0.0, %v6014
      %v6016 = vpop.f32.mrb[0].mxu0
      %v6017 = vadd.f32 0.0, %v6016
      %v6018 = vpop.f32.mrb[0].mxu0
      %v6019 = vadd.f32 0.0, %v6018
      %6020 = vmatprep.mubr.bf16.mxu0 %v5469
      %6021 = vmatmul.mubr.bf16.gmra.mrb[0].mxu0 %v5453
      %v6022 = vpop.f32.mrb[0].mxu0
      %v6023 = vadd.f32 0.0, %v6022
      %v6024 = vpop.f32.mrb[0].mxu0
      %v6025 = vadd.f32 0.0, %v6024
      %v6026 = vpop.f32.mrb[0].mxu0
      %v6027 = vadd.f32 0.0, %v6026
      %v6028 = vpop.f32.mrb[0].mxu0
      %v6029 = vadd.f32 0.0, %v6028
      %6030 = vmatprep.mubr.bf16.mxu0 %v5470
      %6031 = vmatmul.mubr.bf16.gmra.mrb[0].mxu0 %v5454
      %v6032 = vpop.f32.mrb[0].mxu0
      %v6033 = vadd.f32 0.0, %v6032
      %v6034 = vpop.f32.mrb[0].mxu0
      %v6035 = vadd.f32 0.0, %v6034
      %v6036 = vpop.f32.mrb[0].mxu0
      %v6037 = vadd.f32 0.0, %v6036
      %v6038 = vpop.f32.mrb[0].mxu0
      %v6039 = vadd.f32 0.0, %v6038
      %6040 = vmatprep.mubr.bf16.mxu0 %v5471
      %6041 = vmatmul.mubr.bf16.gmra.mrb[0].mxu0 %v5455
      %v6042 = vpop.f32.mrb[0].mxu0
      %v6043 = vadd.f32 0.0, %v6042
      %v6044 = vpop.f32.mrb[0].mxu0
      %v6045 = vadd.f32 0.0, %v6044
      %v6046 = vpop.f32.mrb[0].mxu0
      %v6047 = vadd.f32 0.0, %v6046
      %v6048 = vpop.f32.mrb[0].mxu0
      %v6049 = vadd.f32 0.0, %v6048
      %6050 = vdwg.mxu0
      %6051 = vmatprep.subr.bf16.mxu0 %v5257
      %6052 = vmatpush1.bf16.msra.mxu0 %v5256
      %6053 = vmatprep.subr.bf16.mxu0 %v5263
      %6054 = vmatpush1.bf16.msra.mxu0 %v5262
      %6055 = vmatprep.subr.bf16.mxu0 %v5269
      %6056 = vmatpush1.bf16.msra.mxu0 %v5268
      %6057 = vmatprep.subr.bf16.mxu0 %v5275
      %6058 = vmatpush1.bf16.msra.mxu0 %v5274
      %6059 = vmatprep.subr.bf16.mxu0 %v5281
      %6060 = vmatpush1.bf16.msra.mxu0 %v5280
      %6061 = vmatprep.subr.bf16.mxu0 %v5287
      %6062 = vmatpush1.bf16.msra.mxu0 %v5286
      %6063 = vmatprep.subr.bf16.mxu0 %v5293
      %6064 = vmatpush1.bf16.msra.mxu0 %v5292
      %6065 = vmatprep.subr.bf16.mxu0 %v5299
      %6066 = vmatpush1.bf16.msra.mxu0 %v5298
      %6067 = vmatprep.subr.bf16.mxu0 %v5305
      %6068 = vmatpush1.bf16.msra.mxu0 %v5304
      %6069 = vmatprep.subr.bf16.mxu0 %v5311
      %6070 = vmatpush1.bf16.msra.mxu0 %v5310
      %6071 = vmatprep.subr.bf16.mxu0 %v5317
      %6072 = vmatpush1.bf16.msra.mxu0 %v5316
      %6073 = vmatprep.subr.bf16.mxu0 %v5323
      %6074 = vmatpush1.bf16.msra.mxu0 %v5322
      %6075 = vmatprep.subr.bf16.mxu0 %v5329
      %6076 = vmatpush1.bf16.msra.mxu0 %v5328
      %6077 = vmatprep.subr.bf16.mxu0 %v5335
      %6078 = vmatpush1.bf16.msra.mxu0 %v5334
      %6079 = vmatprep.subr.bf16.mxu0 %v5341
      %6080 = vmatpush1.bf16.msra.mxu0 %v5340
      %6081 = vmatprep.subr.bf16.mxu0 %v5347
      %6082 = vmatpush1.bf16.msra.mxu0 %v5346
      %6083 = vmatprep.mubr.bf16.mxu0 %v5500
      %6084 = vmatmul.mubr.bf16.gmra.mrb[0].mxu0 %v5484
      %v6085 = vpop.f32.mrb[0].mxu0
      %v6086 = vadd.f32 %v6013, %v6085
      %v6087 = vpop.f32.mrb[0].mxu0
      %v6088 = vadd.f32 %v6015, %v6087
      %v6089 = vpop.f32.mrb[0].mxu0
      %v6090 = vadd.f32 %v6017, %v6089
      %v6091 = vpop.f32.mrb[0].mxu0
      %v6092 = vadd.f32 %v6019, %v6091
      %6093 = vmatprep.mubr.bf16.mxu0 %v5501
      %6094 = vmatmul.mubr.bf16.gmra.mrb[0].mxu0 %v5485
      %v6095 = vpop.f32.mrb[0].mxu0
      %v6096 = vadd.f32 %v6023, %v6095
      %v6097 = vpop.f32.mrb[0].mxu0
      %v6098 = vadd.f32 %v6025, %v6097
      %v6099 = vpop.f32.mrb[0].mxu0
      %v6100 = vadd.f32 %v6027, %v6099
      %v6101 = vpop.f32.mrb[0].mxu0
      %v6102 = vadd.f32 %v6029, %v6101
      %6103 = vmatprep.mubr.bf16.mxu0 %v5502
      %6104 = vmatmul.mubr.bf16.gmra.mrb[0].mxu0 %v5486
      %v6105 = vpop.f32.mrb[0].mxu0
      %v6106 = vadd.f32 %v6033, %v6105
      %v6107 = vpop.f32.mrb[0].mxu0
      %v6108 = vadd.f32 %v6035, %v6107
      %v6109 = vpop.f32.mrb[0].mxu0
      %v6110 = vadd.f32 %v6037, %v6109
      %v6111 = vpop.f32.mrb[0].mxu0
      %v6112 = vadd.f32 %v6039, %v6111
      %6113 = vmatprep.mubr.bf16.mxu0 %v5503
      %6114 = vmatmul.mubr.bf16.gmra.mrb[0].mxu0 %v5487
      %v6115 = vpop.f32.mrb[0].mxu0
      %v6116 = vadd.f32 %v6043, %v6115
      %v6117 = vpop.f32.mrb[0].mxu0
      %v6118 = vadd.f32 %v6045, %v6117
      %v6119 = vpop.f32.mrb[0].mxu0
      %v6120 = vadd.f32 %v6047, %v6119
      %v6121 = vpop.f32.mrb[0].mxu0
      %v6122 = vadd.f32 %v6049, %v6121
      %6123 = vdwg.mxu0
      %6124 = vmatprep.subr.bf16.mxu0 %v5353
      %6125 = vmatpush1.bf16.msra.mxu0 %v5352
      %6126 = vmatprep.subr.bf16.mxu0 %v5359
      %6127 = vmatpush1.bf16.msra.mxu0 %v5358
      %6128 = vmatprep.subr.bf16.mxu0 %v5365
      %6129 = vmatpush1.bf16.msra.mxu0 %v5364
      %6130 = vmatprep.subr.bf16.mxu0 %v5371
      %6131 = vmatpush1.bf16.msra.mxu0 %v5370
      %6132 = vmatprep.subr.bf16.mxu0 %v5377
      %6133 = vmatpush1.bf16.msra.mxu0 %v5376
      %6134 = vmatprep.subr.bf16.mxu0 %v5383
      %6135 = vmatpush1.bf16.msra.mxu0 %v5382
      %6136 = vmatprep.subr.bf16.mxu0 %v5389
      %6137 = vmatpush1.bf16.msra.mxu0 %v5388
      %6138 = vmatprep.subr.bf16.mxu0 %v5395
      %6139 = vmatpush1.bf16.msra.mxu0 %v5394
      %6140 = vmatprep.subr.bf16.mxu0 %v5401
      %6141 = vmatpush1.bf16.msra.mxu0 %v5400
      %6142 = vmatprep.subr.bf16.mxu0 %v5407
      %6143 = vmatpush1.bf16.msra.mxu0 %v5406
      %6144 = vmatprep.subr.bf16.mxu0 %v5413
      %6145 = vmatpush1.bf16.msra.mxu0 %v5412
      %6146 = vmatprep.subr.bf16.mxu0 %v5419
      %6147 = vmatpush1.bf16.msra.mxu0 %v5418
      %6148 = vmatprep.subr.bf16.mxu0 %v5425
      %6149 = vmatpush1.bf16.msra.mxu0 %v5424
      %6150 = vmatprep.subr.bf16.mxu0 %v5431
      %6151 = vmatpush1.bf16.msra.mxu0 %v5430
      %6152 = vmatprep.subr.bf16.mxu0 %v5437
      %6153 = vmatpush1.bf16.msra.mxu0 %v5436
      %6154 = vmatprep.subr.bf16.mxu0 %v5443
      %6155 = vmatpush1.bf16.msra.mxu0 %v5442
      %6156 = vmatprep.mubr.bf16.mxu0 %v5532
      %6157 = vmatmul.mubr.bf16.gmra.mrb[0].mxu0 %v5516
      %v6158 = vpop.f32.mrb[0].mxu0
      %v6159 = vadd.f32 %v6086, %v6158
      %v6160 = vpop.f32.mrb[0].mxu0
      %v6161 = vadd.f32 %v6088, %v6160
      %v6162 = vpop.f32.mrb[0].mxu0
      %v6163 = vadd.f32 %v6090, %v6162
      %v6164 = vpop.f32.mrb[0].mxu0
      %v6165 = vadd.f32 %v6092, %v6164
      %6166 = vmatprep.mubr.bf16.mxu0 %v5533
      %6167 = vmatmul.mubr.bf16.gmra.mrb[0].mxu0 %v5517
      %v6168 = vpop.f32.mrb[0].mxu0
      %v6169 = vadd.f32 %v6096, %v6168
      %v6170 = vpop.f32.mrb[0].mxu0
      %v6171 = vadd.f32 %v6098, %v6170
      %v6172 = vpop.f32.mrb[0].mxu0
      %v6173 = vadd.f32 %v6100, %v6172
      %v6174 = vpop.f32.mrb[0].mxu0
      %v6175 = vadd.f32 %v6102, %v6174
      %6176 = vmatprep.mubr.bf16.mxu0 %v5534
      %6177 = vmatmul.mubr.bf16.gmra.mrb[0].mxu0 %v5518
      %v6178 = vpop.f32.mrb[0].mxu0
      %v6179 = vadd.f32 %v6106, %v6178
      %v6180 = vpop.f32.mrb[0].mxu0
      %v6181 = vadd.f32 %v6108, %v6180
      %v6182 = vpop.f32.mrb[0].mxu0
      %v6183 = vadd.f32 %v6110, %v6182
      %v6184 = vpop.f32.mrb[0].mxu0
      %v6185 = vadd.f32 %v6112, %v6184
      %6186 = vmatprep.mubr.bf16.mxu0 %v5535
      %6187 = vmatmul.mubr.bf16.gmra.mrb[0].mxu0 %v5519
      %v6188 = vpop.f32.mrb[0].mxu0
      %v6189 = vadd.f32 %v6116, %v6188
      %v6190 = vpop.f32.mrb[0].mxu0
      %v6191 = vadd.f32 %v6118, %v6190
      %v6192 = vpop.f32.mrb[0].mxu0
      %v6193 = vadd.f32 %v6120, %v6192
      %v6194 = vpop.f32.mrb[0].mxu0
      %v6195 = vadd.f32 %v6122, %v6194
      %6196 = vdwg.mxu0
      %vm6197 = vcmp.gt.f32.partialorder %v5721, 0.0
      %vm6198 = vcmp.gt.f32.partialorder %v5723, 0.0
      %vm6199 = vcmp.gt.f32.partialorder %v5940, 0.0
      %vm6200 = vcmp.gt.f32.partialorder %v5942, 0.0
      %vm6201 = vcmp.gt.f32.partialorder %v6159, 0.0
      %vm6202 = vcmp.gt.f32.partialorder %v6161, 0.0
      %vm6203 = vcmp.gt.f32.partialorder %v5725, 0.0
      %vm6204 = vcmp.gt.f32.partialorder %v5727, 0.0
      %vm6205 = vcmp.gt.f32.partialorder %v5944, 0.0
      %vm6206 = vcmp.gt.f32.partialorder %v5946, 0.0
      %vm6207 = vcmp.gt.f32.partialorder %v6163, 0.0
      %vm6208 = vcmp.gt.f32.partialorder %v6165, 0.0
      %vm6209 = vcmp.gt.f32.partialorder %v5731, 0.0
      %vm6210 = vcmp.gt.f32.partialorder %v5733, 0.0
      %vm6211 = vcmp.gt.f32.partialorder %v5950, 0.0
      %vm6212 = vcmp.gt.f32.partialorder %v5952, 0.0
      %vm6213 = vcmp.gt.f32.partialorder %v6169, 0.0
      %vm6214 = vcmp.gt.f32.partialorder %v6171, 0.0
      %vm6215 = vcmp.gt.f32.partialorder %v5735, 0.0
      %vm6216 = vcmp.gt.f32.partialorder %v5737, 0.0
      %vm6217 = vcmp.gt.f32.partialorder %v5954, 0.0
      %vm6218 = vcmp.gt.f32.partialorder %v5956, 0.0
      %vm6219 = vcmp.gt.f32.partialorder %v6173, 0.0
      %vm6220 = vcmp.gt.f32.partialorder %v6175, 0.0
      %vm6221 = vcmp.gt.f32.partialorder %v5741, 0.0
      %vm6222 = vcmp.gt.f32.partialorder %v5743, 0.0
      %vm6223 = vcmp.gt.f32.partialorder %v5960, 0.0
      %vm6224 = vcmp.gt.f32.partialorder %v5962, 0.0
      %vm6225 = vcmp.gt.f32.partialorder %v6179, 0.0
      %vm6226 = vcmp.gt.f32.partialorder %v6181, 0.0
      %vm6227 = vcmp.gt.f32.partialorder %v5745, 0.0
      %vm6228 = vcmp.gt.f32.partialorder %v5747, 0.0
      %vm6229 = vcmp.gt.f32.partialorder %v5964, 0.0
      %vm6230 = vcmp.gt.f32.partialorder %v5966, 0.0
      %vm6231 = vcmp.gt.f32.partialorder %v6183, 0.0
      %vm6232 = vcmp.gt.f32.partialorder %v6185, 0.0
      %vm6233 = vcmp.gt.f32.partialorder %v5751, 0.0
      %vm6234 = vcmp.gt.f32.partialorder %v5753, 0.0
      %vm6235 = vcmp.gt.f32.partialorder %v5970, 0.0
      %vm6236 = vcmp.gt.f32.partialorder %v5972, 0.0
      %vm6237 = vcmp.gt.f32.partialorder %v6189, 0.0
      %vm6238 = vcmp.gt.f32.partialorder %v6191, 0.0
      %vm6239 = vcmp.gt.f32.partialorder %v5755, 0.0
      %vm6240 = vcmp.gt.f32.partialorder %v5757, 0.0
      %vm6241 = vcmp.gt.f32.partialorder %v5974, 0.0
      %vm6242 = vcmp.gt.f32.partialorder %v5976, 0.0
      %vm6243 = vcmp.gt.f32.partialorder %v6193, 0.0
      %vm6244 = vcmp.gt.f32.partialorder %v6195, 0.0
      %v6245 = vsel %vm6197, 1, 0
      %v6246 = vsel %vm6198, 1, 0
      %v6247 = vsel %vm6199, 1, 0
      %v6248 = vsel %vm6200, 1, 0
      %v6249 = vsel %vm6201, 1, 0
      %v6250 = vsel %vm6202, 1, 0
      %v6251 = vsel %vm6203, 1, 0
      %v6252 = vsel %vm6204, 1, 0
      %v6253 = vsel %vm6205, 1, 0
      %v6254 = vsel %vm6206, 1, 0
      %v6255 = vsel %vm6207, 1, 0
      %v6256 = vsel %vm6208, 1, 0
      %v6257 = vsel %vm6209, 1, 0
      %v6258 = vsel %vm6210, 1, 0
      %v6259 = vsel %vm6211, 1, 0
      %v6260 = vsel %vm6212, 1, 0
      %v6261 = vsel %vm6213, 1, 0
      %v6262 = vsel %vm6214, 1, 0
      %v6263 = vsel %vm6215, 1, 0
      %v6264 = vsel %vm6216, 1, 0
      %v6265 = vsel %vm6217, 1, 0
      %v6266 = vsel %vm6218, 1, 0
      %v6267 = vsel %vm6219, 1, 0
      %v6268 = vsel %vm6220, 1, 0
      %v6269 = vsel %vm6221, 1, 0
      %v6270 = vsel %vm6222, 1, 0
      %v6271 = vsel %vm6223, 1, 0
      %v6272 = vsel %vm6224, 1, 0
      %v6273 = vsel %vm6225, 1, 0
      %v6274 = vsel %vm6226, 1, 0
      %v6275 = vsel %vm6227, 1, 0
      %v6276 = vsel %vm6228, 1, 0
      %v6277 = vsel %vm6229, 1, 0
      %v6278 = vsel %vm6230, 1, 0
      %v6279 = vsel %vm6231, 1, 0
      %v6280 = vsel %vm6232, 1, 0
      %v6281 = vsel %vm6233, 1, 0
      %v6282 = vsel %vm6234, 1, 0
      %v6283 = vsel %vm6235, 1, 0
      %v6284 = vsel %vm6236, 1, 0
      %v6285 = vsel %vm6237, 1, 0
      %v6286 = vsel %vm6238, 1, 0
      %v6287 = vsel %vm6239, 1, 0
      %v6288 = vsel %vm6240, 1, 0
      %v6289 = vsel %vm6241, 1, 0
      %v6290 = vsel %vm6242, 1, 0
      %v6291 = vsel %vm6243, 1, 0
      %v6292 = vsel %vm6244, 1, 0
      %v6293 = vcvt.s32.f32 %v6245
      %v6294 = vcvt.s32.f32 %v6246
      %v6295 = vcvt.s32.f32 %v6247
      %v6296 = vcvt.s32.f32 %v6248
      %v6297 = vcvt.s32.f32 %v6249
      %v6298 = vcvt.s32.f32 %v6250
      %v6299 = vcvt.s32.f32 %v6251
      %v6300 = vcvt.s32.f32 %v6252
      %v6301 = vcvt.s32.f32 %v6253
      %v6302 = vcvt.s32.f32 %v6254
      %v6303 = vcvt.s32.f32 %v6255
      %v6304 = vcvt.s32.f32 %v6256
      %v6305 = vcvt.s32.f32 %v6257
      %v6306 = vcvt.s32.f32 %v6258
      %v6307 = vcvt.s32.f32 %v6259
      %v6308 = vcvt.s32.f32 %v6260
      %v6309 = vcvt.s32.f32 %v6261
      %v6310 = vcvt.s32.f32 %v6262
      %v6311 = vcvt.s32.f32 %v6263
      %v6312 = vcvt.s32.f32 %v6264
      %v6313 = vcvt.s32.f32 %v6265
      %v6314 = vcvt.s32.f32 %v6266
      %v6315 = vcvt.s32.f32 %v6267
      %v6316 = vcvt.s32.f32 %v6268
      %v6317 = vcvt.s32.f32 %v6269
      %v6318 = vcvt.s32.f32 %v6270
      %v6319 = vcvt.s32.f32 %v6271
      %v6320 = vcvt.s32.f32 %v6272
      %v6321 = vcvt.s32.f32 %v6273
      %v6322 = vcvt.s32.f32 %v6274
      %v6323 = vcvt.s32.f32 %v6275
      %v6324 = vcvt.s32.f32 %v6276
      %v6325 = vcvt.s32.f32 %v6277
      %v6326 = vcvt.s32.f32 %v6278
      %v6327 = vcvt.s32.f32 %v6279
      %v6328 = vcvt.s32.f32 %v6280
      %v6329 = vcvt.s32.f32 %v6281
      %v6330 = vcvt.s32.f32 %v6282
      %v6331 = vcvt.s32.f32 %v6283
      %v6332 = vcvt.s32.f32 %v6284
      %v6333 = vcvt.s32.f32 %v6285
      %v6334 = vcvt.s32.f32 %v6286
      %v6335 = vcvt.s32.f32 %v6287
      %v6336 = vcvt.s32.f32 %v6288
      %v6337 = vcvt.s32.f32 %v6289
      %v6338 = vcvt.s32.f32 %v6290
      %v6339 = vcvt.s32.f32 %v6291
      %v6340 = vcvt.s32.f32 %v6292
      %6341 = vst [vmem:[%s116] sm:$0xff] %v6293
      %6342 = vst [vmem:[%s116 + $0x8] sm:$0xff] %v6294
      %6343 = vst [vmem:[%s116 + $0x10] sm:$0xff] %v6295
      %6344 = vst [vmem:[%s116 + $0x18] sm:$0xff] %v6296
      %6345 = vst [vmem:[%s116 + $0x20] sm:$0xff] %v6297
      %6346 = vst [vmem:[%s116 + $0x28] sm:$0xff] %v6298
      %6347 = vst [vmem:[%s116 + $0x30] sm:$0xff] %v6299
      %6348 = vst [vmem:[%s116 + $0x38] sm:$0xff] %v6300
      %6349 = vst [vmem:[%s116 + $0x40] sm:$0xff] %v6301
      %6350 = vst [vmem:[%s116 + $0x48] sm:$0xff] %v6302
      %6351 = vst [vmem:[%s116 + $0x50] sm:$0xff] %v6303
      %6352 = vst [vmem:[%s116 + $0x58] sm:$0xff] %v6304
      %6353 = vst [vmem:[%s116 + $0x60] sm:$0xff] %v6305
      %6354 = vst [vmem:[%s116 + $0x68] sm:$0xff] %v6306
      %6355 = vst [vmem:[%s116 + $0x70] sm:$0xff] %v6307
      %6356 = vst [vmem:[%s116 + $0x78] sm:$0xff] %v6308
      %6357 = vst [vmem:[%s116 + $0x80] sm:$0xff] %v6309
      %6358 = vst [vmem:[%s116 + $0x88] sm:$0xff] %v6310
      %6359 = vst [vmem:[%s116 + $0x90] sm:$0xff] %v6311
      %6360 = vst [vmem:[%s116 + $0x98] sm:$0xff] %v6312
      %6361 = vst [vmem:[%s116 + $0xa0] sm:$0xff] %v6313
      %6362 = vst [vmem:[%s116 + $0xa8] sm:$0xff] %v6314
      %6363 = vst [vmem:[%s116 + $0xb0] sm:$0xff] %v6315
      %6364 = vst [vmem:[%s116 + $0xb8] sm:$0xff] %v6316
      %6365 = vst [vmem:[%s116 + $0xc0] sm:$0xff] %v6317
      %6366 = vst [vmem:[%s116 + $0xc8] sm:$0xff] %v6318
      %6367 = vst [vmem:[%s116 + $0xd0] sm:$0xff] %v6319
      %6368 = vst [vmem:[%s116 + $0xd8] sm:$0xff] %v6320
      %6369 = vst [vmem:[%s116 + $0xe0] sm:$0xff] %v6321
      %6370 = vst [vmem:[%s116 + $0xe8] sm:$0xff] %v6322
      %6371 = vst [vmem:[%s116 + $0xf0] sm:$0xff] %v6323
      %6372 = vst [vmem:[%s116 + $0xf8] sm:$0xff] %v6324
      %6373 = vst [vmem:[%s116 + $0x100] sm:$0xff] %v6325
      %6374 = vst [vmem:[%s116 + $0x108] sm:$0xff] %v6326
      %6375 = vst [vmem:[%s116 + $0x110] sm:$0xff] %v6327
      %6376 = vst [vmem:[%s116 + $0x118] sm:$0xff] %v6328
      %6377 = vst [vmem:[%s116 + $0x120] sm:$0xff] %v6329
      %6378 = vst [vmem:[%s116 + $0x128] sm:$0xff] %v6330
      %6379 = vst [vmem:[%s116 + $0x130] sm:$0xff] %v6331
      %6380 = vst [vmem:[%s116 + $0x138] sm:$0xff] %v6332
      %6381 = vst [vmem:[%s116 + $0x140] sm:$0xff] %v6333
      %6382 = vst [vmem:[%s116 + $0x148] sm:$0xff] %v6334
      %6383 = vst [vmem:[%s116 + $0x150] sm:$0xff] %v6335
      %6384 = vst [vmem:[%s116 + $0x158] sm:$0xff] %v6336
      %6385 = vst [vmem:[%s116 + $0x160] sm:$0xff] %v6337
      %6386 = vst [vmem:[%s116 + $0x168] sm:$0xff] %v6338
      %6387 = vst [vmem:[%s116 + $0x170] sm:$0xff] %v6339
      %6388 = vst [vmem:[%s116 + $0x178] sm:$0xff] %v6340
      %p6389 = scmp.lt.s32.totalorder %s12, 1
      %s6390 = scalar_select %p6389, %s12, 1
      %s6391 = smul.addr %s6390, 48
      %s6392 = smul.addr %s6391, 8
      %s6393 = scalar_lea.vmem %s1, %s6392
      // Predicated region
      $region25: #{rot_proj_forward.1} parent=23 // pred_check
        %p6394 = pneg %p56
      $region26: #{rot_proj_forward.1} parent=23 // pred_check_branch
        %6396 = sbr.rel (%p6394) target = $region28
      $region27: #{rot_proj_forward.1} parent=23 // pred_region
        _
      $region28: #{rot_proj_forward.1} parent=23 // pred_fallthru
        _
    $region24: #{rot_proj_forward.1} parent=5 // pred_fallthru
      _
    %p6397 = scmp.le.s32.totalorder 2, %s7
    // Predicated region
    $region29: #{rot_proj_forward.1} parent=5 // pred_check
      %p6398 = pneg %p6397
    $region30: #{rot_proj_forward.1} parent=5 // pred_check_branch
      %6400 = sbr.rel (%p6398) target = $region32
    $region31: #{rot_proj_forward.1} parent=5 // pred_region
      %s6401 = ssub.s32 %s7, 2
      // Predicated region
      $region33: #{rot_proj_forward.1} parent=31 // pred_check
        %p6402 = pneg %p62
      $region34: #{rot_proj_forward.1} parent=31 // pred_check_branch
        %6404 = sbr.rel (%p6402) target = $region36
      $region35: #{rot_proj_forward.1} parent=31 // pred_region
        %p6405 = scmp.lt.s32.totalorder %s13, 1
        %s6406 = scalar_select %p6405, %s13, 1
        %s6407 = smul.addr %s6406, 48
        %s6408 = smul.addr %s6407, 8
        %s6409 = scalar_lea.vmem %s1, %s6408
      $region36: #{rot_proj_forward.1} parent=31 // pred_fallthru
        _
    $region32: #{rot_proj_forward.1} parent=5 // pred_fallthru
      _
  $region6: #{rot_proj_forward.1} parent=0 // loop_footer
    %s11 = sadd.s32 1, %s7
  $region7: #{rot_proj_forward.1} parent=0 // loop_footer_branch
    %6 = sbr.rel target = $region3
  $region8: #{rot_proj_forward.1} parent=0 // loop_exit
    _

</llo_original>
